<compile_context>
chip_gen: v7x
topology: tpu7x:2x2x1
jax: 0.10.0
libtpu: 0.0.40
codegen_flags: <defaults>
</compile_context>

<pallas_src>
import numpy as np

import jax
import jax.numpy as jnp
from jax import lax
from jax.experimental import pallas as pl
from jax.experimental.pallas import tpu as pltpu


_COMPILER_PARAMS = pltpu.CompilerParams(
    dimension_semantics=("arbitrary",),
    vmem_limit_bytes=32 * 1024 * 1024,
)

_ALIGN = 16  # sublane alignment for bf16 row offsets / padded row counts


def _round_up(x, m):
    return (x + m - 1) // m * m


# ----------------------------- config parsing -------------------------------

def _parse_config(config):
    """Parse a Learner config into fused-kernel metadata.

    Supported pattern:  (conv2d [relu] [bn] [relu])+  flatten  linear.
    """
    blocks = []
    i, n = 0, len(config)
    while i < n and config[i][0] == 'conv2d':
        co, ci, kh, kw, stride, pad = config[i][1][:6]
        i += 1
        relu_before = do_bn = relu_after = False
        if i < n and config[i][0] == 'relu':
            relu_before = True
            i += 1
        if i < n and config[i][0] == 'bn':
            do_bn = True
            i += 1
            if i < n and config[i][0] == 'relu':
                relu_after = True
                i += 1
        blocks.append(dict(co=co, ci=ci, kh=kh, kw=kw, stride=stride, pad=pad,
                           relu_before=relu_before, do_bn=do_bn,
                           relu_after=relu_after))
    ok = (blocks and i + 2 == n and config[i][0] == 'flatten'
          and config[i + 1][0] == 'linear')
    if not ok:
        # TODO(synk): convt2d / pooling / upsample / sigmoid / tanh /
        # leakyrelu / reshape and free-standing bn/relu/linear layouts are not
        # covered by the fused kernel.
        raise NotImplementedError("unsupported Learner config for fused kernel")
    n_out, n_in = config[i + 1][1]
    return blocks, n_out, n_in


def _conv_gather_matrix(n, ih, iw, kh, kw, stride, pad, oh, ow, m_pad):
    """0/1 row-selection matrix turning im2col into an MXU matmul.

    Row t*m_pad + (b*oh*ow + i*ow + j) selects input row
    (b, i*stride + t_kh - pad, j*stride + t_kw - pad) of the (n*ih*iw, Ci)
    activation; out-of-image taps (padding) and the rows padding m_out up to
    m_pad are all-zero.  Exact even in bf16 (entries are 0/1).
    """
    g = np.zeros((kh * kw * m_pad, n * ih * iw), dtype=np.float32)
    for t_kh in range(kh):
        for t_kw in range(kw):
            t = t_kh * kw + t_kw
            for b in range(n):
                for i in range(oh):
                    hi = i * stride + t_kh - pad
                    if hi < 0 or hi >= ih:
                        continue
                    for j in range(ow):
                        wi = j * stride + t_kw - pad
                        if wi < 0 or wi >= iw:
                            continue
                        g[t * m_pad + b * oh * ow + i * ow + j,
                          b * ih * iw + hi * iw + wi] = 1.0
    return g


# ------------------------------ Learner port --------------------------------

def init_learner_vars(config, key):
    """Mirrors Learner.__init__ parameter shapes (kaiming-normal, zeros, ones)."""
    vars_, vars_bn = [], []
    for name, param in config:
        if name == 'conv2d':
            co, ci, kh, kw = param[:4]
            key, sk = jax.random.split(key)
            fan_in = ci * kh * kw
            w = jax.random.normal(sk, (co, ci, kh, kw), jnp.float32) * jnp.sqrt(
                2.0 / fan_in)
            vars_.append(w)
            vars_.append(jnp.zeros((co,), jnp.float32))
        elif name == 'linear':
            out_f, in_f = param
            key, sk = jax.random.split(key)
            w = jax.random.normal(sk, (out_f, in_f), jnp.float32) * jnp.sqrt(
                2.0 / in_f)
            vars_.append(w)
            vars_.append(jnp.zeros((out_f,), jnp.float32))
        elif name == 'bn':
            c = param[0]
            vars_.append(jnp.ones((c,), jnp.float32))   # gamma
            vars_.append(jnp.zeros((c,), jnp.float32))  # beta
            vars_bn.extend([jnp.zeros((c,), jnp.float32),
                            jnp.ones((c,), jnp.float32)])
        elif name in ['tanh', 'relu', 'upsample', 'avg_pool2d', 'max_pool2d',
                      'flatten', 'reshape', 'leakyrelu', 'sigmoid']:
            continue
        else:
            raise NotImplementedError(name)
    return vars_, vars_bn


def learner_forward(config, x, vars_, vars_bn, bn_training=True):
    """Config-driven forward, same semantics as Learner.forward (training BN).

    The whole network runs as ONE Pallas kernel; only the layer-1 im2col and
    the parameter repacking (a handful of tiny ops) happen in the wrapper.
    """
    if not bn_training:
        # TODO(synk): eval-mode BN (running statistics) not implemented; the
        # running stats in vars_bn are also never updated (PyTorch mutates
        # them in-place as a training-mode side effect).
        raise NotImplementedError("bn_training=False not supported")

    blocks, n_out, n_in = _parse_config(config)
    N, ci0, h0, w0 = x.shape
    assert ci0 == blocks[0]['ci']

    # ---- static shape walk --------------------------------------------------
    h, w_sp = h0, w0
    for li, blk in enumerate(blocks):
        if li > 0:
            assert blk['ci'] == blocks[li - 1]['co']
        blk['ih'], blk['iw'] = h, w_sp
        blk['oh'] = (h + 2 * blk['pad'] - blk['kh']) // blk['stride'] + 1
        blk['ow'] = (w_sp + 2 * blk['pad'] - blk['kw']) // blk['stride'] + 1
        blk['m_in'] = N * h * w_sp
        blk['m_out'] = N * blk['oh'] * blk['ow']
        blk['m_pad'] = _round_up(blk['m_out'], _ALIGN)
        h, w_sp = blk['oh'], blk['ow']
    if (h, w_sp) != (1, 1):
        # TODO(synk): general flatten (spatial > 1x1) would need an NHWC->NCHW
        # regrouping of the fused activation rows; not needed for this config.
        raise NotImplementedError("flatten with non-1x1 spatial extent")
    assert blocks[-1]['co'] == n_in

    # ---- constant gather matrices (shape/config only; constants under jit) --
    g_off = 0
    g_parts = []
    for blk in blocks[1:]:
        g = _conv_gather_matrix(N, blk['ih'], blk['iw'], blk['kh'], blk['kw'],
                                blk['stride'], blk['pad'], blk['oh'], blk['ow'],
                                blk['m_pad'])
        blk['g_off'] = g_off
        g_off += g.shape[0]
        g_parts.append(g)
    if g_parts:
        g_cols = max(g.shape[1] for g in g_parts)
        g_np = np.zeros((g_off, g_cols), dtype=np.float32)
        r = 0
        for g in g_parts:
            g_np[r:r + g.shape[0], :g.shape[1]] = g
            r += g.shape[0]
    else:
        g_np = np.zeros((_ALIGN, 128), dtype=np.float32)
    g_all = jnp.asarray(g_np, dtype=jnp.bfloat16)

    # ---- pack weights / epilogue params (runtime ops on vars_, all tiny) ----
    wmax = max(blk['co'] for blk in blocks)
    pw = max(wmax, n_out)
    w_parts, par_rows = [], []
    idx = bn_idx = 0
    w_off = 0
    for li, blk in enumerate(blocks):
        w, b = vars_[idx], vars_[idx + 1]
        idx += 2
        k = blk['kh'] * blk['kw'] * blk['ci']
        kp = _round_up(k, _ALIGN)
        # torch (Co,Ci,Kh,Kw) -> rows ordered (kh, kw, ci), cols = Co
        w2 = jnp.transpose(w, (2, 3, 1, 0)).reshape(k, blk['co'])
        w_parts.append(jnp.pad(w2, ((0, kp - k), (0, wmax - blk['co']))))
        blk['w_off'] = w_off
        w_off += kp
        if blk['do_bn']:
            gamma, beta = vars_[idx], vars_[idx + 1]
            idx += 2
            bn_idx += 2
        else:
            gamma = jnp.ones((blk['co'],), jnp.float32)
            beta = jnp.zeros((blk['co'],), jnp.float32)
        blk['par_row'] = 3 * li
        par_rows += [jnp.pad(b.astype(jnp.float32), (0, pw - blk['co'])),
                     jnp.pad(gamma.astype(jnp.float32), (0, pw - blk['co'])),
                     jnp.pad(beta.astype(jnp.float32), (0, pw - blk['co']))]
    w_fc, b_fc = vars_[idx], vars_[idx + 1]
    idx += 2
    lin_par_row = 3 * len(blocks)
    par_rows.append(jnp.pad(b_fc.astype(jnp.float32), (0, pw - n_out)))
    assert idx == len(vars_)
    assert bn_idx == len(vars_bn)
    w_all = jnp.concatenate(w_parts, axis=0).astype(jnp.bfloat16)
    w_fc_b = w_fc.astype(jnp.bfloat16)
    params = jnp.stack(par_rows, axis=0)

    # ---- layer-1 im2col (kernel input; the image is read from HBM anyway) ---
    b0 = blocks[0]
    k0 = b0['kh'] * b0['kw'] * b0['ci']
    x_nhwc = jnp.transpose(x, (0, 2, 3, 1)).astype(jnp.float32)
    if b0['pad'] > 0:
        p_ = b0['pad']
        x_nhwc = jnp.pad(x_nhwc, ((0, 0), (p_, p_), (p_, p_), (0, 0)))
    cols = []
    for kh in range(b0['kh']):
        h_stop = kh + (b0['oh'] - 1) * b0['stride'] + 1
        for kw in range(b0['kw']):
            w_stop = kw + (b0['ow'] - 1) * b0['stride'] + 1
            cols.append(x_nhwc[:, kh:h_stop:b0['stride'],
                               kw:w_stop:b0['stride'], :])
    p1 = jnp.concatenate(cols, axis=-1).reshape(b0['m_out'], k0)
    p1 = p1.astype(jnp.bfloat16)

    # ---- the single fused kernel --------------------------------------------
    def fused_kernel(p1_ref, g_ref, w_ref, wfc_ref, par_ref, o_ref):

        def epilogue(y, blk):
            co, r, m = blk['co'], blk['par_row'], blk['m_out']
            y = y + par_ref[r:r + 1, 0:co]                       # conv bias
            if blk['relu_before']:
                y = jnp.maximum(y, 0.0)
            if blk['do_bn']:                                     # training BN,
                inv_m = 1.0 / m                                  # one-pass stats
                s = jnp.sum(y, axis=0, keepdims=True)
                ss = jnp.sum(y * y, axis=0, keepdims=True)
                mean = s * inv_m
                var = jnp.maximum(ss * inv_m - mean * mean, 0.0)
                y = (y - mean) * lax.rsqrt(var + 1e-5)
                y = y * par_ref[r + 1:r + 2, 0:co] + par_ref[r + 2:r + 3, 0:co]
            if blk['relu_after']:
                y = jnp.maximum(y, 0.0)
            return y

        # conv block 0: patches are a kernel input -> single GEMM (MXU).
        y = jnp.dot(p1_ref[...], w_ref[0:k0, 0:blocks[0]['co']],
                    preferred_element_type=jnp.float32)
        y = epilogue(y, blocks[0])

        # conv blocks 1..: in-kernel im2col as gather-matmul + per-tap GEMMs.
        for blk in blocks[1:]:
            taps = blk['kh'] * blk['kw']
            ci, co, mp = blk['ci'], blk['co'], blk['m_pad']
            xb = y.astype(jnp.bfloat16)
            g = g_ref[blk['g_off']:blk['g_off'] + taps * mp, 0:blk['m_in']]
            patches = jnp.dot(g, xb, preferred_element_type=jnp.float32)
            pb = patches.astype(jnp.bfloat16)    # exact: rows are bf16 values
            acc = jnp.zeros((mp, co), jnp.float32)
            for t in range(taps):                # short static loop, unrolled
                pt = pb[t * mp:(t + 1) * mp, :]
                wt = w_ref[blk['w_off'] + t * ci:
                           blk['w_off'] + (t + 1) * ci, 0:co]
                acc = acc + jnp.dot(pt, wt, preferred_element_type=jnp.float32)
            y = epilogue(acc[0:blk['m_out'], :], blk)

        # flatten (1x1 spatial -> rows already (N, C) in PyTorch order) +
        # linear: contract against the (out, in) weight directly (trans_b).
        logits = lax.dot_general(y.astype(jnp.bfloat16), wfc_ref[...],
                                 dimension_numbers=(((1,), (1,)), ((), ())),
                                 preferred_element_type=jnp.float32)
        o_ref[...] = logits + par_ref[lin_par_row:lin_par_row + 1, 0:n_out]

    return pl.pallas_call(
        fused_kernel,
        out_shape=jax.ShapeDtypeStruct((N, n_out), jnp.float32),
        grid=(1,),
        in_specs=[
            pl.BlockSpec(p1.shape, lambda i: (0, 0)),
            pl.BlockSpec(g_all.shape, lambda i: (0, 0)),
            pl.BlockSpec(w_all.shape, lambda i: (0, 0)),
            pl.BlockSpec(w_fc_b.shape, lambda i: (0, 0)),
            pl.BlockSpec(params.shape, lambda i: (0, 0)),
        ],
        out_specs=pl.BlockSpec((N, n_out), lambda i: (0, 0)),
        compiler_params=_COMPILER_PARAMS,
    )(p1, g_all, w_all, w_fc_b, params)


# --------------------------- pure-JAX reference ------------------------------

def reference_forward(config, x, vars_):
    """Reference mirroring Learner.forward (bn_training=True).

    Conv/linear operands are cast to bf16 with f32 accumulation, matching the
    kernel's (and XLA:TPU's default) MXU operand precision; bias/ReLU/BN stay
    in f32.
    """
    idx = 0
    for name, param in config:
        if name == 'conv2d':
            w, b = vars_[idx], vars_[idx + 1]
            x = lax.conv_general_dilated(
                x.astype(jnp.bfloat16), w.astype(jnp.bfloat16),
                (param[4], param[4]),
                [(param[5], param[5]), (param[5], param[5])],
                dimension_numbers=('NCHW', 'OIHW', 'NCHW'),
                preferred_element_type=jnp.float32)
            x = x + b.reshape(1, -1, 1, 1)
            idx += 2
        elif name == 'linear':
            w, b = vars_[idx], vars_[idx + 1]
            x = lax.dot_general(
                x.astype(jnp.bfloat16), w.astype(jnp.bfloat16),
                dimension_numbers=(((1,), (1,)), ((), ())),
                preferred_element_type=jnp.float32) + b
            idx += 2
        elif name == 'bn':
            w, b = vars_[idx], vars_[idx + 1]
            mean = jnp.mean(x, axis=(0, 2, 3), keepdims=True)
            var = jnp.mean((x - mean) ** 2, axis=(0, 2, 3), keepdims=True)
            x = (x - mean) * lax.rsqrt(var + 1e-5) * w.reshape(1, -1, 1, 1) \
                + b.reshape(1, -1, 1, 1)
            idx += 2
        elif name == 'relu':
            x = jnp.maximum(x, 0.0)
        elif name == 'flatten':
            x = x.reshape(x.shape[0], -1)
        else:
            raise NotImplementedError(name)
    return x


# ---------------------------------- main -------------------------------------

if __name__ == "__main__":
    # Canonical MAML-Omniglot style config (imgc=1, imgsz=28, 5-way).
    n_way, ch = 5, 32
    config = [
        ('conv2d', [ch, 1, 3, 3, 2, 0]), ('relu', [True]), ('bn', [ch]),
        ('conv2d', [ch, ch, 3, 3, 2, 0]), ('relu', [True]), ('bn', [ch]),
        ('conv2d', [ch, ch, 3, 3, 2, 0]), ('relu', [True]), ('bn', [ch]),
        ('conv2d', [ch, ch, 2, 2, 1, 0]), ('relu', [True]), ('bn', [ch]),
        ('flatten', []),
        ('linear', [n_way, ch]),
    ]

    key = jax.random.PRNGKey(0)
    key, xk = jax.random.split(key)
    x = jax.random.normal(xk, (4, 1, 28, 28), jnp.float32)   # [b, 1, 28, 28]
    vars_, vars_bn = init_learner_vars(config, key)

    fwd = jax.jit(lambda xx, vv: learner_forward(config, xx, vv, vars_bn,
                                                 bn_training=True))
    out = jax.block_until_ready(fwd(x, vars_))
    assert out.shape == (4, n_way), out.shape

    ref = jax.block_until_ready(reference_forward(config, x, vars_))
    assert jnp.allclose(out, ref, rtol=1e-2, atol=1e-2), (
        float(jnp.max(jnp.abs(out - ref))))

    print("KERNEL_OK")
</pallas_src>

<mosaic_0001>
module attributes {stable_mosaic.version = 11 : i64} {
  func.func @fused_kernel(%arg0: i32, %arg1: memref<676x9xbf16, #tpu.memory_space<vmem>>, %arg2: memref<1504x676xbf16, #tpu.memory_space<vmem>>, %arg3: memref<720x32xbf16, #tpu.memory_space<vmem>>, %arg4: memref<5x32xbf16, #tpu.memory_space<vmem>>, %arg5: memref<13x32xf32, #tpu.memory_space<vmem>>, %arg6: memref<4x5xf32, #tpu.memory_space<vmem>>) attributes {dimension_semantics = [#tpu.dimension_semantics<arbitrary>], iteration_bounds = array<i64: 1>, scalar_prefetch = 0 : i64, scratch_operands = 0 : i64, tpu.core_type = #tpu.core_type<tc>, window_params = [{pipeline_mode = #tpu.pipeline_mode<synchronous>, transform_indices = @transform_0, window_bounds = array<i64: 676, 9>}, {pipeline_mode = #tpu.pipeline_mode<synchronous>, transform_indices = @transform_1, window_bounds = array<i64: 1504, 676>}, {pipeline_mode = #tpu.pipeline_mode<synchronous>, transform_indices = @transform_2, window_bounds = array<i64: 720, 32>}, {pipeline_mode = #tpu.pipeline_mode<synchronous>, transform_indices = @transform_3, window_bounds = array<i64: 5, 32>}, {pipeline_mode = #tpu.pipeline_mode<synchronous>, transform_indices = @transform_4, window_bounds = array<i64: 13, 32>}, {pipeline_mode = #tpu.pipeline_mode<synchronous>, transform_indices = @transform_5, window_bounds = array<i64: 4, 5>}]} {
    %c0 = arith.constant 0 : index
    %c0_0 = arith.constant 0 : index
    %0 = vector.load %arg1[%c0, %c0_0] : memref<676x9xbf16, #tpu.memory_space<vmem>>, vector<676x9xbf16>
    %c0_1 = arith.constant 0 : index
    %c0_2 = arith.constant 0 : index
    %1 = vector.load %arg3[%c0_1, %c0_2] : memref<720x32xbf16, #tpu.memory_space<vmem>>, vector<9x32xbf16>
    %cst = arith.constant dense<0.000000e+00> : vector<676x32xf32>
    %2 = tpu.matmul %0, %1, %cst {dimension_numbers = #tpu.dot_dimension_numbers<[1], [0], [0], [1], [0, 0, 1, 1], [], []>} : vector<676x9xbf16>, vector<9x32xbf16>, vector<676x32xf32> -> vector<676x32xf32>
    %c0_3 = arith.constant 0 : index
    %c0_4 = arith.constant 0 : index
    %3 = vector.load %arg5[%c0_3, %c0_4] : memref<13x32xf32, #tpu.memory_space<vmem>>, vector<1x32xf32>
    %4 = vector.broadcast %3 : vector<1x32xf32> to vector<676x32xf32>
    %5 = arith.addf %2, %4 : vector<676x32xf32>
    %cst_5 = arith.constant 0.000000e+00 : f32
    %6 = vector.broadcast %cst_5 : f32 to vector<676x32xf32>
    %7 = arith.maximumf %5, %6 : vector<676x32xf32>
    %cst_6 = arith.constant dense<0.000000e+00> : vector<32xf32>
    %8 = vector.multi_reduction <add>, %7, %cst_6 [0] : vector<676x32xf32> to vector<32xf32>
    %9 = vector.shape_cast %8 : vector<32xf32> to vector<1x32xf32>
    %10 = arith.mulf %7, %7 : vector<676x32xf32>
    %cst_7 = arith.constant dense<0.000000e+00> : vector<32xf32>
    %11 = vector.multi_reduction <add>, %10, %cst_7 [0] : vector<676x32xf32> to vector<32xf32>
    %12 = vector.shape_cast %11 : vector<32xf32> to vector<1x32xf32>
    %cst_8 = arith.constant 1.479290e-03 : f32
    %13 = vector.broadcast %cst_8 : f32 to vector<1x32xf32>
    %14 = arith.mulf %9, %13 : vector<1x32xf32>
    %cst_9 = arith.constant 1.479290e-03 : f32
    %15 = vector.broadcast %cst_9 : f32 to vector<1x32xf32>
    %16 = arith.mulf %12, %15 : vector<1x32xf32>
    %17 = arith.mulf %14, %14 : vector<1x32xf32>
    %18 = arith.subf %16, %17 : vector<1x32xf32>
    %cst_10 = arith.constant 0.000000e+00 : f32
    %19 = vector.broadcast %cst_10 : f32 to vector<1x32xf32>
    %20 = arith.maximumf %18, %19 : vector<1x32xf32>
    %21 = vector.broadcast %14 : vector<1x32xf32> to vector<676x32xf32>
    %22 = arith.subf %7, %21 : vector<676x32xf32>
    %cst_11 = arith.constant 9.99999974E-6 : f32
    %23 = vector.broadcast %cst_11 : f32 to vector<1x32xf32>
    %24 = arith.addf %20, %23 : vector<1x32xf32>
    %25 = math.rsqrt %24 : vector<1x32xf32>
    %26 = vector.broadcast %25 : vector<1x32xf32> to vector<676x32xf32>
    %27 = arith.mulf %22, %26 : vector<676x32xf32>
    %c1 = arith.constant 1 : index
    %c0_12 = arith.constant 0 : index
    %28 = vector.load %arg5[%c1, %c0_12] : memref<13x32xf32, #tpu.memory_space<vmem>>, vector<1x32xf32>
    %29 = vector.broadcast %28 : vector<1x32xf32> to vector<676x32xf32>
    %30 = arith.mulf %27, %29 : vector<676x32xf32>
    %c2 = arith.constant 2 : index
    %c0_13 = arith.constant 0 : index
    %31 = vector.load %arg5[%c2, %c0_13] : memref<13x32xf32, #tpu.memory_space<vmem>>, vector<1x32xf32>
    %32 = vector.broadcast %31 : vector<1x32xf32> to vector<676x32xf32>
    %33 = arith.addf %30, %32 : vector<676x32xf32>
    %34 = arith.truncf %33 : vector<676x32xf32> to vector<676x32xbf16>
    %c0_14 = arith.constant 0 : index
    %c0_15 = arith.constant 0 : index
    %35 = vector.load %arg2[%c0_14, %c0_15] : memref<1504x676xbf16, #tpu.memory_space<vmem>>, vector<1296x676xbf16>
    %cst_16 = arith.constant dense<0.000000e+00> : vector<1296x32xf32>
    %36 = tpu.matmul %35, %34, %cst_16 {dimension_numbers = #tpu.dot_dimension_numbers<[1], [0], [0], [1], [0, 0, 1, 1], [], []>} : vector<1296x676xbf16>, vector<676x32xbf16>, vector<1296x32xf32> -> vector<1296x32xf32>
    %37 = arith.truncf %36 : vector<1296x32xf32> to vector<1296x32xbf16>
    %cst_17 = arith.constant 0.000000e+00 : f32
    %38 = vector.broadcast %cst_17 : f32 to vector<144x32xf32>
    %39 = vector.extract_strided_slice %37 {offsets = [0, 0], sizes = [144, 32], strides = [1, 1]} : vector<1296x32xbf16> to vector<144x32xbf16>
    %c16 = arith.constant 16 : index
    %c0_18 = arith.constant 0 : index
    %40 = vector.load %arg3[%c16, %c0_18] : memref<720x32xbf16, #tpu.memory_space<vmem>>, vector<32x32xbf16>
    %cst_19 = arith.constant dense<0.000000e+00> : vector<144x32xf32>
    %41 = tpu.matmul %39, %40, %cst_19 {dimension_numbers = #tpu.dot_dimension_numbers<[1], [0], [0], [1], [0, 0, 1, 1], [], []>} : vector<144x32xbf16>, vector<32x32xbf16>, vector<144x32xf32> -> vector<144x32xf32>
    %42 = arith.addf %38, %41 : vector<144x32xf32>
    %43 = vector.extract_strided_slice %37 {offsets = [144, 0], sizes = [144, 32], strides = [1, 1]} : vector<1296x32xbf16> to vector<144x32xbf16>
    %c48 = arith.constant 48 : index
    %c0_20 = arith.constant 0 : index
    %44 = vector.load %arg3[%c48, %c0_20] : memref<720x32xbf16, #tpu.memory_space<vmem>>, vector<32x32xbf16>
    %cst_21 = arith.constant dense<0.000000e+00> : vector<144x32xf32>
    %45 = tpu.matmul %43, %44, %cst_21 {dimension_numbers = #tpu.dot_dimension_numbers<[1], [0], [0], [1], [0, 0, 1, 1], [], []>} : vector<144x32xbf16>, vector<32x32xbf16>, vector<144x32xf32> -> vector<144x32xf32>
    %46 = arith.addf %42, %45 : vector<144x32xf32>
    %47 = vector.extract_strided_slice %37 {offsets = [288, 0], sizes = [144, 32], strides = [1, 1]} : vector<1296x32xbf16> to vector<144x32xbf16>
    %c80 = arith.constant 80 : index
    %c0_22 = arith.constant 0 : index
    %48 = vector.load %arg3[%c80, %c0_22] : memref<720x32xbf16, #tpu.memory_space<vmem>>, vector<32x32xbf16>
    %cst_23 = arith.constant dense<0.000000e+00> : vector<144x32xf32>
    %49 = tpu.matmul %47, %48, %cst_23 {dimension_numbers = #tpu.dot_dimension_numbers<[1], [0], [0], [1], [0, 0, 1, 1], [], []>} : vector<144x32xbf16>, vector<32x32xbf16>, vector<144x32xf32> -> vector<144x32xf32>
    %50 = arith.addf %46, %49 : vector<144x32xf32>
    %51 = vector.extract_strided_slice %37 {offsets = [432, 0], sizes = [144, 32], strides = [1, 1]} : vector<1296x32xbf16> to vector<144x32xbf16>
    %c112 = arith.constant 112 : index
    %c0_24 = arith.constant 0 : index
    %52 = vector.load %arg3[%c112, %c0_24] : memref<720x32xbf16, #tpu.memory_space<vmem>>, vector<32x32xbf16>
    %cst_25 = arith.constant dense<0.000000e+00> : vector<144x32xf32>
    %53 = tpu.matmul %51, %52, %cst_25 {dimension_numbers = #tpu.dot_dimension_numbers<[1], [0], [0], [1], [0, 0, 1, 1], [], []>} : vector<144x32xbf16>, vector<32x32xbf16>, vector<144x32xf32> -> vector<144x32xf32>
    %54 = arith.addf %50, %53 : vector<144x32xf32>
    %55 = vector.extract_strided_slice %37 {offsets = [576, 0], sizes = [144, 32], strides = [1, 1]} : vector<1296x32xbf16> to vector<144x32xbf16>
    %c144 = arith.constant 144 : index
    %c0_26 = arith.constant 0 : index
    %56 = vector.load %arg3[%c144, %c0_26] : memref<720x32xbf16, #tpu.memory_space<vmem>>, vector<32x32xbf16>
    %cst_27 = arith.constant dense<0.000000e+00> : vector<144x32xf32>
    %57 = tpu.matmul %55, %56, %cst_27 {dimension_numbers = #tpu.dot_dimension_numbers<[1], [0], [0], [1], [0, 0, 1, 1], [], []>} : vector<144x32xbf16>, vector<32x32xbf16>, vector<144x32xf32> -> vector<144x32xf32>
    %58 = arith.addf %54, %57 : vector<144x32xf32>
    %59 = vector.extract_strided_slice %37 {offsets = [720, 0], sizes = [144, 32], strides = [1, 1]} : vector<1296x32xbf16> to vector<144x32xbf16>
    %c176 = arith.constant 176 : index
    %c0_28 = arith.constant 0 : index
    %60 = vector.load %arg3[%c176, %c0_28] : memref<720x32xbf16, #tpu.memory_space<vmem>>, vector<32x32xbf16>
    %cst_29 = arith.constant dense<0.000000e+00> : vector<144x32xf32>
    %61 = tpu.matmul %59, %60, %cst_29 {dimension_numbers = #tpu.dot_dimension_numbers<[1], [0], [0], [1], [0, 0, 1, 1], [], []>} : vector<144x32xbf16>, vector<32x32xbf16>, vector<144x32xf32> -> vector<144x32xf32>
    %62 = arith.addf %58, %61 : vector<144x32xf32>
    %63 = vector.extract_strided_slice %37 {offsets = [864, 0], sizes = [144, 32], strides = [1, 1]} : vector<1296x32xbf16> to vector<144x32xbf16>
    %c208 = arith.constant 208 : index
    %c0_30 = arith.constant 0 : index
    %64 = vector.load %arg3[%c208, %c0_30] : memref<720x32xbf16, #tpu.memory_space<vmem>>, vector<32x32xbf16>
    %cst_31 = arith.constant dense<0.000000e+00> : vector<144x32xf32>
    %65 = tpu.matmul %63, %64, %cst_31 {dimension_numbers = #tpu.dot_dimension_numbers<[1], [0], [0], [1], [0, 0, 1, 1], [], []>} : vector<144x32xbf16>, vector<32x32xbf16>, vector<144x32xf32> -> vector<144x32xf32>
    %66 = arith.addf %62, %65 : vector<144x32xf32>
    %67 = vector.extract_strided_slice %37 {offsets = [1008, 0], sizes = [144, 32], strides = [1, 1]} : vector<1296x32xbf16> to vector<144x32xbf16>
    %c240 = arith.constant 240 : index
    %c0_32 = arith.constant 0 : index
    %68 = vector.load %arg3[%c240, %c0_32] : memref<720x32xbf16, #tpu.memory_space<vmem>>, vector<32x32xbf16>
    %cst_33 = arith.constant dense<0.000000e+00> : vector<144x32xf32>
    %69 = tpu.matmul %67, %68, %cst_33 {dimension_numbers = #tpu.dot_dimension_numbers<[1], [0], [0], [1], [0, 0, 1, 1], [], []>} : vector<144x32xbf16>, vector<32x32xbf16>, vector<144x32xf32> -> vector<144x32xf32>
    %70 = arith.addf %66, %69 : vector<144x32xf32>
    %71 = vector.extract_strided_slice %37 {offsets = [1152, 0], sizes = [144, 32], strides = [1, 1]} : vector<1296x32xbf16> to vector<144x32xbf16>
    %c272 = arith.constant 272 : index
    %c0_34 = arith.constant 0 : index
    %72 = vector.load %arg3[%c272, %c0_34] : memref<720x32xbf16, #tpu.memory_space<vmem>>, vector<32x32xbf16>
    %cst_35 = arith.constant dense<0.000000e+00> : vector<144x32xf32>
    %73 = tpu.matmul %71, %72, %cst_35 {dimension_numbers = #tpu.dot_dimension_numbers<[1], [0], [0], [1], [0, 0, 1, 1], [], []>} : vector<144x32xbf16>, vector<32x32xbf16>, vector<144x32xf32> -> vector<144x32xf32>
    %74 = arith.addf %70, %73 : vector<144x32xf32>
    %c3 = arith.constant 3 : index
    %c0_36 = arith.constant 0 : index
    %75 = vector.load %arg5[%c3, %c0_36] : memref<13x32xf32, #tpu.memory_space<vmem>>, vector<1x32xf32>
    %76 = vector.broadcast %75 : vector<1x32xf32> to vector<144x32xf32>
    %77 = arith.addf %74, %76 : vector<144x32xf32>
    %cst_37 = arith.constant 0.000000e+00 : f32
    %78 = vector.broadcast %cst_37 : f32 to vector<144x32xf32>
    %79 = arith.maximumf %77, %78 : vector<144x32xf32>
    %cst_38 = arith.constant dense<0.000000e+00> : vector<32xf32>
    %80 = vector.multi_reduction <add>, %79, %cst_38 [0] : vector<144x32xf32> to vector<32xf32>
    %81 = vector.shape_cast %80 : vector<32xf32> to vector<1x32xf32>
    %82 = arith.mulf %79, %79 : vector<144x32xf32>
    %cst_39 = arith.constant dense<0.000000e+00> : vector<32xf32>
    %83 = vector.multi_reduction <add>, %82, %cst_39 [0] : vector<144x32xf32> to vector<32xf32>
    %84 = vector.shape_cast %83 : vector<32xf32> to vector<1x32xf32>
    %cst_40 = arith.constant 0.0069444445 : f32
    %85 = vector.broadcast %cst_40 : f32 to vector<1x32xf32>
    %86 = arith.mulf %81, %85 : vector<1x32xf32>
    %cst_41 = arith.constant 0.0069444445 : f32
    %87 = vector.broadcast %cst_41 : f32 to vector<1x32xf32>
    %88 = arith.mulf %84, %87 : vector<1x32xf32>
    %89 = arith.mulf %86, %86 : vector<1x32xf32>
    %90 = arith.subf %88, %89 : vector<1x32xf32>
    %cst_42 = arith.constant 0.000000e+00 : f32
    %91 = vector.broadcast %cst_42 : f32 to vector<1x32xf32>
    %92 = arith.maximumf %90, %91 : vector<1x32xf32>
    %93 = vector.broadcast %86 : vector<1x32xf32> to vector<144x32xf32>
    %94 = arith.subf %79, %93 : vector<144x32xf32>
    %cst_43 = arith.constant 9.99999974E-6 : f32
    %95 = vector.broadcast %cst_43 : f32 to vector<1x32xf32>
    %96 = arith.addf %92, %95 : vector<1x32xf32>
    %97 = math.rsqrt %96 : vector<1x32xf32>
    %98 = vector.broadcast %97 : vector<1x32xf32> to vector<144x32xf32>
    %99 = arith.mulf %94, %98 : vector<144x32xf32>
    %c4 = arith.constant 4 : index
    %c0_44 = arith.constant 0 : index
    %100 = vector.load %arg5[%c4, %c0_44] : memref<13x32xf32, #tpu.memory_space<vmem>>, vector<1x32xf32>
    %101 = vector.broadcast %100 : vector<1x32xf32> to vector<144x32xf32>
    %102 = arith.mulf %99, %101 : vector<144x32xf32>
    %c5 = arith.constant 5 : index
    %c0_45 = arith.constant 0 : index
    %103 = vector.load %arg5[%c5, %c0_45] : memref<13x32xf32, #tpu.memory_space<vmem>>, vector<1x32xf32>
    %104 = vector.broadcast %103 : vector<1x32xf32> to vector<144x32xf32>
    %105 = arith.addf %102, %104 : vector<144x32xf32>
    %106 = arith.truncf %105 : vector<144x32xf32> to vector<144x32xbf16>
    %c1296 = arith.constant 1296 : index
    %c0_46 = arith.constant 0 : index
    %107 = vector.load %arg2[%c1296, %c0_46] : memref<1504x676xbf16, #tpu.memory_space<vmem>>, vector<144x144xbf16>
    %cst_47 = arith.constant dense<0.000000e+00> : vector<144x32xf32>
    %108 = tpu.matmul %107, %106, %cst_47 {dimension_numbers = #tpu.dot_dimension_numbers<[1], [0], [0], [1], [0, 0, 1, 1], [], []>} : vector<144x144xbf16>, vector<144x32xbf16>, vector<144x32xf32> -> vector<144x32xf32>
    %109 = arith.truncf %108 : vector<144x32xf32> to vector<144x32xbf16>
    %cst_48 = arith.constant 0.000000e+00 : f32
    %110 = vector.broadcast %cst_48 : f32 to vector<16x32xf32>
    %111 = vector.extract_strided_slice %109 {offsets = [0, 0], sizes = [16, 32], strides = [1, 1]} : vector<144x32xbf16> to vector<16x32xbf16>
    %c304 = arith.constant 304 : index
    %c0_49 = arith.constant 0 : index
    %112 = vector.load %arg3[%c304, %c0_49] : memref<720x32xbf16, #tpu.memory_space<vmem>>, vector<32x32xbf16>
    %cst_50 = arith.constant dense<0.000000e+00> : vector<16x32xf32>
    %113 = tpu.matmul %111, %112, %cst_50 {dimension_numbers = #tpu.dot_dimension_numbers<[1], [0], [0], [1], [0, 0, 1, 1], [], []>} : vector<16x32xbf16>, vector<32x32xbf16>, vector<16x32xf32> -> vector<16x32xf32>
    %114 = arith.addf %110, %113 : vector<16x32xf32>
    %115 = vector.extract_strided_slice %109 {offsets = [16, 0], sizes = [16, 32], strides = [1, 1]} : vector<144x32xbf16> to vector<16x32xbf16>
    %c336 = arith.constant 336 : index
    %c0_51 = arith.constant 0 : index
    %116 = vector.load %arg3[%c336, %c0_51] : memref<720x32xbf16, #tpu.memory_space<vmem>>, vector<32x32xbf16>
    %cst_52 = arith.constant dense<0.000000e+00> : vector<16x32xf32>
    %117 = tpu.matmul %115, %116, %cst_52 {dimension_numbers = #tpu.dot_dimension_numbers<[1], [0], [0], [1], [0, 0, 1, 1], [], []>} : vector<16x32xbf16>, vector<32x32xbf16>, vector<16x32xf32> -> vector<16x32xf32>
    %118 = arith.addf %114, %117 : vector<16x32xf32>
    %119 = vector.extract_strided_slice %109 {offsets = [32, 0], sizes = [16, 32], strides = [1, 1]} : vector<144x32xbf16> to vector<16x32xbf16>
    %c368 = arith.constant 368 : index
    %c0_53 = arith.constant 0 : index
    %120 = vector.load %arg3[%c368, %c0_53] : memref<720x32xbf16, #tpu.memory_space<vmem>>, vector<32x32xbf16>
    %cst_54 = arith.constant dense<0.000000e+00> : vector<16x32xf32>
    %121 = tpu.matmul %119, %120, %cst_54 {dimension_numbers = #tpu.dot_dimension_numbers<[1], [0], [0], [1], [0, 0, 1, 1], [], []>} : vector<16x32xbf16>, vector<32x32xbf16>, vector<16x32xf32> -> vector<16x32xf32>
    %122 = arith.addf %118, %121 : vector<16x32xf32>
    %123 = vector.extract_strided_slice %109 {offsets = [48, 0], sizes = [16, 32], strides = [1, 1]} : vector<144x32xbf16> to vector<16x32xbf16>
    %c400 = arith.constant 400 : index
    %c0_55 = arith.constant 0 : index
    %124 = vector.load %arg3[%c400, %c0_55] : memref<720x32xbf16, #tpu.memory_space<vmem>>, vector<32x32xbf16>
    %cst_56 = arith.constant dense<0.000000e+00> : vector<16x32xf32>
    %125 = tpu.matmul %123, %124, %cst_56 {dimension_numbers = #tpu.dot_dimension_numbers<[1], [0], [0], [1], [0, 0, 1, 1], [], []>} : vector<16x32xbf16>, vector<32x32xbf16>, vector<16x32xf32> -> vector<16x32xf32>
    %126 = arith.addf %122, %125 : vector<16x32xf32>
    %127 = vector.extract_strided_slice %109 {offsets = [64, 0], sizes = [16, 32], strides = [1, 1]} : vector<144x32xbf16> to vector<16x32xbf16>
    %c432 = arith.constant 432 : index
    %c0_57 = arith.constant 0 : index
    %128 = vector.load %arg3[%c432, %c0_57] : memref<720x32xbf16, #tpu.memory_space<vmem>>, vector<32x32xbf16>
    %cst_58 = arith.constant dense<0.000000e+00> : vector<16x32xf32>
    %129 = tpu.matmul %127, %128, %cst_58 {dimension_numbers = #tpu.dot_dimension_numbers<[1], [0], [0], [1], [0, 0, 1, 1], [], []>} : vector<16x32xbf16>, vector<32x32xbf16>, vector<16x32xf32> -> vector<16x32xf32>
    %130 = arith.addf %126, %129 : vector<16x32xf32>
    %131 = vector.extract_strided_slice %109 {offsets = [80, 0], sizes = [16, 32], strides = [1, 1]} : vector<144x32xbf16> to vector<16x32xbf16>
    %c464 = arith.constant 464 : index
    %c0_59 = arith.constant 0 : index
    %132 = vector.load %arg3[%c464, %c0_59] : memref<720x32xbf16, #tpu.memory_space<vmem>>, vector<32x32xbf16>
    %cst_60 = arith.constant dense<0.000000e+00> : vector<16x32xf32>
    %133 = tpu.matmul %131, %132, %cst_60 {dimension_numbers = #tpu.dot_dimension_numbers<[1], [0], [0], [1], [0, 0, 1, 1], [], []>} : vector<16x32xbf16>, vector<32x32xbf16>, vector<16x32xf32> -> vector<16x32xf32>
    %134 = arith.addf %130, %133 : vector<16x32xf32>
    %135 = vector.extract_strided_slice %109 {offsets = [96, 0], sizes = [16, 32], strides = [1, 1]} : vector<144x32xbf16> to vector<16x32xbf16>
    %c496 = arith.constant 496 : index
    %c0_61 = arith.constant 0 : index
    %136 = vector.load %arg3[%c496, %c0_61] : memref<720x32xbf16, #tpu.memory_space<vmem>>, vector<32x32xbf16>
    %cst_62 = arith.constant dense<0.000000e+00> : vector<16x32xf32>
    %137 = tpu.matmul %135, %136, %cst_62 {dimension_numbers = #tpu.dot_dimension_numbers<[1], [0], [0], [1], [0, 0, 1, 1], [], []>} : vector<16x32xbf16>, vector<32x32xbf16>, vector<16x32xf32> -> vector<16x32xf32>
    %138 = arith.addf %134, %137 : vector<16x32xf32>
    %139 = vector.extract_strided_slice %109 {offsets = [112, 0], sizes = [16, 32], strides = [1, 1]} : vector<144x32xbf16> to vector<16x32xbf16>
    %c528 = arith.constant 528 : index
    %c0_63 = arith.constant 0 : index
    %140 = vector.load %arg3[%c528, %c0_63] : memref<720x32xbf16, #tpu.memory_space<vmem>>, vector<32x32xbf16>
    %cst_64 = arith.constant dense<0.000000e+00> : vector<16x32xf32>
    %141 = tpu.matmul %139, %140, %cst_64 {dimension_numbers = #tpu.dot_dimension_numbers<[1], [0], [0], [1], [0, 0, 1, 1], [], []>} : vector<16x32xbf16>, vector<32x32xbf16>, vector<16x32xf32> -> vector<16x32xf32>
    %142 = arith.addf %138, %141 : vector<16x32xf32>
    %143 = vector.extract_strided_slice %109 {offsets = [128, 0], sizes = [16, 32], strides = [1, 1]} : vector<144x32xbf16> to vector<16x32xbf16>
    %c560 = arith.constant 560 : index
    %c0_65 = arith.constant 0 : index
    %144 = vector.load %arg3[%c560, %c0_65] : memref<720x32xbf16, #tpu.memory_space<vmem>>, vector<32x32xbf16>
    %cst_66 = arith.constant dense<0.000000e+00> : vector<16x32xf32>
    %145 = tpu.matmul %143, %144, %cst_66 {dimension_numbers = #tpu.dot_dimension_numbers<[1], [0], [0], [1], [0, 0, 1, 1], [], []>} : vector<16x32xbf16>, vector<32x32xbf16>, vector<16x32xf32> -> vector<16x32xf32>
    %146 = arith.addf %142, %145 : vector<16x32xf32>
    %c6 = arith.constant 6 : index
    %c0_67 = arith.constant 0 : index
    %147 = vector.load %arg5[%c6, %c0_67] : memref<13x32xf32, #tpu.memory_space<vmem>>, vector<1x32xf32>
    %148 = vector.broadcast %147 : vector<1x32xf32> to vector<16x32xf32>
    %149 = arith.addf %146, %148 : vector<16x32xf32>
    %cst_68 = arith.constant 0.000000e+00 : f32
    %150 = vector.broadcast %cst_68 : f32 to vector<16x32xf32>
    %151 = arith.maximumf %149, %150 : vector<16x32xf32>
    %cst_69 = arith.constant dense<0.000000e+00> : vector<32xf32>
    %152 = vector.multi_reduction <add>, %151, %cst_69 [0] : vector<16x32xf32> to vector<32xf32>
    %153 = vector.shape_cast %152 : vector<32xf32> to vector<1x32xf32>
    %154 = arith.mulf %151, %151 : vector<16x32xf32>
    %cst_70 = arith.constant dense<0.000000e+00> : vector<32xf32>
    %155 = vector.multi_reduction <add>, %154, %cst_70 [0] : vector<16x32xf32> to vector<32xf32>
    %156 = vector.shape_cast %155 : vector<32xf32> to vector<1x32xf32>
    %cst_71 = arith.constant 6.250000e-02 : f32
    %157 = vector.broadcast %cst_71 : f32 to vector<1x32xf32>
    %158 = arith.mulf %153, %157 : vector<1x32xf32>
    %cst_72 = arith.constant 6.250000e-02 : f32
    %159 = vector.broadcast %cst_72 : f32 to vector<1x32xf32>
    %160 = arith.mulf %156, %159 : vector<1x32xf32>
    %161 = arith.mulf %158, %158 : vector<1x32xf32>
    %162 = arith.subf %160, %161 : vector<1x32xf32>
    %cst_73 = arith.constant 0.000000e+00 : f32
    %163 = vector.broadcast %cst_73 : f32 to vector<1x32xf32>
    %164 = arith.maximumf %162, %163 : vector<1x32xf32>
    %165 = vector.broadcast %158 : vector<1x32xf32> to vector<16x32xf32>
    %166 = arith.subf %151, %165 : vector<16x32xf32>
    %cst_74 = arith.constant 9.99999974E-6 : f32
    %167 = vector.broadcast %cst_74 : f32 to vector<1x32xf32>
    %168 = arith.addf %164, %167 : vector<1x32xf32>
    %169 = math.rsqrt %168 : vector<1x32xf32>
    %170 = vector.broadcast %169 : vector<1x32xf32> to vector<16x32xf32>
    %171 = arith.mulf %166, %170 : vector<16x32xf32>
    %c7 = arith.constant 7 : index
    %c0_75 = arith.constant 0 : index
    %172 = vector.load %arg5[%c7, %c0_75] : memref<13x32xf32, #tpu.memory_space<vmem>>, vector<1x32xf32>
    %173 = vector.broadcast %172 : vector<1x32xf32> to vector<16x32xf32>
    %174 = arith.mulf %171, %173 : vector<16x32xf32>
    %c8 = arith.constant 8 : index
    %c0_76 = arith.constant 0 : index
    %175 = vector.load %arg5[%c8, %c0_76] : memref<13x32xf32, #tpu.memory_space<vmem>>, vector<1x32xf32>
    %176 = vector.broadcast %175 : vector<1x32xf32> to vector<16x32xf32>
    %177 = arith.addf %174, %176 : vector<16x32xf32>
    %178 = arith.truncf %177 : vector<16x32xf32> to vector<16x32xbf16>
    %c1440 = arith.constant 1440 : index
    %c0_77 = arith.constant 0 : index
    %179 = vector.load %arg2[%c1440, %c0_77] : memref<1504x676xbf16, #tpu.memory_space<vmem>>, vector<64x16xbf16>
    %cst_78 = arith.constant dense<0.000000e+00> : vector<64x32xf32>
    %180 = tpu.matmul %179, %178, %cst_78 {dimension_numbers = #tpu.dot_dimension_numbers<[1], [0], [0], [1], [0, 0, 1, 1], [], []>} : vector<64x16xbf16>, vector<16x32xbf16>, vector<64x32xf32> -> vector<64x32xf32>
    %181 = arith.truncf %180 : vector<64x32xf32> to vector<64x32xbf16>
    %cst_79 = arith.constant 0.000000e+00 : f32
    %182 = vector.broadcast %cst_79 : f32 to vector<16x32xf32>
    %183 = vector.extract_strided_slice %181 {offsets = [0, 0], sizes = [16, 32], strides = [1, 1]} : vector<64x32xbf16> to vector<16x32xbf16>
    %c592 = arith.constant 592 : index
    %c0_80 = arith.constant 0 : index
    %184 = vector.load %arg3[%c592, %c0_80] : memref<720x32xbf16, #tpu.memory_space<vmem>>, vector<32x32xbf16>
    %cst_81 = arith.constant dense<0.000000e+00> : vector<16x32xf32>
    %185 = tpu.matmul %183, %184, %cst_81 {dimension_numbers = #tpu.dot_dimension_numbers<[1], [0], [0], [1], [0, 0, 1, 1], [], []>} : vector<16x32xbf16>, vector<32x32xbf16>, vector<16x32xf32> -> vector<16x32xf32>
    %186 = arith.addf %182, %185 : vector<16x32xf32>
    %187 = vector.extract_strided_slice %181 {offsets = [16, 0], sizes = [16, 32], strides = [1, 1]} : vector<64x32xbf16> to vector<16x32xbf16>
    %c624 = arith.constant 624 : index
    %c0_82 = arith.constant 0 : index
    %188 = vector.load %arg3[%c624, %c0_82] : memref<720x32xbf16, #tpu.memory_space<vmem>>, vector<32x32xbf16>
    %cst_83 = arith.constant dense<0.000000e+00> : vector<16x32xf32>
    %189 = tpu.matmul %187, %188, %cst_83 {dimension_numbers = #tpu.dot_dimension_numbers<[1], [0], [0], [1], [0, 0, 1, 1], [], []>} : vector<16x32xbf16>, vector<32x32xbf16>, vector<16x32xf32> -> vector<16x32xf32>
    %190 = arith.addf %186, %189 : vector<16x32xf32>
    %191 = vector.extract_strided_slice %181 {offsets = [32, 0], sizes = [16, 32], strides = [1, 1]} : vector<64x32xbf16> to vector<16x32xbf16>
    %c656 = arith.constant 656 : index
    %c0_84 = arith.constant 0 : index
    %192 = vector.load %arg3[%c656, %c0_84] : memref<720x32xbf16, #tpu.memory_space<vmem>>, vector<32x32xbf16>
    %cst_85 = arith.constant dense<0.000000e+00> : vector<16x32xf32>
    %193 = tpu.matmul %191, %192, %cst_85 {dimension_numbers = #tpu.dot_dimension_numbers<[1], [0], [0], [1], [0, 0, 1, 1], [], []>} : vector<16x32xbf16>, vector<32x32xbf16>, vector<16x32xf32> -> vector<16x32xf32>
    %194 = arith.addf %190, %193 : vector<16x32xf32>
    %195 = vector.extract_strided_slice %181 {offsets = [48, 0], sizes = [16, 32], strides = [1, 1]} : vector<64x32xbf16> to vector<16x32xbf16>
    %c688 = arith.constant 688 : index
    %c0_86 = arith.constant 0 : index
    %196 = vector.load %arg3[%c688, %c0_86] : memref<720x32xbf16, #tpu.memory_space<vmem>>, vector<32x32xbf16>
    %cst_87 = arith.constant dense<0.000000e+00> : vector<16x32xf32>
    %197 = tpu.matmul %195, %196, %cst_87 {dimension_numbers = #tpu.dot_dimension_numbers<[1], [0], [0], [1], [0, 0, 1, 1], [], []>} : vector<16x32xbf16>, vector<32x32xbf16>, vector<16x32xf32> -> vector<16x32xf32>
    %198 = arith.addf %194, %197 : vector<16x32xf32>
    %199 = vector.extract_strided_slice %198 {offsets = [0, 0], sizes = [4, 32], strides = [1, 1]} : vector<16x32xf32> to vector<4x32xf32>
    %c9 = arith.constant 9 : index
    %c0_88 = arith.constant 0 : index
    %200 = vector.load %arg5[%c9, %c0_88] : memref<13x32xf32, #tpu.memory_space<vmem>>, vector<1x32xf32>
    %201 = vector.broadcast %200 : vector<1x32xf32> to vector<4x32xf32>
    %202 = arith.addf %199, %201 : vector<4x32xf32>
    %cst_89 = arith.constant 0.000000e+00 : f32
    %203 = vector.broadcast %cst_89 : f32 to vector<4x32xf32>
    %204 = arith.maximumf %202, %203 : vector<4x32xf32>
    %cst_90 = arith.constant dense<0.000000e+00> : vector<32xf32>
    %205 = vector.multi_reduction <add>, %204, %cst_90 [0] : vector<4x32xf32> to vector<32xf32>
    %206 = vector.shape_cast %205 : vector<32xf32> to vector<1x32xf32>
    %207 = arith.mulf %204, %204 : vector<4x32xf32>
    %cst_91 = arith.constant dense<0.000000e+00> : vector<32xf32>
    %208 = vector.multi_reduction <add>, %207, %cst_91 [0] : vector<4x32xf32> to vector<32xf32>
    %209 = vector.shape_cast %208 : vector<32xf32> to vector<1x32xf32>
    %cst_92 = arith.constant 2.500000e-01 : f32
    %210 = vector.broadcast %cst_92 : f32 to vector<1x32xf32>
    %211 = arith.mulf %206, %210 : vector<1x32xf32>
    %cst_93 = arith.constant 2.500000e-01 : f32
    %212 = vector.broadcast %cst_93 : f32 to vector<1x32xf32>
    %213 = arith.mulf %209, %212 : vector<1x32xf32>
    %214 = arith.mulf %211, %211 : vector<1x32xf32>
    %215 = arith.subf %213, %214 : vector<1x32xf32>
    %cst_94 = arith.constant 0.000000e+00 : f32
    %216 = vector.broadcast %cst_94 : f32 to vector<1x32xf32>
    %217 = arith.maximumf %215, %216 : vector<1x32xf32>
    %218 = vector.broadcast %211 : vector<1x32xf32> to vector<4x32xf32>
    %219 = arith.subf %204, %218 : vector<4x32xf32>
    %cst_95 = arith.constant 9.99999974E-6 : f32
    %220 = vector.broadcast %cst_95 : f32 to vector<1x32xf32>
    %221 = arith.addf %217, %220 : vector<1x32xf32>
    %222 = math.rsqrt %221 : vector<1x32xf32>
    %223 = vector.broadcast %222 : vector<1x32xf32> to vector<4x32xf32>
    %224 = arith.mulf %219, %223 : vector<4x32xf32>
    %c10 = arith.constant 10 : index
    %c0_96 = arith.constant 0 : index
    %225 = vector.load %arg5[%c10, %c0_96] : memref<13x32xf32, #tpu.memory_space<vmem>>, vector<1x32xf32>
    %226 = vector.broadcast %225 : vector<1x32xf32> to vector<4x32xf32>
    %227 = arith.mulf %224, %226 : vector<4x32xf32>
    %c11 = arith.constant 11 : index
    %c0_97 = arith.constant 0 : index
    %228 = vector.load %arg5[%c11, %c0_97] : memref<13x32xf32, #tpu.memory_space<vmem>>, vector<1x32xf32>
    %229 = vector.broadcast %228 : vector<1x32xf32> to vector<4x32xf32>
    %230 = arith.addf %227, %229 : vector<4x32xf32>
    %231 = arith.truncf %230 : vector<4x32xf32> to vector<4x32xbf16>
    %c0_98 = arith.constant 0 : index
    %c0_99 = arith.constant 0 : index
    %232 = vector.load %arg4[%c0_98, %c0_99] : memref<5x32xbf16, #tpu.memory_space<vmem>>, vector<5x32xbf16>
    %cst_100 = arith.constant dense<0.000000e+00> : vector<4x5xf32>
    %233 = tpu.matmul %231, %232, %cst_100 {dimension_numbers = #tpu.dot_dimension_numbers<[1], [1], [0], [0], [0, 0, 1, 0], [], []>} : vector<4x32xbf16>, vector<5x32xbf16>, vector<4x5xf32> -> vector<4x5xf32>
    %c12 = arith.constant 12 : index
    %c0_101 = arith.constant 0 : index
    %234 = vector.load %arg5[%c12, %c0_101] : memref<13x32xf32, #tpu.memory_space<vmem>>, vector<1x5xf32>
    %235 = vector.broadcast %234 : vector<1x5xf32> to vector<4x5xf32>
    %236 = arith.addf %233, %235 : vector<4x5xf32>
    %c0_102 = arith.constant 0 : index
    %c0_103 = arith.constant 0 : index
    %237 = vector.load %arg6[%c0_102, %c0_103] : memref<4x5xf32, #tpu.memory_space<vmem>>, vector<4x5xf32>
    tpu.vector_store %arg6[%c0_102, %c0_103], %236 {strides = array<i32>} : memref<4x5xf32, #tpu.memory_space<vmem>>, vector<4x5xf32>,
    return
  }
  func.func @transform_0(%arg0: i32) -> (i32, i32) {
    %c0_i32 = arith.constant 0 : i32
    %c0_i32_0 = arith.constant 0 : i32
    %c0_i32_1 = arith.constant 0 : i32
    return %c0_i32, %c0_i32_0 : i32, i32
  }
  func.func @transform_1(%arg0: i32) -> (i32, i32) {
    %c0_i32 = arith.constant 0 : i32
    %c0_i32_0 = arith.constant 0 : i32
    %c0_i32_1 = arith.constant 0 : i32
    return %c0_i32, %c0_i32_0 : i32, i32
  }
  func.func @transform_2(%arg0: i32) -> (i32, i32) {
    %c0_i32 = arith.constant 0 : i32
    %c0_i32_0 = arith.constant 0 : i32
    %c0_i32_1 = arith.constant 0 : i32
    return %c0_i32, %c0_i32_0 : i32, i32
  }
  func.func @transform_3(%arg0: i32) -> (i32, i32) {
    %c0_i32 = arith.constant 0 : i32
    %c0_i32_0 = arith.constant 0 : i32
    %c0_i32_1 = arith.constant 0 : i32
    return %c0_i32, %c0_i32_0 : i32, i32
  }
  func.func @transform_4(%arg0: i32) -> (i32, i32) {
    %c0_i32 = arith.constant 0 : i32
    %c0_i32_0 = arith.constant 0 : i32
    %c0_i32_1 = arith.constant 0 : i32
    return %c0_i32, %c0_i32_0 : i32, i32
  }
  func.func @transform_5(%arg0: i32) -> (i32, i32) {
    %c0_i32 = arith.constant 0 : i32
    %c0_i32_0 = arith.constant 0 : i32
    %c0_i32_1 = arith.constant 0 : i32
    return %c0_i32, %c0_i32_0 : i32, i32
  }
}

</mosaic_0001>

<llo_original>
// kernel: _lambda_.1
$region0: #{_lambda_.1}
  #allocation0 [shape = 'u32[]', space=smem, size = 0x4, offset = 0x4, fixed_abs, tag = 'smem constant byte address 0x4 - core index']
  #allocation1 [shape = 'u32[144,128]{1,0:T(1,128)}', space=vmem, size = 0x12000, scoped, tag = 'internal scratch']
  %s0 = inlined_call_operand.vmem [shape: bf16[676,9], index: 0, kind: input, shape index: {}]
  %s1 = inlined_call_operand.vmem [shape: bf16[1504,676], index: 1, kind: input, shape index: {}]
  %s2 = inlined_call_operand.vmem [shape: bf16[720,32], index: 2, kind: input, shape index: {}]
  %s3 = inlined_call_operand.vmem [shape: bf16[5,32], index: 3, kind: input, shape index: {}]
  %s4 = inlined_call_operand.vmem [shape: f32[13,32], index: 4, kind: input, shape index: {}]
  %s5 = inlined_call_operand.hbm [shape: f32[4,5], index: 5, kind: output, shape index: {}]
  %s6 = sld [smem:[#allocation0]]
  $region30: #{_lambda_.1} parent=0
    _
  %s8 = ssub.s32 1, %s6
  %s9 = scalar_select 0, %s8, %s6
  $region1: #{_lambda_.1} parent=0
    #allocation2 [shape = 'u8[2048]{0}', space=vmem, size = 0x800, scoped, tag = 'output window, operand 0, single buffered']
    #allocation3 [shape = 's32[1]{0}', space=sflag, size = 0x4, scoped, tag = 'scoped memory for _lambda_.1']
    %10 = vsyncpa [#allocation3], 0
    // Predicated region
    $region2: #{_lambda_.1} parent=1 // pred_check
      _
    $region3: #{_lambda_.1} parent=1 // pred_check_branch
      %12 = sbr.rel (0) target = $region5
    $region4: #{_lambda_.1} parent=1 // pred_region
      _
    $region5: #{_lambda_.1} parent=1 // pred_fallthru
      _
    // Predicated region
    $region6: #{_lambda_.1} parent=1 // pred_check
      _
    $region7: #{_lambda_.1} parent=1 // pred_check_branch
      %14 = sbr.rel (0) target = $region9
    $region8: #{_lambda_.1} parent=1 // pred_region
      _
    $region9: #{_lambda_.1} parent=1 // pred_fallthru
      _
    // Predicated region
    $region10: #{_lambda_.1} parent=1 // pred_check
      _
    $region11: #{_lambda_.1} parent=1 // pred_check_branch
      %16 = sbr.rel (0) target = $region13
    $region12: #{_lambda_.1} parent=1 // pred_region
      _
    $region13: #{_lambda_.1} parent=1 // pred_fallthru
      _
    // Predicated region
    $region14: #{_lambda_.1} parent=1 // pred_check
      _
    $region15: #{_lambda_.1} parent=1 // pred_check_branch
      %18 = sbr.rel (0) target = $region17
    $region16: #{_lambda_.1} parent=1 // pred_region
      _
    $region17: #{_lambda_.1} parent=1 // pred_fallthru
      _
    // Predicated region
    $region18: #{_lambda_.1} parent=1 // pred_check
      _
    $region19: #{_lambda_.1} parent=1 // pred_check_branch
      %20 = sbr.rel (0) target = $region21
    $region20: #{_lambda_.1} parent=1 // pred_region
      _
    $region21: #{_lambda_.1} parent=1 // pred_fallthru
      _
    %v22 = vld [vmem:[%s0] sm:$0xf]
    %v23 = vld [vmem:[%s0 + $0x4] sm:$0xf]
    %v24 = vld [vmem:[%s0 + $0x8] sm:$0xf]
    %v25 = vld [vmem:[%s0 + $0xc] sm:$0xf]
    %v26 = vld [vmem:[%s0 + $0x10] sm:$0xf]
    %v27 = vld [vmem:[%s0 + $0x14] sm:$0xf]
    %v28 = vld [vmem:[%s0 + $0x18] sm:$0xf]
    %v29 = vld [vmem:[%s0 + $0x1c] sm:$0xf]
    %v30 = vld [vmem:[%s0 + $0x20] sm:$0xf]
    %v31 = vld [vmem:[%s0 + $0x24] sm:$0xf]
    %v32 = vld [vmem:[%s0 + $0x28] sm:$0xf]
    %v33 = vld [vmem:[%s0 + $0x2c] sm:$0xf]
    %v34 = vld [vmem:[%s0 + $0x30] sm:$0xf]
    %v35 = vld [vmem:[%s0 + $0x34] sm:$0xf]
    %v36 = vld [vmem:[%s0 + $0x38] sm:$0xf]
    %v37 = vld [vmem:[%s0 + $0x3c] sm:$0xf]
    %v38 = vld [vmem:[%s0 + $0x40] sm:$0xf]
    %v39 = vld [vmem:[%s0 + $0x44] sm:$0xf]
    %v40 = vld [vmem:[%s0 + $0x48] sm:$0xf]
    %v41 = vld [vmem:[%s0 + $0x4c] sm:$0xf]
    %v42 = vld [vmem:[%s0 + $0x50] sm:$0xf]
    %v43 = vld [vmem:[%s0 + $0x54] sm:$0xf]
    %v44 = vld [vmem:[%s0 + $0x58] sm:$0xf]
    %v45 = vld [vmem:[%s0 + $0x5c] sm:$0xf]
    %v46 = vld [vmem:[%s0 + $0x60] sm:$0xf]
    %v47 = vld [vmem:[%s0 + $0x64] sm:$0xf]
    %v48 = vld [vmem:[%s0 + $0x68] sm:$0xf]
    %v49 = vld [vmem:[%s0 + $0x6c] sm:$0xf]
    %v50 = vld [vmem:[%s0 + $0x70] sm:$0xf]
    %v51 = vld [vmem:[%s0 + $0x74] sm:$0xf]
    %v52 = vld [vmem:[%s0 + $0x78] sm:$0xf]
    %v53 = vld [vmem:[%s0 + $0x7c] sm:$0xf]
    %v54 = vld [vmem:[%s0 + $0x80] sm:$0xf]
    %v55 = vld [vmem:[%s0 + $0x84] sm:$0xf]
    %v56 = vld [vmem:[%s0 + $0x88] sm:$0xf]
    %v57 = vld [vmem:[%s0 + $0x8c] sm:$0xf]
    %v58 = vld [vmem:[%s0 + $0x90] sm:$0xf]
    %v59 = vld [vmem:[%s0 + $0x94] sm:$0xf]
    %v60 = vld [vmem:[%s0 + $0x98] sm:$0xf]
    %v61 = vld [vmem:[%s0 + $0x9c] sm:$0xf]
    %v62 = vld [vmem:[%s0 + $0xa0] sm:$0xf]
    %v63 = vld [vmem:[%s0 + $0xa4] sm:$0xf]
    %v64 = vld [vmem:[%s0 + $0xa8] sm:$0xf]
    %v65 = vld [vmem:[%s0 + $0xac] sm:$0xf]
    %v66 = vld [vmem:[%s0 + $0xb0] sm:$0xf]
    %v67 = vld [vmem:[%s0 + $0xb4] sm:$0xf]
    %v68 = vld [vmem:[%s0 + $0xb8] sm:$0xf]
    %v69 = vld [vmem:[%s0 + $0xbc] sm:$0xf]
    %v70 = vld [vmem:[%s0 + $0xc0] sm:$0xf]
    %v71 = vld [vmem:[%s0 + $0xc4] sm:$0xf]
    %v72 = vld [vmem:[%s0 + $0xc8] sm:$0xf]
    %v73 = vld [vmem:[%s0 + $0xcc] sm:$0xf]
    %v74 = vld [vmem:[%s0 + $0xd0] sm:$0xf]
    %v75 = vld [vmem:[%s0 + $0xd4] sm:$0xf]
    %v76 = vld [vmem:[%s0 + $0xd8] sm:$0xf]
    %v77 = vld [vmem:[%s0 + $0xdc] sm:$0xf]
    %v78 = vld [vmem:[%s0 + $0xe0] sm:$0xf]
    %v79 = vld [vmem:[%s0 + $0xe4] sm:$0xf]
    %v80 = vld [vmem:[%s0 + $0xe8] sm:$0xf]
    %v81 = vld [vmem:[%s0 + $0xec] sm:$0xf]
    %v82 = vld [vmem:[%s0 + $0xf0] sm:$0xf]
    %v83 = vld [vmem:[%s0 + $0xf4] sm:$0xf]
    %v84 = vld [vmem:[%s0 + $0xf8] sm:$0xf]
    %v85 = vld [vmem:[%s0 + $0xfc] sm:$0xf]
    %v86 = vld [vmem:[%s0 + $0x100] sm:$0xf]
    %v87 = vld [vmem:[%s0 + $0x104] sm:$0xf]
    %v88 = vld [vmem:[%s0 + $0x108] sm:$0xf]
    %v89 = vld [vmem:[%s0 + $0x10c] sm:$0xf]
    %v90 = vld [vmem:[%s0 + $0x110] sm:$0xf]
    %v91 = vld [vmem:[%s0 + $0x114] sm:$0xf]
    %v92 = vld [vmem:[%s0 + $0x118] sm:$0xf]
    %v93 = vld [vmem:[%s0 + $0x11c] sm:$0xf]
    %v94 = vld [vmem:[%s0 + $0x120] sm:$0xf]
    %v95 = vld [vmem:[%s0 + $0x124] sm:$0xf]
    %v96 = vld [vmem:[%s0 + $0x128] sm:$0xf]
    %v97 = vld [vmem:[%s0 + $0x12c] sm:$0xf]
    %v98 = vld [vmem:[%s0 + $0x130] sm:$0xf]
    %v99 = vld [vmem:[%s0 + $0x134] sm:$0xf]
    %v100 = vld [vmem:[%s0 + $0x138] sm:$0xf]
    %v101 = vld [vmem:[%s0 + $0x13c] sm:$0xf]
    %v102 = vld [vmem:[%s0 + $0x140] sm:$0xf]
    %v103 = vld [vmem:[%s0 + $0x144] sm:$0xf]
    %v104 = vld [vmem:[%s0 + $0x148] sm:$0xf]
    %v105 = vld [vmem:[%s0 + $0x14c] sm:$0xf]
    %v106 = vld [vmem:[%s0 + $0x150] sm:$0x3]
    %v107 = vld [vmem:[%s2] sm:$0xf]
    %v108 = vld [vmem:[%s2 + $0x4] sm:$0x1]
    %v109 = vld [vmem:[%s4] sm:$0x1]
    %v110 = vlaneseq
    %v111 = vshrl.u32 %v110, 7
    %v112 = vsub.s32 0, %v111
    %v113 = vrot.slane %v109, %v112
    %v199 = vunpack.c.l.b16 %v22
    %v200 = vunpack.c.l.b16 %v23
    %v201 = vunpack.c.l.b16 %v24
    %v202 = vunpack.c.l.b16 %v25
    %v203 = vunpack.c.l.b16 %v26
    %v204 = vunpack.c.l.b16 %v27
    %v205 = vunpack.c.l.b16 %v28
    %v206 = vunpack.c.l.b16 %v29
    %v207 = vunpack.c.l.b16 %v30
    %v208 = vunpack.c.l.b16 %v31
    %v209 = vunpack.c.l.b16 %v32
    %v210 = vunpack.c.l.b16 %v33
    %v211 = vunpack.c.l.b16 %v34
    %v212 = vunpack.c.l.b16 %v35
    %v213 = vunpack.c.l.b16 %v36
    %v214 = vunpack.c.l.b16 %v37
    %v215 = vunpack.c.l.b16 %v38
    %v216 = vunpack.c.l.b16 %v39
    %v217 = vunpack.c.l.b16 %v40
    %v218 = vunpack.c.l.b16 %v41
    %v219 = vunpack.c.l.b16 %v42
    %v220 = vunpack.c.l.b16 %v43
    %v221 = vunpack.c.l.b16 %v44
    %v222 = vunpack.c.l.b16 %v45
    %v223 = vunpack.c.l.b16 %v46
    %v224 = vunpack.c.l.b16 %v47
    %v225 = vunpack.c.l.b16 %v48
    %v226 = vunpack.c.l.b16 %v49
    %v227 = vunpack.c.l.b16 %v50
    %v228 = vunpack.c.l.b16 %v51
    %v229 = vunpack.c.l.b16 %v52
    %v230 = vunpack.c.l.b16 %v53
    %v231 = vunpack.c.l.b16 %v54
    %v232 = vunpack.c.l.b16 %v55
    %v233 = vunpack.c.l.b16 %v56
    %v234 = vunpack.c.l.b16 %v57
    %v235 = vunpack.c.l.b16 %v58
    %v236 = vunpack.c.l.b16 %v59
    %v237 = vunpack.c.l.b16 %v60
    %v238 = vunpack.c.l.b16 %v61
    %v239 = vunpack.c.l.b16 %v62
    %v240 = vunpack.c.l.b16 %v63
    %v241 = vunpack.c.l.b16 %v64
    %v242 = vunpack.c.l.b16 %v65
    %v243 = vunpack.c.l.b16 %v66
    %v244 = vunpack.c.l.b16 %v67
    %v245 = vunpack.c.l.b16 %v68
    %v246 = vunpack.c.l.b16 %v69
    %v247 = vunpack.c.l.b16 %v70
    %v248 = vunpack.c.l.b16 %v71
    %v249 = vunpack.c.l.b16 %v72
    %v250 = vunpack.c.l.b16 %v73
    %v251 = vunpack.c.l.b16 %v74
    %v252 = vunpack.c.l.b16 %v75
    %v253 = vunpack.c.l.b16 %v76
    %v254 = vunpack.c.l.b16 %v77
    %v255 = vunpack.c.l.b16 %v78
    %v256 = vunpack.c.l.b16 %v79
    %v257 = vunpack.c.l.b16 %v80
    %v258 = vunpack.c.l.b16 %v81
    %v259 = vunpack.c.l.b16 %v82
    %v260 = vunpack.c.l.b16 %v83
    %v261 = vunpack.c.l.b16 %v84
    %v262 = vunpack.c.l.b16 %v85
    %v263 = vunpack.c.l.b16 %v86
    %v264 = vunpack.c.l.b16 %v87
    %v265 = vunpack.c.l.b16 %v88
    %v266 = vunpack.c.l.b16 %v89
    %v267 = vunpack.c.l.b16 %v90
    %v268 = vunpack.c.l.b16 %v91
    %v269 = vunpack.c.l.b16 %v92
    %v270 = vunpack.c.l.b16 %v93
    %v271 = vunpack.c.l.b16 %v94
    %v272 = vunpack.c.l.b16 %v95
    %v273 = vunpack.c.l.b16 %v96
    %v274 = vunpack.c.l.b16 %v97
    %v275 = vunpack.c.l.b16 %v98
    %v276 = vunpack.c.l.b16 %v99
    %v277 = vunpack.c.l.b16 %v100
    %v278 = vunpack.c.l.b16 %v101
    %v279 = vunpack.c.l.b16 %v102
    %v280 = vunpack.c.l.b16 %v103
    %v281 = vunpack.c.l.b16 %v104
    %v282 = vunpack.c.l.b16 %v105
    %v283 = vunpack.c.l.b16 %v106
    %v284 = vpack.c.b16 %v200, %v199
    %v285 = vpack.c.b16 %v202, %v201
    %v286 = vpack.c.b16 %v204, %v203
    %v287 = vpack.c.b16 %v206, %v205
    %v288 = vpack.c.b16 %v208, %v207
    %v289 = vpack.c.b16 %v210, %v209
    %v290 = vpack.c.b16 %v212, %v211
    %v291 = vpack.c.b16 %v214, %v213
    %v292 = vpack.c.b16 %v216, %v215
    %v293 = vpack.c.b16 %v218, %v217
    %v294 = vpack.c.b16 %v220, %v219
    %v295 = vpack.c.b16 %v222, %v221
    %v296 = vpack.c.b16 %v224, %v223
    %v297 = vpack.c.b16 %v226, %v225
    %v298 = vpack.c.b16 %v228, %v227
    %v299 = vpack.c.b16 %v230, %v229
    %v300 = vpack.c.b16 %v232, %v231
    %v301 = vpack.c.b16 %v234, %v233
    %v302 = vpack.c.b16 %v236, %v235
    %v303 = vpack.c.b16 %v238, %v237
    %v304 = vpack.c.b16 %v240, %v239
    %v305 = vpack.c.b16 %v242, %v241
    %v306 = vpack.c.b16 %v244, %v243
    %v307 = vpack.c.b16 %v246, %v245
    %v308 = vpack.c.b16 %v248, %v247
    %v309 = vpack.c.b16 %v250, %v249
    %v310 = vpack.c.b16 %v252, %v251
    %v311 = vpack.c.b16 %v254, %v253
    %v312 = vpack.c.b16 %v256, %v255
    %v313 = vpack.c.b16 %v258, %v257
    %v314 = vpack.c.b16 %v260, %v259
    %v315 = vpack.c.b16 %v262, %v261
    %v316 = vpack.c.b16 %v264, %v263
    %v317 = vpack.c.b16 %v266, %v265
    %v318 = vpack.c.b16 %v268, %v267
    %v319 = vpack.c.b16 %v270, %v269
    %v320 = vpack.c.b16 %v272, %v271
    %v321 = vpack.c.b16 %v274, %v273
    %v322 = vpack.c.b16 %v276, %v275
    %v323 = vpack.c.b16 %v278, %v277
    %v324 = vpack.c.b16 %v280, %v279
    %v325 = vpack.c.b16 %v282, %v281
    %v326 = vpack.c.b16 %v283, %v283
    %v329 = vunpack.c.l.b16 %v107
    %v330 = vunpack.c.l.b16 %v108
    %v331 = vpack.c.b16 %v330, %v329
    %vm332 = vcmask 72704
    %v334 = vsel %vm332, %v284, 0
    %v337 = vsel %vm332, %v285, 0
    %v340 = vsel %vm332, %v286, 0
    %v343 = vsel %vm332, %v287, 0
    %v346 = vsel %vm332, %v288, 0
    %v349 = vsel %vm332, %v289, 0
    %v352 = vsel %vm332, %v290, 0
    %v355 = vsel %vm332, %v291, 0
    %v358 = vsel %vm332, %v292, 0
    %v361 = vsel %vm332, %v293, 0
    %v364 = vsel %vm332, %v294, 0
    %v367 = vsel %vm332, %v295, 0
    %v370 = vsel %vm332, %v296, 0
    %v373 = vsel %vm332, %v297, 0
    %v376 = vsel %vm332, %v298, 0
    %v379 = vsel %vm332, %v299, 0
    %v382 = vsel %vm332, %v300, 0
    %v385 = vsel %vm332, %v301, 0
    %v388 = vsel %vm332, %v302, 0
    %v391 = vsel %vm332, %v303, 0
    %v394 = vsel %vm332, %v304, 0
    %v397 = vsel %vm332, %v305, 0
    %v400 = vsel %vm332, %v306, 0
    %v403 = vsel %vm332, %v307, 0
    %v406 = vsel %vm332, %v308, 0
    %v409 = vsel %vm332, %v309, 0
    %v412 = vsel %vm332, %v310, 0
    %v415 = vsel %vm332, %v311, 0
    %v418 = vsel %vm332, %v312, 0
    %v421 = vsel %vm332, %v313, 0
    %v424 = vsel %vm332, %v314, 0
    %v427 = vsel %vm332, %v315, 0
    %v430 = vsel %vm332, %v316, 0
    %v433 = vsel %vm332, %v317, 0
    %v436 = vsel %vm332, %v318, 0
    %v439 = vsel %vm332, %v319, 0
    %v442 = vsel %vm332, %v320, 0
    %v445 = vsel %vm332, %v321, 0
    %v448 = vsel %vm332, %v322, 0
    %v451 = vsel %vm332, %v323, 0
    %v454 = vsel %vm332, %v324, 0
    %v457 = vsel %vm332, %v325, 0
    %v460 = vsel %vm332, %v326, 0
    %vm462 = vcmask 1043456
    %vm463 = vcmask 1044480
    %v464 = vsel %vm462, 4294967295, 65535
    %v465 = vsel %vm463, %v464, 0
    %v467 = vand.u32 %v331, %v465
    %469 = vmatprep.subr.bf16.mxu0 0
    %470 = vmatpush1.bf16.msra.mxu0 %v467
    %471 = vmatprep.subr.bf16.mxu0 0
    %472 = vmatpush1.bf16.msra.mxu0 0
    %473 = vmatprep.subr.bf16.mxu0 0
    %474 = vmatpush1.bf16.msra.mxu0 0
    %475 = vmatprep.subr.bf16.mxu0 0
    %476 = vmatpush1.bf16.msra.mxu0 0
    %477 = vmatprep.subr.bf16.mxu0 0
    %478 = vmatpush1.bf16.msra.mxu0 0
    %479 = vmatprep.subr.bf16.mxu0 0
    %480 = vmatpush1.bf16.msra.mxu0 0
    %481 = vmatprep.subr.bf16.mxu0 0
    %482 = vmatpush1.bf16.msra.mxu0 0
    %483 = vmatprep.subr.bf16.mxu0 0
    %484 = vmatpush1.bf16.msra.mxu0 0
    %485 = vmatprep.subr.bf16.mxu0 0
    %486 = vmatpush1.bf16.msra.mxu0 0
    %487 = vmatprep.subr.bf16.mxu0 0
    %488 = vmatpush1.bf16.msra.mxu0 0
    %489 = vmatprep.subr.bf16.mxu0 0
    %490 = vmatpush1.bf16.msra.mxu0 0
    %491 = vmatprep.subr.bf16.mxu0 0
    %492 = vmatpush1.bf16.msra.mxu0 0
    %493 = vmatprep.subr.bf16.mxu0 0
    %494 = vmatpush1.bf16.msra.mxu0 0
    %495 = vmatprep.subr.bf16.mxu0 0
    %496 = vmatpush1.bf16.msra.mxu0 0
    %497 = vmatprep.subr.bf16.mxu0 0
    %498 = vmatpush1.bf16.msra.mxu0 0
    %499 = vmatprep.subr.bf16.mxu0 0
    %500 = vmatpush1.bf16.msra.mxu0 0
    %501 = vmatprep.mubr.bf16.mxu0 0
    %502 = vmatmul.mubr.bf16.gmra.mrb[0].mxu0 %v334
    %v503 = vpop.f32.mrb[0].mxu0
    %v504 = vadd.f32 %v113, %v503
    %v505 = vpop.f32.mrb[0].mxu0
    %v506 = vpop.f32.mrb[0].mxu0
    %v507 = vadd.f32 %v113, %v506
    %v508 = vpop.f32.mrb[0].mxu0
    %509 = vmatprep.mubr.bf16.mxu0 0
    %510 = vmatmul.mubr.bf16.gmra.mrb[0].mxu0 %v337
    %v511 = vpop.f32.mrb[0].mxu0
    %v512 = vadd.f32 %v113, %v511
    %v513 = vpop.f32.mrb[0].mxu0
    %v514 = vpop.f32.mrb[0].mxu0
    %v515 = vadd.f32 %v113, %v514
    %v516 = vpop.f32.mrb[0].mxu0
    %517 = vmatprep.mubr.bf16.mxu0 0
    %518 = vmatmul.mubr.bf16.gmra.mrb[0].mxu0 %v340
    %v519 = vpop.f32.mrb[0].mxu0
    %v520 = vadd.f32 %v113, %v519
    %v521 = vpop.f32.mrb[0].mxu0
    %v522 = vpop.f32.mrb[0].mxu0
    %v523 = vadd.f32 %v113, %v522
    %v524 = vpop.f32.mrb[0].mxu0
    %525 = vmatprep.mubr.bf16.mxu0 0
    %526 = vmatmul.mubr.bf16.gmra.mrb[0].mxu0 %v343
    %v527 = vpop.f32.mrb[0].mxu0
    %v528 = vadd.f32 %v113, %v527
    %v529 = vpop.f32.mrb[0].mxu0
    %v530 = vpop.f32.mrb[0].mxu0
    %v531 = vadd.f32 %v113, %v530
    %v532 = vpop.f32.mrb[0].mxu0
    %533 = vmatprep.mubr.bf16.mxu0 0
    %534 = vmatmul.mubr.bf16.gmra.mrb[0].mxu0 %v346
    %v535 = vpop.f32.mrb[0].mxu0
    %v536 = vadd.f32 %v113, %v535
    %v537 = vpop.f32.mrb[0].mxu0
    %v538 = vpop.f32.mrb[0].mxu0
    %v539 = vadd.f32 %v113, %v538
    %v540 = vpop.f32.mrb[0].mxu0
    %541 = vmatprep.mubr.bf16.mxu0 0
    %542 = vmatmul.mubr.bf16.gmra.mrb[0].mxu0 %v349
    %v543 = vpop.f32.mrb[0].mxu0
    %v544 = vadd.f32 %v113, %v543
    %v545 = vpop.f32.mrb[0].mxu0
    %v546 = vpop.f32.mrb[0].mxu0
    %v547 = vadd.f32 %v113, %v546
    %v548 = vpop.f32.mrb[0].mxu0
    %549 = vmatprep.mubr.bf16.mxu0 0
    %550 = vmatmul.mubr.bf16.gmra.mrb[0].mxu0 %v352
    %v551 = vpop.f32.mrb[0].mxu0
    %v552 = vadd.f32 %v113, %v551
    %v553 = vpop.f32.mrb[0].mxu0
    %v554 = vpop.f32.mrb[0].mxu0
    %v555 = vadd.f32 %v113, %v554
    %v556 = vpop.f32.mrb[0].mxu0
    %557 = vmatprep.mubr.bf16.mxu0 0
    %558 = vmatmul.mubr.bf16.gmra.mrb[0].mxu0 %v355
    %v559 = vpop.f32.mrb[0].mxu0
    %v560 = vadd.f32 %v113, %v559
    %v561 = vpop.f32.mrb[0].mxu0
    %v562 = vpop.f32.mrb[0].mxu0
    %v563 = vadd.f32 %v113, %v562
    %v564 = vpop.f32.mrb[0].mxu0
    %565 = vmatprep.mubr.bf16.mxu0 0
    %566 = vmatmul.mubr.bf16.gmra.mrb[0].mxu0 %v358
    %v567 = vpop.f32.mrb[0].mxu0
    %v568 = vadd.f32 %v113, %v567
    %v569 = vpop.f32.mrb[0].mxu0
    %v570 = vpop.f32.mrb[0].mxu0
    %v571 = vadd.f32 %v113, %v570
    %v572 = vpop.f32.mrb[0].mxu0
    %573 = vmatprep.mubr.bf16.mxu0 0
    %574 = vmatmul.mubr.bf16.gmra.mrb[0].mxu0 %v361
    %v575 = vpop.f32.mrb[0].mxu0
    %v576 = vadd.f32 %v113, %v575
    %v577 = vpop.f32.mrb[0].mxu0
    %v578 = vpop.f32.mrb[0].mxu0
    %v579 = vadd.f32 %v113, %v578
    %v580 = vpop.f32.mrb[0].mxu0
    %581 = vmatprep.mubr.bf16.mxu0 0
    %582 = vmatmul.mubr.bf16.gmra.mrb[0].mxu0 %v364
    %v583 = vpop.f32.mrb[0].mxu0
    %v584 = vadd.f32 %v113, %v583
    %v585 = vpop.f32.mrb[0].mxu0
    %v586 = vpop.f32.mrb[0].mxu0
    %v587 = vadd.f32 %v113, %v586
    %v588 = vpop.f32.mrb[0].mxu0
    %589 = vmatprep.mubr.bf16.mxu0 0
    %590 = vmatmul.mubr.bf16.gmra.mrb[0].mxu0 %v367
    %v591 = vpop.f32.mrb[0].mxu0
    %v592 = vadd.f32 %v113, %v591
    %v593 = vpop.f32.mrb[0].mxu0
    %v594 = vpop.f32.mrb[0].mxu0
    %v595 = vadd.f32 %v113, %v594
    %v596 = vpop.f32.mrb[0].mxu0
    %597 = vmatprep.mubr.bf16.mxu0 0
    %598 = vmatmul.mubr.bf16.gmra.mrb[0].mxu0 %v370
    %v599 = vpop.f32.mrb[0].mxu0
    %v600 = vadd.f32 %v113, %v599
    %v601 = vpop.f32.mrb[0].mxu0
    %v602 = vpop.f32.mrb[0].mxu0
    %v603 = vadd.f32 %v113, %v602
    %v604 = vpop.f32.mrb[0].mxu0
    %605 = vmatprep.mubr.bf16.mxu0 0
    %606 = vmatmul.mubr.bf16.gmra.mrb[0].mxu0 %v373
    %v607 = vpop.f32.mrb[0].mxu0
    %v608 = vadd.f32 %v113, %v607
    %v609 = vpop.f32.mrb[0].mxu0
    %v610 = vpop.f32.mrb[0].mxu0
    %v611 = vadd.f32 %v113, %v610
    %v612 = vpop.f32.mrb[0].mxu0
    %613 = vmatprep.mubr.bf16.mxu0 0
    %614 = vmatmul.mubr.bf16.gmra.mrb[0].mxu0 %v376
    %v615 = vpop.f32.mrb[0].mxu0
    %v616 = vadd.f32 %v113, %v615
    %v617 = vpop.f32.mrb[0].mxu0
    %v618 = vpop.f32.mrb[0].mxu0
    %v619 = vadd.f32 %v113, %v618
    %v620 = vpop.f32.mrb[0].mxu0
    %621 = vmatprep.mubr.bf16.mxu0 0
    %622 = vmatmul.mubr.bf16.gmra.mrb[0].mxu0 %v379
    %v623 = vpop.f32.mrb[0].mxu0
    %v624 = vadd.f32 %v113, %v623
    %v625 = vpop.f32.mrb[0].mxu0
    %v626 = vpop.f32.mrb[0].mxu0
    %v627 = vadd.f32 %v113, %v626
    %v628 = vpop.f32.mrb[0].mxu0
    %629 = vmatprep.mubr.bf16.mxu0 0
    %630 = vmatmul.mubr.bf16.gmra.mrb[0].mxu0 %v382
    %v631 = vpop.f32.mrb[0].mxu0
    %v632 = vadd.f32 %v113, %v631
    %v633 = vpop.f32.mrb[0].mxu0
    %v634 = vpop.f32.mrb[0].mxu0
    %v635 = vadd.f32 %v113, %v634
    %v636 = vpop.f32.mrb[0].mxu0
    %637 = vmatprep.mubr.bf16.mxu0 0
    %638 = vmatmul.mubr.bf16.gmra.mrb[0].mxu0 %v385
    %v639 = vpop.f32.mrb[0].mxu0
    %v640 = vadd.f32 %v113, %v639
    %v641 = vpop.f32.mrb[0].mxu0
    %v642 = vpop.f32.mrb[0].mxu0
    %v643 = vadd.f32 %v113, %v642
    %v644 = vpop.f32.mrb[0].mxu0
    %645 = vmatprep.mubr.bf16.mxu0 0
    %646 = vmatmul.mubr.bf16.gmra.mrb[0].mxu0 %v388
    %v647 = vpop.f32.mrb[0].mxu0
    %v648 = vadd.f32 %v113, %v647
    %v649 = vpop.f32.mrb[0].mxu0
    %v650 = vpop.f32.mrb[0].mxu0
    %v651 = vadd.f32 %v113, %v650
    %v652 = vpop.f32.mrb[0].mxu0
    %653 = vmatprep.mubr.bf16.mxu0 0
    %654 = vmatmul.mubr.bf16.gmra.mrb[0].mxu0 %v391
    %v655 = vpop.f32.mrb[0].mxu0
    %v656 = vadd.f32 %v113, %v655
    %v657 = vpop.f32.mrb[0].mxu0
    %v658 = vpop.f32.mrb[0].mxu0
    %v659 = vadd.f32 %v113, %v658
    %v660 = vpop.f32.mrb[0].mxu0
    %661 = vmatprep.mubr.bf16.mxu0 0
    %662 = vmatmul.mubr.bf16.gmra.mrb[0].mxu0 %v394
    %v663 = vpop.f32.mrb[0].mxu0
    %v664 = vadd.f32 %v113, %v663
    %v665 = vpop.f32.mrb[0].mxu0
    %v666 = vpop.f32.mrb[0].mxu0
    %v667 = vadd.f32 %v113, %v666
    %v668 = vpop.f32.mrb[0].mxu0
    %669 = vmatprep.mubr.bf16.mxu0 0
    %670 = vmatmul.mubr.bf16.gmra.mrb[0].mxu0 %v397
    %v671 = vpop.f32.mrb[0].mxu0
    %v672 = vadd.f32 %v113, %v671
    %v673 = vpop.f32.mrb[0].mxu0
    %v674 = vpop.f32.mrb[0].mxu0
    %v675 = vadd.f32 %v113, %v674
    %v676 = vpop.f32.mrb[0].mxu0
    %677 = vmatprep.mubr.bf16.mxu0 0
    %678 = vmatmul.mubr.bf16.gmra.mrb[0].mxu0 %v400
    %v679 = vpop.f32.mrb[0].mxu0
    %v680 = vadd.f32 %v113, %v679
    %v681 = vpop.f32.mrb[0].mxu0
    %v682 = vpop.f32.mrb[0].mxu0
    %v683 = vadd.f32 %v113, %v682
    %v684 = vpop.f32.mrb[0].mxu0
    %685 = vmatprep.mubr.bf16.mxu0 0
    %686 = vmatmul.mubr.bf16.gmra.mrb[0].mxu0 %v403
    %v687 = vpop.f32.mrb[0].mxu0
    %v688 = vadd.f32 %v113, %v687
    %v689 = vpop.f32.mrb[0].mxu0
    %v690 = vpop.f32.mrb[0].mxu0
    %v691 = vadd.f32 %v113, %v690
    %v692 = vpop.f32.mrb[0].mxu0
    %693 = vmatprep.mubr.bf16.mxu0 0
    %694 = vmatmul.mubr.bf16.gmra.mrb[0].mxu0 %v406
    %v695 = vpop.f32.mrb[0].mxu0
    %v696 = vadd.f32 %v113, %v695
    %v697 = vpop.f32.mrb[0].mxu0
    %v698 = vpop.f32.mrb[0].mxu0
    %v699 = vadd.f32 %v113, %v698
    %v700 = vpop.f32.mrb[0].mxu0
    %701 = vmatprep.mubr.bf16.mxu0 0
    %702 = vmatmul.mubr.bf16.gmra.mrb[0].mxu0 %v409
    %v703 = vpop.f32.mrb[0].mxu0
    %v704 = vadd.f32 %v113, %v703
    %v705 = vpop.f32.mrb[0].mxu0
    %v706 = vpop.f32.mrb[0].mxu0
    %v707 = vadd.f32 %v113, %v706
    %v708 = vpop.f32.mrb[0].mxu0
    %709 = vmatprep.mubr.bf16.mxu0 0
    %710 = vmatmul.mubr.bf16.gmra.mrb[0].mxu0 %v412
    %v711 = vpop.f32.mrb[0].mxu0
    %v712 = vadd.f32 %v113, %v711
    %v713 = vpop.f32.mrb[0].mxu0
    %v714 = vpop.f32.mrb[0].mxu0
    %v715 = vadd.f32 %v113, %v714
    %v716 = vpop.f32.mrb[0].mxu0
    %717 = vmatprep.mubr.bf16.mxu0 0
    %718 = vmatmul.mubr.bf16.gmra.mrb[0].mxu0 %v415
    %v719 = vpop.f32.mrb[0].mxu0
    %v720 = vadd.f32 %v113, %v719
    %v721 = vpop.f32.mrb[0].mxu0
    %v722 = vpop.f32.mrb[0].mxu0
    %v723 = vadd.f32 %v113, %v722
    %v724 = vpop.f32.mrb[0].mxu0
    %725 = vmatprep.mubr.bf16.mxu0 0
    %726 = vmatmul.mubr.bf16.gmra.mrb[0].mxu0 %v418
    %v727 = vpop.f32.mrb[0].mxu0
    %v728 = vadd.f32 %v113, %v727
    %v729 = vpop.f32.mrb[0].mxu0
    %v730 = vpop.f32.mrb[0].mxu0
    %v731 = vadd.f32 %v113, %v730
    %v732 = vpop.f32.mrb[0].mxu0
    %733 = vmatprep.mubr.bf16.mxu0 0
    %734 = vmatmul.mubr.bf16.gmra.mrb[0].mxu0 %v421
    %v735 = vpop.f32.mrb[0].mxu0
    %v736 = vadd.f32 %v113, %v735
    %v737 = vpop.f32.mrb[0].mxu0
    %v738 = vpop.f32.mrb[0].mxu0
    %v739 = vadd.f32 %v113, %v738
    %v740 = vpop.f32.mrb[0].mxu0
    %741 = vmatprep.mubr.bf16.mxu0 0
    %742 = vmatmul.mubr.bf16.gmra.mrb[0].mxu0 %v424
    %v743 = vpop.f32.mrb[0].mxu0
    %v744 = vadd.f32 %v113, %v743
    %v745 = vpop.f32.mrb[0].mxu0
    %v746 = vpop.f32.mrb[0].mxu0
    %v747 = vadd.f32 %v113, %v746
    %v748 = vpop.f32.mrb[0].mxu0
    %749 = vmatprep.mubr.bf16.mxu0 0
    %750 = vmatmul.mubr.bf16.gmra.mrb[0].mxu0 %v427
    %v751 = vpop.f32.mrb[0].mxu0
    %v752 = vadd.f32 %v113, %v751
    %v753 = vpop.f32.mrb[0].mxu0
    %v754 = vpop.f32.mrb[0].mxu0
    %v755 = vadd.f32 %v113, %v754
    %v756 = vpop.f32.mrb[0].mxu0
    %757 = vmatprep.mubr.bf16.mxu0 0
    %758 = vmatmul.mubr.bf16.gmra.mrb[0].mxu0 %v430
    %v759 = vpop.f32.mrb[0].mxu0
    %v760 = vadd.f32 %v113, %v759
    %v761 = vpop.f32.mrb[0].mxu0
    %v762 = vpop.f32.mrb[0].mxu0
    %v763 = vadd.f32 %v113, %v762
    %v764 = vpop.f32.mrb[0].mxu0
    %765 = vmatprep.mubr.bf16.mxu0 0
    %766 = vmatmul.mubr.bf16.gmra.mrb[0].mxu0 %v433
    %v767 = vpop.f32.mrb[0].mxu0
    %v768 = vadd.f32 %v113, %v767
    %v769 = vpop.f32.mrb[0].mxu0
    %v770 = vpop.f32.mrb[0].mxu0
    %v771 = vadd.f32 %v113, %v770
    %v772 = vpop.f32.mrb[0].mxu0
    %773 = vmatprep.mubr.bf16.mxu0 0
    %774 = vmatmul.mubr.bf16.gmra.mrb[0].mxu0 %v436
    %v775 = vpop.f32.mrb[0].mxu0
    %v776 = vadd.f32 %v113, %v775
    %v777 = vpop.f32.mrb[0].mxu0
    %v778 = vpop.f32.mrb[0].mxu0
    %v779 = vadd.f32 %v113, %v778
    %v780 = vpop.f32.mrb[0].mxu0
    %781 = vmatprep.mubr.bf16.mxu0 0
    %782 = vmatmul.mubr.bf16.gmra.mrb[0].mxu0 %v439
    %v783 = vpop.f32.mrb[0].mxu0
    %v784 = vadd.f32 %v113, %v783
    %v785 = vpop.f32.mrb[0].mxu0
    %v786 = vpop.f32.mrb[0].mxu0
    %v787 = vadd.f32 %v113, %v786
    %v788 = vpop.f32.mrb[0].mxu0
    %789 = vmatprep.mubr.bf16.mxu0 0
    %790 = vmatmul.mubr.bf16.gmra.mrb[0].mxu0 %v442
    %v791 = vpop.f32.mrb[0].mxu0
    %v792 = vadd.f32 %v113, %v791
    %v793 = vpop.f32.mrb[0].mxu0
    %v794 = vpop.f32.mrb[0].mxu0
    %v795 = vadd.f32 %v113, %v794
    %v796 = vpop.f32.mrb[0].mxu0
    %797 = vmatprep.mubr.bf16.mxu0 0
    %798 = vmatmul.mubr.bf16.gmra.mrb[0].mxu0 %v445
    %v799 = vpop.f32.mrb[0].mxu0
    %v800 = vadd.f32 %v113, %v799
    %v801 = vpop.f32.mrb[0].mxu0
    %v802 = vpop.f32.mrb[0].mxu0
    %v803 = vadd.f32 %v113, %v802
    %v804 = vpop.f32.mrb[0].mxu0
    %805 = vmatprep.mubr.bf16.mxu0 0
    %806 = vmatmul.mubr.bf16.gmra.mrb[0].mxu0 %v448
    %v807 = vpop.f32.mrb[0].mxu0
    %v808 = vadd.f32 %v113, %v807
    %v809 = vpop.f32.mrb[0].mxu0
    %v810 = vpop.f32.mrb[0].mxu0
    %v811 = vadd.f32 %v113, %v810
    %v812 = vpop.f32.mrb[0].mxu0
    %813 = vmatprep.mubr.bf16.mxu0 0
    %814 = vmatmul.mubr.bf16.gmra.mrb[0].mxu0 %v451
    %v815 = vpop.f32.mrb[0].mxu0
    %v816 = vadd.f32 %v113, %v815
    %v817 = vpop.f32.mrb[0].mxu0
    %v818 = vpop.f32.mrb[0].mxu0
    %v819 = vadd.f32 %v113, %v818
    %v820 = vpop.f32.mrb[0].mxu0
    %821 = vmatprep.mubr.bf16.mxu0 0
    %822 = vmatmul.mubr.bf16.gmra.mrb[0].mxu0 %v454
    %v823 = vpop.f32.mrb[0].mxu0
    %v824 = vadd.f32 %v113, %v823
    %v825 = vpop.f32.mrb[0].mxu0
    %v826 = vpop.f32.mrb[0].mxu0
    %v827 = vadd.f32 %v113, %v826
    %v828 = vpop.f32.mrb[0].mxu0
    %829 = vmatprep.mubr.bf16.mxu0 0
    %830 = vmatmul.mubr.bf16.gmra.mrb[0].mxu0 %v457
    %v831 = vpop.f32.mrb[0].mxu0
    %v832 = vadd.f32 %v113, %v831
    %v833 = vpop.f32.mrb[0].mxu0
    %v834 = vpop.f32.mrb[0].mxu0
    %v835 = vadd.f32 %v113, %v834
    %v836 = vpop.f32.mrb[0].mxu0
    %837 = vmatprep.mubr.bf16.mxu0 0
    %838 = vmatmul.mubr.bf16.gmra.mrb[0].mxu0 %v460
    %v839 = vpop.f32.mrb[0].mxu0
    %v840 = vadd.f32 %v113, %v839
    %v841 = vpop.f32.mrb[0].mxu0
    %v842 = vpop.f32.mrb[0].mxu0
    %v843 = vpop.f32.mrb[0].mxu0
    %844 = vdwg.mxu0
    %v845 = vmax.f32 %v504, 0.0
    %v846 = vmax.f32 %v507, 0.0
    %v847 = vmax.f32 %v512, 0.0
    %v848 = vmax.f32 %v515, 0.0
    %v849 = vmax.f32 %v520, 0.0
    %v850 = vmax.f32 %v523, 0.0
    %v851 = vmax.f32 %v528, 0.0
    %v852 = vmax.f32 %v531, 0.0
    %v853 = vmax.f32 %v536, 0.0
    %v854 = vmax.f32 %v539, 0.0
    %v855 = vmax.f32 %v544, 0.0
    %v856 = vmax.f32 %v547, 0.0
    %v857 = vmax.f32 %v552, 0.0
    %v858 = vmax.f32 %v555, 0.0
    %v859 = vmax.f32 %v560, 0.0
    %v860 = vmax.f32 %v563, 0.0
    %v861 = vmax.f32 %v568, 0.0
    %v862 = vmax.f32 %v571, 0.0
    %v863 = vmax.f32 %v576, 0.0
    %v864 = vmax.f32 %v579, 0.0
    %v865 = vmax.f32 %v584, 0.0
    %v866 = vmax.f32 %v587, 0.0
    %v867 = vmax.f32 %v592, 0.0
    %v868 = vmax.f32 %v595, 0.0
    %v869 = vmax.f32 %v600, 0.0
    %v870 = vmax.f32 %v603, 0.0
    %v871 = vmax.f32 %v608, 0.0
    %v872 = vmax.f32 %v611, 0.0
    %v873 = vmax.f32 %v616, 0.0
    %v874 = vmax.f32 %v619, 0.0
    %v875 = vmax.f32 %v624, 0.0
    %v876 = vmax.f32 %v627, 0.0
    %v877 = vmax.f32 %v632, 0.0
    %v878 = vmax.f32 %v635, 0.0
    %v879 = vmax.f32 %v640, 0.0
    %v880 = vmax.f32 %v643, 0.0
    %v881 = vmax.f32 %v648, 0.0
    %v882 = vmax.f32 %v651, 0.0
    %v883 = vmax.f32 %v656, 0.0
    %v884 = vmax.f32 %v659, 0.0
    %v885 = vmax.f32 %v664, 0.0
    %v886 = vmax.f32 %v667, 0.0
    %v887 = vmax.f32 %v672, 0.0
    %v888 = vmax.f32 %v675, 0.0
    %v889 = vmax.f32 %v680, 0.0
    %v890 = vmax.f32 %v683, 0.0
    %v891 = vmax.f32 %v688, 0.0
    %v892 = vmax.f32 %v691, 0.0
    %v893 = vmax.f32 %v696, 0.0
    %v894 = vmax.f32 %v699, 0.0
    %v895 = vmax.f32 %v704, 0.0
    %v896 = vmax.f32 %v707, 0.0
    %v897 = vmax.f32 %v712, 0.0
    %v898 = vmax.f32 %v715, 0.0
    %v899 = vmax.f32 %v720, 0.0
    %v900 = vmax.f32 %v723, 0.0
    %v901 = vmax.f32 %v728, 0.0
    %v902 = vmax.f32 %v731, 0.0
    %v903 = vmax.f32 %v736, 0.0
    %v904 = vmax.f32 %v739, 0.0
    %v905 = vmax.f32 %v744, 0.0
    %v906 = vmax.f32 %v747, 0.0
    %v907 = vmax.f32 %v752, 0.0
    %v908 = vmax.f32 %v755, 0.0
    %v909 = vmax.f32 %v760, 0.0
    %v910 = vmax.f32 %v763, 0.0
    %v911 = vmax.f32 %v768, 0.0
    %v912 = vmax.f32 %v771, 0.0
    %v913 = vmax.f32 %v776, 0.0
    %v914 = vmax.f32 %v779, 0.0
    %v915 = vmax.f32 %v784, 0.0
    %v916 = vmax.f32 %v787, 0.0
    %v917 = vmax.f32 %v792, 0.0
    %v918 = vmax.f32 %v795, 0.0
    %v919 = vmax.f32 %v800, 0.0
    %v920 = vmax.f32 %v803, 0.0
    %v921 = vmax.f32 %v808, 0.0
    %v922 = vmax.f32 %v811, 0.0
    %v923 = vmax.f32 %v816, 0.0
    %v924 = vmax.f32 %v819, 0.0
    %v925 = vmax.f32 %v824, 0.0
    %v926 = vmax.f32 %v827, 0.0
    %v927 = vmax.f32 %v832, 0.0
    %v928 = vmax.f32 %v835, 0.0
    %v929 = vmax.f32 %v840, 0.0
    %vm930 = vcmask 261120
    %v931 = vsel %vm930, %v845, 0.0
    %v932 = vsel %vm930, %v846, 0.0
    %v933 = vadd.f32 %v931, %v932
    %v934 = vsel %vm930, %v847, 0.0
    %v935 = vadd.f32 %v933, %v934
    %v936 = vsel %vm930, %v848, 0.0
    %v937 = vadd.f32 %v935, %v936
    %v938 = vsel %vm930, %v849, 0.0
    %v939 = vadd.f32 %v937, %v938
    %v940 = vsel %vm930, %v850, 0.0
    %v941 = vadd.f32 %v939, %v940
    %v942 = vsel %vm930, %v851, 0.0
    %v943 = vadd.f32 %v941, %v942
    %v944 = vsel %vm930, %v852, 0.0
    %v945 = vadd.f32 %v943, %v944
    %v946 = vsel %vm930, %v853, 0.0
    %v947 = vadd.f32 %v945, %v946
    %v948 = vsel %vm930, %v854, 0.0
    %v949 = vadd.f32 %v947, %v948
    %v950 = vsel %vm930, %v855, 0.0
    %v951 = vadd.f32 %v949, %v950
    %v952 = vsel %vm930, %v856, 0.0
    %v953 = vadd.f32 %v951, %v952
    %v954 = vsel %vm930, %v857, 0.0
    %v955 = vadd.f32 %v953, %v954
    %v956 = vsel %vm930, %v858, 0.0
    %v957 = vadd.f32 %v955, %v956
    %v958 = vsel %vm930, %v859, 0.0
    %v959 = vadd.f32 %v957, %v958
    %v960 = vsel %vm930, %v860, 0.0
    %v961 = vadd.f32 %v959, %v960
    %v962 = vsel %vm930, %v861, 0.0
    %v963 = vadd.f32 %v961, %v962
    %v964 = vsel %vm930, %v862, 0.0
    %v965 = vadd.f32 %v963, %v964
    %v966 = vsel %vm930, %v863, 0.0
    %v967 = vadd.f32 %v965, %v966
    %v968 = vsel %vm930, %v864, 0.0
    %v969 = vadd.f32 %v967, %v968
    %v970 = vsel %vm930, %v865, 0.0
    %v971 = vadd.f32 %v969, %v970
    %v972 = vsel %vm930, %v866, 0.0
    %v973 = vadd.f32 %v971, %v972
    %v974 = vsel %vm930, %v867, 0.0
    %v975 = vadd.f32 %v973, %v974
    %v976 = vsel %vm930, %v868, 0.0
    %v977 = vadd.f32 %v975, %v976
    %v978 = vsel %vm930, %v869, 0.0
    %v979 = vadd.f32 %v977, %v978
    %v980 = vsel %vm930, %v870, 0.0
    %v981 = vadd.f32 %v979, %v980
    %v982 = vsel %vm930, %v871, 0.0
    %v983 = vadd.f32 %v981, %v982
    %v984 = vsel %vm930, %v872, 0.0
    %v985 = vadd.f32 %v983, %v984
    %v986 = vsel %vm930, %v873, 0.0
    %v987 = vadd.f32 %v985, %v986
    %v988 = vsel %vm930, %v874, 0.0
    %v989 = vadd.f32 %v987, %v988
    %v990 = vsel %vm930, %v875, 0.0
    %v991 = vadd.f32 %v989, %v990
    %v992 = vsel %vm930, %v876, 0.0
    %v993 = vadd.f32 %v991, %v992
    %v994 = vsel %vm930, %v877, 0.0
    %v995 = vadd.f32 %v993, %v994
    %v996 = vsel %vm930, %v878, 0.0
    %v997 = vadd.f32 %v995, %v996
    %v998 = vsel %vm930, %v879, 0.0
    %v999 = vadd.f32 %v997, %v998
    %v1000 = vsel %vm930, %v880, 0.0
    %v1001 = vadd.f32 %v999, %v1000
    %v1002 = vsel %vm930, %v881, 0.0
    %v1003 = vadd.f32 %v1001, %v1002
    %v1004 = vsel %vm930, %v882, 0.0
    %v1005 = vadd.f32 %v1003, %v1004
    %v1006 = vsel %vm930, %v883, 0.0
    %v1007 = vadd.f32 %v1005, %v1006
    %v1008 = vsel %vm930, %v884, 0.0
    %v1009 = vadd.f32 %v1007, %v1008
    %v1010 = vsel %vm930, %v885, 0.0
    %v1011 = vadd.f32 %v1009, %v1010
    %v1012 = vsel %vm930, %v886, 0.0
    %v1013 = vadd.f32 %v1011, %v1012
    %v1014 = vsel %vm930, %v887, 0.0
    %v1015 = vadd.f32 %v1013, %v1014
    %v1016 = vsel %vm930, %v888, 0.0
    %v1017 = vadd.f32 %v1015, %v1016
    %v1018 = vsel %vm930, %v889, 0.0
    %v1019 = vadd.f32 %v1017, %v1018
    %v1020 = vsel %vm930, %v890, 0.0
    %v1021 = vadd.f32 %v1019, %v1020
    %v1022 = vsel %vm930, %v891, 0.0
    %v1023 = vadd.f32 %v1021, %v1022
    %v1024 = vsel %vm930, %v892, 0.0
    %v1025 = vadd.f32 %v1023, %v1024
    %v1026 = vsel %vm930, %v893, 0.0
    %v1027 = vadd.f32 %v1025, %v1026
    %v1028 = vsel %vm930, %v894, 0.0
    %v1029 = vadd.f32 %v1027, %v1028
    %v1030 = vsel %vm930, %v895, 0.0
    %v1031 = vadd.f32 %v1029, %v1030
    %v1032 = vsel %vm930, %v896, 0.0
    %v1033 = vadd.f32 %v1031, %v1032
    %v1034 = vsel %vm930, %v897, 0.0
    %v1035 = vadd.f32 %v1033, %v1034
    %v1036 = vsel %vm930, %v898, 0.0
    %v1037 = vadd.f32 %v1035, %v1036
    %v1038 = vsel %vm930, %v899, 0.0
    %v1039 = vadd.f32 %v1037, %v1038
    %v1040 = vsel %vm930, %v900, 0.0
    %v1041 = vadd.f32 %v1039, %v1040
    %v1042 = vsel %vm930, %v901, 0.0
    %v1043 = vadd.f32 %v1041, %v1042
    %v1044 = vsel %vm930, %v902, 0.0
    %v1045 = vadd.f32 %v1043, %v1044
    %v1046 = vsel %vm930, %v903, 0.0
    %v1047 = vadd.f32 %v1045, %v1046
    %v1048 = vsel %vm930, %v904, 0.0
    %v1049 = vadd.f32 %v1047, %v1048
    %v1050 = vsel %vm930, %v905, 0.0
    %v1051 = vadd.f32 %v1049, %v1050
    %v1052 = vsel %vm930, %v906, 0.0
    %v1053 = vadd.f32 %v1051, %v1052
    %v1054 = vsel %vm930, %v907, 0.0
    %v1055 = vadd.f32 %v1053, %v1054
    %v1056 = vsel %vm930, %v908, 0.0
    %v1057 = vadd.f32 %v1055, %v1056
    %v1058 = vsel %vm930, %v909, 0.0
    %v1059 = vadd.f32 %v1057, %v1058
    %v1060 = vsel %vm930, %v910, 0.0
    %v1061 = vadd.f32 %v1059, %v1060
    %v1062 = vsel %vm930, %v911, 0.0
    %v1063 = vadd.f32 %v1061, %v1062
    %v1064 = vsel %vm930, %v912, 0.0
    %v1065 = vadd.f32 %v1063, %v1064
    %v1066 = vsel %vm930, %v913, 0.0
    %v1067 = vadd.f32 %v1065, %v1066
    %v1068 = vsel %vm930, %v914, 0.0
    %v1069 = vadd.f32 %v1067, %v1068
    %v1070 = vsel %vm930, %v915, 0.0
    %v1071 = vadd.f32 %v1069, %v1070
    %v1072 = vsel %vm930, %v916, 0.0
    %v1073 = vadd.f32 %v1071, %v1072
    %v1074 = vsel %vm930, %v917, 0.0
    %v1075 = vadd.f32 %v1073, %v1074
    %v1076 = vsel %vm930, %v918, 0.0
    %v1077 = vadd.f32 %v1075, %v1076
    %v1078 = vsel %vm930, %v919, 0.0
    %v1079 = vadd.f32 %v1077, %v1078
    %v1080 = vsel %vm930, %v920, 0.0
    %v1081 = vadd.f32 %v1079, %v1080
    %v1082 = vsel %vm930, %v921, 0.0
    %v1083 = vadd.f32 %v1081, %v1082
    %v1084 = vsel %vm930, %v922, 0.0
    %v1085 = vadd.f32 %v1083, %v1084
    %v1086 = vsel %vm930, %v923, 0.0
    %v1087 = vadd.f32 %v1085, %v1086
    %v1088 = vsel %vm930, %v924, 0.0
    %v1089 = vadd.f32 %v1087, %v1088
    %v1090 = vsel %vm930, %v925, 0.0
    %v1091 = vadd.f32 %v1089, %v1090
    %v1092 = vsel %vm930, %v926, 0.0
    %v1093 = vadd.f32 %v1091, %v1092
    %v1094 = vsel %vm930, %v927, 0.0
    %v1095 = vadd.f32 %v1093, %v1094
    %v1096 = vsel %vm930, %v928, 0.0
    %v1097 = vadd.f32 %v1095, %v1096
    %vm1098 = vcmask 257024
    %v1099 = vsel %vm1098, %v929, 0.0
    %v1100 = vadd.f32 %v1097, %v1099
    %v1101 = vrot.slane %v1100, 4
    %v1102 = vadd.f32 %v1100, %v1101
    %v1103 = vrot.slane %v1102, 2
    %v1104 = vadd.f32 %v1102, %v1103
    %v1105 = vrot.slane %v1104, 1
    %v1106 = vadd.f32 %v1104, %v1105
    %v1107 = vmul.f32 %v845, %v845
    %v1108 = vmul.f32 %v846, %v846
    %v1109 = vmul.f32 %v847, %v847
    %v1110 = vmul.f32 %v848, %v848
    %v1111 = vmul.f32 %v849, %v849
    %v1112 = vmul.f32 %v850, %v850
    %v1113 = vmul.f32 %v851, %v851
    %v1114 = vmul.f32 %v852, %v852
    %v1115 = vmul.f32 %v853, %v853
    %v1116 = vmul.f32 %v854, %v854
    %v1117 = vmul.f32 %v855, %v855
    %v1118 = vmul.f32 %v856, %v856
    %v1119 = vmul.f32 %v857, %v857
    %v1120 = vmul.f32 %v858, %v858
    %v1121 = vmul.f32 %v859, %v859
    %v1122 = vmul.f32 %v860, %v860
    %v1123 = vmul.f32 %v861, %v861
    %v1124 = vmul.f32 %v862, %v862
    %v1125 = vmul.f32 %v863, %v863
    %v1126 = vmul.f32 %v864, %v864
    %v1127 = vmul.f32 %v865, %v865
    %v1128 = vmul.f32 %v866, %v866
    %v1129 = vmul.f32 %v867, %v867
    %v1130 = vmul.f32 %v868, %v868
    %v1131 = vmul.f32 %v869, %v869
    %v1132 = vmul.f32 %v870, %v870
    %v1133 = vmul.f32 %v871, %v871
    %v1134 = vmul.f32 %v872, %v872
    %v1135 = vmul.f32 %v873, %v873
    %v1136 = vmul.f32 %v874, %v874
    %v1137 = vmul.f32 %v875, %v875
    %v1138 = vmul.f32 %v876, %v876
    %v1139 = vmul.f32 %v877, %v877
    %v1140 = vmul.f32 %v878, %v878
    %v1141 = vmul.f32 %v879, %v879
    %v1142 = vmul.f32 %v880, %v880
    %v1143 = vmul.f32 %v881, %v881
    %v1144 = vmul.f32 %v882, %v882
    %v1145 = vmul.f32 %v883, %v883
    %v1146 = vmul.f32 %v884, %v884
    %v1147 = vmul.f32 %v885, %v885
    %v1148 = vmul.f32 %v886, %v886
    %v1149 = vmul.f32 %v887, %v887
    %v1150 = vmul.f32 %v888, %v888
    %v1151 = vmul.f32 %v889, %v889
    %v1152 = vmul.f32 %v890, %v890
    %v1153 = vmul.f32 %v891, %v891
    %v1154 = vmul.f32 %v892, %v892
    %v1155 = vmul.f32 %v893, %v893
    %v1156 = vmul.f32 %v894, %v894
    %v1157 = vmul.f32 %v895, %v895
    %v1158 = vmul.f32 %v896, %v896
    %v1159 = vmul.f32 %v897, %v897
    %v1160 = vmul.f32 %v898, %v898
    %v1161 = vmul.f32 %v899, %v899
    %v1162 = vmul.f32 %v900, %v900
    %v1163 = vmul.f32 %v901, %v901
    %v1164 = vmul.f32 %v902, %v902
    %v1165 = vmul.f32 %v903, %v903
    %v1166 = vmul.f32 %v904, %v904
    %v1167 = vmul.f32 %v905, %v905
    %v1168 = vmul.f32 %v906, %v906
    %v1169 = vmul.f32 %v907, %v907
    %v1170 = vmul.f32 %v908, %v908
    %v1171 = vmul.f32 %v909, %v909
    %v1172 = vmul.f32 %v910, %v910
    %v1173 = vmul.f32 %v911, %v911
    %v1174 = vmul.f32 %v912, %v912
    %v1175 = vmul.f32 %v913, %v913
    %v1176 = vmul.f32 %v914, %v914
    %v1177 = vmul.f32 %v915, %v915
    %v1178 = vmul.f32 %v916, %v916
    %v1179 = vmul.f32 %v917, %v917
    %v1180 = vmul.f32 %v918, %v918
    %v1181 = vmul.f32 %v919, %v919
    %v1182 = vmul.f32 %v920, %v920
    %v1183 = vmul.f32 %v921, %v921
    %v1184 = vmul.f32 %v922, %v922
    %v1185 = vmul.f32 %v923, %v923
    %v1186 = vmul.f32 %v924, %v924
    %v1187 = vmul.f32 %v925, %v925
    %v1188 = vmul.f32 %v926, %v926
    %v1189 = vmul.f32 %v927, %v927
    %v1190 = vmul.f32 %v928, %v928
    %v1191 = vmul.f32 %v929, %v929
    %v1192 = vsel %vm930, %v1107, 0.0
    %v1193 = vsel %vm930, %v1108, 0.0
    %v1194 = vadd.f32 %v1192, %v1193
    %v1195 = vsel %vm930, %v1109, 0.0
    %v1196 = vadd.f32 %v1194, %v1195
    %v1197 = vsel %vm930, %v1110, 0.0
    %v1198 = vadd.f32 %v1196, %v1197
    %v1199 = vsel %vm930, %v1111, 0.0
    %v1200 = vadd.f32 %v1198, %v1199
    %v1201 = vsel %vm930, %v1112, 0.0
    %v1202 = vadd.f32 %v1200, %v1201
    %v1203 = vsel %vm930, %v1113, 0.0
    %v1204 = vadd.f32 %v1202, %v1203
    %v1205 = vsel %vm930, %v1114, 0.0
    %v1206 = vadd.f32 %v1204, %v1205
    %v1207 = vsel %vm930, %v1115, 0.0
    %v1208 = vadd.f32 %v1206, %v1207
    %v1209 = vsel %vm930, %v1116, 0.0
    %v1210 = vadd.f32 %v1208, %v1209
    %v1211 = vsel %vm930, %v1117, 0.0
    %v1212 = vadd.f32 %v1210, %v1211
    %v1213 = vsel %vm930, %v1118, 0.0
    %v1214 = vadd.f32 %v1212, %v1213
    %v1215 = vsel %vm930, %v1119, 0.0
    %v1216 = vadd.f32 %v1214, %v1215
    %v1217 = vsel %vm930, %v1120, 0.0
    %v1218 = vadd.f32 %v1216, %v1217
    %v1219 = vsel %vm930, %v1121, 0.0
    %v1220 = vadd.f32 %v1218, %v1219
    %v1221 = vsel %vm930, %v1122, 0.0
    %v1222 = vadd.f32 %v1220, %v1221
    %v1223 = vsel %vm930, %v1123, 0.0
    %v1224 = vadd.f32 %v1222, %v1223
    %v1225 = vsel %vm930, %v1124, 0.0
    %v1226 = vadd.f32 %v1224, %v1225
    %v1227 = vsel %vm930, %v1125, 0.0
    %v1228 = vadd.f32 %v1226, %v1227
    %v1229 = vsel %vm930, %v1126, 0.0
    %v1230 = vadd.f32 %v1228, %v1229
    %v1231 = vsel %vm930, %v1127, 0.0
    %v1232 = vadd.f32 %v1230, %v1231
    %v1233 = vsel %vm930, %v1128, 0.0
    %v1234 = vadd.f32 %v1232, %v1233
    %v1235 = vsel %vm930, %v1129, 0.0
    %v1236 = vadd.f32 %v1234, %v1235
    %v1237 = vsel %vm930, %v1130, 0.0
    %v1238 = vadd.f32 %v1236, %v1237
    %v1239 = vsel %vm930, %v1131, 0.0
    %v1240 = vadd.f32 %v1238, %v1239
    %v1241 = vsel %vm930, %v1132, 0.0
    %v1242 = vadd.f32 %v1240, %v1241
    %v1243 = vsel %vm930, %v1133, 0.0
    %v1244 = vadd.f32 %v1242, %v1243
    %v1245 = vsel %vm930, %v1134, 0.0
    %v1246 = vadd.f32 %v1244, %v1245
    %v1247 = vsel %vm930, %v1135, 0.0
    %v1248 = vadd.f32 %v1246, %v1247
    %v1249 = vsel %vm930, %v1136, 0.0
    %v1250 = vadd.f32 %v1248, %v1249
    %v1251 = vsel %vm930, %v1137, 0.0
    %v1252 = vadd.f32 %v1250, %v1251
    %v1253 = vsel %vm930, %v1138, 0.0
    %v1254 = vadd.f32 %v1252, %v1253
    %v1255 = vsel %vm930, %v1139, 0.0
    %v1256 = vadd.f32 %v1254, %v1255
    %v1257 = vsel %vm930, %v1140, 0.0
    %v1258 = vadd.f32 %v1256, %v1257
    %v1259 = vsel %vm930, %v1141, 0.0
    %v1260 = vadd.f32 %v1258, %v1259
    %v1261 = vsel %vm930, %v1142, 0.0
    %v1262 = vadd.f32 %v1260, %v1261
    %v1263 = vsel %vm930, %v1143, 0.0
    %v1264 = vadd.f32 %v1262, %v1263
    %v1265 = vsel %vm930, %v1144, 0.0
    %v1266 = vadd.f32 %v1264, %v1265
    %v1267 = vsel %vm930, %v1145, 0.0
    %v1268 = vadd.f32 %v1266, %v1267
    %v1269 = vsel %vm930, %v1146, 0.0
    %v1270 = vadd.f32 %v1268, %v1269
    %v1271 = vsel %vm930, %v1147, 0.0
    %v1272 = vadd.f32 %v1270, %v1271
    %v1273 = vsel %vm930, %v1148, 0.0
    %v1274 = vadd.f32 %v1272, %v1273
    %v1275 = vsel %vm930, %v1149, 0.0
    %v1276 = vadd.f32 %v1274, %v1275
    %v1277 = vsel %vm930, %v1150, 0.0
    %v1278 = vadd.f32 %v1276, %v1277
    %v1279 = vsel %vm930, %v1151, 0.0
    %v1280 = vadd.f32 %v1278, %v1279
    %v1281 = vsel %vm930, %v1152, 0.0
    %v1282 = vadd.f32 %v1280, %v1281
    %v1283 = vsel %vm930, %v1153, 0.0
    %v1284 = vadd.f32 %v1282, %v1283
    %v1285 = vsel %vm930, %v1154, 0.0
    %v1286 = vadd.f32 %v1284, %v1285
    %v1287 = vsel %vm930, %v1155, 0.0
    %v1288 = vadd.f32 %v1286, %v1287
    %v1289 = vsel %vm930, %v1156, 0.0
    %v1290 = vadd.f32 %v1288, %v1289
    %v1291 = vsel %vm930, %v1157, 0.0
    %v1292 = vadd.f32 %v1290, %v1291
    %v1293 = vsel %vm930, %v1158, 0.0
    %v1294 = vadd.f32 %v1292, %v1293
    %v1295 = vsel %vm930, %v1159, 0.0
    %v1296 = vadd.f32 %v1294, %v1295
    %v1297 = vsel %vm930, %v1160, 0.0
    %v1298 = vadd.f32 %v1296, %v1297
    %v1299 = vsel %vm930, %v1161, 0.0
    %v1300 = vadd.f32 %v1298, %v1299
    %v1301 = vsel %vm930, %v1162, 0.0
    %v1302 = vadd.f32 %v1300, %v1301
    %v1303 = vsel %vm930, %v1163, 0.0
    %v1304 = vadd.f32 %v1302, %v1303
    %v1305 = vsel %vm930, %v1164, 0.0
    %v1306 = vadd.f32 %v1304, %v1305
    %v1307 = vsel %vm930, %v1165, 0.0
    %v1308 = vadd.f32 %v1306, %v1307
    %v1309 = vsel %vm930, %v1166, 0.0
    %v1310 = vadd.f32 %v1308, %v1309
    %v1311 = vsel %vm930, %v1167, 0.0
    %v1312 = vadd.f32 %v1310, %v1311
    %v1313 = vsel %vm930, %v1168, 0.0
    %v1314 = vadd.f32 %v1312, %v1313
    %v1315 = vsel %vm930, %v1169, 0.0
    %v1316 = vadd.f32 %v1314, %v1315
    %v1317 = vsel %vm930, %v1170, 0.0
    %v1318 = vadd.f32 %v1316, %v1317
    %v1319 = vsel %vm930, %v1171, 0.0
    %v1320 = vadd.f32 %v1318, %v1319
    %v1321 = vsel %vm930, %v1172, 0.0
    %v1322 = vadd.f32 %v1320, %v1321
    %v1323 = vsel %vm930, %v1173, 0.0
    %v1324 = vadd.f32 %v1322, %v1323
    %v1325 = vsel %vm930, %v1174, 0.0
    %v1326 = vadd.f32 %v1324, %v1325
    %v1327 = vsel %vm930, %v1175, 0.0
    %v1328 = vadd.f32 %v1326, %v1327
    %v1329 = vsel %vm930, %v1176, 0.0
    %v1330 = vadd.f32 %v1328, %v1329
    %v1331 = vsel %vm930, %v1177, 0.0
    %v1332 = vadd.f32 %v1330, %v1331
    %v1333 = vsel %vm930, %v1178, 0.0
    %v1334 = vadd.f32 %v1332, %v1333
    %v1335 = vsel %vm930, %v1179, 0.0
    %v1336 = vadd.f32 %v1334, %v1335
    %v1337 = vsel %vm930, %v1180, 0.0
    %v1338 = vadd.f32 %v1336, %v1337
    %v1339 = vsel %vm930, %v1181, 0.0
    %v1340 = vadd.f32 %v1338, %v1339
    %v1341 = vsel %vm930, %v1182, 0.0
    %v1342 = vadd.f32 %v1340, %v1341
    %v1343 = vsel %vm930, %v1183, 0.0
    %v1344 = vadd.f32 %v1342, %v1343
    %v1345 = vsel %vm930, %v1184, 0.0
    %v1346 = vadd.f32 %v1344, %v1345
    %v1347 = vsel %vm930, %v1185, 0.0
    %v1348 = vadd.f32 %v1346, %v1347
    %v1349 = vsel %vm930, %v1186, 0.0
    %v1350 = vadd.f32 %v1348, %v1349
    %v1351 = vsel %vm930, %v1187, 0.0
    %v1352 = vadd.f32 %v1350, %v1351
    %v1353 = vsel %vm930, %v1188, 0.0
    %v1354 = vadd.f32 %v1352, %v1353
    %v1355 = vsel %vm930, %v1189, 0.0
    %v1356 = vadd.f32 %v1354, %v1355
    %v1357 = vsel %vm930, %v1190, 0.0
    %v1358 = vadd.f32 %v1356, %v1357
    %v1359 = vsel %vm1098, %v1191, 0.0
    %v1360 = vadd.f32 %v1358, %v1359
    %v1361 = vrot.slane %v1360, 4
    %v1362 = vadd.f32 %v1360, %v1361
    %v1363 = vrot.slane %v1362, 2
    %v1364 = vadd.f32 %v1362, %v1363
    %v1365 = vrot.slane %v1364, 1
    %v1366 = vadd.f32 %v1364, %v1365
    %v1367 = vmul.f32 %v1106, 0.00147929
    %v1368 = vmul.f32 %v1366, 0.00147929
    %v1369 = vmul.f32 %v1367, %v1367
    %v1370 = vsub.f32 %v1368, %v1369
    %v1371 = vmax.f32 %v1370, 0.0
    %v1372 = vsub.f32 %v845, %v1367
    %v1373 = vsub.f32 %v846, %v1367
    %v1374 = vsub.f32 %v847, %v1367
    %v1375 = vsub.f32 %v848, %v1367
    %v1376 = vsub.f32 %v849, %v1367
    %v1377 = vsub.f32 %v850, %v1367
    %v1378 = vsub.f32 %v851, %v1367
    %v1379 = vsub.f32 %v852, %v1367
    %v1380 = vsub.f32 %v853, %v1367
    %v1381 = vsub.f32 %v854, %v1367
    %v1382 = vsub.f32 %v855, %v1367
    %v1383 = vsub.f32 %v856, %v1367
    %v1384 = vsub.f32 %v857, %v1367
    %v1385 = vsub.f32 %v858, %v1367
    %v1386 = vsub.f32 %v859, %v1367
    %v1387 = vsub.f32 %v860, %v1367
    %v1388 = vsub.f32 %v861, %v1367
    %v1389 = vsub.f32 %v862, %v1367
    %v1390 = vsub.f32 %v863, %v1367
    %v1391 = vsub.f32 %v864, %v1367
    %v1392 = vsub.f32 %v865, %v1367
    %v1393 = vsub.f32 %v866, %v1367
    %v1394 = vsub.f32 %v867, %v1367
    %v1395 = vsub.f32 %v868, %v1367
    %v1396 = vsub.f32 %v869, %v1367
    %v1397 = vsub.f32 %v870, %v1367
    %v1398 = vsub.f32 %v871, %v1367
    %v1399 = vsub.f32 %v872, %v1367
    %v1400 = vsub.f32 %v873, %v1367
    %v1401 = vsub.f32 %v874, %v1367
    %v1402 = vsub.f32 %v875, %v1367
    %v1403 = vsub.f32 %v876, %v1367
    %v1404 = vsub.f32 %v877, %v1367
    %v1405 = vsub.f32 %v878, %v1367
    %v1406 = vsub.f32 %v879, %v1367
    %v1407 = vsub.f32 %v880, %v1367
    %v1408 = vsub.f32 %v881, %v1367
    %v1409 = vsub.f32 %v882, %v1367
    %v1410 = vsub.f32 %v883, %v1367
    %v1411 = vsub.f32 %v884, %v1367
    %v1412 = vsub.f32 %v885, %v1367
    %v1413 = vsub.f32 %v886, %v1367
    %v1414 = vsub.f32 %v887, %v1367
    %v1415 = vsub.f32 %v888, %v1367
    %v1416 = vsub.f32 %v889, %v1367
    %v1417 = vsub.f32 %v890, %v1367
    %v1418 = vsub.f32 %v891, %v1367
    %v1419 = vsub.f32 %v892, %v1367
    %v1420 = vsub.f32 %v893, %v1367
    %v1421 = vsub.f32 %v894, %v1367
    %v1422 = vsub.f32 %v895, %v1367
    %v1423 = vsub.f32 %v896, %v1367
    %v1424 = vsub.f32 %v897, %v1367
    %v1425 = vsub.f32 %v898, %v1367
    %v1426 = vsub.f32 %v899, %v1367
    %v1427 = vsub.f32 %v900, %v1367
    %v1428 = vsub.f32 %v901, %v1367
    %v1429 = vsub.f32 %v902, %v1367
    %v1430 = vsub.f32 %v903, %v1367
    %v1431 = vsub.f32 %v904, %v1367
    %v1432 = vsub.f32 %v905, %v1367
    %v1433 = vsub.f32 %v906, %v1367
    %v1434 = vsub.f32 %v907, %v1367
    %v1435 = vsub.f32 %v908, %v1367
    %v1436 = vsub.f32 %v909, %v1367
    %v1437 = vsub.f32 %v910, %v1367
    %v1438 = vsub.f32 %v911, %v1367
    %v1439 = vsub.f32 %v912, %v1367
    %v1440 = vsub.f32 %v913, %v1367
    %v1441 = vsub.f32 %v914, %v1367
    %v1442 = vsub.f32 %v915, %v1367
    %v1443 = vsub.f32 %v916, %v1367
    %v1444 = vsub.f32 %v917, %v1367
    %v1445 = vsub.f32 %v918, %v1367
    %v1446 = vsub.f32 %v919, %v1367
    %v1447 = vsub.f32 %v920, %v1367
    %v1448 = vsub.f32 %v921, %v1367
    %v1449 = vsub.f32 %v922, %v1367
    %v1450 = vsub.f32 %v923, %v1367
    %v1451 = vsub.f32 %v924, %v1367
    %v1452 = vsub.f32 %v925, %v1367
    %v1453 = vsub.f32 %v926, %v1367
    %v1454 = vsub.f32 %v927, %v1367
    %v1455 = vsub.f32 %v928, %v1367
    %v1456 = vsub.f32 %v929, %v1367
    %v1457 = vadd.f32 %v1371, 1e-05
    %v1458 = vrsqrt.pop %v1457
    %v1459 = vmul.f32 %v1372, %v1458
    %v1460 = vmul.f32 %v1373, %v1458
    %v1461 = vmul.f32 %v1374, %v1458
    %v1462 = vmul.f32 %v1375, %v1458
    %v1463 = vmul.f32 %v1376, %v1458
    %v1464 = vmul.f32 %v1377, %v1458
    %v1465 = vmul.f32 %v1378, %v1458
    %v1466 = vmul.f32 %v1379, %v1458
    %v1467 = vmul.f32 %v1380, %v1458
    %v1468 = vmul.f32 %v1381, %v1458
    %v1469 = vmul.f32 %v1382, %v1458
    %v1470 = vmul.f32 %v1383, %v1458
    %v1471 = vmul.f32 %v1384, %v1458
    %v1472 = vmul.f32 %v1385, %v1458
    %v1473 = vmul.f32 %v1386, %v1458
    %v1474 = vmul.f32 %v1387, %v1458
    %v1475 = vmul.f32 %v1388, %v1458
    %v1476 = vmul.f32 %v1389, %v1458
    %v1477 = vmul.f32 %v1390, %v1458
    %v1478 = vmul.f32 %v1391, %v1458
    %v1479 = vmul.f32 %v1392, %v1458
    %v1480 = vmul.f32 %v1393, %v1458
    %v1481 = vmul.f32 %v1394, %v1458
    %v1482 = vmul.f32 %v1395, %v1458
    %v1483 = vmul.f32 %v1396, %v1458
    %v1484 = vmul.f32 %v1397, %v1458
    %v1485 = vmul.f32 %v1398, %v1458
    %v1486 = vmul.f32 %v1399, %v1458
    %v1487 = vmul.f32 %v1400, %v1458
    %v1488 = vmul.f32 %v1401, %v1458
    %v1489 = vmul.f32 %v1402, %v1458
    %v1490 = vmul.f32 %v1403, %v1458
    %v1491 = vmul.f32 %v1404, %v1458
    %v1492 = vmul.f32 %v1405, %v1458
    %v1493 = vmul.f32 %v1406, %v1458
    %v1494 = vmul.f32 %v1407, %v1458
    %v1495 = vmul.f32 %v1408, %v1458
    %v1496 = vmul.f32 %v1409, %v1458
    %v1497 = vmul.f32 %v1410, %v1458
    %v1498 = vmul.f32 %v1411, %v1458
    %v1499 = vmul.f32 %v1412, %v1458
    %v1500 = vmul.f32 %v1413, %v1458
    %v1501 = vmul.f32 %v1414, %v1458
    %v1502 = vmul.f32 %v1415, %v1458
    %v1503 = vmul.f32 %v1416, %v1458
    %v1504 = vmul.f32 %v1417, %v1458
    %v1505 = vmul.f32 %v1418, %v1458
    %v1506 = vmul.f32 %v1419, %v1458
    %v1507 = vmul.f32 %v1420, %v1458
    %v1508 = vmul.f32 %v1421, %v1458
    %v1509 = vmul.f32 %v1422, %v1458
    %v1510 = vmul.f32 %v1423, %v1458
    %v1511 = vmul.f32 %v1424, %v1458
    %v1512 = vmul.f32 %v1425, %v1458
    %v1513 = vmul.f32 %v1426, %v1458
    %v1514 = vmul.f32 %v1427, %v1458
    %v1515 = vmul.f32 %v1428, %v1458
    %v1516 = vmul.f32 %v1429, %v1458
    %v1517 = vmul.f32 %v1430, %v1458
    %v1518 = vmul.f32 %v1431, %v1458
    %v1519 = vmul.f32 %v1432, %v1458
    %v1520 = vmul.f32 %v1433, %v1458
    %v1521 = vmul.f32 %v1434, %v1458
    %v1522 = vmul.f32 %v1435, %v1458
    %v1523 = vmul.f32 %v1436, %v1458
    %v1524 = vmul.f32 %v1437, %v1458
    %v1525 = vmul.f32 %v1438, %v1458
    %v1526 = vmul.f32 %v1439, %v1458
    %v1527 = vmul.f32 %v1440, %v1458
    %v1528 = vmul.f32 %v1441, %v1458
    %v1529 = vmul.f32 %v1442, %v1458
    %v1530 = vmul.f32 %v1443, %v1458
    %v1531 = vmul.f32 %v1444, %v1458
    %v1532 = vmul.f32 %v1445, %v1458
    %v1533 = vmul.f32 %v1446, %v1458
    %v1534 = vmul.f32 %v1447, %v1458
    %v1535 = vmul.f32 %v1448, %v1458
    %v1536 = vmul.f32 %v1449, %v1458
    %v1537 = vmul.f32 %v1450, %v1458
    %v1538 = vmul.f32 %v1451, %v1458
    %v1539 = vmul.f32 %v1452, %v1458
    %v1540 = vmul.f32 %v1453, %v1458
    %v1541 = vmul.f32 %v1454, %v1458
    %v1542 = vmul.f32 %v1455, %v1458
    %v1543 = vmul.f32 %v1456, %v1458
    %v1544 = vld [vmem:[%s4 + $0x1] sm:$0x1]
    %v1545 = vlaneseq
    %v1546 = vshrl.u32 %v1545, 7
    %v1547 = vsub.s32 0, %v1546
    %v1548 = vrot.slane %v1544, %v1547
    %v1549 = vmul.f32 %v1459, %v1548
    %v1550 = vmul.f32 %v1460, %v1548
    %v1551 = vmul.f32 %v1461, %v1548
    %v1552 = vmul.f32 %v1462, %v1548
    %v1553 = vmul.f32 %v1463, %v1548
    %v1554 = vmul.f32 %v1464, %v1548
    %v1555 = vmul.f32 %v1465, %v1548
    %v1556 = vmul.f32 %v1466, %v1548
    %v1557 = vmul.f32 %v1467, %v1548
    %v1558 = vmul.f32 %v1468, %v1548
    %v1559 = vmul.f32 %v1469, %v1548
    %v1560 = vmul.f32 %v1470, %v1548
    %v1561 = vmul.f32 %v1471, %v1548
    %v1562 = vmul.f32 %v1472, %v1548
    %v1563 = vmul.f32 %v1473, %v1548
    %v1564 = vmul.f32 %v1474, %v1548
    %v1565 = vmul.f32 %v1475, %v1548
    %v1566 = vmul.f32 %v1476, %v1548
    %v1567 = vmul.f32 %v1477, %v1548
    %v1568 = vmul.f32 %v1478, %v1548
    %v1569 = vmul.f32 %v1479, %v1548
    %v1570 = vmul.f32 %v1480, %v1548
    %v1571 = vmul.f32 %v1481, %v1548
    %v1572 = vmul.f32 %v1482, %v1548
    %v1573 = vmul.f32 %v1483, %v1548
    %v1574 = vmul.f32 %v1484, %v1548
    %v1575 = vmul.f32 %v1485, %v1548
    %v1576 = vmul.f32 %v1486, %v1548
    %v1577 = vmul.f32 %v1487, %v1548
    %v1578 = vmul.f32 %v1488, %v1548
    %v1579 = vmul.f32 %v1489, %v1548
    %v1580 = vmul.f32 %v1490, %v1548
    %v1581 = vmul.f32 %v1491, %v1548
    %v1582 = vmul.f32 %v1492, %v1548
    %v1583 = vmul.f32 %v1493, %v1548
    %v1584 = vmul.f32 %v1494, %v1548
    %v1585 = vmul.f32 %v1495, %v1548
    %v1586 = vmul.f32 %v1496, %v1548
    %v1587 = vmul.f32 %v1497, %v1548
    %v1588 = vmul.f32 %v1498, %v1548
    %v1589 = vmul.f32 %v1499, %v1548
    %v1590 = vmul.f32 %v1500, %v1548
    %v1591 = vmul.f32 %v1501, %v1548
    %v1592 = vmul.f32 %v1502, %v1548
    %v1593 = vmul.f32 %v1503, %v1548
    %v1594 = vmul.f32 %v1504, %v1548
    %v1595 = vmul.f32 %v1505, %v1548
    %v1596 = vmul.f32 %v1506, %v1548
    %v1597 = vmul.f32 %v1507, %v1548
    %v1598 = vmul.f32 %v1508, %v1548
    %v1599 = vmul.f32 %v1509, %v1548
    %v1600 = vmul.f32 %v1510, %v1548
    %v1601 = vmul.f32 %v1511, %v1548
    %v1602 = vmul.f32 %v1512, %v1548
    %v1603 = vmul.f32 %v1513, %v1548
    %v1604 = vmul.f32 %v1514, %v1548
    %v1605 = vmul.f32 %v1515, %v1548
    %v1606 = vmul.f32 %v1516, %v1548
    %v1607 = vmul.f32 %v1517, %v1548
    %v1608 = vmul.f32 %v1518, %v1548
    %v1609 = vmul.f32 %v1519, %v1548
    %v1610 = vmul.f32 %v1520, %v1548
    %v1611 = vmul.f32 %v1521, %v1548
    %v1612 = vmul.f32 %v1522, %v1548
    %v1613 = vmul.f32 %v1523, %v1548
    %v1614 = vmul.f32 %v1524, %v1548
    %v1615 = vmul.f32 %v1525, %v1548
    %v1616 = vmul.f32 %v1526, %v1548
    %v1617 = vmul.f32 %v1527, %v1548
    %v1618 = vmul.f32 %v1528, %v1548
    %v1619 = vmul.f32 %v1529, %v1548
    %v1620 = vmul.f32 %v1530, %v1548
    %v1621 = vmul.f32 %v1531, %v1548
    %v1622 = vmul.f32 %v1532, %v1548
    %v1623 = vmul.f32 %v1533, %v1548
    %v1624 = vmul.f32 %v1534, %v1548
    %v1625 = vmul.f32 %v1535, %v1548
    %v1626 = vmul.f32 %v1536, %v1548
    %v1627 = vmul.f32 %v1537, %v1548
    %v1628 = vmul.f32 %v1538, %v1548
    %v1629 = vmul.f32 %v1539, %v1548
    %v1630 = vmul.f32 %v1540, %v1548
    %v1631 = vmul.f32 %v1541, %v1548
    %v1632 = vmul.f32 %v1542, %v1548
    %v1633 = vmul.f32 %v1543, %v1548
    %v1634 = vld [vmem:[%s4 + $0x2] sm:$0x1]
    %v1635 = vlaneseq
    %v1636 = vshrl.u32 %v1635, 7
    %v1637 = vsub.s32 0, %v1636
    %v1638 = vrot.slane %v1634, %v1637
    %v1639 = vadd.f32 %v1549, %v1638
    %v1640 = vadd.f32 %v1550, %v1638
    %v1641 = vadd.f32 %v1551, %v1638
    %v1642 = vadd.f32 %v1552, %v1638
    %v1643 = vadd.f32 %v1553, %v1638
    %v1644 = vadd.f32 %v1554, %v1638
    %v1645 = vadd.f32 %v1555, %v1638
    %v1646 = vadd.f32 %v1556, %v1638
    %v1647 = vadd.f32 %v1557, %v1638
    %v1648 = vadd.f32 %v1558, %v1638
    %v1649 = vadd.f32 %v1559, %v1638
    %v1650 = vadd.f32 %v1560, %v1638
    %v1651 = vadd.f32 %v1561, %v1638
    %v1652 = vadd.f32 %v1562, %v1638
    %v1653 = vadd.f32 %v1563, %v1638
    %v1654 = vadd.f32 %v1564, %v1638
    %v1655 = vadd.f32 %v1565, %v1638
    %v1656 = vadd.f32 %v1566, %v1638
    %v1657 = vadd.f32 %v1567, %v1638
    %v1658 = vadd.f32 %v1568, %v1638
    %v1659 = vadd.f32 %v1569, %v1638
    %v1660 = vadd.f32 %v1570, %v1638
    %v1661 = vadd.f32 %v1571, %v1638
    %v1662 = vadd.f32 %v1572, %v1638
    %v1663 = vadd.f32 %v1573, %v1638
    %v1664 = vadd.f32 %v1574, %v1638
    %v1665 = vadd.f32 %v1575, %v1638
    %v1666 = vadd.f32 %v1576, %v1638
    %v1667 = vadd.f32 %v1577, %v1638
    %v1668 = vadd.f32 %v1578, %v1638
    %v1669 = vadd.f32 %v1579, %v1638
    %v1670 = vadd.f32 %v1580, %v1638
    %v1671 = vadd.f32 %v1581, %v1638
    %v1672 = vadd.f32 %v1582, %v1638
    %v1673 = vadd.f32 %v1583, %v1638
    %v1674 = vadd.f32 %v1584, %v1638
    %v1675 = vadd.f32 %v1585, %v1638
    %v1676 = vadd.f32 %v1586, %v1638
    %v1677 = vadd.f32 %v1587, %v1638
    %v1678 = vadd.f32 %v1588, %v1638
    %v1679 = vadd.f32 %v1589, %v1638
    %v1680 = vadd.f32 %v1590, %v1638
    %v1681 = vadd.f32 %v1591, %v1638
    %v1682 = vadd.f32 %v1592, %v1638
    %v1683 = vadd.f32 %v1593, %v1638
    %v1684 = vadd.f32 %v1594, %v1638
    %v1685 = vadd.f32 %v1595, %v1638
    %v1686 = vadd.f32 %v1596, %v1638
    %v1687 = vadd.f32 %v1597, %v1638
    %v1688 = vadd.f32 %v1598, %v1638
    %v1689 = vadd.f32 %v1599, %v1638
    %v1690 = vadd.f32 %v1600, %v1638
    %v1691 = vadd.f32 %v1601, %v1638
    %v1692 = vadd.f32 %v1602, %v1638
    %v1693 = vadd.f32 %v1603, %v1638
    %v1694 = vadd.f32 %v1604, %v1638
    %v1695 = vadd.f32 %v1605, %v1638
    %v1696 = vadd.f32 %v1606, %v1638
    %v1697 = vadd.f32 %v1607, %v1638
    %v1698 = vadd.f32 %v1608, %v1638
    %v1699 = vadd.f32 %v1609, %v1638
    %v1700 = vadd.f32 %v1610, %v1638
    %v1701 = vadd.f32 %v1611, %v1638
    %v1702 = vadd.f32 %v1612, %v1638
    %v1703 = vadd.f32 %v1613, %v1638
    %v1704 = vadd.f32 %v1614, %v1638
    %v1705 = vadd.f32 %v1615, %v1638
    %v1706 = vadd.f32 %v1616, %v1638
    %v1707 = vadd.f32 %v1617, %v1638
    %v1708 = vadd.f32 %v1618, %v1638
    %v1709 = vadd.f32 %v1619, %v1638
    %v1710 = vadd.f32 %v1620, %v1638
    %v1711 = vadd.f32 %v1621, %v1638
    %v1712 = vadd.f32 %v1622, %v1638
    %v1713 = vadd.f32 %v1623, %v1638
    %v1714 = vadd.f32 %v1624, %v1638
    %v1715 = vadd.f32 %v1625, %v1638
    %v1716 = vadd.f32 %v1626, %v1638
    %v1717 = vadd.f32 %v1627, %v1638
    %v1718 = vadd.f32 %v1628, %v1638
    %v1719 = vadd.f32 %v1629, %v1638
    %v1720 = vadd.f32 %v1630, %v1638
    %v1721 = vadd.f32 %v1631, %v1638
    %v1722 = vadd.f32 %v1632, %v1638
    %v1723 = vadd.f32 %v1633, %v1638
    %v1724 = vpack.c.bf16 %v1640, %v1639
    %v1725 = vpack.c.bf16 %v1642, %v1641
    %v1726 = vpack.c.bf16 %v1644, %v1643
    %v1727 = vpack.c.bf16 %v1646, %v1645
    %v1728 = vpack.c.bf16 %v1648, %v1647
    %v1729 = vpack.c.bf16 %v1650, %v1649
    %v1730 = vpack.c.bf16 %v1652, %v1651
    %v1731 = vpack.c.bf16 %v1654, %v1653
    %v1732 = vpack.c.bf16 %v1656, %v1655
    %v1733 = vpack.c.bf16 %v1658, %v1657
    %v1734 = vpack.c.bf16 %v1660, %v1659
    %v1735 = vpack.c.bf16 %v1662, %v1661
    %v1736 = vpack.c.bf16 %v1664, %v1663
    %v1737 = vpack.c.bf16 %v1666, %v1665
    %v1738 = vpack.c.bf16 %v1668, %v1667
    %v1739 = vpack.c.bf16 %v1670, %v1669
    %v1740 = vpack.c.bf16 %v1672, %v1671
    %v1741 = vpack.c.bf16 %v1674, %v1673
    %v1742 = vpack.c.bf16 %v1676, %v1675
    %v1743 = vpack.c.bf16 %v1678, %v1677
    %v1744 = vpack.c.bf16 %v1680, %v1679
    %v1745 = vpack.c.bf16 %v1682, %v1681
    %v1746 = vpack.c.bf16 %v1684, %v1683
    %v1747 = vpack.c.bf16 %v1686, %v1685
    %v1748 = vpack.c.bf16 %v1688, %v1687
    %v1749 = vpack.c.bf16 %v1690, %v1689
    %v1750 = vpack.c.bf16 %v1692, %v1691
    %v1751 = vpack.c.bf16 %v1694, %v1693
    %v1752 = vpack.c.bf16 %v1696, %v1695
    %v1753 = vpack.c.bf16 %v1698, %v1697
    %v1754 = vpack.c.bf16 %v1700, %v1699
    %v1755 = vpack.c.bf16 %v1702, %v1701
    %v1756 = vpack.c.bf16 %v1704, %v1703
    %v1757 = vpack.c.bf16 %v1706, %v1705
    %v1758 = vpack.c.bf16 %v1708, %v1707
    %v1759 = vpack.c.bf16 %v1710, %v1709
    %v1760 = vpack.c.bf16 %v1712, %v1711
    %v1761 = vpack.c.bf16 %v1714, %v1713
    %v1762 = vpack.c.bf16 %v1716, %v1715
    %v1763 = vpack.c.bf16 %v1718, %v1717
    %v1764 = vpack.c.bf16 %v1720, %v1719
    %v1765 = vpack.c.bf16 %v1722, %v1721
    %v1766 = vpack.c.bf16 %v1723, %v1723
    %v1767 = vld [vmem:[%s1] sm:$0xff]
    %v1768 = vld [vmem:[%s1 + $0x8] sm:$0xff]
    %v1769 = vld [vmem:[%s1 + $0x10] sm:$0xff]
    %v1770 = vld [vmem:[%s1 + $0x18] sm:$0xff]
    %v1771 = vld [vmem:[%s1 + $0x20] sm:$0xff]
    %v1772 = vld [vmem:[%s1 + $0x28] sm:$0xff]
    %v1773 = vld [vmem:[%s1 + $0x30] sm:$0xff]
    %v1774 = vld [vmem:[%s1 + $0x38] sm:$0xff]
    %v1775 = vld [vmem:[%s1 + $0x40] sm:$0xff]
    %v1776 = vld [vmem:[%s1 + $0x48] sm:$0xff]
    %v1777 = vld [vmem:[%s1 + $0x50] sm:$0xff]
    %v1778 = vld [vmem:[%s1 + $0x58] sm:$0xff]
    %v1779 = vld [vmem:[%s1 + $0x60] sm:$0xff]
    %v1780 = vld [vmem:[%s1 + $0x68] sm:$0xff]
    %v1781 = vld [vmem:[%s1 + $0x70] sm:$0xff]
    %v1782 = vld [vmem:[%s1 + $0x78] sm:$0xff]
    %v1783 = vld [vmem:[%s1 + $0x80] sm:$0xff]
    %v1784 = vld [vmem:[%s1 + $0x88] sm:$0xff]
    %v1785 = vld [vmem:[%s1 + $0x90] sm:$0xff]
    %v1786 = vld [vmem:[%s1 + $0x98] sm:$0xff]
    %v1787 = vld [vmem:[%s1 + $0xa0] sm:$0xff]
    %v1788 = vld [vmem:[%s1 + $0xa8] sm:$0xff]
    %v1789 = vld [vmem:[%s1 + $0xb0] sm:$0xff]
    %v1790 = vld [vmem:[%s1 + $0xb8] sm:$0xff]
    %v1791 = vld [vmem:[%s1 + $0xc0] sm:$0xff]
    %v1792 = vld [vmem:[%s1 + $0xc8] sm:$0xff]
    %v1793 = vld [vmem:[%s1 + $0xd0] sm:$0xff]
    %v1794 = vld [vmem:[%s1 + $0xd8] sm:$0xff]
    %v1795 = vld [vmem:[%s1 + $0xe0] sm:$0xff]
    %v1796 = vld [vmem:[%s1 + $0xe8] sm:$0xff]
    %v1797 = vld [vmem:[%s1 + $0xf0] sm:$0xff]
    %v1798 = vld [vmem:[%s1 + $0xf8] sm:$0xff]
    %v1799 = vld [vmem:[%s1 + $0x100] sm:$0xff]
    %v1800 = vld [vmem:[%s1 + $0x108] sm:$0xff]
    %v1801 = vld [vmem:[%s1 + $0x110] sm:$0xff]
    %v1802 = vld [vmem:[%s1 + $0x118] sm:$0xff]
    %v1803 = vld [vmem:[%s1 + $0x120] sm:$0xff]
    %v1804 = vld [vmem:[%s1 + $0x128] sm:$0xff]
    %v1805 = vld [vmem:[%s1 + $0x130] sm:$0xff]
    %v1806 = vld [vmem:[%s1 + $0x138] sm:$0xff]
    %v1807 = vld [vmem:[%s1 + $0x140] sm:$0xff]
    %v1808 = vld [vmem:[%s1 + $0x148] sm:$0xff]
    %v1809 = vld [vmem:[%s1 + $0x150] sm:$0xff]
    %v1810 = vld [vmem:[%s1 + $0x158] sm:$0xff]
    %v1811 = vld [vmem:[%s1 + $0x160] sm:$0xff]
    %v1812 = vld [vmem:[%s1 + $0x168] sm:$0xff]
    %v1813 = vld [vmem:[%s1 + $0x170] sm:$0xff]
    %v1814 = vld [vmem:[%s1 + $0x178] sm:$0xff]
    %v1815 = vld [vmem:[%s1 + $0x180] sm:$0xff]
    %v1816 = vld [vmem:[%s1 + $0x188] sm:$0xff]
    %v1817 = vld [vmem:[%s1 + $0x190] sm:$0xff]
    %v1818 = vld [vmem:[%s1 + $0x198] sm:$0xff]
    %v1819 = vld [vmem:[%s1 + $0x1a0] sm:$0xff]
    %v1820 = vld [vmem:[%s1 + $0x1a8] sm:$0xff]
    %v1821 = vld [vmem:[%s1 + $0x1b0] sm:$0xff]
    %v1822 = vld [vmem:[%s1 + $0x1b8] sm:$0xff]
    %v1823 = vld [vmem:[%s1 + $0x1c0] sm:$0xff]
    %v1824 = vld [vmem:[%s1 + $0x1c8] sm:$0xff]
    %v1825 = vld [vmem:[%s1 + $0x1d0] sm:$0xff]
    %v1826 = vld [vmem:[%s1 + $0x1d8] sm:$0xff]
    %v1827 = vld [vmem:[%s1 + $0x1e0] sm:$0xff]
    %v1828 = vld [vmem:[%s1 + $0x1e8] sm:$0xff]
    %v1829 = vld [vmem:[%s1 + $0x1f0] sm:$0xff]
    %v1830 = vld [vmem:[%s1 + $0x1f8] sm:$0xff]
    %v1831 = vld [vmem:[%s1 + $0x200] sm:$0xff]
    %v1832 = vld [vmem:[%s1 + $0x208] sm:$0xff]
    %v1833 = vld [vmem:[%s1 + $0x210] sm:$0xff]
    %v1834 = vld [vmem:[%s1 + $0x218] sm:$0xff]
    %v1835 = vld [vmem:[%s1 + $0x220] sm:$0xff]
    %v1836 = vld [vmem:[%s1 + $0x228] sm:$0xff]
    %v1837 = vld [vmem:[%s1 + $0x230] sm:$0xff]
    %v1838 = vld [vmem:[%s1 + $0x238] sm:$0xff]
    %v1839 = vld [vmem:[%s1 + $0x240] sm:$0xff]
    %v1840 = vld [vmem:[%s1 + $0x248] sm:$0xff]
    %v1841 = vld [vmem:[%s1 + $0x250] sm:$0xff]
    %v1842 = vld [vmem:[%s1 + $0x258] sm:$0xff]
    %v1843 = vld [vmem:[%s1 + $0x260] sm:$0xff]
    %v1844 = vld [vmem:[%s1 + $0x268] sm:$0xff]
    %v1845 = vld [vmem:[%s1 + $0x270] sm:$0xff]
    %v1846 = vld [vmem:[%s1 + $0x278] sm:$0xff]
    %v1847 = vld [vmem:[%s1 + $0x280] sm:$0xff]
    %v1848 = vld [vmem:[%s1 + $0x288] sm:$0xff]
    %v1849 = vld [vmem:[%s1 + $0x290] sm:$0xff]
    %v1850 = vld [vmem:[%s1 + $0x298] sm:$0xff]
    %v1851 = vld [vmem:[%s1 + $0x2a0] sm:$0xff]
    %v1852 = vld [vmem:[%s1 + $0x2a8] sm:$0xff]
    %v1853 = vld [vmem:[%s1 + $0x2b0] sm:$0xff]
    %v1854 = vld [vmem:[%s1 + $0x2b8] sm:$0xff]
    %v1855 = vld [vmem:[%s1 + $0x2c0] sm:$0xff]
    %v1856 = vld [vmem:[%s1 + $0x2c8] sm:$0xff]
    %v1857 = vld [vmem:[%s1 + $0x2d0] sm:$0xff]
    %v1858 = vld [vmem:[%s1 + $0x2d8] sm:$0xff]
    %v1859 = vld [vmem:[%s1 + $0x2e0] sm:$0xff]
    %v1860 = vld [vmem:[%s1 + $0x2e8] sm:$0xff]
    %v1861 = vld [vmem:[%s1 + $0x2f0] sm:$0xff]
    %v1862 = vld [vmem:[%s1 + $0x2f8] sm:$0xff]
    %v1863 = vld [vmem:[%s1 + $0x300] sm:$0xff]
    %v1864 = vld [vmem:[%s1 + $0x308] sm:$0xff]
    %v1865 = vld [vmem:[%s1 + $0x310] sm:$0xff]
    %v1866 = vld [vmem:[%s1 + $0x318] sm:$0xff]
    %v1867 = vld [vmem:[%s1 + $0x320] sm:$0xff]
    %v1868 = vld [vmem:[%s1 + $0x328] sm:$0xff]
    %v1869 = vld [vmem:[%s1 + $0x330] sm:$0xff]
    %v1870 = vld [vmem:[%s1 + $0x338] sm:$0xff]
    %v1871 = vld [vmem:[%s1 + $0x340] sm:$0xff]
    %v1872 = vld [vmem:[%s1 + $0x348] sm:$0xff]
    %v1873 = vld [vmem:[%s1 + $0x350] sm:$0xff]
    %v1874 = vld [vmem:[%s1 + $0x358] sm:$0xff]
    %v1875 = vld [vmem:[%s1 + $0x360] sm:$0xff]
    %v1876 = vld [vmem:[%s1 + $0x368] sm:$0xff]
    %v1877 = vld [vmem:[%s1 + $0x370] sm:$0xff]
    %v1878 = vld [vmem:[%s1 + $0x378] sm:$0xff]
    %v1879 = vld [vmem:[%s1 + $0x380] sm:$0xff]
    %v1880 = vld [vmem:[%s1 + $0x388] sm:$0xff]
    %v1881 = vld [vmem:[%s1 + $0x390] sm:$0xff]
    %v1882 = vld [vmem:[%s1 + $0x398] sm:$0xff]
    %v1883 = vld [vmem:[%s1 + $0x3a0] sm:$0xff]
    %v1884 = vld [vmem:[%s1 + $0x3a8] sm:$0xff]
    %v1885 = vld [vmem:[%s1 + $0x3b0] sm:$0xff]
    %v1886 = vld [vmem:[%s1 + $0x3b8] sm:$0xff]
    %v1887 = vld [vmem:[%s1 + $0x3c0] sm:$0xff]
    %v1888 = vld [vmem:[%s1 + $0x3c8] sm:$0xff]
    %v1889 = vld [vmem:[%s1 + $0x3d0] sm:$0xff]
    %v1890 = vld [vmem:[%s1 + $0x3d8] sm:$0xff]
    %v1891 = vld [vmem:[%s1 + $0x3e0] sm:$0xff]
    %v1892 = vld [vmem:[%s1 + $0x3e8] sm:$0xff]
    %v1893 = vld [vmem:[%s1 + $0x3f0] sm:$0xff]
    %v1894 = vld [vmem:[%s1 + $0x3f8] sm:$0xff]
    %v1895 = vld [vmem:[%s1 + $0x400] sm:$0xff]
    %v1896 = vld [vmem:[%s1 + $0x408] sm:$0xff]
    %v1897 = vld [vmem:[%s1 + $0x410] sm:$0xff]
    %v1898 = vld [vmem:[%s1 + $0x418] sm:$0xff]
    %v1899 = vld [vmem:[%s1 + $0x420] sm:$0xff]
    %v1900 = vld [vmem:[%s1 + $0x428] sm:$0xff]
    %v1901 = vld [vmem:[%s1 + $0x430] sm:$0xff]
    %v1902 = vld [vmem:[%s1 + $0x438] sm:$0xff]
    %v1903 = vld [vmem:[%s1 + $0x440] sm:$0xff]
    %v1904 = vld [vmem:[%s1 + $0x448] sm:$0xff]
    %v1905 = vld [vmem:[%s1 + $0x450] sm:$0xff]
    %v1906 = vld [vmem:[%s1 + $0x458] sm:$0xff]
    %v1907 = vld [vmem:[%s1 + $0x460] sm:$0xff]
    %v1908 = vld [vmem:[%s1 + $0x468] sm:$0xff]
    %v1909 = vld [vmem:[%s1 + $0x470] sm:$0xff]
    %v1910 = vld [vmem:[%s1 + $0x478] sm:$0xff]
    %v1911 = vld [vmem:[%s1 + $0x480] sm:$0xff]
    %v1912 = vld [vmem:[%s1 + $0x488] sm:$0xff]
    %v1913 = vld [vmem:[%s1 + $0x490] sm:$0xff]
    %v1914 = vld [vmem:[%s1 + $0x498] sm:$0xff]
    %v1915 = vld [vmem:[%s1 + $0x4a0] sm:$0xff]
    %v1916 = vld [vmem:[%s1 + $0x4a8] sm:$0xff]
    %v1917 = vld [vmem:[%s1 + $0x4b0] sm:$0xff]
    %v1918 = vld [vmem:[%s1 + $0x4b8] sm:$0xff]
    %v1919 = vld [vmem:[%s1 + $0x4c0] sm:$0xff]
    %v1920 = vld [vmem:[%s1 + $0x4c8] sm:$0xff]
    %v1921 = vld [vmem:[%s1 + $0x4d0] sm:$0xff]
    %v1922 = vld [vmem:[%s1 + $0x4d8] sm:$0xff]
    %v1923 = vld [vmem:[%s1 + $0x4e0] sm:$0xff]
    %v1924 = vld [vmem:[%s1 + $0x4e8] sm:$0xff]
    %v1925 = vld [vmem:[%s1 + $0x4f0] sm:$0xff]
    %v1926 = vld [vmem:[%s1 + $0x4f8] sm:$0xff]
    %v1927 = vld [vmem:[%s1 + $0x500] sm:$0xff]
    %v1928 = vld [vmem:[%s1 + $0x508] sm:$0xff]
    %v1929 = vld [vmem:[%s1 + $0x510] sm:$0xff]
    %v1930 = vld [vmem:[%s1 + $0x518] sm:$0xff]
    %v1931 = vld [vmem:[%s1 + $0x520] sm:$0xff]
    %v1932 = vld [vmem:[%s1 + $0x528] sm:$0xff]
    %v1933 = vld [vmem:[%s1 + $0x530] sm:$0xff]
    %v1934 = vld [vmem:[%s1 + $0x538] sm:$0xff]
    %v1935 = vld [vmem:[%s1 + $0x540] sm:$0xff]
    %v1936 = vld [vmem:[%s1 + $0x548] sm:$0xff]
    %v1937 = vld [vmem:[%s1 + $0x550] sm:$0xff]
    %v1938 = vld [vmem:[%s1 + $0x558] sm:$0xff]
    %v1939 = vld [vmem:[%s1 + $0x560] sm:$0xff]
    %v1940 = vld [vmem:[%s1 + $0x568] sm:$0xff]
    %v1941 = vld [vmem:[%s1 + $0x570] sm:$0xff]
    %v1942 = vld [vmem:[%s1 + $0x578] sm:$0xff]
    %v1943 = vld [vmem:[%s1 + $0x580] sm:$0xff]
    %v1944 = vld [vmem:[%s1 + $0x588] sm:$0xff]
    %v1945 = vld [vmem:[%s1 + $0x590] sm:$0xff]
    %v1946 = vld [vmem:[%s1 + $0x598] sm:$0xff]
    %v1947 = vld [vmem:[%s1 + $0x5a0] sm:$0xff]
    %v1948 = vld [vmem:[%s1 + $0x5a8] sm:$0xff]
    %v1949 = vld [vmem:[%s1 + $0x5b0] sm:$0xff]
    %v1950 = vld [vmem:[%s1 + $0x5b8] sm:$0xff]
    %v1951 = vld [vmem:[%s1 + $0x5c0] sm:$0xff]
    %v1952 = vld [vmem:[%s1 + $0x5c8] sm:$0xff]
    %v1953 = vld [vmem:[%s1 + $0x5d0] sm:$0xff]
    %v1954 = vld [vmem:[%s1 + $0x5d8] sm:$0xff]
    %v1955 = vld [vmem:[%s1 + $0x5e0] sm:$0xff]
    %v1956 = vld [vmem:[%s1 + $0x5e8] sm:$0xff]
    %v1957 = vld [vmem:[%s1 + $0x5f0] sm:$0xff]
    %v1958 = vld [vmem:[%s1 + $0x5f8] sm:$0xff]
    %v1959 = vld [vmem:[%s1 + $0x600] sm:$0xff]
    %v1960 = vld [vmem:[%s1 + $0x608] sm:$0xff]
    %v1961 = vld [vmem:[%s1 + $0x610] sm:$0xff]
    %v1962 = vld [vmem:[%s1 + $0x618] sm:$0xff]
    %v1963 = vld [vmem:[%s1 + $0x620] sm:$0xff]
    %v1964 = vld [vmem:[%s1 + $0x628] sm:$0xff]
    %v1965 = vld [vmem:[%s1 + $0x630] sm:$0xff]
    %v1966 = vld [vmem:[%s1 + $0x638] sm:$0xff]
    %v1967 = vld [vmem:[%s1 + $0x640] sm:$0xff]
    %v1968 = vld [vmem:[%s1 + $0x648] sm:$0xff]
    %v1969 = vld [vmem:[%s1 + $0x650] sm:$0xff]
    %v1970 = vld [vmem:[%s1 + $0x658] sm:$0xff]
    %v1971 = vld [vmem:[%s1 + $0x660] sm:$0xff]
    %v1972 = vld [vmem:[%s1 + $0x668] sm:$0xff]
    %v1973 = vld [vmem:[%s1 + $0x670] sm:$0xff]
    %v1974 = vld [vmem:[%s1 + $0x678] sm:$0xff]
    %v1975 = vld [vmem:[%s1 + $0x680] sm:$0xff]
    %v1976 = vld [vmem:[%s1 + $0x688] sm:$0xff]
    %v1977 = vld [vmem:[%s1 + $0x690] sm:$0xff]
    %v1978 = vld [vmem:[%s1 + $0x698] sm:$0xff]
    %v1979 = vld [vmem:[%s1 + $0x6a0] sm:$0xff]
    %v1980 = vld [vmem:[%s1 + $0x6a8] sm:$0xff]
    %v1981 = vld [vmem:[%s1 + $0x6b0] sm:$0xff]
    %v1982 = vld [vmem:[%s1 + $0x6b8] sm:$0xff]
    %v1983 = vld [vmem:[%s1 + $0x6c0] sm:$0xff]
    %v1984 = vld [vmem:[%s1 + $0x6c8] sm:$0xff]
    %v1985 = vld [vmem:[%s1 + $0x6d0] sm:$0xff]
    %v1986 = vld [vmem:[%s1 + $0x6d8] sm:$0xff]
    %v1987 = vld [vmem:[%s1 + $0x6e0] sm:$0xff]
    %v1988 = vld [vmem:[%s1 + $0x6e8] sm:$0xff]
    %v1989 = vld [vmem:[%s1 + $0x6f0] sm:$0xff]
    %v1990 = vld [vmem:[%s1 + $0x6f8] sm:$0xff]
    %v1991 = vld [vmem:[%s1 + $0x700] sm:$0xff]
    %v1992 = vld [vmem:[%s1 + $0x708] sm:$0xff]
    %v1993 = vld [vmem:[%s1 + $0x710] sm:$0xff]
    %v1994 = vld [vmem:[%s1 + $0x718] sm:$0xff]
    %v1995 = vld [vmem:[%s1 + $0x720] sm:$0xff]
    %v1996 = vld [vmem:[%s1 + $0x728] sm:$0xff]
    %v1997 = vld [vmem:[%s1 + $0x730] sm:$0xff]
    %v1998 = vld [vmem:[%s1 + $0x738] sm:$0xff]
    %v1999 = vld [vmem:[%s1 + $0x740] sm:$0xff]
    %v2000 = vld [vmem:[%s1 + $0x748] sm:$0xff]
    %v2001 = vld [vmem:[%s1 + $0x750] sm:$0xff]
    %v2002 = vld [vmem:[%s1 + $0x758] sm:$0xff]
    %v2003 = vld [vmem:[%s1 + $0x760] sm:$0xff]
    %v2004 = vld [vmem:[%s1 + $0x768] sm:$0xff]
    %v2005 = vld [vmem:[%s1 + $0x770] sm:$0xff]
    %v2006 = vld [vmem:[%s1 + $0x778] sm:$0xff]
    %v2007 = vld [vmem:[%s1 + $0x780] sm:$0xff]
    %v2008 = vld [vmem:[%s1 + $0x788] sm:$0xff]
    %v2009 = vld [vmem:[%s1 + $0x790] sm:$0xff]
    %v2010 = vld [vmem:[%s1 + $0x798] sm:$0xff]
    %v2011 = vld [vmem:[%s1 + $0x7a0] sm:$0xff]
    %v2012 = vld [vmem:[%s1 + $0x7a8] sm:$0xff]
    %v2013 = vld [vmem:[%s1 + $0x7b0] sm:$0xff]
    %v2014 = vld [vmem:[%s1 + $0x7b8] sm:$0xff]
    %v2015 = vld [vmem:[%s1 + $0x7c0] sm:$0xff]
    %v2016 = vld [vmem:[%s1 + $0x7c8] sm:$0xff]
    %v2017 = vld [vmem:[%s1 + $0x7d0] sm:$0xff]
    %v2018 = vld [vmem:[%s1 + $0x7d8] sm:$0xff]
    %v2019 = vld [vmem:[%s1 + $0x7e0] sm:$0xff]
    %v2020 = vld [vmem:[%s1 + $0x7e8] sm:$0xff]
    %v2021 = vld [vmem:[%s1 + $0x7f0] sm:$0xff]
    %v2022 = vld [vmem:[%s1 + $0x7f8] sm:$0xff]
    %v2023 = vld [vmem:[%s1 + $0x800] sm:$0xff]
    %v2024 = vld [vmem:[%s1 + $0x808] sm:$0xff]
    %v2025 = vld [vmem:[%s1 + $0x810] sm:$0xff]
    %v2026 = vld [vmem:[%s1 + $0x818] sm:$0xff]
    %v2027 = vld [vmem:[%s1 + $0x820] sm:$0xff]
    %v2028 = vld [vmem:[%s1 + $0x828] sm:$0xff]
    %v2029 = vld [vmem:[%s1 + $0x830] sm:$0xff]
    %v2030 = vld [vmem:[%s1 + $0x838] sm:$0xff]
    %v2031 = vld [vmem:[%s1 + $0x840] sm:$0xff]
    %v2032 = vld [vmem:[%s1 + $0x848] sm:$0xff]
    %v2033 = vld [vmem:[%s1 + $0x850] sm:$0xff]
    %v2034 = vld [vmem:[%s1 + $0x858] sm:$0xff]
    %v2035 = vld [vmem:[%s1 + $0x860] sm:$0xff]
    %v2036 = vld [vmem:[%s1 + $0x868] sm:$0xff]
    %v2037 = vld [vmem:[%s1 + $0x870] sm:$0xff]
    %v2038 = vld [vmem:[%s1 + $0x878] sm:$0xff]
    %v2039 = vld [vmem:[%s1 + $0x880] sm:$0xff]
    %v2040 = vld [vmem:[%s1 + $0x888] sm:$0xff]
    %v2041 = vld [vmem:[%s1 + $0x890] sm:$0xff]
    %v2042 = vld [vmem:[%s1 + $0x898] sm:$0xff]
    %v2043 = vld [vmem:[%s1 + $0x8a0] sm:$0xff]
    %v2044 = vld [vmem:[%s1 + $0x8a8] sm:$0xff]
    %v2045 = vld [vmem:[%s1 + $0x8b0] sm:$0xff]
    %v2046 = vld [vmem:[%s1 + $0x8b8] sm:$0xff]
    %v2047 = vld [vmem:[%s1 + $0x8c0] sm:$0xff]
    %v2048 = vld [vmem:[%s1 + $0x8c8] sm:$0xff]
    %v2049 = vld [vmem:[%s1 + $0x8d0] sm:$0xff]
    %v2050 = vld [vmem:[%s1 + $0x8d8] sm:$0xff]
    %v2051 = vld [vmem:[%s1 + $0x8e0] sm:$0xff]
    %v2052 = vld [vmem:[%s1 + $0x8e8] sm:$0xff]
    %v2053 = vld [vmem:[%s1 + $0x8f0] sm:$0xff]
    %v2054 = vld [vmem:[%s1 + $0x8f8] sm:$0xff]
    %v2055 = vld [vmem:[%s1 + $0x900] sm:$0xff]
    %v2056 = vld [vmem:[%s1 + $0x908] sm:$0xff]
    %v2057 = vld [vmem:[%s1 + $0x910] sm:$0xff]
    %v2058 = vld [vmem:[%s1 + $0x918] sm:$0xff]
    %v2059 = vld [vmem:[%s1 + $0x920] sm:$0xff]
    %v2060 = vld [vmem:[%s1 + $0x928] sm:$0xff]
    %v2061 = vld [vmem:[%s1 + $0x930] sm:$0xff]
    %v2062 = vld [vmem:[%s1 + $0x938] sm:$0xff]
    %v2063 = vld [vmem:[%s1 + $0x940] sm:$0xff]
    %v2064 = vld [vmem:[%s1 + $0x948] sm:$0xff]
    %v2065 = vld [vmem:[%s1 + $0x950] sm:$0xff]
    %v2066 = vld [vmem:[%s1 + $0x958] sm:$0xff]
    %v2067 = vld [vmem:[%s1 + $0x960] sm:$0xff]
    %v2068 = vld [vmem:[%s1 + $0x968] sm:$0xff]
    %v2069 = vld [vmem:[%s1 + $0x970] sm:$0xff]
    %v2070 = vld [vmem:[%s1 + $0x978] sm:$0xff]
    %v2071 = vld [vmem:[%s1 + $0x980] sm:$0xff]
    %v2072 = vld [vmem:[%s1 + $0x988] sm:$0xff]
    %v2073 = vld [vmem:[%s1 + $0x990] sm:$0xff]
    %v2074 = vld [vmem:[%s1 + $0x998] sm:$0xff]
    %v2075 = vld [vmem:[%s1 + $0x9a0] sm:$0xff]
    %v2076 = vld [vmem:[%s1 + $0x9a8] sm:$0xff]
    %v2077 = vld [vmem:[%s1 + $0x9b0] sm:$0xff]
    %v2078 = vld [vmem:[%s1 + $0x9b8] sm:$0xff]
    %v2079 = vld [vmem:[%s1 + $0x9c0] sm:$0xff]
    %v2080 = vld [vmem:[%s1 + $0x9c8] sm:$0xff]
    %v2081 = vld [vmem:[%s1 + $0x9d0] sm:$0xff]
    %v2082 = vld [vmem:[%s1 + $0x9d8] sm:$0xff]
    %v2083 = vld [vmem:[%s1 + $0x9e0] sm:$0xff]
    %v2084 = vld [vmem:[%s1 + $0x9e8] sm:$0xff]
    %v2085 = vld [vmem:[%s1 + $0x9f0] sm:$0xff]
    %v2086 = vld [vmem:[%s1 + $0x9f8] sm:$0xff]
    %v2087 = vld [vmem:[%s1 + $0xa00] sm:$0xff]
    %v2088 = vld [vmem:[%s1 + $0xa08] sm:$0xff]
    %v2089 = vld [vmem:[%s1 + $0xa10] sm:$0xff]
    %v2090 = vld [vmem:[%s1 + $0xa18] sm:$0xff]
    %v2091 = vld [vmem:[%s1 + $0xa20] sm:$0xff]
    %v2092 = vld [vmem:[%s1 + $0xa28] sm:$0xff]
    %v2093 = vld [vmem:[%s1 + $0xa30] sm:$0xff]
    %v2094 = vld [vmem:[%s1 + $0xa38] sm:$0xff]
    %v2095 = vld [vmem:[%s1 + $0xa40] sm:$0xff]
    %v2096 = vld [vmem:[%s1 + $0xa48] sm:$0xff]
    %v2097 = vld [vmem:[%s1 + $0xa50] sm:$0xff]
    %v2098 = vld [vmem:[%s1 + $0xa58] sm:$0xff]
    %v2099 = vld [vmem:[%s1 + $0xa60] sm:$0xff]
    %v2100 = vld [vmem:[%s1 + $0xa68] sm:$0xff]
    %v2101 = vld [vmem:[%s1 + $0xa70] sm:$0xff]
    %v2102 = vld [vmem:[%s1 + $0xa78] sm:$0xff]
    %v2103 = vld [vmem:[%s1 + $0xa80] sm:$0xff]
    %v2104 = vld [vmem:[%s1 + $0xa88] sm:$0xff]
    %v2105 = vld [vmem:[%s1 + $0xa90] sm:$0xff]
    %v2106 = vld [vmem:[%s1 + $0xa98] sm:$0xff]
    %v2107 = vld [vmem:[%s1 + $0xaa0] sm:$0xff]
    %v2108 = vld [vmem:[%s1 + $0xaa8] sm:$0xff]
    %v2109 = vld [vmem:[%s1 + $0xab0] sm:$0xff]
    %v2110 = vld [vmem:[%s1 + $0xab8] sm:$0xff]
    %v2111 = vld [vmem:[%s1 + $0xac0] sm:$0xff]
    %v2112 = vld [vmem:[%s1 + $0xac8] sm:$0xff]
    %v2113 = vld [vmem:[%s1 + $0xad0] sm:$0xff]
    %v2114 = vld [vmem:[%s1 + $0xad8] sm:$0xff]
    %v2115 = vld [vmem:[%s1 + $0xae0] sm:$0xff]
    %v2116 = vld [vmem:[%s1 + $0xae8] sm:$0xff]
    %v2117 = vld [vmem:[%s1 + $0xaf0] sm:$0xff]
    %v2118 = vld [vmem:[%s1 + $0xaf8] sm:$0xff]
    %v2119 = vld [vmem:[%s1 + $0xb00] sm:$0xff]
    %v2120 = vld [vmem:[%s1 + $0xb08] sm:$0xff]
    %v2121 = vld [vmem:[%s1 + $0xb10] sm:$0xff]
    %v2122 = vld [vmem:[%s1 + $0xb18] sm:$0xff]
    %v2123 = vld [vmem:[%s1 + $0xb20] sm:$0xff]
    %v2124 = vld [vmem:[%s1 + $0xb28] sm:$0xff]
    %v2125 = vld [vmem:[%s1 + $0xb30] sm:$0xff]
    %v2126 = vld [vmem:[%s1 + $0xb38] sm:$0xff]
    %v2127 = vld [vmem:[%s1 + $0xb40] sm:$0xff]
    %v2128 = vld [vmem:[%s1 + $0xb48] sm:$0xff]
    %v2129 = vld [vmem:[%s1 + $0xb50] sm:$0xff]
    %v2130 = vld [vmem:[%s1 + $0xb58] sm:$0xff]
    %v2131 = vld [vmem:[%s1 + $0xb60] sm:$0xff]
    %v2132 = vld [vmem:[%s1 + $0xb68] sm:$0xff]
    %v2133 = vld [vmem:[%s1 + $0xb70] sm:$0xff]
    %v2134 = vld [vmem:[%s1 + $0xb78] sm:$0xff]
    %v2135 = vld [vmem:[%s1 + $0xb80] sm:$0xff]
    %v2136 = vld [vmem:[%s1 + $0xb88] sm:$0xff]
    %v2137 = vld [vmem:[%s1 + $0xb90] sm:$0xff]
    %v2138 = vld [vmem:[%s1 + $0xb98] sm:$0xff]
    %v2139 = vld [vmem:[%s1 + $0xba0] sm:$0xff]
    %v2140 = vld [vmem:[%s1 + $0xba8] sm:$0xff]
    %v2141 = vld [vmem:[%s1 + $0xbb0] sm:$0xff]
    %v2142 = vld [vmem:[%s1 + $0xbb8] sm:$0xff]
    %v2143 = vld [vmem:[%s1 + $0xbc0] sm:$0xff]
    %v2144 = vld [vmem:[%s1 + $0xbc8] sm:$0xff]
    %v2145 = vld [vmem:[%s1 + $0xbd0] sm:$0xff]
    %v2146 = vld [vmem:[%s1 + $0xbd8] sm:$0xff]
    %v2147 = vld [vmem:[%s1 + $0xbe0] sm:$0xff]
    %v2148 = vld [vmem:[%s1 + $0xbe8] sm:$0xff]
    %v2149 = vld [vmem:[%s1 + $0xbf0] sm:$0xff]
    %v2150 = vld [vmem:[%s1 + $0xbf8] sm:$0xff]
    %v2151 = vld [vmem:[%s1 + $0xc00] sm:$0xff]
    %v2152 = vld [vmem:[%s1 + $0xc08] sm:$0xff]
    %v2153 = vld [vmem:[%s1 + $0xc10] sm:$0xff]
    %v2154 = vld [vmem:[%s1 + $0xc18] sm:$0xff]
    %v2155 = vld [vmem:[%s1 + $0xc20] sm:$0xff]
    %v2156 = vld [vmem:[%s1 + $0xc28] sm:$0xff]
    %v2157 = vld [vmem:[%s1 + $0xc30] sm:$0xff]
    %v2158 = vld [vmem:[%s1 + $0xc38] sm:$0xff]
    %v2159 = vld [vmem:[%s1 + $0xc40] sm:$0xff]
    %v2160 = vld [vmem:[%s1 + $0xc48] sm:$0xff]
    %v2161 = vld [vmem:[%s1 + $0xc50] sm:$0xff]
    %v2162 = vld [vmem:[%s1 + $0xc58] sm:$0xff]
    %v2163 = vld [vmem:[%s1 + $0xc60] sm:$0xff]
    %v2164 = vld [vmem:[%s1 + $0xc68] sm:$0xff]
    %v2165 = vld [vmem:[%s1 + $0xc70] sm:$0xff]
    %v2166 = vld [vmem:[%s1 + $0xc78] sm:$0xff]
    %v2167 = vld [vmem:[%s1 + $0xc80] sm:$0xff]
    %v2168 = vld [vmem:[%s1 + $0xc88] sm:$0xff]
    %v2169 = vld [vmem:[%s1 + $0xc90] sm:$0xff]
    %v2170 = vld [vmem:[%s1 + $0xc98] sm:$0xff]
    %v2171 = vld [vmem:[%s1 + $0xca0] sm:$0xff]
    %v2172 = vld [vmem:[%s1 + $0xca8] sm:$0xff]
    %v2173 = vld [vmem:[%s1 + $0xcb0] sm:$0xff]
    %v2174 = vld [vmem:[%s1 + $0xcb8] sm:$0xff]
    %v2175 = vld [vmem:[%s1 + $0xcc0] sm:$0xff]
    %v2176 = vld [vmem:[%s1 + $0xcc8] sm:$0xff]
    %v2177 = vld [vmem:[%s1 + $0xcd0] sm:$0xff]
    %v2178 = vld [vmem:[%s1 + $0xcd8] sm:$0xff]
    %v2179 = vld [vmem:[%s1 + $0xce0] sm:$0xff]
    %v2180 = vld [vmem:[%s1 + $0xce8] sm:$0xff]
    %v2181 = vld [vmem:[%s1 + $0xcf0] sm:$0xff]
    %v2182 = vld [vmem:[%s1 + $0xcf8] sm:$0xff]
    %v2183 = vld [vmem:[%s1 + $0xd00] sm:$0xff]
    %v2184 = vld [vmem:[%s1 + $0xd08] sm:$0xff]
    %v2185 = vld [vmem:[%s1 + $0xd10] sm:$0xff]
    %v2186 = vld [vmem:[%s1 + $0xd18] sm:$0xff]
    %v2187 = vld [vmem:[%s1 + $0xd20] sm:$0xff]
    %v2188 = vld [vmem:[%s1 + $0xd28] sm:$0xff]
    %v2189 = vld [vmem:[%s1 + $0xd30] sm:$0xff]
    %v2190 = vld [vmem:[%s1 + $0xd38] sm:$0xff]
    %v2191 = vld [vmem:[%s1 + $0xd40] sm:$0xff]
    %v2192 = vld [vmem:[%s1 + $0xd48] sm:$0xff]
    %v2193 = vld [vmem:[%s1 + $0xd50] sm:$0xff]
    %v2194 = vld [vmem:[%s1 + $0xd58] sm:$0xff]
    %v2195 = vld [vmem:[%s1 + $0xd60] sm:$0xff]
    %v2196 = vld [vmem:[%s1 + $0xd68] sm:$0xff]
    %v2197 = vld [vmem:[%s1 + $0xd70] sm:$0xff]
    %v2198 = vld [vmem:[%s1 + $0xd78] sm:$0xff]
    %v2199 = vld [vmem:[%s1 + $0xd80] sm:$0xff]
    %v2200 = vld [vmem:[%s1 + $0xd88] sm:$0xff]
    %v2201 = vld [vmem:[%s1 + $0xd90] sm:$0xff]
    %v2202 = vld [vmem:[%s1 + $0xd98] sm:$0xff]
    %v2203 = vld [vmem:[%s1 + $0xda0] sm:$0xff]
    %v2204 = vld [vmem:[%s1 + $0xda8] sm:$0xff]
    %v2205 = vld [vmem:[%s1 + $0xdb0] sm:$0xff]
    %v2206 = vld [vmem:[%s1 + $0xdb8] sm:$0xff]
    %v2207 = vld [vmem:[%s1 + $0xdc0] sm:$0xff]
    %v2208 = vld [vmem:[%s1 + $0xdc8] sm:$0xff]
    %v2209 = vld [vmem:[%s1 + $0xdd0] sm:$0xff]
    %v2210 = vld [vmem:[%s1 + $0xdd8] sm:$0xff]
    %v2211 = vld [vmem:[%s1 + $0xde0] sm:$0xff]
    %v2212 = vld [vmem:[%s1 + $0xde8] sm:$0xff]
    %v2213 = vld [vmem:[%s1 + $0xdf0] sm:$0xff]
    %v2214 = vld [vmem:[%s1 + $0xdf8] sm:$0xff]
    %v2215 = vld [vmem:[%s1 + $0xe00] sm:$0xff]
    %v2216 = vld [vmem:[%s1 + $0xe08] sm:$0xff]
    %v2217 = vld [vmem:[%s1 + $0xe10] sm:$0xff]
    %v2218 = vld [vmem:[%s1 + $0xe18] sm:$0xff]
    %v2219 = vld [vmem:[%s1 + $0xe20] sm:$0xff]
    %v2220 = vld [vmem:[%s1 + $0xe28] sm:$0xff]
    %v2221 = vld [vmem:[%s1 + $0xe30] sm:$0xff]
    %v2222 = vld [vmem:[%s1 + $0xe38] sm:$0xff]
    %v2223 = vld [vmem:[%s1 + $0xe40] sm:$0xff]
    %v2224 = vld [vmem:[%s1 + $0xe48] sm:$0xff]
    %v2225 = vld [vmem:[%s1 + $0xe50] sm:$0xff]
    %v2226 = vld [vmem:[%s1 + $0xe58] sm:$0xff]
    %v2227 = vld [vmem:[%s1 + $0xe60] sm:$0xff]
    %v2228 = vld [vmem:[%s1 + $0xe68] sm:$0xff]
    %v2229 = vld [vmem:[%s1 + $0xe70] sm:$0xff]
    %v2230 = vld [vmem:[%s1 + $0xe78] sm:$0xff]
    %v2231 = vld [vmem:[%s1 + $0xe80] sm:$0xff]
    %v2232 = vld [vmem:[%s1 + $0xe88] sm:$0xff]
    %v2233 = vld [vmem:[%s1 + $0xe90] sm:$0xff]
    %v2234 = vld [vmem:[%s1 + $0xe98] sm:$0xff]
    %v2235 = vld [vmem:[%s1 + $0xea0] sm:$0xff]
    %v2236 = vld [vmem:[%s1 + $0xea8] sm:$0xff]
    %v2237 = vld [vmem:[%s1 + $0xeb0] sm:$0xff]
    %v2238 = vld [vmem:[%s1 + $0xeb8] sm:$0xff]
    %v2239 = vld [vmem:[%s1 + $0xec0] sm:$0xff]
    %v2240 = vld [vmem:[%s1 + $0xec8] sm:$0xff]
    %v2241 = vld [vmem:[%s1 + $0xed0] sm:$0xff]
    %v2242 = vld [vmem:[%s1 + $0xed8] sm:$0xff]
    %v2243 = vld [vmem:[%s1 + $0xee0] sm:$0xff]
    %v2244 = vld [vmem:[%s1 + $0xee8] sm:$0xff]
    %v2245 = vld [vmem:[%s1 + $0xef0] sm:$0xff]
    %v2246 = vld [vmem:[%s1 + $0xef8] sm:$0xff]
    %v2247 = vld [vmem:[%s1 + $0xf00] sm:$0xff]
    %v2248 = vld [vmem:[%s1 + $0xf08] sm:$0xff]
    %v2249 = vld [vmem:[%s1 + $0xf10] sm:$0xff]
    %v2250 = vld [vmem:[%s1 + $0xf18] sm:$0xff]
    %v2251 = vld [vmem:[%s1 + $0xf20] sm:$0xff]
    %v2252 = vld [vmem:[%s1 + $0xf28] sm:$0xff]
    %v2739 = vunpack.c.l.b16 %v1767
    %v2740 = vunpack.c.h.b16 %v1767
    %v2741 = vunpack.c.l.b16 %v1768
    %v2742 = vunpack.c.h.b16 %v1768
    %v2743 = vunpack.c.l.b16 %v1769
    %v2744 = vunpack.c.h.b16 %v1769
    %v2745 = vunpack.c.l.b16 %v1770
    %v2746 = vunpack.c.h.b16 %v1770
    %v2747 = vunpack.c.l.b16 %v1771
    %v2748 = vunpack.c.h.b16 %v1771
    %v2749 = vunpack.c.l.b16 %v1772
    %v2750 = vunpack.c.h.b16 %v1772
    %v2751 = vunpack.c.l.b16 %v1773
    %v2752 = vunpack.c.h.b16 %v1773
    %v2753 = vunpack.c.l.b16 %v1774
    %v2754 = vunpack.c.h.b16 %v1774
    %v2755 = vunpack.c.l.b16 %v1775
    %v2756 = vunpack.c.h.b16 %v1775
    %v2757 = vunpack.c.l.b16 %v1776
    %v2758 = vunpack.c.h.b16 %v1776
    %v2759 = vunpack.c.l.b16 %v1777
    %v2760 = vunpack.c.h.b16 %v1777
    %v2761 = vunpack.c.l.b16 %v1778
    %v2762 = vunpack.c.h.b16 %v1778
    %v2763 = vunpack.c.l.b16 %v1779
    %v2764 = vunpack.c.h.b16 %v1779
    %v2765 = vunpack.c.l.b16 %v1780
    %v2766 = vunpack.c.h.b16 %v1780
    %v2767 = vunpack.c.l.b16 %v1781
    %v2768 = vunpack.c.h.b16 %v1781
    %v2769 = vunpack.c.l.b16 %v1782
    %v2770 = vunpack.c.h.b16 %v1782
    %v2771 = vunpack.c.l.b16 %v1783
    %v2772 = vunpack.c.h.b16 %v1783
    %v2773 = vunpack.c.l.b16 %v1784
    %v2774 = vunpack.c.h.b16 %v1784
    %v2775 = vunpack.c.l.b16 %v1785
    %v2776 = vunpack.c.h.b16 %v1785
    %v2777 = vunpack.c.l.b16 %v1786
    %v2778 = vunpack.c.h.b16 %v1786
    %v2779 = vunpack.c.l.b16 %v1787
    %v2780 = vunpack.c.h.b16 %v1787
    %v2781 = vunpack.c.l.b16 %v1788
    %v2782 = vunpack.c.h.b16 %v1788
    %v2783 = vunpack.c.l.b16 %v1789
    %v2784 = vunpack.c.h.b16 %v1789
    %v2785 = vunpack.c.l.b16 %v1790
    %v2786 = vunpack.c.h.b16 %v1790
    %v2787 = vunpack.c.l.b16 %v1791
    %v2788 = vunpack.c.h.b16 %v1791
    %v2789 = vunpack.c.l.b16 %v1792
    %v2790 = vunpack.c.h.b16 %v1792
    %v2791 = vunpack.c.l.b16 %v1793
    %v2792 = vunpack.c.h.b16 %v1793
    %v2793 = vunpack.c.l.b16 %v1794
    %v2794 = vunpack.c.h.b16 %v1794
    %v2795 = vunpack.c.l.b16 %v1795
    %v2796 = vunpack.c.h.b16 %v1795
    %v2797 = vunpack.c.l.b16 %v1796
    %v2798 = vunpack.c.h.b16 %v1796
    %v2799 = vunpack.c.l.b16 %v1797
    %v2800 = vunpack.c.h.b16 %v1797
    %v2801 = vunpack.c.l.b16 %v1798
    %v2802 = vunpack.c.h.b16 %v1798
    %v2803 = vunpack.c.l.b16 %v1799
    %v2804 = vunpack.c.h.b16 %v1799
    %v2805 = vunpack.c.l.b16 %v1800
    %v2806 = vunpack.c.h.b16 %v1800
    %v2807 = vunpack.c.l.b16 %v1801
    %v2808 = vunpack.c.h.b16 %v1801
    %v2809 = vunpack.c.l.b16 %v1802
    %v2810 = vunpack.c.h.b16 %v1802
    %v2811 = vunpack.c.l.b16 %v1803
    %v2812 = vunpack.c.h.b16 %v1803
    %v2813 = vunpack.c.l.b16 %v1804
    %v2814 = vunpack.c.h.b16 %v1804
    %v2815 = vunpack.c.l.b16 %v1805
    %v2816 = vunpack.c.h.b16 %v1805
    %v2817 = vunpack.c.l.b16 %v1806
    %v2818 = vunpack.c.h.b16 %v1806
    %v2819 = vunpack.c.l.b16 %v1807
    %v2820 = vunpack.c.h.b16 %v1807
    %v2821 = vunpack.c.l.b16 %v1808
    %v2822 = vunpack.c.h.b16 %v1808
    %v2823 = vunpack.c.l.b16 %v1809
    %v2824 = vunpack.c.h.b16 %v1809
    %v2825 = vunpack.c.l.b16 %v1810
    %v2826 = vunpack.c.h.b16 %v1810
    %v2827 = vunpack.c.l.b16 %v1811
    %v2828 = vunpack.c.h.b16 %v1811
    %v2829 = vunpack.c.l.b16 %v1812
    %v2830 = vunpack.c.h.b16 %v1812
    %v2831 = vunpack.c.l.b16 %v1813
    %v2832 = vunpack.c.h.b16 %v1813
    %v2833 = vunpack.c.l.b16 %v1814
    %v2834 = vunpack.c.h.b16 %v1814
    %v2835 = vunpack.c.l.b16 %v1815
    %v2836 = vunpack.c.h.b16 %v1815
    %v2837 = vunpack.c.l.b16 %v1816
    %v2838 = vunpack.c.h.b16 %v1816
    %v2839 = vunpack.c.l.b16 %v1817
    %v2840 = vunpack.c.h.b16 %v1817
    %v2841 = vunpack.c.l.b16 %v1818
    %v2842 = vunpack.c.h.b16 %v1818
    %v2843 = vunpack.c.l.b16 %v1819
    %v2844 = vunpack.c.h.b16 %v1819
    %v2845 = vunpack.c.l.b16 %v1820
    %v2846 = vunpack.c.h.b16 %v1820
    %v2847 = vunpack.c.l.b16 %v1821
    %v2848 = vunpack.c.h.b16 %v1821
    %v2849 = vunpack.c.l.b16 %v1822
    %v2850 = vunpack.c.h.b16 %v1822
    %v2851 = vunpack.c.l.b16 %v1823
    %v2852 = vunpack.c.h.b16 %v1823
    %v2853 = vunpack.c.l.b16 %v1824
    %v2854 = vunpack.c.h.b16 %v1824
    %v2855 = vunpack.c.l.b16 %v1825
    %v2856 = vunpack.c.h.b16 %v1825
    %v2857 = vunpack.c.l.b16 %v1826
    %v2858 = vunpack.c.h.b16 %v1826
    %v2859 = vunpack.c.l.b16 %v1827
    %v2860 = vunpack.c.h.b16 %v1827
    %v2861 = vunpack.c.l.b16 %v1828
    %v2862 = vunpack.c.h.b16 %v1828
    %v2863 = vunpack.c.l.b16 %v1829
    %v2864 = vunpack.c.h.b16 %v1829
    %v2865 = vunpack.c.l.b16 %v1830
    %v2866 = vunpack.c.h.b16 %v1830
    %v2867 = vunpack.c.l.b16 %v1831
    %v2868 = vunpack.c.h.b16 %v1831
    %v2869 = vunpack.c.l.b16 %v1832
    %v2870 = vunpack.c.h.b16 %v1832
    %v2871 = vunpack.c.l.b16 %v1833
    %v2872 = vunpack.c.h.b16 %v1833
    %v2873 = vunpack.c.l.b16 %v1834
    %v2874 = vunpack.c.h.b16 %v1834
    %v2875 = vunpack.c.l.b16 %v1835
    %v2876 = vunpack.c.h.b16 %v1835
    %v2877 = vunpack.c.l.b16 %v1836
    %v2878 = vunpack.c.h.b16 %v1836
    %v2879 = vunpack.c.l.b16 %v1837
    %v2880 = vunpack.c.h.b16 %v1837
    %v2881 = vunpack.c.l.b16 %v1838
    %v2882 = vunpack.c.h.b16 %v1838
    %v2883 = vunpack.c.l.b16 %v1839
    %v2884 = vunpack.c.h.b16 %v1839
    %v2885 = vunpack.c.l.b16 %v1840
    %v2886 = vunpack.c.h.b16 %v1840
    %v2887 = vunpack.c.l.b16 %v1841
    %v2888 = vunpack.c.h.b16 %v1841
    %v2889 = vunpack.c.l.b16 %v1842
    %v2890 = vunpack.c.h.b16 %v1842
    %v2891 = vunpack.c.l.b16 %v1843
    %v2892 = vunpack.c.h.b16 %v1843
    %v2893 = vunpack.c.l.b16 %v1844
    %v2894 = vunpack.c.h.b16 %v1844
    %v2895 = vunpack.c.l.b16 %v1845
    %v2896 = vunpack.c.h.b16 %v1845
    %v2897 = vunpack.c.l.b16 %v1846
    %v2898 = vunpack.c.h.b16 %v1846
    %v2899 = vunpack.c.l.b16 %v1847
    %v2900 = vunpack.c.h.b16 %v1847
    %v2901 = vunpack.c.l.b16 %v1848
    %v2902 = vunpack.c.h.b16 %v1848
    %v2903 = vunpack.c.l.b16 %v1849
    %v2904 = vunpack.c.h.b16 %v1849
    %v2905 = vunpack.c.l.b16 %v1850
    %v2906 = vunpack.c.h.b16 %v1850
    %v2907 = vunpack.c.l.b16 %v1851
    %v2908 = vunpack.c.h.b16 %v1851
    %v2909 = vunpack.c.l.b16 %v1852
    %v2910 = vunpack.c.h.b16 %v1852
    %v2911 = vunpack.c.l.b16 %v1853
    %v2912 = vunpack.c.h.b16 %v1853
    %v2913 = vunpack.c.l.b16 %v1854
    %v2914 = vunpack.c.h.b16 %v1854
    %v2915 = vunpack.c.l.b16 %v1855
    %v2916 = vunpack.c.h.b16 %v1855
    %v2917 = vunpack.c.l.b16 %v1856
    %v2918 = vunpack.c.h.b16 %v1856
    %v2919 = vunpack.c.l.b16 %v1857
    %v2920 = vunpack.c.h.b16 %v1857
    %v2921 = vunpack.c.l.b16 %v1858
    %v2922 = vunpack.c.h.b16 %v1858
    %v2923 = vunpack.c.l.b16 %v1859
    %v2924 = vunpack.c.h.b16 %v1859
    %v2925 = vunpack.c.l.b16 %v1860
    %v2926 = vunpack.c.h.b16 %v1860
    %v2927 = vunpack.c.l.b16 %v1861
    %v2928 = vunpack.c.h.b16 %v1861
    %v2929 = vunpack.c.l.b16 %v1862
    %v2930 = vunpack.c.h.b16 %v1862
    %v2931 = vunpack.c.l.b16 %v1863
    %v2932 = vunpack.c.h.b16 %v1863
    %v2933 = vunpack.c.l.b16 %v1864
    %v2934 = vunpack.c.h.b16 %v1864
    %v2935 = vunpack.c.l.b16 %v1865
    %v2936 = vunpack.c.h.b16 %v1865
    %v2937 = vunpack.c.l.b16 %v1866
    %v2938 = vunpack.c.h.b16 %v1866
    %v2939 = vunpack.c.l.b16 %v1867
    %v2940 = vunpack.c.h.b16 %v1867
    %v2941 = vunpack.c.l.b16 %v1868
    %v2942 = vunpack.c.h.b16 %v1868
    %v2943 = vunpack.c.l.b16 %v1869
    %v2944 = vunpack.c.h.b16 %v1869
    %v2945 = vunpack.c.l.b16 %v1870
    %v2946 = vunpack.c.h.b16 %v1870
    %v2947 = vunpack.c.l.b16 %v1871
    %v2948 = vunpack.c.h.b16 %v1871
    %v2949 = vunpack.c.l.b16 %v1872
    %v2950 = vunpack.c.h.b16 %v1872
    %v2951 = vunpack.c.l.b16 %v1873
    %v2952 = vunpack.c.h.b16 %v1873
    %v2953 = vunpack.c.l.b16 %v1874
    %v2954 = vunpack.c.h.b16 %v1874
    %v2955 = vunpack.c.l.b16 %v1875
    %v2956 = vunpack.c.h.b16 %v1875
    %v2957 = vunpack.c.l.b16 %v1876
    %v2958 = vunpack.c.h.b16 %v1876
    %v2959 = vunpack.c.l.b16 %v1877
    %v2960 = vunpack.c.h.b16 %v1877
    %v2961 = vunpack.c.l.b16 %v1878
    %v2962 = vunpack.c.h.b16 %v1878
    %v2963 = vunpack.c.l.b16 %v1879
    %v2964 = vunpack.c.h.b16 %v1879
    %v2965 = vunpack.c.l.b16 %v1880
    %v2966 = vunpack.c.h.b16 %v1880
    %v2967 = vunpack.c.l.b16 %v1881
    %v2968 = vunpack.c.h.b16 %v1881
    %v2969 = vunpack.c.l.b16 %v1882
    %v2970 = vunpack.c.h.b16 %v1882
    %v2971 = vunpack.c.l.b16 %v1883
    %v2972 = vunpack.c.h.b16 %v1883
    %v2973 = vunpack.c.l.b16 %v1884
    %v2974 = vunpack.c.h.b16 %v1884
    %v2975 = vunpack.c.l.b16 %v1885
    %v2976 = vunpack.c.h.b16 %v1885
    %v2977 = vunpack.c.l.b16 %v1886
    %v2978 = vunpack.c.h.b16 %v1886
    %v2979 = vunpack.c.l.b16 %v1887
    %v2980 = vunpack.c.h.b16 %v1887
    %v2981 = vunpack.c.l.b16 %v1888
    %v2982 = vunpack.c.h.b16 %v1888
    %v2983 = vunpack.c.l.b16 %v1889
    %v2984 = vunpack.c.h.b16 %v1889
    %v2985 = vunpack.c.l.b16 %v1890
    %v2986 = vunpack.c.h.b16 %v1890
    %v2987 = vunpack.c.l.b16 %v1891
    %v2988 = vunpack.c.h.b16 %v1891
    %v2989 = vunpack.c.l.b16 %v1892
    %v2990 = vunpack.c.h.b16 %v1892
    %v2991 = vunpack.c.l.b16 %v1893
    %v2992 = vunpack.c.h.b16 %v1893
    %v2993 = vunpack.c.l.b16 %v1894
    %v2994 = vunpack.c.h.b16 %v1894
    %v2995 = vunpack.c.l.b16 %v1895
    %v2996 = vunpack.c.h.b16 %v1895
    %v2997 = vunpack.c.l.b16 %v1896
    %v2998 = vunpack.c.h.b16 %v1896
    %v2999 = vunpack.c.l.b16 %v1897
    %v3000 = vunpack.c.h.b16 %v1897
    %v3001 = vunpack.c.l.b16 %v1898
    %v3002 = vunpack.c.h.b16 %v1898
    %v3003 = vunpack.c.l.b16 %v1899
    %v3004 = vunpack.c.h.b16 %v1899
    %v3005 = vunpack.c.l.b16 %v1900
    %v3006 = vunpack.c.h.b16 %v1900
    %v3007 = vunpack.c.l.b16 %v1901
    %v3008 = vunpack.c.h.b16 %v1901
    %v3009 = vunpack.c.l.b16 %v1902
    %v3010 = vunpack.c.h.b16 %v1902
    %v3011 = vunpack.c.l.b16 %v1903
    %v3012 = vunpack.c.h.b16 %v1903
    %v3013 = vunpack.c.l.b16 %v1904
    %v3014 = vunpack.c.h.b16 %v1904
    %v3015 = vunpack.c.l.b16 %v1905
    %v3016 = vunpack.c.h.b16 %v1905
    %v3017 = vunpack.c.l.b16 %v1906
    %v3018 = vunpack.c.h.b16 %v1906
    %v3019 = vunpack.c.l.b16 %v1907
    %v3020 = vunpack.c.h.b16 %v1907
    %v3021 = vunpack.c.l.b16 %v1908
    %v3022 = vunpack.c.h.b16 %v1908
    %v3023 = vunpack.c.l.b16 %v1909
    %v3024 = vunpack.c.h.b16 %v1909
    %v3025 = vunpack.c.l.b16 %v1910
    %v3026 = vunpack.c.h.b16 %v1910
    %v3027 = vunpack.c.l.b16 %v1911
    %v3028 = vunpack.c.h.b16 %v1911
    %v3029 = vunpack.c.l.b16 %v1912
    %v3030 = vunpack.c.h.b16 %v1912
    %v3031 = vunpack.c.l.b16 %v1913
    %v3032 = vunpack.c.h.b16 %v1913
    %v3033 = vunpack.c.l.b16 %v1914
    %v3034 = vunpack.c.h.b16 %v1914
    %v3035 = vunpack.c.l.b16 %v1915
    %v3036 = vunpack.c.h.b16 %v1915
    %v3037 = vunpack.c.l.b16 %v1916
    %v3038 = vunpack.c.h.b16 %v1916
    %v3039 = vunpack.c.l.b16 %v1917
    %v3040 = vunpack.c.h.b16 %v1917
    %v3041 = vunpack.c.l.b16 %v1918
    %v3042 = vunpack.c.h.b16 %v1918
    %v3043 = vunpack.c.l.b16 %v1919
    %v3044 = vunpack.c.h.b16 %v1919
    %v3045 = vunpack.c.l.b16 %v1920
    %v3046 = vunpack.c.h.b16 %v1920
    %v3047 = vunpack.c.l.b16 %v1921
    %v3048 = vunpack.c.h.b16 %v1921
    %v3049 = vunpack.c.l.b16 %v1922
    %v3050 = vunpack.c.h.b16 %v1922
    %v3051 = vunpack.c.l.b16 %v1923
    %v3052 = vunpack.c.h.b16 %v1923
    %v3053 = vunpack.c.l.b16 %v1924
    %v3054 = vunpack.c.h.b16 %v1924
    %v3055 = vunpack.c.l.b16 %v1925
    %v3056 = vunpack.c.h.b16 %v1925
    %v3057 = vunpack.c.l.b16 %v1926
    %v3058 = vunpack.c.h.b16 %v1926
    %v3059 = vunpack.c.l.b16 %v1927
    %v3060 = vunpack.c.h.b16 %v1927
    %v3061 = vunpack.c.l.b16 %v1928
    %v3062 = vunpack.c.h.b16 %v1928
    %v3063 = vunpack.c.l.b16 %v1929
    %v3064 = vunpack.c.h.b16 %v1929
    %v3065 = vunpack.c.l.b16 %v1930
    %v3066 = vunpack.c.h.b16 %v1930
    %v3067 = vunpack.c.l.b16 %v1931
    %v3068 = vunpack.c.h.b16 %v1931
    %v3069 = vunpack.c.l.b16 %v1932
    %v3070 = vunpack.c.h.b16 %v1932
    %v3071 = vunpack.c.l.b16 %v1933
    %v3072 = vunpack.c.h.b16 %v1933
    %v3073 = vunpack.c.l.b16 %v1934
    %v3074 = vunpack.c.h.b16 %v1934
    %v3075 = vunpack.c.l.b16 %v1935
    %v3076 = vunpack.c.h.b16 %v1935
    %v3077 = vunpack.c.l.b16 %v1936
    %v3078 = vunpack.c.h.b16 %v1936
    %v3079 = vunpack.c.l.b16 %v1937
    %v3080 = vunpack.c.h.b16 %v1937
    %v3081 = vunpack.c.l.b16 %v1938
    %v3082 = vunpack.c.h.b16 %v1938
    %v3083 = vunpack.c.l.b16 %v1939
    %v3084 = vunpack.c.h.b16 %v1939
    %v3085 = vunpack.c.l.b16 %v1940
    %v3086 = vunpack.c.h.b16 %v1940
    %v3087 = vunpack.c.l.b16 %v1941
    %v3088 = vunpack.c.h.b16 %v1941
    %v3089 = vunpack.c.l.b16 %v1942
    %v3090 = vunpack.c.h.b16 %v1942
    %v3091 = vunpack.c.l.b16 %v1943
    %v3092 = vunpack.c.h.b16 %v1943
    %v3093 = vunpack.c.l.b16 %v1944
    %v3094 = vunpack.c.h.b16 %v1944
    %v3095 = vunpack.c.l.b16 %v1945
    %v3096 = vunpack.c.h.b16 %v1945
    %v3097 = vunpack.c.l.b16 %v1946
    %v3098 = vunpack.c.h.b16 %v1946
    %v3099 = vunpack.c.l.b16 %v1947
    %v3100 = vunpack.c.h.b16 %v1947
    %v3101 = vunpack.c.l.b16 %v1948
    %v3102 = vunpack.c.h.b16 %v1948
    %v3103 = vunpack.c.l.b16 %v1949
    %v3104 = vunpack.c.h.b16 %v1949
    %v3105 = vunpack.c.l.b16 %v1950
    %v3106 = vunpack.c.h.b16 %v1950
    %v3107 = vunpack.c.l.b16 %v1951
    %v3108 = vunpack.c.h.b16 %v1951
    %v3109 = vunpack.c.l.b16 %v1952
    %v3110 = vunpack.c.h.b16 %v1952
    %v3111 = vunpack.c.l.b16 %v1953
    %v3112 = vunpack.c.h.b16 %v1953
    %v3113 = vunpack.c.l.b16 %v1954
    %v3114 = vunpack.c.h.b16 %v1954
    %v3115 = vunpack.c.l.b16 %v1955
    %v3116 = vunpack.c.h.b16 %v1955
    %v3117 = vunpack.c.l.b16 %v1956
    %v3118 = vunpack.c.h.b16 %v1956
    %v3119 = vunpack.c.l.b16 %v1957
    %v3120 = vunpack.c.h.b16 %v1957
    %v3121 = vunpack.c.l.b16 %v1958
    %v3122 = vunpack.c.h.b16 %v1958
    %v3123 = vunpack.c.l.b16 %v1959
    %v3124 = vunpack.c.h.b16 %v1959
    %v3125 = vunpack.c.l.b16 %v1960
    %v3126 = vunpack.c.h.b16 %v1960
    %v3127 = vunpack.c.l.b16 %v1961
    %v3128 = vunpack.c.h.b16 %v1961
    %v3129 = vunpack.c.l.b16 %v1962
    %v3130 = vunpack.c.h.b16 %v1962
    %v3131 = vunpack.c.l.b16 %v1963
    %v3132 = vunpack.c.h.b16 %v1963
    %v3133 = vunpack.c.l.b16 %v1964
    %v3134 = vunpack.c.h.b16 %v1964
    %v3135 = vunpack.c.l.b16 %v1965
    %v3136 = vunpack.c.h.b16 %v1965
    %v3137 = vunpack.c.l.b16 %v1966
    %v3138 = vunpack.c.h.b16 %v1966
    %v3139 = vunpack.c.l.b16 %v1967
    %v3140 = vunpack.c.h.b16 %v1967
    %v3141 = vunpack.c.l.b16 %v1968
    %v3142 = vunpack.c.h.b16 %v1968
    %v3143 = vunpack.c.l.b16 %v1969
    %v3144 = vunpack.c.h.b16 %v1969
    %v3145 = vunpack.c.l.b16 %v1970
    %v3146 = vunpack.c.h.b16 %v1970
    %v3147 = vunpack.c.l.b16 %v1971
    %v3148 = vunpack.c.h.b16 %v1971
    %v3149 = vunpack.c.l.b16 %v1972
    %v3150 = vunpack.c.h.b16 %v1972
    %v3151 = vunpack.c.l.b16 %v1973
    %v3152 = vunpack.c.h.b16 %v1973
    %v3153 = vunpack.c.l.b16 %v1974
    %v3154 = vunpack.c.h.b16 %v1974
    %v3155 = vunpack.c.l.b16 %v1975
    %v3156 = vunpack.c.h.b16 %v1975
    %v3157 = vunpack.c.l.b16 %v1976
    %v3158 = vunpack.c.h.b16 %v1976
    %v3159 = vunpack.c.l.b16 %v1977
    %v3160 = vunpack.c.h.b16 %v1977
    %v3161 = vunpack.c.l.b16 %v1978
    %v3162 = vunpack.c.h.b16 %v1978
    %v3163 = vunpack.c.l.b16 %v1979
    %v3164 = vunpack.c.h.b16 %v1979
    %v3165 = vunpack.c.l.b16 %v1980
    %v3166 = vunpack.c.h.b16 %v1980
    %v3167 = vunpack.c.l.b16 %v1981
    %v3168 = vunpack.c.h.b16 %v1981
    %v3169 = vunpack.c.l.b16 %v1982
    %v3170 = vunpack.c.h.b16 %v1982
    %v3171 = vunpack.c.l.b16 %v1983
    %v3172 = vunpack.c.h.b16 %v1983
    %v3173 = vunpack.c.l.b16 %v1984
    %v3174 = vunpack.c.h.b16 %v1984
    %v3175 = vunpack.c.l.b16 %v1985
    %v3176 = vunpack.c.h.b16 %v1985
    %v3177 = vunpack.c.l.b16 %v1986
    %v3178 = vunpack.c.h.b16 %v1986
    %v3179 = vunpack.c.l.b16 %v1987
    %v3180 = vunpack.c.h.b16 %v1987
    %v3181 = vunpack.c.l.b16 %v1988
    %v3182 = vunpack.c.h.b16 %v1988
    %v3183 = vunpack.c.l.b16 %v1989
    %v3184 = vunpack.c.h.b16 %v1989
    %v3185 = vunpack.c.l.b16 %v1990
    %v3186 = vunpack.c.h.b16 %v1990
    %v3187 = vunpack.c.l.b16 %v1991
    %v3188 = vunpack.c.h.b16 %v1991
    %v3189 = vunpack.c.l.b16 %v1992
    %v3190 = vunpack.c.h.b16 %v1992
    %v3191 = vunpack.c.l.b16 %v1993
    %v3192 = vunpack.c.h.b16 %v1993
    %v3193 = vunpack.c.l.b16 %v1994
    %v3194 = vunpack.c.h.b16 %v1994
    %v3195 = vunpack.c.l.b16 %v1995
    %v3196 = vunpack.c.h.b16 %v1995
    %v3197 = vunpack.c.l.b16 %v1996
    %v3198 = vunpack.c.h.b16 %v1996
    %v3199 = vunpack.c.l.b16 %v1997
    %v3200 = vunpack.c.h.b16 %v1997
    %v3201 = vunpack.c.l.b16 %v1998
    %v3202 = vunpack.c.h.b16 %v1998
    %v3203 = vunpack.c.l.b16 %v1999
    %v3204 = vunpack.c.h.b16 %v1999
    %v3205 = vunpack.c.l.b16 %v2000
    %v3206 = vunpack.c.h.b16 %v2000
    %v3207 = vunpack.c.l.b16 %v2001
    %v3208 = vunpack.c.h.b16 %v2001
    %v3209 = vunpack.c.l.b16 %v2002
    %v3210 = vunpack.c.h.b16 %v2002
    %v3211 = vunpack.c.l.b16 %v2003
    %v3212 = vunpack.c.h.b16 %v2003
    %v3213 = vunpack.c.l.b16 %v2004
    %v3214 = vunpack.c.h.b16 %v2004
    %v3215 = vunpack.c.l.b16 %v2005
    %v3216 = vunpack.c.h.b16 %v2005
    %v3217 = vunpack.c.l.b16 %v2006
    %v3218 = vunpack.c.h.b16 %v2006
    %v3219 = vunpack.c.l.b16 %v2007
    %v3220 = vunpack.c.h.b16 %v2007
    %v3221 = vunpack.c.l.b16 %v2008
    %v3222 = vunpack.c.h.b16 %v2008
    %v3223 = vunpack.c.l.b16 %v2009
    %v3224 = vunpack.c.h.b16 %v2009
    %v3225 = vunpack.c.l.b16 %v2010
    %v3226 = vunpack.c.h.b16 %v2010
    %v3227 = vunpack.c.l.b16 %v2011
    %v3228 = vunpack.c.h.b16 %v2011
    %v3229 = vunpack.c.l.b16 %v2012
    %v3230 = vunpack.c.h.b16 %v2012
    %v3231 = vunpack.c.l.b16 %v2013
    %v3232 = vunpack.c.h.b16 %v2013
    %v3233 = vunpack.c.l.b16 %v2014
    %v3234 = vunpack.c.h.b16 %v2014
    %v3235 = vunpack.c.l.b16 %v2015
    %v3236 = vunpack.c.h.b16 %v2015
    %v3237 = vunpack.c.l.b16 %v2016
    %v3238 = vunpack.c.h.b16 %v2016
    %v3239 = vunpack.c.l.b16 %v2017
    %v3240 = vunpack.c.h.b16 %v2017
    %v3241 = vunpack.c.l.b16 %v2018
    %v3242 = vunpack.c.h.b16 %v2018
    %v3243 = vunpack.c.l.b16 %v2019
    %v3244 = vunpack.c.h.b16 %v2019
    %v3245 = vunpack.c.l.b16 %v2020
    %v3246 = vunpack.c.h.b16 %v2020
    %v3247 = vunpack.c.l.b16 %v2021
    %v3248 = vunpack.c.h.b16 %v2021
    %v3249 = vunpack.c.l.b16 %v2022
    %v3250 = vunpack.c.h.b16 %v2022
    %v3251 = vunpack.c.l.b16 %v2023
    %v3252 = vunpack.c.h.b16 %v2023
    %v3253 = vunpack.c.l.b16 %v2024
    %v3254 = vunpack.c.h.b16 %v2024
    %v3255 = vunpack.c.l.b16 %v2025
    %v3256 = vunpack.c.h.b16 %v2025
    %v3257 = vunpack.c.l.b16 %v2026
    %v3258 = vunpack.c.h.b16 %v2026
    %v3259 = vunpack.c.l.b16 %v2027
    %v3260 = vunpack.c.h.b16 %v2027
    %v3261 = vunpack.c.l.b16 %v2028
    %v3262 = vunpack.c.h.b16 %v2028
    %v3263 = vunpack.c.l.b16 %v2029
    %v3264 = vunpack.c.h.b16 %v2029
    %v3265 = vunpack.c.l.b16 %v2030
    %v3266 = vunpack.c.h.b16 %v2030
    %v3267 = vunpack.c.l.b16 %v2031
    %v3268 = vunpack.c.h.b16 %v2031
    %v3269 = vunpack.c.l.b16 %v2032
    %v3270 = vunpack.c.h.b16 %v2032
    %v3271 = vunpack.c.l.b16 %v2033
    %v3272 = vunpack.c.h.b16 %v2033
    %v3273 = vunpack.c.l.b16 %v2034
    %v3274 = vunpack.c.h.b16 %v2034
    %v3275 = vunpack.c.l.b16 %v2035
    %v3276 = vunpack.c.h.b16 %v2035
    %v3277 = vunpack.c.l.b16 %v2036
    %v3278 = vunpack.c.h.b16 %v2036
    %v3279 = vunpack.c.l.b16 %v2037
    %v3280 = vunpack.c.h.b16 %v2037
    %v3281 = vunpack.c.l.b16 %v2038
    %v3282 = vunpack.c.h.b16 %v2038
    %v3283 = vunpack.c.l.b16 %v2039
    %v3284 = vunpack.c.h.b16 %v2039
    %v3285 = vunpack.c.l.b16 %v2040
    %v3286 = vunpack.c.h.b16 %v2040
    %v3287 = vunpack.c.l.b16 %v2041
    %v3288 = vunpack.c.h.b16 %v2041
    %v3289 = vunpack.c.l.b16 %v2042
    %v3290 = vunpack.c.h.b16 %v2042
    %v3291 = vunpack.c.l.b16 %v2043
    %v3292 = vunpack.c.h.b16 %v2043
    %v3293 = vunpack.c.l.b16 %v2044
    %v3294 = vunpack.c.h.b16 %v2044
    %v3295 = vunpack.c.l.b16 %v2045
    %v3296 = vunpack.c.h.b16 %v2045
    %v3297 = vunpack.c.l.b16 %v2046
    %v3298 = vunpack.c.h.b16 %v2046
    %v3299 = vunpack.c.l.b16 %v2047
    %v3300 = vunpack.c.h.b16 %v2047
    %v3301 = vunpack.c.l.b16 %v2048
    %v3302 = vunpack.c.h.b16 %v2048
    %v3303 = vunpack.c.l.b16 %v2049
    %v3304 = vunpack.c.h.b16 %v2049
    %v3305 = vunpack.c.l.b16 %v2050
    %v3306 = vunpack.c.h.b16 %v2050
    %v3307 = vunpack.c.l.b16 %v2051
    %v3308 = vunpack.c.h.b16 %v2051
    %v3309 = vunpack.c.l.b16 %v2052
    %v3310 = vunpack.c.h.b16 %v2052
    %v3311 = vunpack.c.l.b16 %v2053
    %v3312 = vunpack.c.h.b16 %v2053
    %v3313 = vunpack.c.l.b16 %v2054
    %v3314 = vunpack.c.h.b16 %v2054
    %v3315 = vunpack.c.l.b16 %v2055
    %v3316 = vunpack.c.h.b16 %v2055
    %v3317 = vunpack.c.l.b16 %v2056
    %v3318 = vunpack.c.h.b16 %v2056
    %v3319 = vunpack.c.l.b16 %v2057
    %v3320 = vunpack.c.h.b16 %v2057
    %v3321 = vunpack.c.l.b16 %v2058
    %v3322 = vunpack.c.h.b16 %v2058
    %v3323 = vunpack.c.l.b16 %v2059
    %v3324 = vunpack.c.h.b16 %v2059
    %v3325 = vunpack.c.l.b16 %v2060
    %v3326 = vunpack.c.h.b16 %v2060
    %v3327 = vunpack.c.l.b16 %v2061
    %v3328 = vunpack.c.h.b16 %v2061
    %v3329 = vunpack.c.l.b16 %v2062
    %v3330 = vunpack.c.h.b16 %v2062
    %v3331 = vunpack.c.l.b16 %v2063
    %v3332 = vunpack.c.h.b16 %v2063
    %v3333 = vunpack.c.l.b16 %v2064
    %v3334 = vunpack.c.h.b16 %v2064
    %v3335 = vunpack.c.l.b16 %v2065
    %v3336 = vunpack.c.h.b16 %v2065
    %v3337 = vunpack.c.l.b16 %v2066
    %v3338 = vunpack.c.h.b16 %v2066
    %v3339 = vunpack.c.l.b16 %v2067
    %v3340 = vunpack.c.h.b16 %v2067
    %v3341 = vunpack.c.l.b16 %v2068
    %v3342 = vunpack.c.h.b16 %v2068
    %v3343 = vunpack.c.l.b16 %v2069
    %v3344 = vunpack.c.h.b16 %v2069
    %v3345 = vunpack.c.l.b16 %v2070
    %v3346 = vunpack.c.h.b16 %v2070
    %v3347 = vunpack.c.l.b16 %v2071
    %v3348 = vunpack.c.h.b16 %v2071
    %v3349 = vunpack.c.l.b16 %v2072
    %v3350 = vunpack.c.h.b16 %v2072
    %v3351 = vunpack.c.l.b16 %v2073
    %v3352 = vunpack.c.h.b16 %v2073
    %v3353 = vunpack.c.l.b16 %v2074
    %v3354 = vunpack.c.h.b16 %v2074
    %v3355 = vunpack.c.l.b16 %v2075
    %v3356 = vunpack.c.h.b16 %v2075
    %v3357 = vunpack.c.l.b16 %v2076
    %v3358 = vunpack.c.h.b16 %v2076
    %v3359 = vunpack.c.l.b16 %v2077
    %v3360 = vunpack.c.h.b16 %v2077
    %v3361 = vunpack.c.l.b16 %v2078
    %v3362 = vunpack.c.h.b16 %v2078
    %v3363 = vunpack.c.l.b16 %v2079
    %v3364 = vunpack.c.h.b16 %v2079
    %v3365 = vunpack.c.l.b16 %v2080
    %v3366 = vunpack.c.h.b16 %v2080
    %v3367 = vunpack.c.l.b16 %v2081
    %v3368 = vunpack.c.h.b16 %v2081
    %v3369 = vunpack.c.l.b16 %v2082
    %v3370 = vunpack.c.h.b16 %v2082
    %v3371 = vunpack.c.l.b16 %v2083
    %v3372 = vunpack.c.h.b16 %v2083
    %v3373 = vunpack.c.l.b16 %v2084
    %v3374 = vunpack.c.h.b16 %v2084
    %v3375 = vunpack.c.l.b16 %v2085
    %v3376 = vunpack.c.h.b16 %v2085
    %v3377 = vunpack.c.l.b16 %v2086
    %v3378 = vunpack.c.h.b16 %v2086
    %v3379 = vunpack.c.l.b16 %v2087
    %v3380 = vunpack.c.h.b16 %v2087
    %v3381 = vunpack.c.l.b16 %v2088
    %v3382 = vunpack.c.h.b16 %v2088
    %v3383 = vunpack.c.l.b16 %v2089
    %v3384 = vunpack.c.h.b16 %v2089
    %v3385 = vunpack.c.l.b16 %v2090
    %v3386 = vunpack.c.h.b16 %v2090
    %v3387 = vunpack.c.l.b16 %v2091
    %v3388 = vunpack.c.h.b16 %v2091
    %v3389 = vunpack.c.l.b16 %v2092
    %v3390 = vunpack.c.h.b16 %v2092
    %v3391 = vunpack.c.l.b16 %v2093
    %v3392 = vunpack.c.h.b16 %v2093
    %v3393 = vunpack.c.l.b16 %v2094
    %v3394 = vunpack.c.h.b16 %v2094
    %v3395 = vunpack.c.l.b16 %v2095
    %v3396 = vunpack.c.h.b16 %v2095
    %v3397 = vunpack.c.l.b16 %v2096
    %v3398 = vunpack.c.h.b16 %v2096
    %v3399 = vunpack.c.l.b16 %v2097
    %v3400 = vunpack.c.h.b16 %v2097
    %v3401 = vunpack.c.l.b16 %v2098
    %v3402 = vunpack.c.h.b16 %v2098
    %v3403 = vunpack.c.l.b16 %v2099
    %v3404 = vunpack.c.h.b16 %v2099
    %v3405 = vunpack.c.l.b16 %v2100
    %v3406 = vunpack.c.h.b16 %v2100
    %v3407 = vunpack.c.l.b16 %v2101
    %v3408 = vunpack.c.h.b16 %v2101
    %v3409 = vunpack.c.l.b16 %v2102
    %v3410 = vunpack.c.h.b16 %v2102
    %v3411 = vunpack.c.l.b16 %v2103
    %v3412 = vunpack.c.h.b16 %v2103
    %v3413 = vunpack.c.l.b16 %v2104
    %v3414 = vunpack.c.h.b16 %v2104
    %v3415 = vunpack.c.l.b16 %v2105
    %v3416 = vunpack.c.h.b16 %v2105
    %v3417 = vunpack.c.l.b16 %v2106
    %v3418 = vunpack.c.h.b16 %v2106
    %v3419 = vunpack.c.l.b16 %v2107
    %v3420 = vunpack.c.h.b16 %v2107
    %v3421 = vunpack.c.l.b16 %v2108
    %v3422 = vunpack.c.h.b16 %v2108
    %v3423 = vunpack.c.l.b16 %v2109
    %v3424 = vunpack.c.h.b16 %v2109
    %v3425 = vunpack.c.l.b16 %v2110
    %v3426 = vunpack.c.h.b16 %v2110
    %v3427 = vunpack.c.l.b16 %v2111
    %v3428 = vunpack.c.h.b16 %v2111
    %v3429 = vunpack.c.l.b16 %v2112
    %v3430 = vunpack.c.h.b16 %v2112
    %v3431 = vunpack.c.l.b16 %v2113
    %v3432 = vunpack.c.h.b16 %v2113
    %v3433 = vunpack.c.l.b16 %v2114
    %v3434 = vunpack.c.h.b16 %v2114
    %v3435 = vunpack.c.l.b16 %v2115
    %v3436 = vunpack.c.h.b16 %v2115
    %v3437 = vunpack.c.l.b16 %v2116
    %v3438 = vunpack.c.h.b16 %v2116
    %v3439 = vunpack.c.l.b16 %v2117
    %v3440 = vunpack.c.h.b16 %v2117
    %v3441 = vunpack.c.l.b16 %v2118
    %v3442 = vunpack.c.h.b16 %v2118
    %v3443 = vunpack.c.l.b16 %v2119
    %v3444 = vunpack.c.h.b16 %v2119
    %v3445 = vunpack.c.l.b16 %v2120
    %v3446 = vunpack.c.h.b16 %v2120
    %v3447 = vunpack.c.l.b16 %v2121
    %v3448 = vunpack.c.h.b16 %v2121
    %v3449 = vunpack.c.l.b16 %v2122
    %v3450 = vunpack.c.h.b16 %v2122
    %v3451 = vunpack.c.l.b16 %v2123
    %v3452 = vunpack.c.h.b16 %v2123
    %v3453 = vunpack.c.l.b16 %v2124
    %v3454 = vunpack.c.h.b16 %v2124
    %v3455 = vunpack.c.l.b16 %v2125
    %v3456 = vunpack.c.h.b16 %v2125
    %v3457 = vunpack.c.l.b16 %v2126
    %v3458 = vunpack.c.h.b16 %v2126
    %v3459 = vunpack.c.l.b16 %v2127
    %v3460 = vunpack.c.h.b16 %v2127
    %v3461 = vunpack.c.l.b16 %v2128
    %v3462 = vunpack.c.h.b16 %v2128
    %v3463 = vunpack.c.l.b16 %v2129
    %v3464 = vunpack.c.h.b16 %v2129
    %v3465 = vunpack.c.l.b16 %v2130
    %v3466 = vunpack.c.h.b16 %v2130
    %v3467 = vunpack.c.l.b16 %v2131
    %v3468 = vunpack.c.h.b16 %v2131
    %v3469 = vunpack.c.l.b16 %v2132
    %v3470 = vunpack.c.h.b16 %v2132
    %v3471 = vunpack.c.l.b16 %v2133
    %v3472 = vunpack.c.h.b16 %v2133
    %v3473 = vunpack.c.l.b16 %v2134
    %v3474 = vunpack.c.h.b16 %v2134
    %v3475 = vunpack.c.l.b16 %v2135
    %v3476 = vunpack.c.h.b16 %v2135
    %v3477 = vunpack.c.l.b16 %v2136
    %v3478 = vunpack.c.h.b16 %v2136
    %v3479 = vunpack.c.l.b16 %v2137
    %v3480 = vunpack.c.h.b16 %v2137
    %v3481 = vunpack.c.l.b16 %v2138
    %v3482 = vunpack.c.h.b16 %v2138
    %v3483 = vunpack.c.l.b16 %v2139
    %v3484 = vunpack.c.h.b16 %v2139
    %v3485 = vunpack.c.l.b16 %v2140
    %v3486 = vunpack.c.h.b16 %v2140
    %v3487 = vunpack.c.l.b16 %v2141
    %v3488 = vunpack.c.h.b16 %v2141
    %v3489 = vunpack.c.l.b16 %v2142
    %v3490 = vunpack.c.h.b16 %v2142
    %v3491 = vunpack.c.l.b16 %v2143
    %v3492 = vunpack.c.h.b16 %v2143
    %v3493 = vunpack.c.l.b16 %v2144
    %v3494 = vunpack.c.h.b16 %v2144
    %v3495 = vunpack.c.l.b16 %v2145
    %v3496 = vunpack.c.h.b16 %v2145
    %v3497 = vunpack.c.l.b16 %v2146
    %v3498 = vunpack.c.h.b16 %v2146
    %v3499 = vunpack.c.l.b16 %v2147
    %v3500 = vunpack.c.h.b16 %v2147
    %v3501 = vunpack.c.l.b16 %v2148
    %v3502 = vunpack.c.h.b16 %v2148
    %v3503 = vunpack.c.l.b16 %v2149
    %v3504 = vunpack.c.h.b16 %v2149
    %v3505 = vunpack.c.l.b16 %v2150
    %v3506 = vunpack.c.h.b16 %v2150
    %v3507 = vunpack.c.l.b16 %v2151
    %v3508 = vunpack.c.h.b16 %v2151
    %v3509 = vunpack.c.l.b16 %v2152
    %v3510 = vunpack.c.h.b16 %v2152
    %v3511 = vunpack.c.l.b16 %v2153
    %v3512 = vunpack.c.h.b16 %v2153
    %v3513 = vunpack.c.l.b16 %v2154
    %v3514 = vunpack.c.h.b16 %v2154
    %v3515 = vunpack.c.l.b16 %v2155
    %v3516 = vunpack.c.h.b16 %v2155
    %v3517 = vunpack.c.l.b16 %v2156
    %v3518 = vunpack.c.h.b16 %v2156
    %v3519 = vunpack.c.l.b16 %v2157
    %v3520 = vunpack.c.h.b16 %v2157
    %v3521 = vunpack.c.l.b16 %v2158
    %v3522 = vunpack.c.h.b16 %v2158
    %v3523 = vunpack.c.l.b16 %v2159
    %v3524 = vunpack.c.h.b16 %v2159
    %v3525 = vunpack.c.l.b16 %v2160
    %v3526 = vunpack.c.h.b16 %v2160
    %v3527 = vunpack.c.l.b16 %v2161
    %v3528 = vunpack.c.h.b16 %v2161
    %v3529 = vunpack.c.l.b16 %v2162
    %v3530 = vunpack.c.h.b16 %v2162
    %v3531 = vunpack.c.l.b16 %v2163
    %v3532 = vunpack.c.h.b16 %v2163
    %v3533 = vunpack.c.l.b16 %v2164
    %v3534 = vunpack.c.h.b16 %v2164
    %v3535 = vunpack.c.l.b16 %v2165
    %v3536 = vunpack.c.h.b16 %v2165
    %v3537 = vunpack.c.l.b16 %v2166
    %v3538 = vunpack.c.h.b16 %v2166
    %v3539 = vunpack.c.l.b16 %v2167
    %v3540 = vunpack.c.h.b16 %v2167
    %v3541 = vunpack.c.l.b16 %v2168
    %v3542 = vunpack.c.h.b16 %v2168
    %v3543 = vunpack.c.l.b16 %v2169
    %v3544 = vunpack.c.h.b16 %v2169
    %v3545 = vunpack.c.l.b16 %v2170
    %v3546 = vunpack.c.h.b16 %v2170
    %v3547 = vunpack.c.l.b16 %v2171
    %v3548 = vunpack.c.h.b16 %v2171
    %v3549 = vunpack.c.l.b16 %v2172
    %v3550 = vunpack.c.h.b16 %v2172
    %v3551 = vunpack.c.l.b16 %v2173
    %v3552 = vunpack.c.h.b16 %v2173
    %v3553 = vunpack.c.l.b16 %v2174
    %v3554 = vunpack.c.h.b16 %v2174
    %v3555 = vunpack.c.l.b16 %v2175
    %v3556 = vunpack.c.h.b16 %v2175
    %v3557 = vunpack.c.l.b16 %v2176
    %v3558 = vunpack.c.h.b16 %v2176
    %v3559 = vunpack.c.l.b16 %v2177
    %v3560 = vunpack.c.h.b16 %v2177
    %v3561 = vunpack.c.l.b16 %v2178
    %v3562 = vunpack.c.h.b16 %v2178
    %v3563 = vunpack.c.l.b16 %v2179
    %v3564 = vunpack.c.h.b16 %v2179
    %v3565 = vunpack.c.l.b16 %v2180
    %v3566 = vunpack.c.h.b16 %v2180
    %v3567 = vunpack.c.l.b16 %v2181
    %v3568 = vunpack.c.h.b16 %v2181
    %v3569 = vunpack.c.l.b16 %v2182
    %v3570 = vunpack.c.h.b16 %v2182
    %v3571 = vunpack.c.l.b16 %v2183
    %v3572 = vunpack.c.h.b16 %v2183
    %v3573 = vunpack.c.l.b16 %v2184
    %v3574 = vunpack.c.h.b16 %v2184
    %v3575 = vunpack.c.l.b16 %v2185
    %v3576 = vunpack.c.h.b16 %v2185
    %v3577 = vunpack.c.l.b16 %v2186
    %v3578 = vunpack.c.h.b16 %v2186
    %v3579 = vunpack.c.l.b16 %v2187
    %v3580 = vunpack.c.h.b16 %v2187
    %v3581 = vunpack.c.l.b16 %v2188
    %v3582 = vunpack.c.h.b16 %v2188
    %v3583 = vunpack.c.l.b16 %v2189
    %v3584 = vunpack.c.h.b16 %v2189
    %v3585 = vunpack.c.l.b16 %v2190
    %v3586 = vunpack.c.h.b16 %v2190
    %v3587 = vunpack.c.l.b16 %v2191
    %v3588 = vunpack.c.h.b16 %v2191
    %v3589 = vunpack.c.l.b16 %v2192
    %v3590 = vunpack.c.h.b16 %v2192
    %v3591 = vunpack.c.l.b16 %v2193
    %v3592 = vunpack.c.h.b16 %v2193
    %v3593 = vunpack.c.l.b16 %v2194
    %v3594 = vunpack.c.h.b16 %v2194
    %v3595 = vunpack.c.l.b16 %v2195
    %v3596 = vunpack.c.h.b16 %v2195
    %v3597 = vunpack.c.l.b16 %v2196
    %v3598 = vunpack.c.h.b16 %v2196
    %v3599 = vunpack.c.l.b16 %v2197
    %v3600 = vunpack.c.h.b16 %v2197
    %v3601 = vunpack.c.l.b16 %v2198
    %v3602 = vunpack.c.h.b16 %v2198
    %v3603 = vunpack.c.l.b16 %v2199
    %v3604 = vunpack.c.h.b16 %v2199
    %v3605 = vunpack.c.l.b16 %v2200
    %v3606 = vunpack.c.h.b16 %v2200
    %v3607 = vunpack.c.l.b16 %v2201
    %v3608 = vunpack.c.h.b16 %v2201
    %v3609 = vunpack.c.l.b16 %v2202
    %v3610 = vunpack.c.h.b16 %v2202
    %v3611 = vunpack.c.l.b16 %v2203
    %v3612 = vunpack.c.h.b16 %v2203
    %v3613 = vunpack.c.l.b16 %v2204
    %v3614 = vunpack.c.h.b16 %v2204
    %v3615 = vunpack.c.l.b16 %v2205
    %v3616 = vunpack.c.h.b16 %v2205
    %v3617 = vunpack.c.l.b16 %v2206
    %v3618 = vunpack.c.h.b16 %v2206
    %v3619 = vunpack.c.l.b16 %v2207
    %v3620 = vunpack.c.h.b16 %v2207
    %v3621 = vunpack.c.l.b16 %v2208
    %v3622 = vunpack.c.h.b16 %v2208
    %v3623 = vunpack.c.l.b16 %v2209
    %v3624 = vunpack.c.h.b16 %v2209
    %v3625 = vunpack.c.l.b16 %v2210
    %v3626 = vunpack.c.h.b16 %v2210
    %v3627 = vunpack.c.l.b16 %v2211
    %v3628 = vunpack.c.h.b16 %v2211
    %v3629 = vunpack.c.l.b16 %v2212
    %v3630 = vunpack.c.h.b16 %v2212
    %v3631 = vunpack.c.l.b16 %v2213
    %v3632 = vunpack.c.h.b16 %v2213
    %v3633 = vunpack.c.l.b16 %v2214
    %v3634 = vunpack.c.h.b16 %v2214
    %v3635 = vunpack.c.l.b16 %v2215
    %v3636 = vunpack.c.h.b16 %v2215
    %v3637 = vunpack.c.l.b16 %v2216
    %v3638 = vunpack.c.h.b16 %v2216
    %v3639 = vunpack.c.l.b16 %v2217
    %v3640 = vunpack.c.h.b16 %v2217
    %v3641 = vunpack.c.l.b16 %v2218
    %v3642 = vunpack.c.h.b16 %v2218
    %v3643 = vunpack.c.l.b16 %v2219
    %v3644 = vunpack.c.h.b16 %v2219
    %v3645 = vunpack.c.l.b16 %v2220
    %v3646 = vunpack.c.h.b16 %v2220
    %v3647 = vunpack.c.l.b16 %v2221
    %v3648 = vunpack.c.h.b16 %v2221
    %v3649 = vunpack.c.l.b16 %v2222
    %v3650 = vunpack.c.h.b16 %v2222
    %v3651 = vunpack.c.l.b16 %v2223
    %v3652 = vunpack.c.h.b16 %v2223
    %v3653 = vunpack.c.l.b16 %v2224
    %v3654 = vunpack.c.h.b16 %v2224
    %v3655 = vunpack.c.l.b16 %v2225
    %v3656 = vunpack.c.h.b16 %v2225
    %v3657 = vunpack.c.l.b16 %v2226
    %v3658 = vunpack.c.h.b16 %v2226
    %v3659 = vunpack.c.l.b16 %v2227
    %v3660 = vunpack.c.h.b16 %v2227
    %v3661 = vunpack.c.l.b16 %v2228
    %v3662 = vunpack.c.h.b16 %v2228
    %v3663 = vunpack.c.l.b16 %v2229
    %v3664 = vunpack.c.h.b16 %v2229
    %v3665 = vunpack.c.l.b16 %v2230
    %v3666 = vunpack.c.h.b16 %v2230
    %v3667 = vunpack.c.l.b16 %v2231
    %v3668 = vunpack.c.h.b16 %v2231
    %v3669 = vunpack.c.l.b16 %v2232
    %v3670 = vunpack.c.h.b16 %v2232
    %v3671 = vunpack.c.l.b16 %v2233
    %v3672 = vunpack.c.h.b16 %v2233
    %v3673 = vunpack.c.l.b16 %v2234
    %v3674 = vunpack.c.h.b16 %v2234
    %v3675 = vunpack.c.l.b16 %v2235
    %v3676 = vunpack.c.h.b16 %v2235
    %v3677 = vunpack.c.l.b16 %v2236
    %v3678 = vunpack.c.h.b16 %v2236
    %v3679 = vunpack.c.l.b16 %v2237
    %v3680 = vunpack.c.h.b16 %v2237
    %v3681 = vunpack.c.l.b16 %v2238
    %v3682 = vunpack.c.h.b16 %v2238
    %v3683 = vunpack.c.l.b16 %v2239
    %v3684 = vunpack.c.h.b16 %v2239
    %v3685 = vunpack.c.l.b16 %v2240
    %v3686 = vunpack.c.h.b16 %v2240
    %v3687 = vunpack.c.l.b16 %v2241
    %v3688 = vunpack.c.h.b16 %v2241
    %v3689 = vunpack.c.l.b16 %v2242
    %v3690 = vunpack.c.h.b16 %v2242
    %v3691 = vunpack.c.l.b16 %v2243
    %v3692 = vunpack.c.h.b16 %v2243
    %v3693 = vunpack.c.l.b16 %v2244
    %v3694 = vunpack.c.h.b16 %v2244
    %v3695 = vunpack.c.l.b16 %v2245
    %v3696 = vunpack.c.h.b16 %v2245
    %v3697 = vunpack.c.l.b16 %v2246
    %v3698 = vunpack.c.h.b16 %v2246
    %v3699 = vunpack.c.l.b16 %v2247
    %v3700 = vunpack.c.h.b16 %v2247
    %v3701 = vunpack.c.l.b16 %v2248
    %v3702 = vunpack.c.h.b16 %v2248
    %v3703 = vunpack.c.l.b16 %v2249
    %v3704 = vunpack.c.h.b16 %v2249
    %v3705 = vunpack.c.l.b16 %v2250
    %v3706 = vunpack.c.h.b16 %v2250
    %v3707 = vunpack.c.l.b16 %v2251
    %v3708 = vunpack.c.h.b16 %v2251
    %v3709 = vunpack.c.l.b16 %v2252
    %v3710 = vunpack.c.h.b16 %v2252
    %v3711 = vpack.c.b16 %v2745, %v2739
    %v3712 = vpack.c.b16 %v2746, %v2740
    %v3713 = vpack.c.b16 %v2747, %v2741
    %v3714 = vpack.c.b16 %v2748, %v2742
    %v3715 = vpack.c.b16 %v2749, %v2743
    %v3716 = vpack.c.b16 %v2750, %v2744
    %v3717 = vpack.c.b16 %v2757, %v2751
    %v3718 = vpack.c.b16 %v2758, %v2752
    %v3719 = vpack.c.b16 %v2759, %v2753
    %v3720 = vpack.c.b16 %v2760, %v2754
    %v3721 = vpack.c.b16 %v2761, %v2755
    %v3722 = vpack.c.b16 %v2762, %v2756
    %v3723 = vpack.c.b16 %v2769, %v2763
    %v3724 = vpack.c.b16 %v2770, %v2764
    %v3725 = vpack.c.b16 %v2771, %v2765
    %v3726 = vpack.c.b16 %v2772, %v2766
    %v3727 = vpack.c.b16 %v2773, %v2767
    %v3728 = vpack.c.b16 %v2774, %v2768
    %v3729 = vpack.c.b16 %v2781, %v2775
    %v3730 = vpack.c.b16 %v2782, %v2776
    %v3731 = vpack.c.b16 %v2783, %v2777
    %v3732 = vpack.c.b16 %v2784, %v2778
    %v3733 = vpack.c.b16 %v2785, %v2779
    %v3734 = vpack.c.b16 %v2786, %v2780
    %v3735 = vpack.c.b16 %v2793, %v2787
    %v3736 = vpack.c.b16 %v2794, %v2788
    %v3737 = vpack.c.b16 %v2795, %v2789
    %v3738 = vpack.c.b16 %v2796, %v2790
    %v3739 = vpack.c.b16 %v2797, %v2791
    %v3740 = vpack.c.b16 %v2798, %v2792
    %v3741 = vpack.c.b16 %v2805, %v2799
    %v3742 = vpack.c.b16 %v2806, %v2800
    %v3743 = vpack.c.b16 %v2807, %v2801
    %v3744 = vpack.c.b16 %v2808, %v2802
    %v3745 = vpack.c.b16 %v2809, %v2803
    %v3746 = vpack.c.b16 %v2810, %v2804
    %v3747 = vpack.c.b16 %v2817, %v2811
    %v3748 = vpack.c.b16 %v2818, %v2812
    %v3749 = vpack.c.b16 %v2819, %v2813
    %v3750 = vpack.c.b16 %v2820, %v2814
    %v3751 = vpack.c.b16 %v2821, %v2815
    %v3752 = vpack.c.b16 %v2822, %v2816
    %v3753 = vpack.c.b16 %v2829, %v2823
    %v3754 = vpack.c.b16 %v2830, %v2824
    %v3755 = vpack.c.b16 %v2831, %v2825
    %v3756 = vpack.c.b16 %v2832, %v2826
    %v3757 = vpack.c.b16 %v2833, %v2827
    %v3758 = vpack.c.b16 %v2834, %v2828
    %v3759 = vpack.c.b16 %v2841, %v2835
    %v3760 = vpack.c.b16 %v2842, %v2836
    %v3761 = vpack.c.b16 %v2843, %v2837
    %v3762 = vpack.c.b16 %v2844, %v2838
    %v3763 = vpack.c.b16 %v2845, %v2839
    %v3764 = vpack.c.b16 %v2846, %v2840
    %v3765 = vpack.c.b16 %v2853, %v2847
    %v3766 = vpack.c.b16 %v2854, %v2848
    %v3767 = vpack.c.b16 %v2855, %v2849
    %v3768 = vpack.c.b16 %v2856, %v2850
    %v3769 = vpack.c.b16 %v2857, %v2851
    %v3770 = vpack.c.b16 %v2858, %v2852
    %v3771 = vpack.c.b16 %v2865, %v2859
    %v3772 = vpack.c.b16 %v2866, %v2860
    %v3773 = vpack.c.b16 %v2867, %v2861
    %v3774 = vpack.c.b16 %v2868, %v2862
    %v3775 = vpack.c.b16 %v2869, %v2863
    %v3776 = vpack.c.b16 %v2870, %v2864
    %v3777 = vpack.c.b16 %v2877, %v2871
    %v3778 = vpack.c.b16 %v2878, %v2872
    %v3779 = vpack.c.b16 %v2879, %v2873
    %v3780 = vpack.c.b16 %v2880, %v2874
    %v3781 = vpack.c.b16 %v2881, %v2875
    %v3782 = vpack.c.b16 %v2882, %v2876
    %v3783 = vpack.c.b16 %v2889, %v2883
    %v3784 = vpack.c.b16 %v2890, %v2884
    %v3785 = vpack.c.b16 %v2891, %v2885
    %v3786 = vpack.c.b16 %v2892, %v2886
    %v3787 = vpack.c.b16 %v2893, %v2887
    %v3788 = vpack.c.b16 %v2894, %v2888
    %v3789 = vpack.c.b16 %v2901, %v2895
    %v3790 = vpack.c.b16 %v2902, %v2896
    %v3791 = vpack.c.b16 %v2903, %v2897
    %v3792 = vpack.c.b16 %v2904, %v2898
    %v3793 = vpack.c.b16 %v2905, %v2899
    %v3794 = vpack.c.b16 %v2906, %v2900
    %v3795 = vpack.c.b16 %v2913, %v2907
    %v3796 = vpack.c.b16 %v2914, %v2908
    %v3797 = vpack.c.b16 %v2915, %v2909
    %v3798 = vpack.c.b16 %v2916, %v2910
    %v3799 = vpack.c.b16 %v2917, %v2911
    %v3800 = vpack.c.b16 %v2918, %v2912
    %v3801 = vpack.c.b16 %v2925, %v2919
    %v3802 = vpack.c.b16 %v2926, %v2920
    %v3803 = vpack.c.b16 %v2927, %v2921
    %v3804 = vpack.c.b16 %v2928, %v2922
    %v3805 = vpack.c.b16 %v2929, %v2923
    %v3806 = vpack.c.b16 %v2930, %v2924
    %v3807 = vpack.c.b16 %v2937, %v2931
    %v3808 = vpack.c.b16 %v2938, %v2932
    %v3809 = vpack.c.b16 %v2939, %v2933
    %v3810 = vpack.c.b16 %v2940, %v2934
    %v3811 = vpack.c.b16 %v2941, %v2935
    %v3812 = vpack.c.b16 %v2942, %v2936
    %v3813 = vpack.c.b16 %v2949, %v2943
    %v3814 = vpack.c.b16 %v2950, %v2944
    %v3815 = vpack.c.b16 %v2951, %v2945
    %v3816 = vpack.c.b16 %v2952, %v2946
    %v3817 = vpack.c.b16 %v2953, %v2947
    %v3818 = vpack.c.b16 %v2954, %v2948
    %v3819 = vpack.c.b16 %v2961, %v2955
    %v3820 = vpack.c.b16 %v2962, %v2956
    %v3821 = vpack.c.b16 %v2963, %v2957
    %v3822 = vpack.c.b16 %v2964, %v2958
    %v3823 = vpack.c.b16 %v2965, %v2959
    %v3824 = vpack.c.b16 %v2966, %v2960
    %v3825 = vpack.c.b16 %v2973, %v2967
    %v3826 = vpack.c.b16 %v2974, %v2968
    %v3827 = vpack.c.b16 %v2975, %v2969
    %v3828 = vpack.c.b16 %v2976, %v2970
    %v3829 = vpack.c.b16 %v2977, %v2971
    %v3830 = vpack.c.b16 %v2978, %v2972
    %v3831 = vpack.c.b16 %v2985, %v2979
    %v3832 = vpack.c.b16 %v2986, %v2980
    %v3833 = vpack.c.b16 %v2987, %v2981
    %v3834 = vpack.c.b16 %v2988, %v2982
    %v3835 = vpack.c.b16 %v2989, %v2983
    %v3836 = vpack.c.b16 %v2990, %v2984
    %v3837 = vpack.c.b16 %v2997, %v2991
    %v3838 = vpack.c.b16 %v2998, %v2992
    %v3839 = vpack.c.b16 %v2999, %v2993
    %v3840 = vpack.c.b16 %v3000, %v2994
    %v3841 = vpack.c.b16 %v3001, %v2995
    %v3842 = vpack.c.b16 %v3002, %v2996
    %v3843 = vpack.c.b16 %v3009, %v3003
    %v3844 = vpack.c.b16 %v3010, %v3004
    %v3845 = vpack.c.b16 %v3011, %v3005
    %v3846 = vpack.c.b16 %v3012, %v3006
    %v3847 = vpack.c.b16 %v3013, %v3007
    %v3848 = vpack.c.b16 %v3014, %v3008
    %v3849 = vpack.c.b16 %v3021, %v3015
    %v3850 = vpack.c.b16 %v3022, %v3016
    %v3851 = vpack.c.b16 %v3023, %v3017
    %v3852 = vpack.c.b16 %v3024, %v3018
    %v3853 = vpack.c.b16 %v3025, %v3019
    %v3854 = vpack.c.b16 %v3026, %v3020
    %v3855 = vpack.c.b16 %v3033, %v3027
    %v3856 = vpack.c.b16 %v3034, %v3028
    %v3857 = vpack.c.b16 %v3035, %v3029
    %v3858 = vpack.c.b16 %v3036, %v3030
    %v3859 = vpack.c.b16 %v3037, %v3031
    %v3860 = vpack.c.b16 %v3038, %v3032
    %v3861 = vpack.c.b16 %v3045, %v3039
    %v3862 = vpack.c.b16 %v3046, %v3040
    %v3863 = vpack.c.b16 %v3047, %v3041
    %v3864 = vpack.c.b16 %v3048, %v3042
    %v3865 = vpack.c.b16 %v3049, %v3043
    %v3866 = vpack.c.b16 %v3050, %v3044
    %v3867 = vpack.c.b16 %v3057, %v3051
    %v3868 = vpack.c.b16 %v3058, %v3052
    %v3869 = vpack.c.b16 %v3059, %v3053
    %v3870 = vpack.c.b16 %v3060, %v3054
    %v3871 = vpack.c.b16 %v3061, %v3055
    %v3872 = vpack.c.b16 %v3062, %v3056
    %v3873 = vpack.c.b16 %v3069, %v3063
    %v3874 = vpack.c.b16 %v3070, %v3064
    %v3875 = vpack.c.b16 %v3071, %v3065
    %v3876 = vpack.c.b16 %v3072, %v3066
    %v3877 = vpack.c.b16 %v3073, %v3067
    %v3878 = vpack.c.b16 %v3074, %v3068
    %v3879 = vpack.c.b16 %v3081, %v3075
    %v3880 = vpack.c.b16 %v3082, %v3076
    %v3881 = vpack.c.b16 %v3083, %v3077
    %v3882 = vpack.c.b16 %v3084, %v3078
    %v3883 = vpack.c.b16 %v3085, %v3079
    %v3884 = vpack.c.b16 %v3086, %v3080
    %v3885 = vpack.c.b16 %v3093, %v3087
    %v3886 = vpack.c.b16 %v3094, %v3088
    %v3887 = vpack.c.b16 %v3095, %v3089
    %v3888 = vpack.c.b16 %v3096, %v3090
    %v3889 = vpack.c.b16 %v3097, %v3091
    %v3890 = vpack.c.b16 %v3098, %v3092
    %v3891 = vpack.c.b16 %v3105, %v3099
    %v3892 = vpack.c.b16 %v3106, %v3100
    %v3893 = vpack.c.b16 %v3107, %v3101
    %v3894 = vpack.c.b16 %v3108, %v3102
    %v3895 = vpack.c.b16 %v3109, %v3103
    %v3896 = vpack.c.b16 %v3110, %v3104
    %v3897 = vpack.c.b16 %v3117, %v3111
    %v3898 = vpack.c.b16 %v3118, %v3112
    %v3899 = vpack.c.b16 %v3119, %v3113
    %v3900 = vpack.c.b16 %v3120, %v3114
    %v3901 = vpack.c.b16 %v3121, %v3115
    %v3902 = vpack.c.b16 %v3122, %v3116
    %v3903 = vpack.c.b16 %v3129, %v3123
    %v3904 = vpack.c.b16 %v3130, %v3124
    %v3905 = vpack.c.b16 %v3131, %v3125
    %v3906 = vpack.c.b16 %v3132, %v3126
    %v3907 = vpack.c.b16 %v3133, %v3127
    %v3908 = vpack.c.b16 %v3134, %v3128
    %v3909 = vpack.c.b16 %v3141, %v3135
    %v3910 = vpack.c.b16 %v3142, %v3136
    %v3911 = vpack.c.b16 %v3143, %v3137
    %v3912 = vpack.c.b16 %v3144, %v3138
    %v3913 = vpack.c.b16 %v3145, %v3139
    %v3914 = vpack.c.b16 %v3146, %v3140
    %v3915 = vpack.c.b16 %v3153, %v3147
    %v3916 = vpack.c.b16 %v3154, %v3148
    %v3917 = vpack.c.b16 %v3155, %v3149
    %v3918 = vpack.c.b16 %v3156, %v3150
    %v3919 = vpack.c.b16 %v3157, %v3151
    %v3920 = vpack.c.b16 %v3158, %v3152
    %v3921 = vpack.c.b16 %v3165, %v3159
    %v3922 = vpack.c.b16 %v3166, %v3160
    %v3923 = vpack.c.b16 %v3167, %v3161
    %v3924 = vpack.c.b16 %v3168, %v3162
    %v3925 = vpack.c.b16 %v3169, %v3163
    %v3926 = vpack.c.b16 %v3170, %v3164
    %v3927 = vpack.c.b16 %v3177, %v3171
    %v3928 = vpack.c.b16 %v3178, %v3172
    %v3929 = vpack.c.b16 %v3179, %v3173
    %v3930 = vpack.c.b16 %v3180, %v3174
    %v3931 = vpack.c.b16 %v3181, %v3175
    %v3932 = vpack.c.b16 %v3182, %v3176
    %v3933 = vpack.c.b16 %v3189, %v3183
    %v3934 = vpack.c.b16 %v3190, %v3184
    %v3935 = vpack.c.b16 %v3191, %v3185
    %v3936 = vpack.c.b16 %v3192, %v3186
    %v3937 = vpack.c.b16 %v3193, %v3187
    %v3938 = vpack.c.b16 %v3194, %v3188
    %v3939 = vpack.c.b16 %v3201, %v3195
    %v3940 = vpack.c.b16 %v3202, %v3196
    %v3941 = vpack.c.b16 %v3203, %v3197
    %v3942 = vpack.c.b16 %v3204, %v3198
    %v3943 = vpack.c.b16 %v3205, %v3199
    %v3944 = vpack.c.b16 %v3206, %v3200
    %v3945 = vpack.c.b16 %v3213, %v3207
    %v3946 = vpack.c.b16 %v3214, %v3208
    %v3947 = vpack.c.b16 %v3215, %v3209
    %v3948 = vpack.c.b16 %v3216, %v3210
    %v3949 = vpack.c.b16 %v3217, %v3211
    %v3950 = vpack.c.b16 %v3218, %v3212
    %v3951 = vpack.c.b16 %v3225, %v3219
    %v3952 = vpack.c.b16 %v3226, %v3220
    %v3953 = vpack.c.b16 %v3227, %v3221
    %v3954 = vpack.c.b16 %v3228, %v3222
    %v3955 = vpack.c.b16 %v3229, %v3223
    %v3956 = vpack.c.b16 %v3230, %v3224
    %v3957 = vpack.c.b16 %v3237, %v3231
    %v3958 = vpack.c.b16 %v3238, %v3232
    %v3959 = vpack.c.b16 %v3239, %v3233
    %v3960 = vpack.c.b16 %v3240, %v3234
    %v3961 = vpack.c.b16 %v3241, %v3235
    %v3962 = vpack.c.b16 %v3242, %v3236
    %v3963 = vpack.c.b16 %v3249, %v3243
    %v3964 = vpack.c.b16 %v3250, %v3244
    %v3965 = vpack.c.b16 %v3251, %v3245
    %v3966 = vpack.c.b16 %v3252, %v3246
    %v3967 = vpack.c.b16 %v3253, %v3247
    %v3968 = vpack.c.b16 %v3254, %v3248
    %v3969 = vpack.c.b16 %v3261, %v3255
    %v3970 = vpack.c.b16 %v3262, %v3256
    %v3971 = vpack.c.b16 %v3263, %v3257
    %v3972 = vpack.c.b16 %v3264, %v3258
    %v3973 = vpack.c.b16 %v3265, %v3259
    %v3974 = vpack.c.b16 %v3266, %v3260
    %v3975 = vpack.c.b16 %v3273, %v3267
    %v3976 = vpack.c.b16 %v3274, %v3268
    %v3977 = vpack.c.b16 %v3275, %v3269
    %v3978 = vpack.c.b16 %v3276, %v3270
    %v3979 = vpack.c.b16 %v3277, %v3271
    %v3980 = vpack.c.b16 %v3278, %v3272
    %v3981 = vpack.c.b16 %v3285, %v3279
    %v3982 = vpack.c.b16 %v3286, %v3280
    %v3983 = vpack.c.b16 %v3287, %v3281
    %v3984 = vpack.c.b16 %v3288, %v3282
    %v3985 = vpack.c.b16 %v3289, %v3283
    %v3986 = vpack.c.b16 %v3290, %v3284
    %v3987 = vpack.c.b16 %v3297, %v3291
    %v3988 = vpack.c.b16 %v3298, %v3292
    %v3989 = vpack.c.b16 %v3299, %v3293
    %v3990 = vpack.c.b16 %v3300, %v3294
    %v3991 = vpack.c.b16 %v3301, %v3295
    %v3992 = vpack.c.b16 %v3302, %v3296
    %v3993 = vpack.c.b16 %v3309, %v3303
    %v3994 = vpack.c.b16 %v3310, %v3304
    %v3995 = vpack.c.b16 %v3311, %v3305
    %v3996 = vpack.c.b16 %v3312, %v3306
    %v3997 = vpack.c.b16 %v3313, %v3307
    %v3998 = vpack.c.b16 %v3314, %v3308
    %v3999 = vpack.c.b16 %v3321, %v3315
    %v4000 = vpack.c.b16 %v3322, %v3316
    %v4001 = vpack.c.b16 %v3323, %v3317
    %v4002 = vpack.c.b16 %v3324, %v3318
    %v4003 = vpack.c.b16 %v3325, %v3319
    %v4004 = vpack.c.b16 %v3326, %v3320
    %v4005 = vpack.c.b16 %v3333, %v3327
    %v4006 = vpack.c.b16 %v3334, %v3328
    %v4007 = vpack.c.b16 %v3335, %v3329
    %v4008 = vpack.c.b16 %v3336, %v3330
    %v4009 = vpack.c.b16 %v3337, %v3331
    %v4010 = vpack.c.b16 %v3338, %v3332
    %v4011 = vpack.c.b16 %v3345, %v3339
    %v4012 = vpack.c.b16 %v3346, %v3340
    %v4013 = vpack.c.b16 %v3347, %v3341
    %v4014 = vpack.c.b16 %v3348, %v3342
    %v4015 = vpack.c.b16 %v3349, %v3343
    %v4016 = vpack.c.b16 %v3350, %v3344
    %v4017 = vpack.c.b16 %v3357, %v3351
    %v4018 = vpack.c.b16 %v3358, %v3352
    %v4019 = vpack.c.b16 %v3359, %v3353
    %v4020 = vpack.c.b16 %v3360, %v3354
    %v4021 = vpack.c.b16 %v3361, %v3355
    %v4022 = vpack.c.b16 %v3362, %v3356
    %v4023 = vpack.c.b16 %v3369, %v3363
    %v4024 = vpack.c.b16 %v3370, %v3364
    %v4025 = vpack.c.b16 %v3371, %v3365
    %v4026 = vpack.c.b16 %v3372, %v3366
    %v4027 = vpack.c.b16 %v3373, %v3367
    %v4028 = vpack.c.b16 %v3374, %v3368
    %v4029 = vpack.c.b16 %v3381, %v3375
    %v4030 = vpack.c.b16 %v3382, %v3376
    %v4031 = vpack.c.b16 %v3383, %v3377
    %v4032 = vpack.c.b16 %v3384, %v3378
    %v4033 = vpack.c.b16 %v3385, %v3379
    %v4034 = vpack.c.b16 %v3386, %v3380
    %v4035 = vpack.c.b16 %v3393, %v3387
    %v4036 = vpack.c.b16 %v3394, %v3388
    %v4037 = vpack.c.b16 %v3395, %v3389
    %v4038 = vpack.c.b16 %v3396, %v3390
    %v4039 = vpack.c.b16 %v3397, %v3391
    %v4040 = vpack.c.b16 %v3398, %v3392
    %v4041 = vpack.c.b16 %v3405, %v3399
    %v4042 = vpack.c.b16 %v3406, %v3400
    %v4043 = vpack.c.b16 %v3407, %v3401
    %v4044 = vpack.c.b16 %v3408, %v3402
    %v4045 = vpack.c.b16 %v3409, %v3403
    %v4046 = vpack.c.b16 %v3410, %v3404
    %v4047 = vpack.c.b16 %v3417, %v3411
    %v4048 = vpack.c.b16 %v3418, %v3412
    %v4049 = vpack.c.b16 %v3419, %v3413
    %v4050 = vpack.c.b16 %v3420, %v3414
    %v4051 = vpack.c.b16 %v3421, %v3415
    %v4052 = vpack.c.b16 %v3422, %v3416
    %v4053 = vpack.c.b16 %v3429, %v3423
    %v4054 = vpack.c.b16 %v3430, %v3424
    %v4055 = vpack.c.b16 %v3431, %v3425
    %v4056 = vpack.c.b16 %v3432, %v3426
    %v4057 = vpack.c.b16 %v3433, %v3427
    %v4058 = vpack.c.b16 %v3434, %v3428
    %v4059 = vpack.c.b16 %v3441, %v3435
    %v4060 = vpack.c.b16 %v3442, %v3436
    %v4061 = vpack.c.b16 %v3443, %v3437
    %v4062 = vpack.c.b16 %v3444, %v3438
    %v4063 = vpack.c.b16 %v3445, %v3439
    %v4064 = vpack.c.b16 %v3446, %v3440
    %v4065 = vpack.c.b16 %v3453, %v3447
    %v4066 = vpack.c.b16 %v3454, %v3448
    %v4067 = vpack.c.b16 %v3455, %v3449
    %v4068 = vpack.c.b16 %v3456, %v3450
    %v4069 = vpack.c.b16 %v3457, %v3451
    %v4070 = vpack.c.b16 %v3458, %v3452
    %v4071 = vpack.c.b16 %v3465, %v3459
    %v4072 = vpack.c.b16 %v3466, %v3460
    %v4073 = vpack.c.b16 %v3467, %v3461
    %v4074 = vpack.c.b16 %v3468, %v3462
    %v4075 = vpack.c.b16 %v3469, %v3463
    %v4076 = vpack.c.b16 %v3470, %v3464
    %v4077 = vpack.c.b16 %v3477, %v3471
    %v4078 = vpack.c.b16 %v3478, %v3472
    %v4079 = vpack.c.b16 %v3479, %v3473
    %v4080 = vpack.c.b16 %v3480, %v3474
    %v4081 = vpack.c.b16 %v3481, %v3475
    %v4082 = vpack.c.b16 %v3482, %v3476
    %v4083 = vpack.c.b16 %v3489, %v3483
    %v4084 = vpack.c.b16 %v3490, %v3484
    %v4085 = vpack.c.b16 %v3491, %v3485
    %v4086 = vpack.c.b16 %v3492, %v3486
    %v4087 = vpack.c.b16 %v3493, %v3487
    %v4088 = vpack.c.b16 %v3494, %v3488
    %v4089 = vpack.c.b16 %v3501, %v3495
    %v4090 = vpack.c.b16 %v3502, %v3496
    %v4091 = vpack.c.b16 %v3503, %v3497
    %v4092 = vpack.c.b16 %v3504, %v3498
    %v4093 = vpack.c.b16 %v3505, %v3499
    %v4094 = vpack.c.b16 %v3506, %v3500
    %v4095 = vpack.c.b16 %v3513, %v3507
    %v4096 = vpack.c.b16 %v3514, %v3508
    %v4097 = vpack.c.b16 %v3515, %v3509
    %v4098 = vpack.c.b16 %v3516, %v3510
    %v4099 = vpack.c.b16 %v3517, %v3511
    %v4100 = vpack.c.b16 %v3518, %v3512
    %v4101 = vpack.c.b16 %v3525, %v3519
    %v4102 = vpack.c.b16 %v3526, %v3520
    %v4103 = vpack.c.b16 %v3527, %v3521
    %v4104 = vpack.c.b16 %v3528, %v3522
    %v4105 = vpack.c.b16 %v3529, %v3523
    %v4106 = vpack.c.b16 %v3530, %v3524
    %v4107 = vpack.c.b16 %v3537, %v3531
    %v4108 = vpack.c.b16 %v3538, %v3532
    %v4109 = vpack.c.b16 %v3539, %v3533
    %v4110 = vpack.c.b16 %v3540, %v3534
    %v4111 = vpack.c.b16 %v3541, %v3535
    %v4112 = vpack.c.b16 %v3542, %v3536
    %v4113 = vpack.c.b16 %v3549, %v3543
    %v4114 = vpack.c.b16 %v3550, %v3544
    %v4115 = vpack.c.b16 %v3551, %v3545
    %v4116 = vpack.c.b16 %v3552, %v3546
    %v4117 = vpack.c.b16 %v3553, %v3547
    %v4118 = vpack.c.b16 %v3554, %v3548
    %v4119 = vpack.c.b16 %v3561, %v3555
    %v4120 = vpack.c.b16 %v3562, %v3556
    %v4121 = vpack.c.b16 %v3563, %v3557
    %v4122 = vpack.c.b16 %v3564, %v3558
    %v4123 = vpack.c.b16 %v3565, %v3559
    %v4124 = vpack.c.b16 %v3566, %v3560
    %v4125 = vpack.c.b16 %v3573, %v3567
    %v4126 = vpack.c.b16 %v3574, %v3568
    %v4127 = vpack.c.b16 %v3575, %v3569
    %v4128 = vpack.c.b16 %v3576, %v3570
    %v4129 = vpack.c.b16 %v3577, %v3571
    %v4130 = vpack.c.b16 %v3578, %v3572
    %v4131 = vpack.c.b16 %v3585, %v3579
    %v4132 = vpack.c.b16 %v3586, %v3580
    %v4133 = vpack.c.b16 %v3587, %v3581
    %v4134 = vpack.c.b16 %v3588, %v3582
    %v4135 = vpack.c.b16 %v3589, %v3583
    %v4136 = vpack.c.b16 %v3590, %v3584
    %v4137 = vpack.c.b16 %v3597, %v3591
    %v4138 = vpack.c.b16 %v3598, %v3592
    %v4139 = vpack.c.b16 %v3599, %v3593
    %v4140 = vpack.c.b16 %v3600, %v3594
    %v4141 = vpack.c.b16 %v3601, %v3595
    %v4142 = vpack.c.b16 %v3602, %v3596
    %v4143 = vpack.c.b16 %v3609, %v3603
    %v4144 = vpack.c.b16 %v3610, %v3604
    %v4145 = vpack.c.b16 %v3611, %v3605
    %v4146 = vpack.c.b16 %v3612, %v3606
    %v4147 = vpack.c.b16 %v3613, %v3607
    %v4148 = vpack.c.b16 %v3614, %v3608
    %v4149 = vpack.c.b16 %v3621, %v3615
    %v4150 = vpack.c.b16 %v3622, %v3616
    %v4151 = vpack.c.b16 %v3623, %v3617
    %v4152 = vpack.c.b16 %v3624, %v3618
    %v4153 = vpack.c.b16 %v3625, %v3619
    %v4154 = vpack.c.b16 %v3626, %v3620
    %v4155 = vpack.c.b16 %v3633, %v3627
    %v4156 = vpack.c.b16 %v3634, %v3628
    %v4157 = vpack.c.b16 %v3635, %v3629
    %v4158 = vpack.c.b16 %v3636, %v3630
    %v4159 = vpack.c.b16 %v3637, %v3631
    %v4160 = vpack.c.b16 %v3638, %v3632
    %v4161 = vpack.c.b16 %v3645, %v3639
    %v4162 = vpack.c.b16 %v3646, %v3640
    %v4163 = vpack.c.b16 %v3647, %v3641
    %v4164 = vpack.c.b16 %v3648, %v3642
    %v4165 = vpack.c.b16 %v3649, %v3643
    %v4166 = vpack.c.b16 %v3650, %v3644
    %v4167 = vpack.c.b16 %v3657, %v3651
    %v4168 = vpack.c.b16 %v3658, %v3652
    %v4169 = vpack.c.b16 %v3659, %v3653
    %v4170 = vpack.c.b16 %v3660, %v3654
    %v4171 = vpack.c.b16 %v3661, %v3655
    %v4172 = vpack.c.b16 %v3662, %v3656
    %v4173 = vpack.c.b16 %v3669, %v3663
    %v4174 = vpack.c.b16 %v3670, %v3664
    %v4175 = vpack.c.b16 %v3671, %v3665
    %v4176 = vpack.c.b16 %v3672, %v3666
    %v4177 = vpack.c.b16 %v3673, %v3667
    %v4178 = vpack.c.b16 %v3674, %v3668
    %v4179 = vpack.c.b16 %v3681, %v3675
    %v4180 = vpack.c.b16 %v3682, %v3676
    %v4181 = vpack.c.b16 %v3683, %v3677
    %v4182 = vpack.c.b16 %v3684, %v3678
    %v4183 = vpack.c.b16 %v3685, %v3679
    %v4184 = vpack.c.b16 %v3686, %v3680
    %v4185 = vpack.c.b16 %v3693, %v3687
    %v4186 = vpack.c.b16 %v3694, %v3688
    %v4187 = vpack.c.b16 %v3695, %v3689
    %v4188 = vpack.c.b16 %v3696, %v3690
    %v4189 = vpack.c.b16 %v3697, %v3691
    %v4190 = vpack.c.b16 %v3698, %v3692
    %v4191 = vpack.c.b16 %v3705, %v3699
    %v4192 = vpack.c.b16 %v3706, %v3700
    %v4193 = vpack.c.b16 %v3707, %v3701
    %v4194 = vpack.c.b16 %v3708, %v3702
    %v4195 = vpack.c.b16 %v3709, %v3703
    %v4196 = vpack.c.b16 %v3710, %v3704
    %vm4602 = vcmask 293888
    %v4604 = vsel %vm4602, %v3716, 0
    %v4607 = vsel %vm4602, %v3722, 0
    %v4610 = vsel %vm4602, %v3728, 0
    %v4613 = vsel %vm4602, %v3734, 0
    %v4616 = vsel %vm4602, %v3740, 0
    %v4619 = vsel %vm4602, %v3746, 0
    %v4622 = vsel %vm4602, %v3752, 0
    %v4625 = vsel %vm4602, %v3758, 0
    %v4628 = vsel %vm4602, %v3764, 0
    %v4631 = vsel %vm4602, %v3770, 0
    %v4634 = vsel %vm4602, %v3776, 0
    %v4637 = vsel %vm4602, %v3782, 0
    %v4640 = vsel %vm4602, %v3788, 0
    %v4643 = vsel %vm4602, %v3794, 0
    %v4646 = vsel %vm4602, %v3800, 0
    %v4649 = vsel %vm4602, %v3806, 0
    %v4652 = vsel %vm4602, %v3812, 0
    %v4655 = vsel %vm4602, %v3818, 0
    %v4658 = vsel %vm4602, %v3824, 0
    %v4661 = vsel %vm4602, %v3830, 0
    %v4664 = vsel %vm4602, %v3836, 0
    %v4667 = vsel %vm4602, %v3842, 0
    %v4670 = vsel %vm4602, %v3848, 0
    %v4673 = vsel %vm4602, %v3854, 0
    %v4676 = vsel %vm4602, %v3860, 0
    %v4679 = vsel %vm4602, %v3866, 0
    %v4682 = vsel %vm4602, %v3872, 0
    %v4685 = vsel %vm4602, %v3878, 0
    %v4688 = vsel %vm4602, %v3884, 0
    %v4691 = vsel %vm4602, %v3890, 0
    %v4694 = vsel %vm4602, %v3896, 0
    %v4697 = vsel %vm4602, %v3902, 0
    %v4700 = vsel %vm4602, %v3908, 0
    %v4703 = vsel %vm4602, %v3914, 0
    %v4706 = vsel %vm4602, %v3920, 0
    %v4709 = vsel %vm4602, %v3926, 0
    %v4712 = vsel %vm4602, %v3932, 0
    %v4715 = vsel %vm4602, %v3938, 0
    %v4718 = vsel %vm4602, %v3944, 0
    %v4721 = vsel %vm4602, %v3950, 0
    %v4724 = vsel %vm4602, %v3956, 0
    %v4727 = vsel %vm4602, %v3962, 0
    %v4730 = vsel %vm4602, %v3968, 0
    %v4733 = vsel %vm4602, %v3974, 0
    %v4736 = vsel %vm4602, %v3980, 0
    %v4739 = vsel %vm4602, %v3986, 0
    %v4742 = vsel %vm4602, %v3992, 0
    %v4745 = vsel %vm4602, %v3998, 0
    %v4748 = vsel %vm4602, %v4004, 0
    %v4751 = vsel %vm4602, %v4010, 0
    %v4754 = vsel %vm4602, %v4016, 0
    %v4757 = vsel %vm4602, %v4022, 0
    %v4760 = vsel %vm4602, %v4028, 0
    %v4763 = vsel %vm4602, %v4034, 0
    %v4766 = vsel %vm4602, %v4040, 0
    %v4769 = vsel %vm4602, %v4046, 0
    %v4772 = vsel %vm4602, %v4052, 0
    %v4775 = vsel %vm4602, %v4058, 0
    %v4778 = vsel %vm4602, %v4064, 0
    %v4781 = vsel %vm4602, %v4070, 0
    %v4784 = vsel %vm4602, %v4076, 0
    %v4787 = vsel %vm4602, %v4082, 0
    %v4790 = vsel %vm4602, %v4088, 0
    %v4793 = vsel %vm4602, %v4094, 0
    %v4796 = vsel %vm4602, %v4100, 0
    %v4799 = vsel %vm4602, %v4106, 0
    %v4802 = vsel %vm4602, %v4112, 0
    %v4805 = vsel %vm4602, %v4118, 0
    %v4808 = vsel %vm4602, %v4124, 0
    %v4811 = vsel %vm4602, %v4130, 0
    %v4814 = vsel %vm4602, %v4136, 0
    %v4817 = vsel %vm4602, %v4142, 0
    %v4820 = vsel %vm4602, %v4148, 0
    %v4823 = vsel %vm4602, %v4154, 0
    %v4826 = vsel %vm4602, %v4160, 0
    %v4829 = vsel %vm4602, %v4166, 0
    %v4832 = vsel %vm4602, %v4172, 0
    %v4835 = vsel %vm4602, %v4178, 0
    %v4838 = vsel %vm4602, %v4184, 0
    %v4841 = vsel %vm4602, %v4190, 0
    %v4844 = vsel %vm4602, %v4196, 0
    %vm4846 = vcmask 1041408
    %v4848 = vsel %vm4846, %v1766, 0
    %4850 = vmatprep.subr.bf16.mxu0 0
    %4851 = vmatpush1.bf16.msra.mxu0 %v1724
    %4852 = vmatprep.subr.bf16.mxu0 0
    %4853 = vmatpush1.bf16.msra.mxu0 %v1725
    %4854 = vmatprep.subr.bf16.mxu0 0
    %4855 = vmatpush1.bf16.msra.mxu0 %v1726
    %4856 = vmatprep.subr.bf16.mxu0 0
    %4857 = vmatpush1.bf16.msra.mxu0 %v1727
    %4858 = vmatprep.subr.bf16.mxu0 0
    %4859 = vmatpush1.bf16.msra.mxu0 %v1728
    %4860 = vmatprep.subr.bf16.mxu0 0
    %4861 = vmatpush1.bf16.msra.mxu0 %v1729
    %4862 = vmatprep.subr.bf16.mxu0 0
    %4863 = vmatpush1.bf16.msra.mxu0 %v1730
    %4864 = vmatprep.subr.bf16.mxu0 0
    %4865 = vmatpush1.bf16.msra.mxu0 %v1731
    %4866 = vmatprep.subr.bf16.mxu0 0
    %4867 = vmatpush1.bf16.msra.mxu0 %v1732
    %4868 = vmatprep.subr.bf16.mxu0 0
    %4869 = vmatpush1.bf16.msra.mxu0 %v1733
    %4870 = vmatprep.subr.bf16.mxu0 0
    %4871 = vmatpush1.bf16.msra.mxu0 %v1734
    %4872 = vmatprep.subr.bf16.mxu0 0
    %4873 = vmatpush1.bf16.msra.mxu0 %v1735
    %4874 = vmatprep.subr.bf16.mxu0 0
    %4875 = vmatpush1.bf16.msra.mxu0 %v1736
    %4876 = vmatprep.subr.bf16.mxu0 0
    %4877 = vmatpush1.bf16.msra.mxu0 %v1737
    %4878 = vmatprep.subr.bf16.mxu0 0
    %4879 = vmatpush1.bf16.msra.mxu0 %v1738
    %4880 = vmatprep.subr.bf16.mxu0 0
    %4881 = vmatpush1.bf16.msra.mxu0 %v1739
    %4882 = vmatprep.mubr.bf16.mxu0 %v3712
    %4883 = vmatmul.mubr.bf16.gmra.mrb[0].mxu0 %v3711
    %v4884 = vpop.f32.mrb[0].mxu0
    %v4885 = vadd.f32 0.0, %v4884
    %v4886 = vpop.f32.mrb[0].mxu0
    %v4887 = vpop.f32.mrb[0].mxu0
    %v4888 = vadd.f32 0.0, %v4887
    %v4889 = vpop.f32.mrb[0].mxu0
    %4890 = vmatprep.mubr.bf16.mxu0 %v3718
    %4891 = vmatmul.mubr.bf16.gmra.mrb[0].mxu0 %v3717
    %v4892 = vpop.f32.mrb[0].mxu0
    %v4893 = vadd.f32 0.0, %v4892
    %v4894 = vpop.f32.mrb[0].mxu0
    %v4895 = vpop.f32.mrb[0].mxu0
    %v4896 = vadd.f32 0.0, %v4895
    %v4897 = vpop.f32.mrb[0].mxu0
    %4898 = vmatprep.mubr.bf16.mxu0 %v3724
    %4899 = vmatmul.mubr.bf16.gmra.mrb[0].mxu0 %v3723
    %v4900 = vpop.f32.mrb[0].mxu0
    %v4901 = vadd.f32 0.0, %v4900
    %v4902 = vpop.f32.mrb[0].mxu0
    %v4903 = vpop.f32.mrb[0].mxu0
    %v4904 = vadd.f32 0.0, %v4903
    %v4905 = vpop.f32.mrb[0].mxu0
    %4906 = vmatprep.mubr.bf16.mxu0 %v3730
    %4907 = vmatmul.mubr.bf16.gmra.mrb[0].mxu0 %v3729
    %v4908 = vpop.f32.mrb[0].mxu0
    %v4909 = vadd.f32 0.0, %v4908
    %v4910 = vpop.f32.mrb[0].mxu0
    %v4911 = vpop.f32.mrb[0].mxu0
    %v4912 = vadd.f32 0.0, %v4911
    %v4913 = vpop.f32.mrb[0].mxu0
    %4914 = vmatprep.mubr.bf16.mxu0 %v3736
    %4915 = vmatmul.mubr.bf16.gmra.mrb[0].mxu0 %v3735
    %v4916 = vpop.f32.mrb[0].mxu0
    %v4917 = vadd.f32 0.0, %v4916
    %v4918 = vpop.f32.mrb[0].mxu0
    %v4919 = vpop.f32.mrb[0].mxu0
    %v4920 = vadd.f32 0.0, %v4919
    %v4921 = vpop.f32.mrb[0].mxu0
    %4922 = vmatprep.mubr.bf16.mxu0 %v3742
    %4923 = vmatmul.mubr.bf16.gmra.mrb[0].mxu0 %v3741
    %v4924 = vpop.f32.mrb[0].mxu0
    %v4925 = vadd.f32 0.0, %v4924
    %v4926 = vpop.f32.mrb[0].mxu0
    %v4927 = vpop.f32.mrb[0].mxu0
    %v4928 = vadd.f32 0.0, %v4927
    %v4929 = vpop.f32.mrb[0].mxu0
    %4930 = vmatprep.mubr.bf16.mxu0 %v3748
    %4931 = vmatmul.mubr.bf16.gmra.mrb[0].mxu0 %v3747
    %v4932 = vpop.f32.mrb[0].mxu0
    %v4933 = vadd.f32 0.0, %v4932
    %v4934 = vpop.f32.mrb[0].mxu0
    %v4935 = vpop.f32.mrb[0].mxu0
    %v4936 = vadd.f32 0.0, %v4935
    %v4937 = vpop.f32.mrb[0].mxu0
    %4938 = vmatprep.mubr.bf16.mxu0 %v3754
    %4939 = vmatmul.mubr.bf16.gmra.mrb[0].mxu0 %v3753
    %v4940 = vpop.f32.mrb[0].mxu0
    %v4941 = vadd.f32 0.0, %v4940
    %v4942 = vpop.f32.mrb[0].mxu0
    %v4943 = vpop.f32.mrb[0].mxu0
    %v4944 = vadd.f32 0.0, %v4943
    %v4945 = vpop.f32.mrb[0].mxu0
    %4946 = vmatprep.mubr.bf16.mxu0 %v3760
    %4947 = vmatmul.mubr.bf16.gmra.mrb[0].mxu0 %v3759
    %v4948 = vpop.f32.mrb[0].mxu0
    %v4949 = vadd.f32 0.0, %v4948
    %v4950 = vpop.f32.mrb[0].mxu0
    %v4951 = vpop.f32.mrb[0].mxu0
    %v4952 = vadd.f32 0.0, %v4951
    %v4953 = vpop.f32.mrb[0].mxu0
    %4954 = vmatprep.mubr.bf16.mxu0 %v3766
    %4955 = vmatmul.mubr.bf16.gmra.mrb[0].mxu0 %v3765
    %v4956 = vpop.f32.mrb[0].mxu0
    %v4957 = vadd.f32 0.0, %v4956
    %v4958 = vpop.f32.mrb[0].mxu0
    %v4959 = vpop.f32.mrb[0].mxu0
    %v4960 = vadd.f32 0.0, %v4959
    %v4961 = vpop.f32.mrb[0].mxu0
    %4962 = vmatprep.mubr.bf16.mxu0 %v3772
    %4963 = vmatmul.mubr.bf16.gmra.mrb[0].mxu0 %v3771
    %v4964 = vpop.f32.mrb[0].mxu0
    %v4965 = vadd.f32 0.0, %v4964
    %v4966 = vpop.f32.mrb[0].mxu0
    %v4967 = vpop.f32.mrb[0].mxu0
    %v4968 = vadd.f32 0.0, %v4967
    %v4969 = vpop.f32.mrb[0].mxu0
    %4970 = vmatprep.mubr.bf16.mxu0 %v3778
    %4971 = vmatmul.mubr.bf16.gmra.mrb[0].mxu0 %v3777
    %v4972 = vpop.f32.mrb[0].mxu0
    %v4973 = vadd.f32 0.0, %v4972
    %v4974 = vpop.f32.mrb[0].mxu0
    %v4975 = vpop.f32.mrb[0].mxu0
    %v4976 = vadd.f32 0.0, %v4975
    %v4977 = vpop.f32.mrb[0].mxu0
    %4978 = vmatprep.mubr.bf16.mxu0 %v3784
    %4979 = vmatmul.mubr.bf16.gmra.mrb[0].mxu0 %v3783
    %v4980 = vpop.f32.mrb[0].mxu0
    %v4981 = vadd.f32 0.0, %v4980
    %v4982 = vpop.f32.mrb[0].mxu0
    %v4983 = vpop.f32.mrb[0].mxu0
    %v4984 = vadd.f32 0.0, %v4983
    %v4985 = vpop.f32.mrb[0].mxu0
    %4986 = vmatprep.mubr.bf16.mxu0 %v3790
    %4987 = vmatmul.mubr.bf16.gmra.mrb[0].mxu0 %v3789
    %v4988 = vpop.f32.mrb[0].mxu0
    %v4989 = vadd.f32 0.0, %v4988
    %v4990 = vpop.f32.mrb[0].mxu0
    %v4991 = vpop.f32.mrb[0].mxu0
    %v4992 = vadd.f32 0.0, %v4991
    %v4993 = vpop.f32.mrb[0].mxu0
    %4994 = vmatprep.mubr.bf16.mxu0 %v3796
    %4995 = vmatmul.mubr.bf16.gmra.mrb[0].mxu0 %v3795
    %v4996 = vpop.f32.mrb[0].mxu0
    %v4997 = vadd.f32 0.0, %v4996
    %v4998 = vpop.f32.mrb[0].mxu0
    %v4999 = vpop.f32.mrb[0].mxu0
    %v5000 = vadd.f32 0.0, %v4999
    %v5001 = vpop.f32.mrb[0].mxu0
    %5002 = vmatprep.mubr.bf16.mxu0 %v3802
    %5003 = vmatmul.mubr.bf16.gmra.mrb[0].mxu0 %v3801
    %v5004 = vpop.f32.mrb[0].mxu0
    %v5005 = vadd.f32 0.0, %v5004
    %v5006 = vpop.f32.mrb[0].mxu0
    %v5007 = vpop.f32.mrb[0].mxu0
    %v5008 = vadd.f32 0.0, %v5007
    %v5009 = vpop.f32.mrb[0].mxu0
    %5010 = vmatprep.mubr.bf16.mxu0 %v3808
    %5011 = vmatmul.mubr.bf16.gmra.mrb[0].mxu0 %v3807
    %v5012 = vpop.f32.mrb[0].mxu0
    %v5013 = vadd.f32 0.0, %v5012
    %v5014 = vpop.f32.mrb[0].mxu0
    %v5015 = vpop.f32.mrb[0].mxu0
    %v5016 = vadd.f32 0.0, %v5015
    %v5017 = vpop.f32.mrb[0].mxu0
    %5018 = vmatprep.mubr.bf16.mxu0 %v3814
    %5019 = vmatmul.mubr.bf16.gmra.mrb[0].mxu0 %v3813
    %v5020 = vpop.f32.mrb[0].mxu0
    %v5021 = vadd.f32 0.0, %v5020
    %v5022 = vpop.f32.mrb[0].mxu0
    %v5023 = vpop.f32.mrb[0].mxu0
    %v5024 = vadd.f32 0.0, %v5023
    %v5025 = vpop.f32.mrb[0].mxu0
    %5026 = vmatprep.mubr.bf16.mxu0 %v3820
    %5027 = vmatmul.mubr.bf16.gmra.mrb[0].mxu0 %v3819
    %v5028 = vpop.f32.mrb[0].mxu0
    %v5029 = vadd.f32 0.0, %v5028
    %v5030 = vpop.f32.mrb[0].mxu0
    %v5031 = vpop.f32.mrb[0].mxu0
    %v5032 = vadd.f32 0.0, %v5031
    %v5033 = vpop.f32.mrb[0].mxu0
    %5034 = vmatprep.mubr.bf16.mxu0 %v3826
    %5035 = vmatmul.mubr.bf16.gmra.mrb[0].mxu0 %v3825
    %v5036 = vpop.f32.mrb[0].mxu0
    %v5037 = vadd.f32 0.0, %v5036
    %v5038 = vpop.f32.mrb[0].mxu0
    %v5039 = vpop.f32.mrb[0].mxu0
    %v5040 = vadd.f32 0.0, %v5039
    %v5041 = vpop.f32.mrb[0].mxu0
    %5042 = vmatprep.mubr.bf16.mxu0 %v3832
    %5043 = vmatmul.mubr.bf16.gmra.mrb[0].mxu0 %v3831
    %v5044 = vpop.f32.mrb[0].mxu0
    %v5045 = vadd.f32 0.0, %v5044
    %v5046 = vpop.f32.mrb[0].mxu0
    %v5047 = vpop.f32.mrb[0].mxu0
    %v5048 = vadd.f32 0.0, %v5047
    %v5049 = vpop.f32.mrb[0].mxu0
    %5050 = vmatprep.mubr.bf16.mxu0 %v3838
    %5051 = vmatmul.mubr.bf16.gmra.mrb[0].mxu0 %v3837
    %v5052 = vpop.f32.mrb[0].mxu0
    %v5053 = vadd.f32 0.0, %v5052
    %v5054 = vpop.f32.mrb[0].mxu0
    %v5055 = vpop.f32.mrb[0].mxu0
    %v5056 = vadd.f32 0.0, %v5055
    %v5057 = vpop.f32.mrb[0].mxu0
    %5058 = vmatprep.mubr.bf16.mxu0 %v3844
    %5059 = vmatmul.mubr.bf16.gmra.mrb[0].mxu0 %v3843
    %v5060 = vpop.f32.mrb[0].mxu0
    %v5061 = vadd.f32 0.0, %v5060
    %v5062 = vpop.f32.mrb[0].mxu0
    %v5063 = vpop.f32.mrb[0].mxu0
    %v5064 = vadd.f32 0.0, %v5063
    %v5065 = vpop.f32.mrb[0].mxu0
    %5066 = vmatprep.mubr.bf16.mxu0 %v3850
    %5067 = vmatmul.mubr.bf16.gmra.mrb[0].mxu0 %v3849
    %v5068 = vpop.f32.mrb[0].mxu0
    %v5069 = vadd.f32 0.0, %v5068
    %v5070 = vpop.f32.mrb[0].mxu0
    %v5071 = vpop.f32.mrb[0].mxu0
    %v5072 = vadd.f32 0.0, %v5071
    %v5073 = vpop.f32.mrb[0].mxu0
    %5074 = vmatprep.mubr.bf16.mxu0 %v3856
    %5075 = vmatmul.mubr.bf16.gmra.mrb[0].mxu0 %v3855
    %v5076 = vpop.f32.mrb[0].mxu0
    %v5077 = vadd.f32 0.0, %v5076
    %v5078 = vpop.f32.mrb[0].mxu0
    %v5079 = vpop.f32.mrb[0].mxu0
    %v5080 = vadd.f32 0.0, %v5079
    %v5081 = vpop.f32.mrb[0].mxu0
    %5082 = vmatprep.mubr.bf16.mxu0 %v3862
    %5083 = vmatmul.mubr.bf16.gmra.mrb[0].mxu0 %v3861
    %v5084 = vpop.f32.mrb[0].mxu0
    %v5085 = vadd.f32 0.0, %v5084
    %v5086 = vpop.f32.mrb[0].mxu0
    %v5087 = vpop.f32.mrb[0].mxu0
    %v5088 = vadd.f32 0.0, %v5087
    %v5089 = vpop.f32.mrb[0].mxu0
    %5090 = vmatprep.mubr.bf16.mxu0 %v3868
    %5091 = vmatmul.mubr.bf16.gmra.mrb[0].mxu0 %v3867
    %v5092 = vpop.f32.mrb[0].mxu0
    %v5093 = vadd.f32 0.0, %v5092
    %v5094 = vpop.f32.mrb[0].mxu0
    %v5095 = vpop.f32.mrb[0].mxu0
    %v5096 = vadd.f32 0.0, %v5095
    %v5097 = vpop.f32.mrb[0].mxu0
    %5098 = vmatprep.mubr.bf16.mxu0 %v3874
    %5099 = vmatmul.mubr.bf16.gmra.mrb[0].mxu0 %v3873
    %v5100 = vpop.f32.mrb[0].mxu0
    %v5101 = vadd.f32 0.0, %v5100
    %v5102 = vpop.f32.mrb[0].mxu0
    %v5103 = vpop.f32.mrb[0].mxu0
    %v5104 = vadd.f32 0.0, %v5103
    %v5105 = vpop.f32.mrb[0].mxu0
    %5106 = vmatprep.mubr.bf16.mxu0 %v3880
    %5107 = vmatmul.mubr.bf16.gmra.mrb[0].mxu0 %v3879
    %v5108 = vpop.f32.mrb[0].mxu0
    %v5109 = vadd.f32 0.0, %v5108
    %v5110 = vpop.f32.mrb[0].mxu0
    %v5111 = vpop.f32.mrb[0].mxu0
    %v5112 = vadd.f32 0.0, %v5111
    %v5113 = vpop.f32.mrb[0].mxu0
    %5114 = vmatprep.mubr.bf16.mxu0 %v3886
    %5115 = vmatmul.mubr.bf16.gmra.mrb[0].mxu0 %v3885
    %v5116 = vpop.f32.mrb[0].mxu0
    %v5117 = vadd.f32 0.0, %v5116
    %v5118 = vpop.f32.mrb[0].mxu0
    %v5119 = vpop.f32.mrb[0].mxu0
    %v5120 = vadd.f32 0.0, %v5119
    %v5121 = vpop.f32.mrb[0].mxu0
    %5122 = vmatprep.mubr.bf16.mxu0 %v3892
    %5123 = vmatmul.mubr.bf16.gmra.mrb[0].mxu0 %v3891
    %v5124 = vpop.f32.mrb[0].mxu0
    %v5125 = vadd.f32 0.0, %v5124
    %v5126 = vpop.f32.mrb[0].mxu0
    %v5127 = vpop.f32.mrb[0].mxu0
    %v5128 = vadd.f32 0.0, %v5127
    %v5129 = vpop.f32.mrb[0].mxu0
    %5130 = vmatprep.mubr.bf16.mxu0 %v3898
    %5131 = vmatmul.mubr.bf16.gmra.mrb[0].mxu0 %v3897
    %v5132 = vpop.f32.mrb[0].mxu0
    %v5133 = vadd.f32 0.0, %v5132
    %v5134 = vpop.f32.mrb[0].mxu0
    %v5135 = vpop.f32.mrb[0].mxu0
    %v5136 = vadd.f32 0.0, %v5135
    %v5137 = vpop.f32.mrb[0].mxu0
    %5138 = vmatprep.mubr.bf16.mxu0 %v3904
    %5139 = vmatmul.mubr.bf16.gmra.mrb[0].mxu0 %v3903
    %v5140 = vpop.f32.mrb[0].mxu0
    %v5141 = vadd.f32 0.0, %v5140
    %v5142 = vpop.f32.mrb[0].mxu0
    %v5143 = vpop.f32.mrb[0].mxu0
    %v5144 = vadd.f32 0.0, %v5143
    %v5145 = vpop.f32.mrb[0].mxu0
    %5146 = vmatprep.mubr.bf16.mxu0 %v3910
    %5147 = vmatmul.mubr.bf16.gmra.mrb[0].mxu0 %v3909
    %v5148 = vpop.f32.mrb[0].mxu0
    %v5149 = vadd.f32 0.0, %v5148
    %v5150 = vpop.f32.mrb[0].mxu0
    %v5151 = vpop.f32.mrb[0].mxu0
    %v5152 = vadd.f32 0.0, %v5151
    %v5153 = vpop.f32.mrb[0].mxu0
    %5154 = vmatprep.mubr.bf16.mxu0 %v3916
    %5155 = vmatmul.mubr.bf16.gmra.mrb[0].mxu0 %v3915
    %v5156 = vpop.f32.mrb[0].mxu0
    %v5157 = vadd.f32 0.0, %v5156
    %v5158 = vpop.f32.mrb[0].mxu0
    %v5159 = vpop.f32.mrb[0].mxu0
    %v5160 = vadd.f32 0.0, %v5159
    %v5161 = vpop.f32.mrb[0].mxu0
    %5162 = vmatprep.mubr.bf16.mxu0 %v3922
    %5163 = vmatmul.mubr.bf16.gmra.mrb[0].mxu0 %v3921
    %v5164 = vpop.f32.mrb[0].mxu0
    %v5165 = vadd.f32 0.0, %v5164
    %v5166 = vpop.f32.mrb[0].mxu0
    %v5167 = vpop.f32.mrb[0].mxu0
    %v5168 = vadd.f32 0.0, %v5167
    %v5169 = vpop.f32.mrb[0].mxu0
    %5170 = vmatprep.mubr.bf16.mxu0 %v3928
    %5171 = vmatmul.mubr.bf16.gmra.mrb[0].mxu0 %v3927
    %v5172 = vpop.f32.mrb[0].mxu0
    %v5173 = vadd.f32 0.0, %v5172
    %v5174 = vpop.f32.mrb[0].mxu0
    %v5175 = vpop.f32.mrb[0].mxu0
    %v5176 = vadd.f32 0.0, %v5175
    %v5177 = vpop.f32.mrb[0].mxu0
    %5178 = vmatprep.mubr.bf16.mxu0 %v3934
    %5179 = vmatmul.mubr.bf16.gmra.mrb[0].mxu0 %v3933
    %v5180 = vpop.f32.mrb[0].mxu0
    %v5181 = vadd.f32 0.0, %v5180
    %v5182 = vpop.f32.mrb[0].mxu0
    %v5183 = vpop.f32.mrb[0].mxu0
    %v5184 = vadd.f32 0.0, %v5183
    %v5185 = vpop.f32.mrb[0].mxu0
    %5186 = vmatprep.mubr.bf16.mxu0 %v3940
    %5187 = vmatmul.mubr.bf16.gmra.mrb[0].mxu0 %v3939
    %v5188 = vpop.f32.mrb[0].mxu0
    %v5189 = vadd.f32 0.0, %v5188
    %v5190 = vpop.f32.mrb[0].mxu0
    %v5191 = vpop.f32.mrb[0].mxu0
    %v5192 = vadd.f32 0.0, %v5191
    %v5193 = vpop.f32.mrb[0].mxu0
    %5194 = vmatprep.mubr.bf16.mxu0 %v3946
    %5195 = vmatmul.mubr.bf16.gmra.mrb[0].mxu0 %v3945
    %v5196 = vpop.f32.mrb[0].mxu0
    %v5197 = vadd.f32 0.0, %v5196
    %v5198 = vpop.f32.mrb[0].mxu0
    %v5199 = vpop.f32.mrb[0].mxu0
    %v5200 = vadd.f32 0.0, %v5199
    %v5201 = vpop.f32.mrb[0].mxu0
    %5202 = vmatprep.mubr.bf16.mxu0 %v3952
    %5203 = vmatmul.mubr.bf16.gmra.mrb[0].mxu0 %v3951
    %v5204 = vpop.f32.mrb[0].mxu0
    %v5205 = vadd.f32 0.0, %v5204
    %v5206 = vpop.f32.mrb[0].mxu0
    %v5207 = vpop.f32.mrb[0].mxu0
    %v5208 = vadd.f32 0.0, %v5207
    %v5209 = vpop.f32.mrb[0].mxu0
    %5210 = vmatprep.mubr.bf16.mxu0 %v3958
    %5211 = vmatmul.mubr.bf16.gmra.mrb[0].mxu0 %v3957
    %v5212 = vpop.f32.mrb[0].mxu0
    %v5213 = vadd.f32 0.0, %v5212
    %v5214 = vpop.f32.mrb[0].mxu0
    %v5215 = vpop.f32.mrb[0].mxu0
    %v5216 = vadd.f32 0.0, %v5215
    %v5217 = vpop.f32.mrb[0].mxu0
    %5218 = vmatprep.mubr.bf16.mxu0 %v3964
    %5219 = vmatmul.mubr.bf16.gmra.mrb[0].mxu0 %v3963
    %v5220 = vpop.f32.mrb[0].mxu0
    %v5221 = vadd.f32 0.0, %v5220
    %v5222 = vpop.f32.mrb[0].mxu0
    %v5223 = vpop.f32.mrb[0].mxu0
    %v5224 = vadd.f32 0.0, %v5223
    %v5225 = vpop.f32.mrb[0].mxu0
    %5226 = vmatprep.mubr.bf16.mxu0 %v3970
    %5227 = vmatmul.mubr.bf16.gmra.mrb[0].mxu0 %v3969
    %v5228 = vpop.f32.mrb[0].mxu0
    %v5229 = vadd.f32 0.0, %v5228
    %v5230 = vpop.f32.mrb[0].mxu0
    %v5231 = vpop.f32.mrb[0].mxu0
    %v5232 = vadd.f32 0.0, %v5231
    %v5233 = vpop.f32.mrb[0].mxu0
    %5234 = vmatprep.mubr.bf16.mxu0 %v3976
    %5235 = vmatmul.mubr.bf16.gmra.mrb[0].mxu0 %v3975
    %v5236 = vpop.f32.mrb[0].mxu0
    %v5237 = vadd.f32 0.0, %v5236
    %v5238 = vpop.f32.mrb[0].mxu0
    %v5239 = vpop.f32.mrb[0].mxu0
    %v5240 = vadd.f32 0.0, %v5239
    %v5241 = vpop.f32.mrb[0].mxu0
    %5242 = vmatprep.mubr.bf16.mxu0 %v3982
    %5243 = vmatmul.mubr.bf16.gmra.mrb[0].mxu0 %v3981
    %v5244 = vpop.f32.mrb[0].mxu0
    %v5245 = vadd.f32 0.0, %v5244
    %v5246 = vpop.f32.mrb[0].mxu0
    %v5247 = vpop.f32.mrb[0].mxu0
    %v5248 = vadd.f32 0.0, %v5247
    %v5249 = vpop.f32.mrb[0].mxu0
    %5250 = vmatprep.mubr.bf16.mxu0 %v3988
    %5251 = vmatmul.mubr.bf16.gmra.mrb[0].mxu0 %v3987
    %v5252 = vpop.f32.mrb[0].mxu0
    %v5253 = vadd.f32 0.0, %v5252
    %v5254 = vpop.f32.mrb[0].mxu0
    %v5255 = vpop.f32.mrb[0].mxu0
    %v5256 = vadd.f32 0.0, %v5255
    %v5257 = vpop.f32.mrb[0].mxu0
    %5258 = vmatprep.mubr.bf16.mxu0 %v3994
    %5259 = vmatmul.mubr.bf16.gmra.mrb[0].mxu0 %v3993
    %v5260 = vpop.f32.mrb[0].mxu0
    %v5261 = vadd.f32 0.0, %v5260
    %v5262 = vpop.f32.mrb[0].mxu0
    %v5263 = vpop.f32.mrb[0].mxu0
    %v5264 = vadd.f32 0.0, %v5263
    %v5265 = vpop.f32.mrb[0].mxu0
    %5266 = vmatprep.mubr.bf16.mxu0 %v4000
    %5267 = vmatmul.mubr.bf16.gmra.mrb[0].mxu0 %v3999
    %v5268 = vpop.f32.mrb[0].mxu0
    %v5269 = vadd.f32 0.0, %v5268
    %v5270 = vpop.f32.mrb[0].mxu0
    %v5271 = vpop.f32.mrb[0].mxu0
    %v5272 = vadd.f32 0.0, %v5271
    %v5273 = vpop.f32.mrb[0].mxu0
    %5274 = vmatprep.mubr.bf16.mxu0 %v4006
    %5275 = vmatmul.mubr.bf16.gmra.mrb[0].mxu0 %v4005
    %v5276 = vpop.f32.mrb[0].mxu0
    %v5277 = vadd.f32 0.0, %v5276
    %v5278 = vpop.f32.mrb[0].mxu0
    %v5279 = vpop.f32.mrb[0].mxu0
    %v5280 = vadd.f32 0.0, %v5279
    %v5281 = vpop.f32.mrb[0].mxu0
    %5282 = vmatprep.mubr.bf16.mxu0 %v4012
    %5283 = vmatmul.mubr.bf16.gmra.mrb[0].mxu0 %v4011
    %v5284 = vpop.f32.mrb[0].mxu0
    %v5285 = vadd.f32 0.0, %v5284
    %v5286 = vpop.f32.mrb[0].mxu0
    %v5287 = vpop.f32.mrb[0].mxu0
    %v5288 = vadd.f32 0.0, %v5287
    %v5289 = vpop.f32.mrb[0].mxu0
    %5290 = vmatprep.mubr.bf16.mxu0 %v4018
    %5291 = vmatmul.mubr.bf16.gmra.mrb[0].mxu0 %v4017
    %v5292 = vpop.f32.mrb[0].mxu0
    %v5293 = vadd.f32 0.0, %v5292
    %v5294 = vpop.f32.mrb[0].mxu0
    %v5295 = vpop.f32.mrb[0].mxu0
    %v5296 = vadd.f32 0.0, %v5295
    %v5297 = vpop.f32.mrb[0].mxu0
    %5298 = vmatprep.mubr.bf16.mxu0 %v4024
    %5299 = vmatmul.mubr.bf16.gmra.mrb[0].mxu0 %v4023
    %v5300 = vpop.f32.mrb[0].mxu0
    %v5301 = vadd.f32 0.0, %v5300
    %v5302 = vpop.f32.mrb[0].mxu0
    %v5303 = vpop.f32.mrb[0].mxu0
    %v5304 = vadd.f32 0.0, %v5303
    %v5305 = vpop.f32.mrb[0].mxu0
    %5306 = vmatprep.mubr.bf16.mxu0 %v4030
    %5307 = vmatmul.mubr.bf16.gmra.mrb[0].mxu0 %v4029
    %v5308 = vpop.f32.mrb[0].mxu0
    %v5309 = vadd.f32 0.0, %v5308
    %v5310 = vpop.f32.mrb[0].mxu0
    %v5311 = vpop.f32.mrb[0].mxu0
    %v5312 = vadd.f32 0.0, %v5311
    %v5313 = vpop.f32.mrb[0].mxu0
    %5314 = vmatprep.mubr.bf16.mxu0 %v4036
    %5315 = vmatmul.mubr.bf16.gmra.mrb[0].mxu0 %v4035
    %v5316 = vpop.f32.mrb[0].mxu0
    %v5317 = vadd.f32 0.0, %v5316
    %v5318 = vpop.f32.mrb[0].mxu0
    %v5319 = vpop.f32.mrb[0].mxu0
    %v5320 = vadd.f32 0.0, %v5319
    %v5321 = vpop.f32.mrb[0].mxu0
    %5322 = vmatprep.mubr.bf16.mxu0 %v4042
    %5323 = vmatmul.mubr.bf16.gmra.mrb[0].mxu0 %v4041
    %v5324 = vpop.f32.mrb[0].mxu0
    %v5325 = vadd.f32 0.0, %v5324
    %v5326 = vpop.f32.mrb[0].mxu0
    %v5327 = vpop.f32.mrb[0].mxu0
    %v5328 = vadd.f32 0.0, %v5327
    %v5329 = vpop.f32.mrb[0].mxu0
    %5330 = vmatprep.mubr.bf16.mxu0 %v4048
    %5331 = vmatmul.mubr.bf16.gmra.mrb[0].mxu0 %v4047
    %v5332 = vpop.f32.mrb[0].mxu0
    %v5333 = vadd.f32 0.0, %v5332
    %v5334 = vpop.f32.mrb[0].mxu0
    %v5335 = vpop.f32.mrb[0].mxu0
    %v5336 = vadd.f32 0.0, %v5335
    %v5337 = vpop.f32.mrb[0].mxu0
    %5338 = vmatprep.mubr.bf16.mxu0 %v4054
    %5339 = vmatmul.mubr.bf16.gmra.mrb[0].mxu0 %v4053
    %v5340 = vpop.f32.mrb[0].mxu0
    %v5341 = vadd.f32 0.0, %v5340
    %v5342 = vpop.f32.mrb[0].mxu0
    %v5343 = vpop.f32.mrb[0].mxu0
    %v5344 = vadd.f32 0.0, %v5343
    %v5345 = vpop.f32.mrb[0].mxu0
    %5346 = vmatprep.mubr.bf16.mxu0 %v4060
    %5347 = vmatmul.mubr.bf16.gmra.mrb[0].mxu0 %v4059
    %v5348 = vpop.f32.mrb[0].mxu0
    %v5349 = vadd.f32 0.0, %v5348
    %v5350 = vpop.f32.mrb[0].mxu0
    %v5351 = vpop.f32.mrb[0].mxu0
    %v5352 = vadd.f32 0.0, %v5351
    %v5353 = vpop.f32.mrb[0].mxu0
    %5354 = vmatprep.mubr.bf16.mxu0 %v4066
    %5355 = vmatmul.mubr.bf16.gmra.mrb[0].mxu0 %v4065
    %v5356 = vpop.f32.mrb[0].mxu0
    %v5357 = vadd.f32 0.0, %v5356
    %v5358 = vpop.f32.mrb[0].mxu0
    %v5359 = vpop.f32.mrb[0].mxu0
    %v5360 = vadd.f32 0.0, %v5359
    %v5361 = vpop.f32.mrb[0].mxu0
    %5362 = vmatprep.mubr.bf16.mxu0 %v4072
    %5363 = vmatmul.mubr.bf16.gmra.mrb[0].mxu0 %v4071
    %v5364 = vpop.f32.mrb[0].mxu0
    %v5365 = vadd.f32 0.0, %v5364
    %v5366 = vpop.f32.mrb[0].mxu0
    %v5367 = vpop.f32.mrb[0].mxu0
    %v5368 = vadd.f32 0.0, %v5367
    %v5369 = vpop.f32.mrb[0].mxu0
    %5370 = vmatprep.mubr.bf16.mxu0 %v4078
    %5371 = vmatmul.mubr.bf16.gmra.mrb[0].mxu0 %v4077
    %v5372 = vpop.f32.mrb[0].mxu0
    %v5373 = vadd.f32 0.0, %v5372
    %v5374 = vpop.f32.mrb[0].mxu0
    %v5375 = vpop.f32.mrb[0].mxu0
    %v5376 = vadd.f32 0.0, %v5375
    %v5377 = vpop.f32.mrb[0].mxu0
    %5378 = vmatprep.mubr.bf16.mxu0 %v4084
    %5379 = vmatmul.mubr.bf16.gmra.mrb[0].mxu0 %v4083
    %v5380 = vpop.f32.mrb[0].mxu0
    %v5381 = vadd.f32 0.0, %v5380
    %v5382 = vpop.f32.mrb[0].mxu0
    %v5383 = vpop.f32.mrb[0].mxu0
    %v5384 = vadd.f32 0.0, %v5383
    %v5385 = vpop.f32.mrb[0].mxu0
    %5386 = vmatprep.mubr.bf16.mxu0 %v4090
    %5387 = vmatmul.mubr.bf16.gmra.mrb[0].mxu0 %v4089
    %v5388 = vpop.f32.mrb[0].mxu0
    %v5389 = vadd.f32 0.0, %v5388
    %v5390 = vpop.f32.mrb[0].mxu0
    %v5391 = vpop.f32.mrb[0].mxu0
    %v5392 = vadd.f32 0.0, %v5391
    %v5393 = vpop.f32.mrb[0].mxu0
    %5394 = vmatprep.mubr.bf16.mxu0 %v4096
    %5395 = vmatmul.mubr.bf16.gmra.mrb[0].mxu0 %v4095
    %v5396 = vpop.f32.mrb[0].mxu0
    %v5397 = vadd.f32 0.0, %v5396
    %v5398 = vpop.f32.mrb[0].mxu0
    %v5399 = vpop.f32.mrb[0].mxu0
    %v5400 = vadd.f32 0.0, %v5399
    %v5401 = vpop.f32.mrb[0].mxu0
    %5402 = vmatprep.mubr.bf16.mxu0 %v4102
    %5403 = vmatmul.mubr.bf16.gmra.mrb[0].mxu0 %v4101
    %v5404 = vpop.f32.mrb[0].mxu0
    %v5405 = vadd.f32 0.0, %v5404
    %v5406 = vpop.f32.mrb[0].mxu0
    %v5407 = vpop.f32.mrb[0].mxu0
    %v5408 = vadd.f32 0.0, %v5407
    %v5409 = vpop.f32.mrb[0].mxu0
    %5410 = vmatprep.mubr.bf16.mxu0 %v4108
    %5411 = vmatmul.mubr.bf16.gmra.mrb[0].mxu0 %v4107
    %v5412 = vpop.f32.mrb[0].mxu0
    %v5413 = vadd.f32 0.0, %v5412
    %v5414 = vpop.f32.mrb[0].mxu0
    %v5415 = vpop.f32.mrb[0].mxu0
    %v5416 = vadd.f32 0.0, %v5415
    %v5417 = vpop.f32.mrb[0].mxu0
    %5418 = vmatprep.mubr.bf16.mxu0 %v4114
    %5419 = vmatmul.mubr.bf16.gmra.mrb[0].mxu0 %v4113
    %v5420 = vpop.f32.mrb[0].mxu0
    %v5421 = vadd.f32 0.0, %v5420
    %v5422 = vpop.f32.mrb[0].mxu0
    %v5423 = vpop.f32.mrb[0].mxu0
    %v5424 = vadd.f32 0.0, %v5423
    %v5425 = vpop.f32.mrb[0].mxu0
    %5426 = vmatprep.mubr.bf16.mxu0 %v4120
    %5427 = vmatmul.mubr.bf16.gmra.mrb[0].mxu0 %v4119
    %v5428 = vpop.f32.mrb[0].mxu0
    %v5429 = vadd.f32 0.0, %v5428
    %v5430 = vpop.f32.mrb[0].mxu0
    %v5431 = vpop.f32.mrb[0].mxu0
    %v5432 = vadd.f32 0.0, %v5431
    %v5433 = vpop.f32.mrb[0].mxu0
    %5434 = vmatprep.mubr.bf16.mxu0 %v4126
    %5435 = vmatmul.mubr.bf16.gmra.mrb[0].mxu0 %v4125
    %v5436 = vpop.f32.mrb[0].mxu0
    %v5437 = vadd.f32 0.0, %v5436
    %v5438 = vpop.f32.mrb[0].mxu0
    %v5439 = vpop.f32.mrb[0].mxu0
    %v5440 = vadd.f32 0.0, %v5439
    %v5441 = vpop.f32.mrb[0].mxu0
    %5442 = vmatprep.mubr.bf16.mxu0 %v4132
    %5443 = vmatmul.mubr.bf16.gmra.mrb[0].mxu0 %v4131
    %v5444 = vpop.f32.mrb[0].mxu0
    %v5445 = vadd.f32 0.0, %v5444
    %v5446 = vpop.f32.mrb[0].mxu0
    %v5447 = vpop.f32.mrb[0].mxu0
    %v5448 = vadd.f32 0.0, %v5447
    %v5449 = vpop.f32.mrb[0].mxu0
    %5450 = vmatprep.mubr.bf16.mxu0 %v4138
    %5451 = vmatmul.mubr.bf16.gmra.mrb[0].mxu0 %v4137
    %v5452 = vpop.f32.mrb[0].mxu0
    %v5453 = vadd.f32 0.0, %v5452
    %v5454 = vpop.f32.mrb[0].mxu0
    %v5455 = vpop.f32.mrb[0].mxu0
    %v5456 = vadd.f32 0.0, %v5455
    %v5457 = vpop.f32.mrb[0].mxu0
    %5458 = vmatprep.mubr.bf16.mxu0 %v4144
    %5459 = vmatmul.mubr.bf16.gmra.mrb[0].mxu0 %v4143
    %v5460 = vpop.f32.mrb[0].mxu0
    %v5461 = vadd.f32 0.0, %v5460
    %v5462 = vpop.f32.mrb[0].mxu0
    %v5463 = vpop.f32.mrb[0].mxu0
    %v5464 = vadd.f32 0.0, %v5463
    %v5465 = vpop.f32.mrb[0].mxu0
    %5466 = vmatprep.mubr.bf16.mxu0 %v4150
    %5467 = vmatmul.mubr.bf16.gmra.mrb[0].mxu0 %v4149
    %v5468 = vpop.f32.mrb[0].mxu0
    %v5469 = vadd.f32 0.0, %v5468
    %v5470 = vpop.f32.mrb[0].mxu0
    %v5471 = vpop.f32.mrb[0].mxu0
    %v5472 = vadd.f32 0.0, %v5471
    %v5473 = vpop.f32.mrb[0].mxu0
    %5474 = vmatprep.mubr.bf16.mxu0 %v4156
    %5475 = vmatmul.mubr.bf16.gmra.mrb[0].mxu0 %v4155
    %v5476 = vpop.f32.mrb[0].mxu0
    %v5477 = vadd.f32 0.0, %v5476
    %v5478 = vpop.f32.mrb[0].mxu0
    %v5479 = vpop.f32.mrb[0].mxu0
    %v5480 = vadd.f32 0.0, %v5479
    %v5481 = vpop.f32.mrb[0].mxu0
    %5482 = vmatprep.mubr.bf16.mxu0 %v4162
    %5483 = vmatmul.mubr.bf16.gmra.mrb[0].mxu0 %v4161
    %v5484 = vpop.f32.mrb[0].mxu0
    %v5485 = vadd.f32 0.0, %v5484
    %v5486 = vpop.f32.mrb[0].mxu0
    %v5487 = vpop.f32.mrb[0].mxu0
    %v5488 = vadd.f32 0.0, %v5487
    %v5489 = vpop.f32.mrb[0].mxu0
    %5490 = vmatprep.mubr.bf16.mxu0 %v4168
    %5491 = vmatmul.mubr.bf16.gmra.mrb[0].mxu0 %v4167
    %v5492 = vpop.f32.mrb[0].mxu0
    %v5493 = vadd.f32 0.0, %v5492
    %v5494 = vpop.f32.mrb[0].mxu0
    %v5495 = vpop.f32.mrb[0].mxu0
    %v5496 = vadd.f32 0.0, %v5495
    %v5497 = vpop.f32.mrb[0].mxu0
    %5498 = vmatprep.mubr.bf16.mxu0 %v4174
    %5499 = vmatmul.mubr.bf16.gmra.mrb[0].mxu0 %v4173
    %v5500 = vpop.f32.mrb[0].mxu0
    %v5501 = vadd.f32 0.0, %v5500
    %v5502 = vpop.f32.mrb[0].mxu0
    %v5503 = vpop.f32.mrb[0].mxu0
    %v5504 = vadd.f32 0.0, %v5503
    %v5505 = vpop.f32.mrb[0].mxu0
    %5506 = vmatprep.mubr.bf16.mxu0 %v4180
    %5507 = vmatmul.mubr.bf16.gmra.mrb[0].mxu0 %v4179
    %v5508 = vpop.f32.mrb[0].mxu0
    %v5509 = vadd.f32 0.0, %v5508
    %v5510 = vpop.f32.mrb[0].mxu0
    %v5511 = vpop.f32.mrb[0].mxu0
    %v5512 = vadd.f32 0.0, %v5511
    %v5513 = vpop.f32.mrb[0].mxu0
    %5514 = vmatprep.mubr.bf16.mxu0 %v4186
    %5515 = vmatmul.mubr.bf16.gmra.mrb[0].mxu0 %v4185
    %v5516 = vpop.f32.mrb[0].mxu0
    %v5517 = vadd.f32 0.0, %v5516
    %v5518 = vpop.f32.mrb[0].mxu0
    %v5519 = vpop.f32.mrb[0].mxu0
    %v5520 = vadd.f32 0.0, %v5519
    %v5521 = vpop.f32.mrb[0].mxu0
    %5522 = vmatprep.mubr.bf16.mxu0 %v4192
    %5523 = vmatmul.mubr.bf16.gmra.mrb[0].mxu0 %v4191
    %v5524 = vpop.f32.mrb[0].mxu0
    %v5525 = vadd.f32 0.0, %v5524
    %v5526 = vpop.f32.mrb[0].mxu0
    %v5527 = vpop.f32.mrb[0].mxu0
    %v5528 = vadd.f32 0.0, %v5527
    %v5529 = vpop.f32.mrb[0].mxu0
    %5530 = vdwg.mxu0
    %5531 = vmatprep.subr.bf16.mxu0 0
    %5532 = vmatpush1.bf16.msra.mxu0 %v1740
    %5533 = vmatprep.subr.bf16.mxu0 0
    %5534 = vmatpush1.bf16.msra.mxu0 %v1741
    %5535 = vmatprep.subr.bf16.mxu0 0
    %5536 = vmatpush1.bf16.msra.mxu0 %v1742
    %5537 = vmatprep.subr.bf16.mxu0 0
    %5538 = vmatpush1.bf16.msra.mxu0 %v1743
    %5539 = vmatprep.subr.bf16.mxu0 0
    %5540 = vmatpush1.bf16.msra.mxu0 %v1744
    %5541 = vmatprep.subr.bf16.mxu0 0
    %5542 = vmatpush1.bf16.msra.mxu0 %v1745
    %5543 = vmatprep.subr.bf16.mxu0 0
    %5544 = vmatpush1.bf16.msra.mxu0 %v1746
    %5545 = vmatprep.subr.bf16.mxu0 0
    %5546 = vmatpush1.bf16.msra.mxu0 %v1747
    %5547 = vmatprep.subr.bf16.mxu0 0
    %5548 = vmatpush1.bf16.msra.mxu0 %v1748
    %5549 = vmatprep.subr.bf16.mxu0 0
    %5550 = vmatpush1.bf16.msra.mxu0 %v1749
    %5551 = vmatprep.subr.bf16.mxu0 0
    %5552 = vmatpush1.bf16.msra.mxu0 %v1750
    %5553 = vmatprep.subr.bf16.mxu0 0
    %5554 = vmatpush1.bf16.msra.mxu0 %v1751
    %5555 = vmatprep.subr.bf16.mxu0 0
    %5556 = vmatpush1.bf16.msra.mxu0 %v1752
    %5557 = vmatprep.subr.bf16.mxu0 0
    %5558 = vmatpush1.bf16.msra.mxu0 %v1753
    %5559 = vmatprep.subr.bf16.mxu0 0
    %5560 = vmatpush1.bf16.msra.mxu0 %v1754
    %5561 = vmatprep.subr.bf16.mxu0 0
    %5562 = vmatpush1.bf16.msra.mxu0 %v1755
    %5563 = vmatprep.mubr.bf16.mxu0 %v3714
    %5564 = vmatmul.mubr.bf16.gmra.mrb[0].mxu0 %v3713
    %v5565 = vpop.f32.mrb[0].mxu0
    %v5566 = vadd.f32 %v4885, %v5565
    %v5567 = vpop.f32.mrb[0].mxu0
    %v5568 = vpop.f32.mrb[0].mxu0
    %v5569 = vadd.f32 %v4888, %v5568
    %v5570 = vpop.f32.mrb[0].mxu0
    %5571 = vmatprep.mubr.bf16.mxu0 %v3720
    %5572 = vmatmul.mubr.bf16.gmra.mrb[0].mxu0 %v3719
    %v5573 = vpop.f32.mrb[0].mxu0
    %v5574 = vadd.f32 %v4893, %v5573
    %v5575 = vpop.f32.mrb[0].mxu0
    %v5576 = vpop.f32.mrb[0].mxu0
    %v5577 = vadd.f32 %v4896, %v5576
    %v5578 = vpop.f32.mrb[0].mxu0
    %5579 = vmatprep.mubr.bf16.mxu0 %v3726
    %5580 = vmatmul.mubr.bf16.gmra.mrb[0].mxu0 %v3725
    %v5581 = vpop.f32.mrb[0].mxu0
    %v5582 = vadd.f32 %v4901, %v5581
    %v5583 = vpop.f32.mrb[0].mxu0
    %v5584 = vpop.f32.mrb[0].mxu0
    %v5585 = vadd.f32 %v4904, %v5584
    %v5586 = vpop.f32.mrb[0].mxu0
    %5587 = vmatprep.mubr.bf16.mxu0 %v3732
    %5588 = vmatmul.mubr.bf16.gmra.mrb[0].mxu0 %v3731
    %v5589 = vpop.f32.mrb[0].mxu0
    %v5590 = vadd.f32 %v4909, %v5589
    %v5591 = vpop.f32.mrb[0].mxu0
    %v5592 = vpop.f32.mrb[0].mxu0
    %v5593 = vadd.f32 %v4912, %v5592
    %v5594 = vpop.f32.mrb[0].mxu0
    %5595 = vmatprep.mubr.bf16.mxu0 %v3738
    %5596 = vmatmul.mubr.bf16.gmra.mrb[0].mxu0 %v3737
    %v5597 = vpop.f32.mrb[0].mxu0
    %v5598 = vadd.f32 %v4917, %v5597
    %v5599 = vpop.f32.mrb[0].mxu0
    %v5600 = vpop.f32.mrb[0].mxu0
    %v5601 = vadd.f32 %v4920, %v5600
    %v5602 = vpop.f32.mrb[0].mxu0
    %5603 = vmatprep.mubr.bf16.mxu0 %v3744
    %5604 = vmatmul.mubr.bf16.gmra.mrb[0].mxu0 %v3743
    %v5605 = vpop.f32.mrb[0].mxu0
    %v5606 = vadd.f32 %v4925, %v5605
    %v5607 = vpop.f32.mrb[0].mxu0
    %v5608 = vpop.f32.mrb[0].mxu0
    %v5609 = vadd.f32 %v4928, %v5608
    %v5610 = vpop.f32.mrb[0].mxu0
    %5611 = vmatprep.mubr.bf16.mxu0 %v3750
    %5612 = vmatmul.mubr.bf16.gmra.mrb[0].mxu0 %v3749
    %v5613 = vpop.f32.mrb[0].mxu0
    %v5614 = vadd.f32 %v4933, %v5613
    %v5615 = vpop.f32.mrb[0].mxu0
    %v5616 = vpop.f32.mrb[0].mxu0
    %v5617 = vadd.f32 %v4936, %v5616
    %v5618 = vpop.f32.mrb[0].mxu0
    %5619 = vmatprep.mubr.bf16.mxu0 %v3756
    %5620 = vmatmul.mubr.bf16.gmra.mrb[0].mxu0 %v3755
    %v5621 = vpop.f32.mrb[0].mxu0
    %v5622 = vadd.f32 %v4941, %v5621
    %v5623 = vpop.f32.mrb[0].mxu0
    %v5624 = vpop.f32.mrb[0].mxu0
    %v5625 = vadd.f32 %v4944, %v5624
    %v5626 = vpop.f32.mrb[0].mxu0
    %5627 = vmatprep.mubr.bf16.mxu0 %v3762
    %5628 = vmatmul.mubr.bf16.gmra.mrb[0].mxu0 %v3761
    %v5629 = vpop.f32.mrb[0].mxu0
    %v5630 = vadd.f32 %v4949, %v5629
    %v5631 = vpop.f32.mrb[0].mxu0
    %v5632 = vpop.f32.mrb[0].mxu0
    %v5633 = vadd.f32 %v4952, %v5632
    %v5634 = vpop.f32.mrb[0].mxu0
    %5635 = vmatprep.mubr.bf16.mxu0 %v3768
    %5636 = vmatmul.mubr.bf16.gmra.mrb[0].mxu0 %v3767
    %v5637 = vpop.f32.mrb[0].mxu0
    %v5638 = vadd.f32 %v4957, %v5637
    %v5639 = vpop.f32.mrb[0].mxu0
    %v5640 = vpop.f32.mrb[0].mxu0
    %v5641 = vadd.f32 %v4960, %v5640
    %v5642 = vpop.f32.mrb[0].mxu0
    %5643 = vmatprep.mubr.bf16.mxu0 %v3774
    %5644 = vmatmul.mubr.bf16.gmra.mrb[0].mxu0 %v3773
    %v5645 = vpop.f32.mrb[0].mxu0
    %v5646 = vadd.f32 %v4965, %v5645
    %v5647 = vpop.f32.mrb[0].mxu0
    %v5648 = vpop.f32.mrb[0].mxu0
    %v5649 = vadd.f32 %v4968, %v5648
    %v5650 = vpop.f32.mrb[0].mxu0
    %5651 = vmatprep.mubr.bf16.mxu0 %v3780
    %5652 = vmatmul.mubr.bf16.gmra.mrb[0].mxu0 %v3779
    %v5653 = vpop.f32.mrb[0].mxu0
    %v5654 = vadd.f32 %v4973, %v5653
    %v5655 = vpop.f32.mrb[0].mxu0
    %v5656 = vpop.f32.mrb[0].mxu0
    %v5657 = vadd.f32 %v4976, %v5656
    %v5658 = vpop.f32.mrb[0].mxu0
    %5659 = vmatprep.mubr.bf16.mxu0 %v3786
    %5660 = vmatmul.mubr.bf16.gmra.mrb[0].mxu0 %v3785
    %v5661 = vpop.f32.mrb[0].mxu0
    %v5662 = vadd.f32 %v4981, %v5661
    %v5663 = vpop.f32.mrb[0].mxu0
    %v5664 = vpop.f32.mrb[0].mxu0
    %v5665 = vadd.f32 %v4984, %v5664
    %v5666 = vpop.f32.mrb[0].mxu0
    %5667 = vmatprep.mubr.bf16.mxu0 %v3792
    %5668 = vmatmul.mubr.bf16.gmra.mrb[0].mxu0 %v3791
    %v5669 = vpop.f32.mrb[0].mxu0
    %v5670 = vadd.f32 %v4989, %v5669
    %v5671 = vpop.f32.mrb[0].mxu0
    %v5672 = vpop.f32.mrb[0].mxu0
    %v5673 = vadd.f32 %v4992, %v5672
    %v5674 = vpop.f32.mrb[0].mxu0
    %5675 = vmatprep.mubr.bf16.mxu0 %v3798
    %5676 = vmatmul.mubr.bf16.gmra.mrb[0].mxu0 %v3797
    %v5677 = vpop.f32.mrb[0].mxu0
    %v5678 = vadd.f32 %v4997, %v5677
    %v5679 = vpop.f32.mrb[0].mxu0
    %v5680 = vpop.f32.mrb[0].mxu0
    %v5681 = vadd.f32 %v5000, %v5680
    %v5682 = vpop.f32.mrb[0].mxu0
    %5683 = vmatprep.mubr.bf16.mxu0 %v3804
    %5684 = vmatmul.mubr.bf16.gmra.mrb[0].mxu0 %v3803
    %v5685 = vpop.f32.mrb[0].mxu0
    %v5686 = vadd.f32 %v5005, %v5685
    %v5687 = vpop.f32.mrb[0].mxu0
    %v5688 = vpop.f32.mrb[0].mxu0
    %v5689 = vadd.f32 %v5008, %v5688
    %v5690 = vpop.f32.mrb[0].mxu0
    %5691 = vmatprep.mubr.bf16.mxu0 %v3810
    %5692 = vmatmul.mubr.bf16.gmra.mrb[0].mxu0 %v3809
    %v5693 = vpop.f32.mrb[0].mxu0
    %v5694 = vadd.f32 %v5013, %v5693
    %v5695 = vpop.f32.mrb[0].mxu0
    %v5696 = vpop.f32.mrb[0].mxu0
    %v5697 = vadd.f32 %v5016, %v5696
    %v5698 = vpop.f32.mrb[0].mxu0
    %5699 = vmatprep.mubr.bf16.mxu0 %v3816
    %5700 = vmatmul.mubr.bf16.gmra.mrb[0].mxu0 %v3815
    %v5701 = vpop.f32.mrb[0].mxu0
    %v5702 = vadd.f32 %v5021, %v5701
    %v5703 = vpop.f32.mrb[0].mxu0
    %v5704 = vpop.f32.mrb[0].mxu0
    %v5705 = vadd.f32 %v5024, %v5704
    %v5706 = vpop.f32.mrb[0].mxu0
    %5707 = vmatprep.mubr.bf16.mxu0 %v3822
    %5708 = vmatmul.mubr.bf16.gmra.mrb[0].mxu0 %v3821
    %v5709 = vpop.f32.mrb[0].mxu0
    %v5710 = vadd.f32 %v5029, %v5709
    %v5711 = vpop.f32.mrb[0].mxu0
    %v5712 = vpop.f32.mrb[0].mxu0
    %v5713 = vadd.f32 %v5032, %v5712
    %v5714 = vpop.f32.mrb[0].mxu0
    %5715 = vmatprep.mubr.bf16.mxu0 %v3828
    %5716 = vmatmul.mubr.bf16.gmra.mrb[0].mxu0 %v3827
    %v5717 = vpop.f32.mrb[0].mxu0
    %v5718 = vadd.f32 %v5037, %v5717
    %v5719 = vpop.f32.mrb[0].mxu0
    %v5720 = vpop.f32.mrb[0].mxu0
    %v5721 = vadd.f32 %v5040, %v5720
    %v5722 = vpop.f32.mrb[0].mxu0
    %5723 = vmatprep.mubr.bf16.mxu0 %v3834
    %5724 = vmatmul.mubr.bf16.gmra.mrb[0].mxu0 %v3833
    %v5725 = vpop.f32.mrb[0].mxu0
    %v5726 = vadd.f32 %v5045, %v5725
    %v5727 = vpop.f32.mrb[0].mxu0
    %v5728 = vpop.f32.mrb[0].mxu0
    %v5729 = vadd.f32 %v5048, %v5728
    %v5730 = vpop.f32.mrb[0].mxu0
    %5731 = vmatprep.mubr.bf16.mxu0 %v3840
    %5732 = vmatmul.mubr.bf16.gmra.mrb[0].mxu0 %v3839
    %v5733 = vpop.f32.mrb[0].mxu0
    %v5734 = vadd.f32 %v5053, %v5733
    %v5735 = vpop.f32.mrb[0].mxu0
    %v5736 = vpop.f32.mrb[0].mxu0
    %v5737 = vadd.f32 %v5056, %v5736
    %v5738 = vpop.f32.mrb[0].mxu0
    %5739 = vmatprep.mubr.bf16.mxu0 %v3846
    %5740 = vmatmul.mubr.bf16.gmra.mrb[0].mxu0 %v3845
    %v5741 = vpop.f32.mrb[0].mxu0
    %v5742 = vadd.f32 %v5061, %v5741
    %v5743 = vpop.f32.mrb[0].mxu0
    %v5744 = vpop.f32.mrb[0].mxu0
    %v5745 = vadd.f32 %v5064, %v5744
    %v5746 = vpop.f32.mrb[0].mxu0
    %5747 = vmatprep.mubr.bf16.mxu0 %v3852
    %5748 = vmatmul.mubr.bf16.gmra.mrb[0].mxu0 %v3851
    %v5749 = vpop.f32.mrb[0].mxu0
    %v5750 = vadd.f32 %v5069, %v5749
    %v5751 = vpop.f32.mrb[0].mxu0
    %v5752 = vpop.f32.mrb[0].mxu0
    %v5753 = vadd.f32 %v5072, %v5752
    %v5754 = vpop.f32.mrb[0].mxu0
    %5755 = vmatprep.mubr.bf16.mxu0 %v3858
    %5756 = vmatmul.mubr.bf16.gmra.mrb[0].mxu0 %v3857
    %v5757 = vpop.f32.mrb[0].mxu0
    %v5758 = vadd.f32 %v5077, %v5757
    %v5759 = vpop.f32.mrb[0].mxu0
    %v5760 = vpop.f32.mrb[0].mxu0
    %v5761 = vadd.f32 %v5080, %v5760
    %v5762 = vpop.f32.mrb[0].mxu0
    %5763 = vmatprep.mubr.bf16.mxu0 %v3864
    %5764 = vmatmul.mubr.bf16.gmra.mrb[0].mxu0 %v3863
    %v5765 = vpop.f32.mrb[0].mxu0
    %v5766 = vadd.f32 %v5085, %v5765
    %v5767 = vpop.f32.mrb[0].mxu0
    %v5768 = vpop.f32.mrb[0].mxu0
    %v5769 = vadd.f32 %v5088, %v5768
    %v5770 = vpop.f32.mrb[0].mxu0
    %5771 = vmatprep.mubr.bf16.mxu0 %v3870
    %5772 = vmatmul.mubr.bf16.gmra.mrb[0].mxu0 %v3869
    %v5773 = vpop.f32.mrb[0].mxu0
    %v5774 = vadd.f32 %v5093, %v5773
    %v5775 = vpop.f32.mrb[0].mxu0
    %v5776 = vpop.f32.mrb[0].mxu0
    %v5777 = vadd.f32 %v5096, %v5776
    %v5778 = vpop.f32.mrb[0].mxu0
    %5779 = vmatprep.mubr.bf16.mxu0 %v3876
    %5780 = vmatmul.mubr.bf16.gmra.mrb[0].mxu0 %v3875
    %v5781 = vpop.f32.mrb[0].mxu0
    %v5782 = vadd.f32 %v5101, %v5781
    %v5783 = vpop.f32.mrb[0].mxu0
    %v5784 = vpop.f32.mrb[0].mxu0
    %v5785 = vadd.f32 %v5104, %v5784
    %v5786 = vpop.f32.mrb[0].mxu0
    %5787 = vmatprep.mubr.bf16.mxu0 %v3882
    %5788 = vmatmul.mubr.bf16.gmra.mrb[0].mxu0 %v3881
    %v5789 = vpop.f32.mrb[0].mxu0
    %v5790 = vadd.f32 %v5109, %v5789
    %v5791 = vpop.f32.mrb[0].mxu0
    %v5792 = vpop.f32.mrb[0].mxu0
    %v5793 = vadd.f32 %v5112, %v5792
    %v5794 = vpop.f32.mrb[0].mxu0
    %5795 = vmatprep.mubr.bf16.mxu0 %v3888
    %5796 = vmatmul.mubr.bf16.gmra.mrb[0].mxu0 %v3887
    %v5797 = vpop.f32.mrb[0].mxu0
    %v5798 = vadd.f32 %v5117, %v5797
    %v5799 = vpop.f32.mrb[0].mxu0
    %v5800 = vpop.f32.mrb[0].mxu0
    %v5801 = vadd.f32 %v5120, %v5800
    %v5802 = vpop.f32.mrb[0].mxu0
    %5803 = vmatprep.mubr.bf16.mxu0 %v3894
    %5804 = vmatmul.mubr.bf16.gmra.mrb[0].mxu0 %v3893
    %v5805 = vpop.f32.mrb[0].mxu0
    %v5806 = vadd.f32 %v5125, %v5805
    %v5807 = vpop.f32.mrb[0].mxu0
    %v5808 = vpop.f32.mrb[0].mxu0
    %v5809 = vadd.f32 %v5128, %v5808
    %v5810 = vpop.f32.mrb[0].mxu0
    %5811 = vmatprep.mubr.bf16.mxu0 %v3900
    %5812 = vmatmul.mubr.bf16.gmra.mrb[0].mxu0 %v3899
    %v5813 = vpop.f32.mrb[0].mxu0
    %v5814 = vadd.f32 %v5133, %v5813
    %v5815 = vpop.f32.mrb[0].mxu0
    %v5816 = vpop.f32.mrb[0].mxu0
    %v5817 = vadd.f32 %v5136, %v5816
    %v5818 = vpop.f32.mrb[0].mxu0
    %5819 = vmatprep.mubr.bf16.mxu0 %v3906
    %5820 = vmatmul.mubr.bf16.gmra.mrb[0].mxu0 %v3905
    %v5821 = vpop.f32.mrb[0].mxu0
    %v5822 = vadd.f32 %v5141, %v5821
    %v5823 = vpop.f32.mrb[0].mxu0
    %v5824 = vpop.f32.mrb[0].mxu0
    %v5825 = vadd.f32 %v5144, %v5824
    %v5826 = vpop.f32.mrb[0].mxu0
    %5827 = vmatprep.mubr.bf16.mxu0 %v3912
    %5828 = vmatmul.mubr.bf16.gmra.mrb[0].mxu0 %v3911
    %v5829 = vpop.f32.mrb[0].mxu0
    %v5830 = vadd.f32 %v5149, %v5829
    %v5831 = vpop.f32.mrb[0].mxu0
    %v5832 = vpop.f32.mrb[0].mxu0
    %v5833 = vadd.f32 %v5152, %v5832
    %v5834 = vpop.f32.mrb[0].mxu0
    %5835 = vmatprep.mubr.bf16.mxu0 %v3918
    %5836 = vmatmul.mubr.bf16.gmra.mrb[0].mxu0 %v3917
    %v5837 = vpop.f32.mrb[0].mxu0
    %v5838 = vadd.f32 %v5157, %v5837
    %v5839 = vpop.f32.mrb[0].mxu0
    %v5840 = vpop.f32.mrb[0].mxu0
    %v5841 = vadd.f32 %v5160, %v5840
    %v5842 = vpop.f32.mrb[0].mxu0
    %5843 = vmatprep.mubr.bf16.mxu0 %v3924
    %5844 = vmatmul.mubr.bf16.gmra.mrb[0].mxu0 %v3923
    %v5845 = vpop.f32.mrb[0].mxu0
    %v5846 = vadd.f32 %v5165, %v5845
    %v5847 = vpop.f32.mrb[0].mxu0
    %v5848 = vpop.f32.mrb[0].mxu0
    %v5849 = vadd.f32 %v5168, %v5848
    %v5850 = vpop.f32.mrb[0].mxu0
    %5851 = vmatprep.mubr.bf16.mxu0 %v3930
    %5852 = vmatmul.mubr.bf16.gmra.mrb[0].mxu0 %v3929
    %v5853 = vpop.f32.mrb[0].mxu0
    %v5854 = vadd.f32 %v5173, %v5853
    %v5855 = vpop.f32.mrb[0].mxu0
    %v5856 = vpop.f32.mrb[0].mxu0
    %v5857 = vadd.f32 %v5176, %v5856
    %v5858 = vpop.f32.mrb[0].mxu0
    %5859 = vmatprep.mubr.bf16.mxu0 %v3936
    %5860 = vmatmul.mubr.bf16.gmra.mrb[0].mxu0 %v3935
    %v5861 = vpop.f32.mrb[0].mxu0
    %v5862 = vadd.f32 %v5181, %v5861
    %v5863 = vpop.f32.mrb[0].mxu0
    %v5864 = vpop.f32.mrb[0].mxu0
    %v5865 = vadd.f32 %v5184, %v5864
    %v5866 = vpop.f32.mrb[0].mxu0
    %5867 = vmatprep.mubr.bf16.mxu0 %v3942
    %5868 = vmatmul.mubr.bf16.gmra.mrb[0].mxu0 %v3941
    %v5869 = vpop.f32.mrb[0].mxu0
    %v5870 = vadd.f32 %v5189, %v5869
    %v5871 = vpop.f32.mrb[0].mxu0
    %v5872 = vpop.f32.mrb[0].mxu0
    %v5873 = vadd.f32 %v5192, %v5872
    %v5874 = vpop.f32.mrb[0].mxu0
    %5875 = vmatprep.mubr.bf16.mxu0 %v3948
    %5876 = vmatmul.mubr.bf16.gmra.mrb[0].mxu0 %v3947
    %v5877 = vpop.f32.mrb[0].mxu0
    %v5878 = vadd.f32 %v5197, %v5877
    %v5879 = vpop.f32.mrb[0].mxu0
    %v5880 = vpop.f32.mrb[0].mxu0
    %v5881 = vadd.f32 %v5200, %v5880
    %v5882 = vpop.f32.mrb[0].mxu0
    %5883 = vmatprep.mubr.bf16.mxu0 %v3954
    %5884 = vmatmul.mubr.bf16.gmra.mrb[0].mxu0 %v3953
    %v5885 = vpop.f32.mrb[0].mxu0
    %v5886 = vadd.f32 %v5205, %v5885
    %v5887 = vpop.f32.mrb[0].mxu0
    %v5888 = vpop.f32.mrb[0].mxu0
    %v5889 = vadd.f32 %v5208, %v5888
    %v5890 = vpop.f32.mrb[0].mxu0
    %5891 = vmatprep.mubr.bf16.mxu0 %v3960
    %5892 = vmatmul.mubr.bf16.gmra.mrb[0].mxu0 %v3959
    %v5893 = vpop.f32.mrb[0].mxu0
    %v5894 = vadd.f32 %v5213, %v5893
    %v5895 = vpop.f32.mrb[0].mxu0
    %v5896 = vpop.f32.mrb[0].mxu0
    %v5897 = vadd.f32 %v5216, %v5896
    %v5898 = vpop.f32.mrb[0].mxu0
    %5899 = vmatprep.mubr.bf16.mxu0 %v3966
    %5900 = vmatmul.mubr.bf16.gmra.mrb[0].mxu0 %v3965
    %v5901 = vpop.f32.mrb[0].mxu0
    %v5902 = vadd.f32 %v5221, %v5901
    %v5903 = vpop.f32.mrb[0].mxu0
    %v5904 = vpop.f32.mrb[0].mxu0
    %v5905 = vadd.f32 %v5224, %v5904
    %v5906 = vpop.f32.mrb[0].mxu0
    %5907 = vmatprep.mubr.bf16.mxu0 %v3972
    %5908 = vmatmul.mubr.bf16.gmra.mrb[0].mxu0 %v3971
    %v5909 = vpop.f32.mrb[0].mxu0
    %v5910 = vadd.f32 %v5229, %v5909
    %v5911 = vpop.f32.mrb[0].mxu0
    %v5912 = vpop.f32.mrb[0].mxu0
    %v5913 = vadd.f32 %v5232, %v5912
    %v5914 = vpop.f32.mrb[0].mxu0
    %5915 = vmatprep.mubr.bf16.mxu0 %v3978
    %5916 = vmatmul.mubr.bf16.gmra.mrb[0].mxu0 %v3977
    %v5917 = vpop.f32.mrb[0].mxu0
    %v5918 = vadd.f32 %v5237, %v5917
    %v5919 = vpop.f32.mrb[0].mxu0
    %v5920 = vpop.f32.mrb[0].mxu0
    %v5921 = vadd.f32 %v5240, %v5920
    %v5922 = vpop.f32.mrb[0].mxu0
    %5923 = vmatprep.mubr.bf16.mxu0 %v3984
    %5924 = vmatmul.mubr.bf16.gmra.mrb[0].mxu0 %v3983
    %v5925 = vpop.f32.mrb[0].mxu0
    %v5926 = vadd.f32 %v5245, %v5925
    %v5927 = vpop.f32.mrb[0].mxu0
    %v5928 = vpop.f32.mrb[0].mxu0
    %v5929 = vadd.f32 %v5248, %v5928
    %v5930 = vpop.f32.mrb[0].mxu0
    %5931 = vmatprep.mubr.bf16.mxu0 %v3990
    %5932 = vmatmul.mubr.bf16.gmra.mrb[0].mxu0 %v3989
    %v5933 = vpop.f32.mrb[0].mxu0
    %v5934 = vadd.f32 %v5253, %v5933
    %v5935 = vpop.f32.mrb[0].mxu0
    %v5936 = vpop.f32.mrb[0].mxu0
    %v5937 = vadd.f32 %v5256, %v5936
    %v5938 = vpop.f32.mrb[0].mxu0
    %5939 = vmatprep.mubr.bf16.mxu0 %v3996
    %5940 = vmatmul.mubr.bf16.gmra.mrb[0].mxu0 %v3995
    %v5941 = vpop.f32.mrb[0].mxu0
    %v5942 = vadd.f32 %v5261, %v5941
    %v5943 = vpop.f32.mrb[0].mxu0
    %v5944 = vpop.f32.mrb[0].mxu0
    %v5945 = vadd.f32 %v5264, %v5944
    %v5946 = vpop.f32.mrb[0].mxu0
    %5947 = vmatprep.mubr.bf16.mxu0 %v4002
    %5948 = vmatmul.mubr.bf16.gmra.mrb[0].mxu0 %v4001
    %v5949 = vpop.f32.mrb[0].mxu0
    %v5950 = vadd.f32 %v5269, %v5949
    %v5951 = vpop.f32.mrb[0].mxu0
    %v5952 = vpop.f32.mrb[0].mxu0
    %v5953 = vadd.f32 %v5272, %v5952
    %v5954 = vpop.f32.mrb[0].mxu0
    %5955 = vmatprep.mubr.bf16.mxu0 %v4008
    %5956 = vmatmul.mubr.bf16.gmra.mrb[0].mxu0 %v4007
    %v5957 = vpop.f32.mrb[0].mxu0
    %v5958 = vadd.f32 %v5277, %v5957
    %v5959 = vpop.f32.mrb[0].mxu0
    %v5960 = vpop.f32.mrb[0].mxu0
    %v5961 = vadd.f32 %v5280, %v5960
    %v5962 = vpop.f32.mrb[0].mxu0
    %5963 = vmatprep.mubr.bf16.mxu0 %v4014
    %5964 = vmatmul.mubr.bf16.gmra.mrb[0].mxu0 %v4013
    %v5965 = vpop.f32.mrb[0].mxu0
    %v5966 = vadd.f32 %v5285, %v5965
    %v5967 = vpop.f32.mrb[0].mxu0
    %v5968 = vpop.f32.mrb[0].mxu0
    %v5969 = vadd.f32 %v5288, %v5968
    %v5970 = vpop.f32.mrb[0].mxu0
    %5971 = vmatprep.mubr.bf16.mxu0 %v4020
    %5972 = vmatmul.mubr.bf16.gmra.mrb[0].mxu0 %v4019
    %v5973 = vpop.f32.mrb[0].mxu0
    %v5974 = vadd.f32 %v5293, %v5973
    %v5975 = vpop.f32.mrb[0].mxu0
    %v5976 = vpop.f32.mrb[0].mxu0
    %v5977 = vadd.f32 %v5296, %v5976
    %v5978 = vpop.f32.mrb[0].mxu0
    %5979 = vmatprep.mubr.bf16.mxu0 %v4026
    %5980 = vmatmul.mubr.bf16.gmra.mrb[0].mxu0 %v4025
    %v5981 = vpop.f32.mrb[0].mxu0
    %v5982 = vadd.f32 %v5301, %v5981
    %v5983 = vpop.f32.mrb[0].mxu0
    %v5984 = vpop.f32.mrb[0].mxu0
    %v5985 = vadd.f32 %v5304, %v5984
    %v5986 = vpop.f32.mrb[0].mxu0
    %5987 = vmatprep.mubr.bf16.mxu0 %v4032
    %5988 = vmatmul.mubr.bf16.gmra.mrb[0].mxu0 %v4031
    %v5989 = vpop.f32.mrb[0].mxu0
    %v5990 = vadd.f32 %v5309, %v5989
    %v5991 = vpop.f32.mrb[0].mxu0
    %v5992 = vpop.f32.mrb[0].mxu0
    %v5993 = vadd.f32 %v5312, %v5992
    %v5994 = vpop.f32.mrb[0].mxu0
    %5995 = vmatprep.mubr.bf16.mxu0 %v4038
    %5996 = vmatmul.mubr.bf16.gmra.mrb[0].mxu0 %v4037
    %v5997 = vpop.f32.mrb[0].mxu0
    %v5998 = vadd.f32 %v5317, %v5997
    %v5999 = vpop.f32.mrb[0].mxu0
    %v6000 = vpop.f32.mrb[0].mxu0
    %v6001 = vadd.f32 %v5320, %v6000
    %v6002 = vpop.f32.mrb[0].mxu0
    %6003 = vmatprep.mubr.bf16.mxu0 %v4044
    %6004 = vmatmul.mubr.bf16.gmra.mrb[0].mxu0 %v4043
    %v6005 = vpop.f32.mrb[0].mxu0
    %v6006 = vadd.f32 %v5325, %v6005
    %v6007 = vpop.f32.mrb[0].mxu0
    %v6008 = vpop.f32.mrb[0].mxu0
    %v6009 = vadd.f32 %v5328, %v6008
    %v6010 = vpop.f32.mrb[0].mxu0
    %6011 = vmatprep.mubr.bf16.mxu0 %v4050
    %6012 = vmatmul.mubr.bf16.gmra.mrb[0].mxu0 %v4049
    %v6013 = vpop.f32.mrb[0].mxu0
    %v6014 = vadd.f32 %v5333, %v6013
    %v6015 = vpop.f32.mrb[0].mxu0
    %v6016 = vpop.f32.mrb[0].mxu0
    %v6017 = vadd.f32 %v5336, %v6016
    %v6018 = vpop.f32.mrb[0].mxu0
    %6019 = vmatprep.mubr.bf16.mxu0 %v4056
    %6020 = vmatmul.mubr.bf16.gmra.mrb[0].mxu0 %v4055
    %v6021 = vpop.f32.mrb[0].mxu0
    %v6022 = vadd.f32 %v5341, %v6021
    %v6023 = vpop.f32.mrb[0].mxu0
    %v6024 = vpop.f32.mrb[0].mxu0
    %v6025 = vadd.f32 %v5344, %v6024
    %v6026 = vpop.f32.mrb[0].mxu0
    %6027 = vmatprep.mubr.bf16.mxu0 %v4062
    %6028 = vmatmul.mubr.bf16.gmra.mrb[0].mxu0 %v4061
    %v6029 = vpop.f32.mrb[0].mxu0
    %v6030 = vadd.f32 %v5349, %v6029
    %v6031 = vpop.f32.mrb[0].mxu0
    %v6032 = vpop.f32.mrb[0].mxu0
    %v6033 = vadd.f32 %v5352, %v6032
    %v6034 = vpop.f32.mrb[0].mxu0
    %6035 = vmatprep.mubr.bf16.mxu0 %v4068
    %6036 = vmatmul.mubr.bf16.gmra.mrb[0].mxu0 %v4067
    %v6037 = vpop.f32.mrb[0].mxu0
    %v6038 = vadd.f32 %v5357, %v6037
    %v6039 = vpop.f32.mrb[0].mxu0
    %v6040 = vpop.f32.mrb[0].mxu0
    %v6041 = vadd.f32 %v5360, %v6040
    %v6042 = vpop.f32.mrb[0].mxu0
    %6043 = vmatprep.mubr.bf16.mxu0 %v4074
    %6044 = vmatmul.mubr.bf16.gmra.mrb[0].mxu0 %v4073
    %v6045 = vpop.f32.mrb[0].mxu0
    %v6046 = vadd.f32 %v5365, %v6045
    %v6047 = vpop.f32.mrb[0].mxu0
    %v6048 = vpop.f32.mrb[0].mxu0
    %v6049 = vadd.f32 %v5368, %v6048
    %v6050 = vpop.f32.mrb[0].mxu0
    %6051 = vmatprep.mubr.bf16.mxu0 %v4080
    %6052 = vmatmul.mubr.bf16.gmra.mrb[0].mxu0 %v4079
    %v6053 = vpop.f32.mrb[0].mxu0
    %v6054 = vadd.f32 %v5373, %v6053
    %v6055 = vpop.f32.mrb[0].mxu0
    %v6056 = vpop.f32.mrb[0].mxu0
    %v6057 = vadd.f32 %v5376, %v6056
    %v6058 = vpop.f32.mrb[0].mxu0
    %6059 = vmatprep.mubr.bf16.mxu0 %v4086
    %6060 = vmatmul.mubr.bf16.gmra.mrb[0].mxu0 %v4085
    %v6061 = vpop.f32.mrb[0].mxu0
    %v6062 = vadd.f32 %v5381, %v6061
    %v6063 = vpop.f32.mrb[0].mxu0
    %v6064 = vpop.f32.mrb[0].mxu0
    %v6065 = vadd.f32 %v5384, %v6064
    %v6066 = vpop.f32.mrb[0].mxu0
    %6067 = vmatprep.mubr.bf16.mxu0 %v4092
    %6068 = vmatmul.mubr.bf16.gmra.mrb[0].mxu0 %v4091
    %v6069 = vpop.f32.mrb[0].mxu0
    %v6070 = vadd.f32 %v5389, %v6069
    %v6071 = vpop.f32.mrb[0].mxu0
    %v6072 = vpop.f32.mrb[0].mxu0
    %v6073 = vadd.f32 %v5392, %v6072
    %v6074 = vpop.f32.mrb[0].mxu0
    %6075 = vmatprep.mubr.bf16.mxu0 %v4098
    %6076 = vmatmul.mubr.bf16.gmra.mrb[0].mxu0 %v4097
    %v6077 = vpop.f32.mrb[0].mxu0
    %v6078 = vadd.f32 %v5397, %v6077
    %v6079 = vpop.f32.mrb[0].mxu0
    %v6080 = vpop.f32.mrb[0].mxu0
    %v6081 = vadd.f32 %v5400, %v6080
    %v6082 = vpop.f32.mrb[0].mxu0
    %6083 = vmatprep.mubr.bf16.mxu0 %v4104
    %6084 = vmatmul.mubr.bf16.gmra.mrb[0].mxu0 %v4103
    %v6085 = vpop.f32.mrb[0].mxu0
    %v6086 = vadd.f32 %v5405, %v6085
    %v6087 = vpop.f32.mrb[0].mxu0
    %v6088 = vpop.f32.mrb[0].mxu0
    %v6089 = vadd.f32 %v5408, %v6088
    %v6090 = vpop.f32.mrb[0].mxu0
    %6091 = vmatprep.mubr.bf16.mxu0 %v4110
    %6092 = vmatmul.mubr.bf16.gmra.mrb[0].mxu0 %v4109
    %v6093 = vpop.f32.mrb[0].mxu0
    %v6094 = vadd.f32 %v5413, %v6093
    %v6095 = vpop.f32.mrb[0].mxu0
    %v6096 = vpop.f32.mrb[0].mxu0
    %v6097 = vadd.f32 %v5416, %v6096
    %v6098 = vpop.f32.mrb[0].mxu0
    %6099 = vmatprep.mubr.bf16.mxu0 %v4116
    %6100 = vmatmul.mubr.bf16.gmra.mrb[0].mxu0 %v4115
    %v6101 = vpop.f32.mrb[0].mxu0
    %v6102 = vadd.f32 %v5421, %v6101
    %v6103 = vpop.f32.mrb[0].mxu0
    %v6104 = vpop.f32.mrb[0].mxu0
    %v6105 = vadd.f32 %v5424, %v6104
    %v6106 = vpop.f32.mrb[0].mxu0
    %6107 = vmatprep.mubr.bf16.mxu0 %v4122
    %6108 = vmatmul.mubr.bf16.gmra.mrb[0].mxu0 %v4121
    %v6109 = vpop.f32.mrb[0].mxu0
    %v6110 = vadd.f32 %v5429, %v6109
    %v6111 = vpop.f32.mrb[0].mxu0
    %v6112 = vpop.f32.mrb[0].mxu0
    %v6113 = vadd.f32 %v5432, %v6112
    %v6114 = vpop.f32.mrb[0].mxu0
    %6115 = vmatprep.mubr.bf16.mxu0 %v4128
    %6116 = vmatmul.mubr.bf16.gmra.mrb[0].mxu0 %v4127
    %v6117 = vpop.f32.mrb[0].mxu0
    %v6118 = vadd.f32 %v5437, %v6117
    %v6119 = vpop.f32.mrb[0].mxu0
    %v6120 = vpop.f32.mrb[0].mxu0
    %v6121 = vadd.f32 %v5440, %v6120
    %v6122 = vpop.f32.mrb[0].mxu0
    %6123 = vmatprep.mubr.bf16.mxu0 %v4134
    %6124 = vmatmul.mubr.bf16.gmra.mrb[0].mxu0 %v4133
    %v6125 = vpop.f32.mrb[0].mxu0
    %v6126 = vadd.f32 %v5445, %v6125
    %v6127 = vpop.f32.mrb[0].mxu0
    %v6128 = vpop.f32.mrb[0].mxu0
    %v6129 = vadd.f32 %v5448, %v6128
    %v6130 = vpop.f32.mrb[0].mxu0
    %6131 = vmatprep.mubr.bf16.mxu0 %v4140
    %6132 = vmatmul.mubr.bf16.gmra.mrb[0].mxu0 %v4139
    %v6133 = vpop.f32.mrb[0].mxu0
    %v6134 = vadd.f32 %v5453, %v6133
    %v6135 = vpop.f32.mrb[0].mxu0
    %v6136 = vpop.f32.mrb[0].mxu0
    %v6137 = vadd.f32 %v5456, %v6136
    %v6138 = vpop.f32.mrb[0].mxu0
    %6139 = vmatprep.mubr.bf16.mxu0 %v4146
    %6140 = vmatmul.mubr.bf16.gmra.mrb[0].mxu0 %v4145
    %v6141 = vpop.f32.mrb[0].mxu0
    %v6142 = vadd.f32 %v5461, %v6141
    %v6143 = vpop.f32.mrb[0].mxu0
    %v6144 = vpop.f32.mrb[0].mxu0
    %v6145 = vadd.f32 %v5464, %v6144
    %v6146 = vpop.f32.mrb[0].mxu0
    %6147 = vmatprep.mubr.bf16.mxu0 %v4152
    %6148 = vmatmul.mubr.bf16.gmra.mrb[0].mxu0 %v4151
    %v6149 = vpop.f32.mrb[0].mxu0
    %v6150 = vadd.f32 %v5469, %v6149
    %v6151 = vpop.f32.mrb[0].mxu0
    %v6152 = vpop.f32.mrb[0].mxu0
    %v6153 = vadd.f32 %v5472, %v6152
    %v6154 = vpop.f32.mrb[0].mxu0
    %6155 = vmatprep.mubr.bf16.mxu0 %v4158
    %6156 = vmatmul.mubr.bf16.gmra.mrb[0].mxu0 %v4157
    %v6157 = vpop.f32.mrb[0].mxu0
    %v6158 = vadd.f32 %v5477, %v6157
    %v6159 = vpop.f32.mrb[0].mxu0
    %v6160 = vpop.f32.mrb[0].mxu0
    %v6161 = vadd.f32 %v5480, %v6160
    %v6162 = vpop.f32.mrb[0].mxu0
    %6163 = vmatprep.mubr.bf16.mxu0 %v4164
    %6164 = vmatmul.mubr.bf16.gmra.mrb[0].mxu0 %v4163
    %v6165 = vpop.f32.mrb[0].mxu0
    %v6166 = vadd.f32 %v5485, %v6165
    %v6167 = vpop.f32.mrb[0].mxu0
    %v6168 = vpop.f32.mrb[0].mxu0
    %v6169 = vadd.f32 %v5488, %v6168
    %v6170 = vpop.f32.mrb[0].mxu0
    %6171 = vmatprep.mubr.bf16.mxu0 %v4170
    %6172 = vmatmul.mubr.bf16.gmra.mrb[0].mxu0 %v4169
    %v6173 = vpop.f32.mrb[0].mxu0
    %v6174 = vadd.f32 %v5493, %v6173
    %v6175 = vpop.f32.mrb[0].mxu0
    %v6176 = vpop.f32.mrb[0].mxu0
    %v6177 = vadd.f32 %v5496, %v6176
    %v6178 = vpop.f32.mrb[0].mxu0
    %6179 = vmatprep.mubr.bf16.mxu0 %v4176
    %6180 = vmatmul.mubr.bf16.gmra.mrb[0].mxu0 %v4175
    %v6181 = vpop.f32.mrb[0].mxu0
    %v6182 = vadd.f32 %v5501, %v6181
    %v6183 = vpop.f32.mrb[0].mxu0
    %v6184 = vpop.f32.mrb[0].mxu0
    %v6185 = vadd.f32 %v5504, %v6184
    %v6186 = vpop.f32.mrb[0].mxu0
    %6187 = vmatprep.mubr.bf16.mxu0 %v4182
    %6188 = vmatmul.mubr.bf16.gmra.mrb[0].mxu0 %v4181
    %v6189 = vpop.f32.mrb[0].mxu0
    %v6190 = vadd.f32 %v5509, %v6189
    %v6191 = vpop.f32.mrb[0].mxu0
    %v6192 = vpop.f32.mrb[0].mxu0
    %v6193 = vadd.f32 %v5512, %v6192
    %v6194 = vpop.f32.mrb[0].mxu0
    %6195 = vmatprep.mubr.bf16.mxu0 %v4188
    %6196 = vmatmul.mubr.bf16.gmra.mrb[0].mxu0 %v4187
    %v6197 = vpop.f32.mrb[0].mxu0
    %v6198 = vadd.f32 %v5517, %v6197
    %v6199 = vpop.f32.mrb[0].mxu0
    %v6200 = vpop.f32.mrb[0].mxu0
    %v6201 = vadd.f32 %v5520, %v6200
    %v6202 = vpop.f32.mrb[0].mxu0
    %6203 = vmatprep.mubr.bf16.mxu0 %v4194
    %6204 = vmatmul.mubr.bf16.gmra.mrb[0].mxu0 %v4193
    %v6205 = vpop.f32.mrb[0].mxu0
    %v6206 = vadd.f32 %v5525, %v6205
    %v6207 = vpop.f32.mrb[0].mxu0
    %v6208 = vpop.f32.mrb[0].mxu0
    %v6209 = vadd.f32 %v5528, %v6208
    %v6210 = vpop.f32.mrb[0].mxu0
    %6211 = vdwg.mxu0
    %6212 = vmatprep.subr.bf16.mxu0 0
    %6213 = vmatpush1.bf16.msra.mxu0 %v1756
    %6214 = vmatprep.subr.bf16.mxu0 0
    %6215 = vmatpush1.bf16.msra.mxu0 %v1757
    %6216 = vmatprep.subr.bf16.mxu0 0
    %6217 = vmatpush1.bf16.msra.mxu0 %v1758
    %6218 = vmatprep.subr.bf16.mxu0 0
    %6219 = vmatpush1.bf16.msra.mxu0 %v1759
    %6220 = vmatprep.subr.bf16.mxu0 0
    %6221 = vmatpush1.bf16.msra.mxu0 %v1760
    %6222 = vmatprep.subr.bf16.mxu0 0
    %6223 = vmatpush1.bf16.msra.mxu0 %v1761
    %6224 = vmatprep.subr.bf16.mxu0 0
    %6225 = vmatpush1.bf16.msra.mxu0 %v1762
    %6226 = vmatprep.subr.bf16.mxu0 0
    %6227 = vmatpush1.bf16.msra.mxu0 %v1763
    %6228 = vmatprep.subr.bf16.mxu0 0
    %6229 = vmatpush1.bf16.msra.mxu0 %v1764
    %6230 = vmatprep.subr.bf16.mxu0 0
    %6231 = vmatpush1.bf16.msra.mxu0 %v1765
    %6232 = vmatprep.subr.bf16.mxu0 0
    %6233 = vmatpush1.bf16.msra.mxu0 %v4848
    %6234 = vmatprep.subr.bf16.mxu0 0
    %6235 = vmatpush1.bf16.msra.mxu0 0
    %6236 = vmatprep.subr.bf16.mxu0 0
    %6237 = vmatpush1.bf16.msra.mxu0 0
    %6238 = vmatprep.subr.bf16.mxu0 0
    %6239 = vmatpush1.bf16.msra.mxu0 0
    %6240 = vmatprep.subr.bf16.mxu0 0
    %6241 = vmatpush1.bf16.msra.mxu0 0
    %6242 = vmatprep.subr.bf16.mxu0 0
    %6243 = vmatpush1.bf16.msra.mxu0 0
    %6244 = vmatprep.mubr.bf16.mxu0 %v4604
    %6245 = vmatmul.mubr.bf16.gmra.mrb[0].mxu0 %v3715
    %v6246 = vpop.f32.mrb[0].mxu0
    %v6247 = vadd.f32 %v5566, %v6246
    %v6248 = vpop.f32.mrb[0].mxu0
    %v6249 = vpop.f32.mrb[0].mxu0
    %v6250 = vadd.f32 %v5569, %v6249
    %v6251 = vpop.f32.mrb[0].mxu0
    %6252 = vmatprep.mubr.bf16.mxu0 %v4607
    %6253 = vmatmul.mubr.bf16.gmra.mrb[0].mxu0 %v3721
    %v6254 = vpop.f32.mrb[0].mxu0
    %v6255 = vadd.f32 %v5574, %v6254
    %v6256 = vpop.f32.mrb[0].mxu0
    %v6257 = vpop.f32.mrb[0].mxu0
    %v6258 = vadd.f32 %v5577, %v6257
    %v6259 = vpop.f32.mrb[0].mxu0
    %6260 = vmatprep.mubr.bf16.mxu0 %v4610
    %6261 = vmatmul.mubr.bf16.gmra.mrb[0].mxu0 %v3727
    %v6262 = vpop.f32.mrb[0].mxu0
    %v6263 = vadd.f32 %v5582, %v6262
    %v6264 = vpop.f32.mrb[0].mxu0
    %v6265 = vpop.f32.mrb[0].mxu0
    %v6266 = vadd.f32 %v5585, %v6265
    %v6267 = vpop.f32.mrb[0].mxu0
    %6268 = vmatprep.mubr.bf16.mxu0 %v4613
    %6269 = vmatmul.mubr.bf16.gmra.mrb[0].mxu0 %v3733
    %v6270 = vpop.f32.mrb[0].mxu0
    %v6271 = vadd.f32 %v5590, %v6270
    %v6272 = vpop.f32.mrb[0].mxu0
    %v6273 = vpop.f32.mrb[0].mxu0
    %v6274 = vadd.f32 %v5593, %v6273
    %v6275 = vpop.f32.mrb[0].mxu0
    %6276 = vmatprep.mubr.bf16.mxu0 %v4616
    %6277 = vmatmul.mubr.bf16.gmra.mrb[0].mxu0 %v3739
    %v6278 = vpop.f32.mrb[0].mxu0
    %v6279 = vadd.f32 %v5598, %v6278
    %v6280 = vpop.f32.mrb[0].mxu0
    %v6281 = vpop.f32.mrb[0].mxu0
    %v6282 = vadd.f32 %v5601, %v6281
    %v6283 = vpop.f32.mrb[0].mxu0
    %6284 = vmatprep.mubr.bf16.mxu0 %v4619
    %6285 = vmatmul.mubr.bf16.gmra.mrb[0].mxu0 %v3745
    %v6286 = vpop.f32.mrb[0].mxu0
    %v6287 = vadd.f32 %v5606, %v6286
    %v6288 = vpop.f32.mrb[0].mxu0
    %v6289 = vpop.f32.mrb[0].mxu0
    %v6290 = vadd.f32 %v5609, %v6289
    %v6291 = vpop.f32.mrb[0].mxu0
    %6292 = vmatprep.mubr.bf16.mxu0 %v4622
    %6293 = vmatmul.mubr.bf16.gmra.mrb[0].mxu0 %v3751
    %v6294 = vpop.f32.mrb[0].mxu0
    %v6295 = vadd.f32 %v5614, %v6294
    %v6296 = vpop.f32.mrb[0].mxu0
    %v6297 = vpop.f32.mrb[0].mxu0
    %v6298 = vadd.f32 %v5617, %v6297
    %v6299 = vpop.f32.mrb[0].mxu0
    %6300 = vmatprep.mubr.bf16.mxu0 %v4625
    %6301 = vmatmul.mubr.bf16.gmra.mrb[0].mxu0 %v3757
    %v6302 = vpop.f32.mrb[0].mxu0
    %v6303 = vadd.f32 %v5622, %v6302
    %v6304 = vpop.f32.mrb[0].mxu0
    %v6305 = vpop.f32.mrb[0].mxu0
    %v6306 = vadd.f32 %v5625, %v6305
    %v6307 = vpop.f32.mrb[0].mxu0
    %6308 = vmatprep.mubr.bf16.mxu0 %v4628
    %6309 = vmatmul.mubr.bf16.gmra.mrb[0].mxu0 %v3763
    %v6310 = vpop.f32.mrb[0].mxu0
    %v6311 = vadd.f32 %v5630, %v6310
    %v6312 = vpop.f32.mrb[0].mxu0
    %v6313 = vpop.f32.mrb[0].mxu0
    %v6314 = vadd.f32 %v5633, %v6313
    %v6315 = vpop.f32.mrb[0].mxu0
    %6316 = vmatprep.mubr.bf16.mxu0 %v4631
    %6317 = vmatmul.mubr.bf16.gmra.mrb[0].mxu0 %v3769
    %v6318 = vpop.f32.mrb[0].mxu0
    %v6319 = vadd.f32 %v5638, %v6318
    %v6320 = vpop.f32.mrb[0].mxu0
    %v6321 = vpop.f32.mrb[0].mxu0
    %v6322 = vadd.f32 %v5641, %v6321
    %v6323 = vpop.f32.mrb[0].mxu0
    %6324 = vmatprep.mubr.bf16.mxu0 %v4634
    %6325 = vmatmul.mubr.bf16.gmra.mrb[0].mxu0 %v3775
    %v6326 = vpop.f32.mrb[0].mxu0
    %v6327 = vadd.f32 %v5646, %v6326
    %v6328 = vpop.f32.mrb[0].mxu0
    %v6329 = vpop.f32.mrb[0].mxu0
    %v6330 = vadd.f32 %v5649, %v6329
    %v6331 = vpop.f32.mrb[0].mxu0
    %6332 = vmatprep.mubr.bf16.mxu0 %v4637
    %6333 = vmatmul.mubr.bf16.gmra.mrb[0].mxu0 %v3781
    %v6334 = vpop.f32.mrb[0].mxu0
    %v6335 = vadd.f32 %v5654, %v6334
    %v6336 = vpop.f32.mrb[0].mxu0
    %v6337 = vpop.f32.mrb[0].mxu0
    %v6338 = vadd.f32 %v5657, %v6337
    %v6339 = vpop.f32.mrb[0].mxu0
    %6340 = vmatprep.mubr.bf16.mxu0 %v4640
    %6341 = vmatmul.mubr.bf16.gmra.mrb[0].mxu0 %v3787
    %v6342 = vpop.f32.mrb[0].mxu0
    %v6343 = vadd.f32 %v5662, %v6342
    %v6344 = vpop.f32.mrb[0].mxu0
    %v6345 = vpop.f32.mrb[0].mxu0
    %v6346 = vadd.f32 %v5665, %v6345
    %v6347 = vpop.f32.mrb[0].mxu0
    %6348 = vmatprep.mubr.bf16.mxu0 %v4643
    %6349 = vmatmul.mubr.bf16.gmra.mrb[0].mxu0 %v3793
    %v6350 = vpop.f32.mrb[0].mxu0
    %v6351 = vadd.f32 %v5670, %v6350
    %v6352 = vpop.f32.mrb[0].mxu0
    %v6353 = vpop.f32.mrb[0].mxu0
    %v6354 = vadd.f32 %v5673, %v6353
    %v6355 = vpop.f32.mrb[0].mxu0
    %6356 = vmatprep.mubr.bf16.mxu0 %v4646
    %6357 = vmatmul.mubr.bf16.gmra.mrb[0].mxu0 %v3799
    %v6358 = vpop.f32.mrb[0].mxu0
    %v6359 = vadd.f32 %v5678, %v6358
    %v6360 = vpop.f32.mrb[0].mxu0
    %v6361 = vpop.f32.mrb[0].mxu0
    %v6362 = vadd.f32 %v5681, %v6361
    %v6363 = vpop.f32.mrb[0].mxu0
    %6364 = vmatprep.mubr.bf16.mxu0 %v4649
    %6365 = vmatmul.mubr.bf16.gmra.mrb[0].mxu0 %v3805
    %v6366 = vpop.f32.mrb[0].mxu0
    %v6367 = vadd.f32 %v5686, %v6366
    %v6368 = vpop.f32.mrb[0].mxu0
    %v6369 = vpop.f32.mrb[0].mxu0
    %v6370 = vadd.f32 %v5689, %v6369
    %v6371 = vpop.f32.mrb[0].mxu0
    %6372 = vmatprep.mubr.bf16.mxu0 %v4652
    %6373 = vmatmul.mubr.bf16.gmra.mrb[0].mxu0 %v3811
    %v6374 = vpop.f32.mrb[0].mxu0
    %v6375 = vadd.f32 %v5694, %v6374
    %v6376 = vpop.f32.mrb[0].mxu0
    %v6377 = vpop.f32.mrb[0].mxu0
    %v6378 = vadd.f32 %v5697, %v6377
    %v6379 = vpop.f32.mrb[0].mxu0
    %6380 = vmatprep.mubr.bf16.mxu0 %v4655
    %6381 = vmatmul.mubr.bf16.gmra.mrb[0].mxu0 %v3817
    %v6382 = vpop.f32.mrb[0].mxu0
    %v6383 = vadd.f32 %v5702, %v6382
    %v6384 = vpop.f32.mrb[0].mxu0
    %v6385 = vpop.f32.mrb[0].mxu0
    %v6386 = vadd.f32 %v5705, %v6385
    %v6387 = vpop.f32.mrb[0].mxu0
    %6388 = vmatprep.mubr.bf16.mxu0 %v4658
    %6389 = vmatmul.mubr.bf16.gmra.mrb[0].mxu0 %v3823
    %v6390 = vpop.f32.mrb[0].mxu0
    %v6391 = vadd.f32 %v5710, %v6390
    %v6392 = vpop.f32.mrb[0].mxu0
    %v6393 = vpop.f32.mrb[0].mxu0
    %v6394 = vadd.f32 %v5713, %v6393
    %v6395 = vpop.f32.mrb[0].mxu0
    %6396 = vmatprep.mubr.bf16.mxu0 %v4661
    %6397 = vmatmul.mubr.bf16.gmra.mrb[0].mxu0 %v3829
    %v6398 = vpop.f32.mrb[0].mxu0
    %v6399 = vadd.f32 %v5718, %v6398
    %v6400 = vpop.f32.mrb[0].mxu0
    %v6401 = vpop.f32.mrb[0].mxu0
    %v6402 = vadd.f32 %v5721, %v6401
    %v6403 = vpop.f32.mrb[0].mxu0
    %6404 = vmatprep.mubr.bf16.mxu0 %v4664
    %6405 = vmatmul.mubr.bf16.gmra.mrb[0].mxu0 %v3835
    %v6406 = vpop.f32.mrb[0].mxu0
    %v6407 = vadd.f32 %v5726, %v6406
    %v6408 = vpop.f32.mrb[0].mxu0
    %v6409 = vpop.f32.mrb[0].mxu0
    %v6410 = vadd.f32 %v5729, %v6409
    %v6411 = vpop.f32.mrb[0].mxu0
    %6412 = vmatprep.mubr.bf16.mxu0 %v4667
    %6413 = vmatmul.mubr.bf16.gmra.mrb[0].mxu0 %v3841
    %v6414 = vpop.f32.mrb[0].mxu0
    %v6415 = vadd.f32 %v5734, %v6414
    %v6416 = vpop.f32.mrb[0].mxu0
    %v6417 = vpop.f32.mrb[0].mxu0
    %v6418 = vadd.f32 %v5737, %v6417
    %v6419 = vpop.f32.mrb[0].mxu0
    %6420 = vmatprep.mubr.bf16.mxu0 %v4670
    %6421 = vmatmul.mubr.bf16.gmra.mrb[0].mxu0 %v3847
    %v6422 = vpop.f32.mrb[0].mxu0
    %v6423 = vadd.f32 %v5742, %v6422
    %v6424 = vpop.f32.mrb[0].mxu0
    %v6425 = vpop.f32.mrb[0].mxu0
    %v6426 = vadd.f32 %v5745, %v6425
    %v6427 = vpop.f32.mrb[0].mxu0
    %6428 = vmatprep.mubr.bf16.mxu0 %v4673
    %6429 = vmatmul.mubr.bf16.gmra.mrb[0].mxu0 %v3853
    %v6430 = vpop.f32.mrb[0].mxu0
    %v6431 = vadd.f32 %v5750, %v6430
    %v6432 = vpop.f32.mrb[0].mxu0
    %v6433 = vpop.f32.mrb[0].mxu0
    %v6434 = vadd.f32 %v5753, %v6433
    %v6435 = vpop.f32.mrb[0].mxu0
    %6436 = vmatprep.mubr.bf16.mxu0 %v4676
    %6437 = vmatmul.mubr.bf16.gmra.mrb[0].mxu0 %v3859
    %v6438 = vpop.f32.mrb[0].mxu0
    %v6439 = vadd.f32 %v5758, %v6438
    %v6440 = vpop.f32.mrb[0].mxu0
    %v6441 = vpop.f32.mrb[0].mxu0
    %v6442 = vadd.f32 %v5761, %v6441
    %v6443 = vpop.f32.mrb[0].mxu0
    %6444 = vmatprep.mubr.bf16.mxu0 %v4679
    %6445 = vmatmul.mubr.bf16.gmra.mrb[0].mxu0 %v3865
    %v6446 = vpop.f32.mrb[0].mxu0
    %v6447 = vadd.f32 %v5766, %v6446
    %v6448 = vpop.f32.mrb[0].mxu0
    %v6449 = vpop.f32.mrb[0].mxu0
    %v6450 = vadd.f32 %v5769, %v6449
    %v6451 = vpop.f32.mrb[0].mxu0
    %6452 = vmatprep.mubr.bf16.mxu0 %v4682
    %6453 = vmatmul.mubr.bf16.gmra.mrb[0].mxu0 %v3871
    %v6454 = vpop.f32.mrb[0].mxu0
    %v6455 = vadd.f32 %v5774, %v6454
    %v6456 = vpop.f32.mrb[0].mxu0
    %v6457 = vpop.f32.mrb[0].mxu0
    %v6458 = vadd.f32 %v5777, %v6457
    %v6459 = vpop.f32.mrb[0].mxu0
    %6460 = vmatprep.mubr.bf16.mxu0 %v4685
    %6461 = vmatmul.mubr.bf16.gmra.mrb[0].mxu0 %v3877
    %v6462 = vpop.f32.mrb[0].mxu0
    %v6463 = vadd.f32 %v5782, %v6462
    %v6464 = vpop.f32.mrb[0].mxu0
    %v6465 = vpop.f32.mrb[0].mxu0
    %v6466 = vadd.f32 %v5785, %v6465
    %v6467 = vpop.f32.mrb[0].mxu0
    %6468 = vmatprep.mubr.bf16.mxu0 %v4688
    %6469 = vmatmul.mubr.bf16.gmra.mrb[0].mxu0 %v3883
    %v6470 = vpop.f32.mrb[0].mxu0
    %v6471 = vadd.f32 %v5790, %v6470
    %v6472 = vpop.f32.mrb[0].mxu0
    %v6473 = vpop.f32.mrb[0].mxu0
    %v6474 = vadd.f32 %v5793, %v6473
    %v6475 = vpop.f32.mrb[0].mxu0
    %6476 = vmatprep.mubr.bf16.mxu0 %v4691
    %6477 = vmatmul.mubr.bf16.gmra.mrb[0].mxu0 %v3889
    %v6478 = vpop.f32.mrb[0].mxu0
    %v6479 = vadd.f32 %v5798, %v6478
    %v6480 = vpop.f32.mrb[0].mxu0
    %v6481 = vpop.f32.mrb[0].mxu0
    %v6482 = vadd.f32 %v5801, %v6481
    %v6483 = vpop.f32.mrb[0].mxu0
    %6484 = vmatprep.mubr.bf16.mxu0 %v4694
    %6485 = vmatmul.mubr.bf16.gmra.mrb[0].mxu0 %v3895
    %v6486 = vpop.f32.mrb[0].mxu0
    %v6487 = vadd.f32 %v5806, %v6486
    %v6488 = vpop.f32.mrb[0].mxu0
    %v6489 = vpop.f32.mrb[0].mxu0
    %v6490 = vadd.f32 %v5809, %v6489
    %v6491 = vpop.f32.mrb[0].mxu0
    %6492 = vmatprep.mubr.bf16.mxu0 %v4697
    %6493 = vmatmul.mubr.bf16.gmra.mrb[0].mxu0 %v3901
    %v6494 = vpop.f32.mrb[0].mxu0
    %v6495 = vadd.f32 %v5814, %v6494
    %v6496 = vpop.f32.mrb[0].mxu0
    %v6497 = vpop.f32.mrb[0].mxu0
    %v6498 = vadd.f32 %v5817, %v6497
    %v6499 = vpop.f32.mrb[0].mxu0
    %6500 = vmatprep.mubr.bf16.mxu0 %v4700
    %6501 = vmatmul.mubr.bf16.gmra.mrb[0].mxu0 %v3907
    %v6502 = vpop.f32.mrb[0].mxu0
    %v6503 = vadd.f32 %v5822, %v6502
    %v6504 = vpop.f32.mrb[0].mxu0
    %v6505 = vpop.f32.mrb[0].mxu0
    %v6506 = vadd.f32 %v5825, %v6505
    %v6507 = vpop.f32.mrb[0].mxu0
    %6508 = vmatprep.mubr.bf16.mxu0 %v4703
    %6509 = vmatmul.mubr.bf16.gmra.mrb[0].mxu0 %v3913
    %v6510 = vpop.f32.mrb[0].mxu0
    %v6511 = vadd.f32 %v5830, %v6510
    %v6512 = vpop.f32.mrb[0].mxu0
    %v6513 = vpop.f32.mrb[0].mxu0
    %v6514 = vadd.f32 %v5833, %v6513
    %v6515 = vpop.f32.mrb[0].mxu0
    %6516 = vmatprep.mubr.bf16.mxu0 %v4706
    %6517 = vmatmul.mubr.bf16.gmra.mrb[0].mxu0 %v3919
    %v6518 = vpop.f32.mrb[0].mxu0
    %v6519 = vadd.f32 %v5838, %v6518
    %v6520 = vpop.f32.mrb[0].mxu0
    %v6521 = vpop.f32.mrb[0].mxu0
    %v6522 = vadd.f32 %v5841, %v6521
    %v6523 = vpop.f32.mrb[0].mxu0
    %6524 = vmatprep.mubr.bf16.mxu0 %v4709
    %6525 = vmatmul.mubr.bf16.gmra.mrb[0].mxu0 %v3925
    %v6526 = vpop.f32.mrb[0].mxu0
    %v6527 = vadd.f32 %v5846, %v6526
    %v6528 = vpop.f32.mrb[0].mxu0
    %v6529 = vpop.f32.mrb[0].mxu0
    %v6530 = vadd.f32 %v5849, %v6529
    %v6531 = vpop.f32.mrb[0].mxu0
    %6532 = vmatprep.mubr.bf16.mxu0 %v4712
    %6533 = vmatmul.mubr.bf16.gmra.mrb[0].mxu0 %v3931
    %v6534 = vpop.f32.mrb[0].mxu0
    %v6535 = vadd.f32 %v5854, %v6534
    %v6536 = vpop.f32.mrb[0].mxu0
    %v6537 = vpop.f32.mrb[0].mxu0
    %v6538 = vadd.f32 %v5857, %v6537
    %v6539 = vpop.f32.mrb[0].mxu0
    %6540 = vmatprep.mubr.bf16.mxu0 %v4715
    %6541 = vmatmul.mubr.bf16.gmra.mrb[0].mxu0 %v3937
    %v6542 = vpop.f32.mrb[0].mxu0
    %v6543 = vadd.f32 %v5862, %v6542
    %v6544 = vpop.f32.mrb[0].mxu0
    %v6545 = vpop.f32.mrb[0].mxu0
    %v6546 = vadd.f32 %v5865, %v6545
    %v6547 = vpop.f32.mrb[0].mxu0
    %6548 = vmatprep.mubr.bf16.mxu0 %v4718
    %6549 = vmatmul.mubr.bf16.gmra.mrb[0].mxu0 %v3943
    %v6550 = vpop.f32.mrb[0].mxu0
    %v6551 = vadd.f32 %v5870, %v6550
    %v6552 = vpop.f32.mrb[0].mxu0
    %v6553 = vpop.f32.mrb[0].mxu0
    %v6554 = vadd.f32 %v5873, %v6553
    %v6555 = vpop.f32.mrb[0].mxu0
    %6556 = vmatprep.mubr.bf16.mxu0 %v4721
    %6557 = vmatmul.mubr.bf16.gmra.mrb[0].mxu0 %v3949
    %v6558 = vpop.f32.mrb[0].mxu0
    %v6559 = vadd.f32 %v5878, %v6558
    %v6560 = vpop.f32.mrb[0].mxu0
    %v6561 = vpop.f32.mrb[0].mxu0
    %v6562 = vadd.f32 %v5881, %v6561
    %v6563 = vpop.f32.mrb[0].mxu0
    %6564 = vmatprep.mubr.bf16.mxu0 %v4724
    %6565 = vmatmul.mubr.bf16.gmra.mrb[0].mxu0 %v3955
    %v6566 = vpop.f32.mrb[0].mxu0
    %v6567 = vadd.f32 %v5886, %v6566
    %v6568 = vpop.f32.mrb[0].mxu0
    %v6569 = vpop.f32.mrb[0].mxu0
    %v6570 = vadd.f32 %v5889, %v6569
    %v6571 = vpop.f32.mrb[0].mxu0
    %6572 = vmatprep.mubr.bf16.mxu0 %v4727
    %6573 = vmatmul.mubr.bf16.gmra.mrb[0].mxu0 %v3961
    %v6574 = vpop.f32.mrb[0].mxu0
    %v6575 = vadd.f32 %v5894, %v6574
    %v6576 = vpop.f32.mrb[0].mxu0
    %v6577 = vpop.f32.mrb[0].mxu0
    %v6578 = vadd.f32 %v5897, %v6577
    %v6579 = vpop.f32.mrb[0].mxu0
    %6580 = vmatprep.mubr.bf16.mxu0 %v4730
    %6581 = vmatmul.mubr.bf16.gmra.mrb[0].mxu0 %v3967
    %v6582 = vpop.f32.mrb[0].mxu0
    %v6583 = vadd.f32 %v5902, %v6582
    %v6584 = vpop.f32.mrb[0].mxu0
    %v6585 = vpop.f32.mrb[0].mxu0
    %v6586 = vadd.f32 %v5905, %v6585
    %v6587 = vpop.f32.mrb[0].mxu0
    %6588 = vmatprep.mubr.bf16.mxu0 %v4733
    %6589 = vmatmul.mubr.bf16.gmra.mrb[0].mxu0 %v3973
    %v6590 = vpop.f32.mrb[0].mxu0
    %v6591 = vadd.f32 %v5910, %v6590
    %v6592 = vpop.f32.mrb[0].mxu0
    %v6593 = vpop.f32.mrb[0].mxu0
    %v6594 = vadd.f32 %v5913, %v6593
    %v6595 = vpop.f32.mrb[0].mxu0
    %6596 = vmatprep.mubr.bf16.mxu0 %v4736
    %6597 = vmatmul.mubr.bf16.gmra.mrb[0].mxu0 %v3979
    %v6598 = vpop.f32.mrb[0].mxu0
    %v6599 = vadd.f32 %v5918, %v6598
    %v6600 = vpop.f32.mrb[0].mxu0
    %v6601 = vpop.f32.mrb[0].mxu0
    %v6602 = vadd.f32 %v5921, %v6601
    %v6603 = vpop.f32.mrb[0].mxu0
    %6604 = vmatprep.mubr.bf16.mxu0 %v4739
    %6605 = vmatmul.mubr.bf16.gmra.mrb[0].mxu0 %v3985
    %v6606 = vpop.f32.mrb[0].mxu0
    %v6607 = vadd.f32 %v5926, %v6606
    %v6608 = vpop.f32.mrb[0].mxu0
    %v6609 = vpop.f32.mrb[0].mxu0
    %v6610 = vadd.f32 %v5929, %v6609
    %v6611 = vpop.f32.mrb[0].mxu0
    %6612 = vmatprep.mubr.bf16.mxu0 %v4742
    %6613 = vmatmul.mubr.bf16.gmra.mrb[0].mxu0 %v3991
    %v6614 = vpop.f32.mrb[0].mxu0
    %v6615 = vadd.f32 %v5934, %v6614
    %v6616 = vpop.f32.mrb[0].mxu0
    %v6617 = vpop.f32.mrb[0].mxu0
    %v6618 = vadd.f32 %v5937, %v6617
    %v6619 = vpop.f32.mrb[0].mxu0
    %6620 = vmatprep.mubr.bf16.mxu0 %v4745
    %6621 = vmatmul.mubr.bf16.gmra.mrb[0].mxu0 %v3997
    %v6622 = vpop.f32.mrb[0].mxu0
    %v6623 = vadd.f32 %v5942, %v6622
    %v6624 = vpop.f32.mrb[0].mxu0
    %v6625 = vpop.f32.mrb[0].mxu0
    %v6626 = vadd.f32 %v5945, %v6625
    %v6627 = vpop.f32.mrb[0].mxu0
    %6628 = vmatprep.mubr.bf16.mxu0 %v4748
    %6629 = vmatmul.mubr.bf16.gmra.mrb[0].mxu0 %v4003
    %v6630 = vpop.f32.mrb[0].mxu0
    %v6631 = vadd.f32 %v5950, %v6630
    %v6632 = vpop.f32.mrb[0].mxu0
    %v6633 = vpop.f32.mrb[0].mxu0
    %v6634 = vadd.f32 %v5953, %v6633
    %v6635 = vpop.f32.mrb[0].mxu0
    %6636 = vmatprep.mubr.bf16.mxu0 %v4751
    %6637 = vmatmul.mubr.bf16.gmra.mrb[0].mxu0 %v4009
    %v6638 = vpop.f32.mrb[0].mxu0
    %v6639 = vadd.f32 %v5958, %v6638
    %v6640 = vpop.f32.mrb[0].mxu0
    %v6641 = vpop.f32.mrb[0].mxu0
    %v6642 = vadd.f32 %v5961, %v6641
    %v6643 = vpop.f32.mrb[0].mxu0
    %6644 = vmatprep.mubr.bf16.mxu0 %v4754
    %6645 = vmatmul.mubr.bf16.gmra.mrb[0].mxu0 %v4015
    %v6646 = vpop.f32.mrb[0].mxu0
    %v6647 = vadd.f32 %v5966, %v6646
    %v6648 = vpop.f32.mrb[0].mxu0
    %v6649 = vpop.f32.mrb[0].mxu0
    %v6650 = vadd.f32 %v5969, %v6649
    %v6651 = vpop.f32.mrb[0].mxu0
    %6652 = vmatprep.mubr.bf16.mxu0 %v4757
    %6653 = vmatmul.mubr.bf16.gmra.mrb[0].mxu0 %v4021
    %v6654 = vpop.f32.mrb[0].mxu0
    %v6655 = vadd.f32 %v5974, %v6654
    %v6656 = vpop.f32.mrb[0].mxu0
    %v6657 = vpop.f32.mrb[0].mxu0
    %v6658 = vadd.f32 %v5977, %v6657
    %v6659 = vpop.f32.mrb[0].mxu0
    %6660 = vmatprep.mubr.bf16.mxu0 %v4760
    %6661 = vmatmul.mubr.bf16.gmra.mrb[0].mxu0 %v4027
    %v6662 = vpop.f32.mrb[0].mxu0
    %v6663 = vadd.f32 %v5982, %v6662
    %v6664 = vpop.f32.mrb[0].mxu0
    %v6665 = vpop.f32.mrb[0].mxu0
    %v6666 = vadd.f32 %v5985, %v6665
    %v6667 = vpop.f32.mrb[0].mxu0
    %6668 = vmatprep.mubr.bf16.mxu0 %v4763
    %6669 = vmatmul.mubr.bf16.gmra.mrb[0].mxu0 %v4033
    %v6670 = vpop.f32.mrb[0].mxu0
    %v6671 = vadd.f32 %v5990, %v6670
    %v6672 = vpop.f32.mrb[0].mxu0
    %v6673 = vpop.f32.mrb[0].mxu0
    %v6674 = vadd.f32 %v5993, %v6673
    %v6675 = vpop.f32.mrb[0].mxu0
    %6676 = vmatprep.mubr.bf16.mxu0 %v4766
    %6677 = vmatmul.mubr.bf16.gmra.mrb[0].mxu0 %v4039
    %v6678 = vpop.f32.mrb[0].mxu0
    %v6679 = vadd.f32 %v5998, %v6678
    %v6680 = vpop.f32.mrb[0].mxu0
    %v6681 = vpop.f32.mrb[0].mxu0
    %v6682 = vadd.f32 %v6001, %v6681
    %v6683 = vpop.f32.mrb[0].mxu0
    %6684 = vmatprep.mubr.bf16.mxu0 %v4769
    %6685 = vmatmul.mubr.bf16.gmra.mrb[0].mxu0 %v4045
    %v6686 = vpop.f32.mrb[0].mxu0
    %v6687 = vadd.f32 %v6006, %v6686
    %v6688 = vpop.f32.mrb[0].mxu0
    %v6689 = vpop.f32.mrb[0].mxu0
    %v6690 = vadd.f32 %v6009, %v6689
    %v6691 = vpop.f32.mrb[0].mxu0
    %6692 = vmatprep.mubr.bf16.mxu0 %v4772
    %6693 = vmatmul.mubr.bf16.gmra.mrb[0].mxu0 %v4051
    %v6694 = vpop.f32.mrb[0].mxu0
    %v6695 = vadd.f32 %v6014, %v6694
    %v6696 = vpop.f32.mrb[0].mxu0
    %v6697 = vpop.f32.mrb[0].mxu0
    %v6698 = vadd.f32 %v6017, %v6697
    %v6699 = vpop.f32.mrb[0].mxu0
    %6700 = vmatprep.mubr.bf16.mxu0 %v4775
    %6701 = vmatmul.mubr.bf16.gmra.mrb[0].mxu0 %v4057
    %v6702 = vpop.f32.mrb[0].mxu0
    %v6703 = vadd.f32 %v6022, %v6702
    %v6704 = vpop.f32.mrb[0].mxu0
    %v6705 = vpop.f32.mrb[0].mxu0
    %v6706 = vadd.f32 %v6025, %v6705
    %v6707 = vpop.f32.mrb[0].mxu0
    %6708 = vmatprep.mubr.bf16.mxu0 %v4778
    %6709 = vmatmul.mubr.bf16.gmra.mrb[0].mxu0 %v4063
    %v6710 = vpop.f32.mrb[0].mxu0
    %v6711 = vadd.f32 %v6030, %v6710
    %v6712 = vpop.f32.mrb[0].mxu0
    %v6713 = vpop.f32.mrb[0].mxu0
    %v6714 = vadd.f32 %v6033, %v6713
    %v6715 = vpop.f32.mrb[0].mxu0
    %6716 = vmatprep.mubr.bf16.mxu0 %v4781
    %6717 = vmatmul.mubr.bf16.gmra.mrb[0].mxu0 %v4069
    %v6718 = vpop.f32.mrb[0].mxu0
    %v6719 = vadd.f32 %v6038, %v6718
    %v6720 = vpop.f32.mrb[0].mxu0
    %v6721 = vpop.f32.mrb[0].mxu0
    %v6722 = vadd.f32 %v6041, %v6721
    %v6723 = vpop.f32.mrb[0].mxu0
    %6724 = vmatprep.mubr.bf16.mxu0 %v4784
    %6725 = vmatmul.mubr.bf16.gmra.mrb[0].mxu0 %v4075
    %v6726 = vpop.f32.mrb[0].mxu0
    %v6727 = vadd.f32 %v6046, %v6726
    %v6728 = vpop.f32.mrb[0].mxu0
    %v6729 = vpop.f32.mrb[0].mxu0
    %v6730 = vadd.f32 %v6049, %v6729
    %v6731 = vpop.f32.mrb[0].mxu0
    %6732 = vmatprep.mubr.bf16.mxu0 %v4787
    %6733 = vmatmul.mubr.bf16.gmra.mrb[0].mxu0 %v4081
    %v6734 = vpop.f32.mrb[0].mxu0
    %v6735 = vadd.f32 %v6054, %v6734
    %v6736 = vpop.f32.mrb[0].mxu0
    %v6737 = vpop.f32.mrb[0].mxu0
    %v6738 = vadd.f32 %v6057, %v6737
    %v6739 = vpop.f32.mrb[0].mxu0
    %6740 = vmatprep.mubr.bf16.mxu0 %v4790
    %6741 = vmatmul.mubr.bf16.gmra.mrb[0].mxu0 %v4087
    %v6742 = vpop.f32.mrb[0].mxu0
    %v6743 = vadd.f32 %v6062, %v6742
    %v6744 = vpop.f32.mrb[0].mxu0
    %v6745 = vpop.f32.mrb[0].mxu0
    %v6746 = vadd.f32 %v6065, %v6745
    %v6747 = vpop.f32.mrb[0].mxu0
    %6748 = vmatprep.mubr.bf16.mxu0 %v4793
    %6749 = vmatmul.mubr.bf16.gmra.mrb[0].mxu0 %v4093
    %v6750 = vpop.f32.mrb[0].mxu0
    %v6751 = vadd.f32 %v6070, %v6750
    %v6752 = vpop.f32.mrb[0].mxu0
    %v6753 = vpop.f32.mrb[0].mxu0
    %v6754 = vadd.f32 %v6073, %v6753
    %v6755 = vpop.f32.mrb[0].mxu0
    %6756 = vmatprep.mubr.bf16.mxu0 %v4796
    %6757 = vmatmul.mubr.bf16.gmra.mrb[0].mxu0 %v4099
    %v6758 = vpop.f32.mrb[0].mxu0
    %v6759 = vadd.f32 %v6078, %v6758
    %v6760 = vpop.f32.mrb[0].mxu0
    %v6761 = vpop.f32.mrb[0].mxu0
    %v6762 = vadd.f32 %v6081, %v6761
    %v6763 = vpop.f32.mrb[0].mxu0
    %6764 = vmatprep.mubr.bf16.mxu0 %v4799
    %6765 = vmatmul.mubr.bf16.gmra.mrb[0].mxu0 %v4105
    %v6766 = vpop.f32.mrb[0].mxu0
    %v6767 = vadd.f32 %v6086, %v6766
    %v6768 = vpop.f32.mrb[0].mxu0
    %v6769 = vpop.f32.mrb[0].mxu0
    %v6770 = vadd.f32 %v6089, %v6769
    %v6771 = vpop.f32.mrb[0].mxu0
    %6772 = vmatprep.mubr.bf16.mxu0 %v4802
    %6773 = vmatmul.mubr.bf16.gmra.mrb[0].mxu0 %v4111
    %v6774 = vpop.f32.mrb[0].mxu0
    %v6775 = vadd.f32 %v6094, %v6774
    %v6776 = vpop.f32.mrb[0].mxu0
    %v6777 = vpop.f32.mrb[0].mxu0
    %v6778 = vadd.f32 %v6097, %v6777
    %v6779 = vpop.f32.mrb[0].mxu0
    %6780 = vmatprep.mubr.bf16.mxu0 %v4805
    %6781 = vmatmul.mubr.bf16.gmra.mrb[0].mxu0 %v4117
    %v6782 = vpop.f32.mrb[0].mxu0
    %v6783 = vadd.f32 %v6102, %v6782
    %v6784 = vpop.f32.mrb[0].mxu0
    %v6785 = vpop.f32.mrb[0].mxu0
    %v6786 = vadd.f32 %v6105, %v6785
    %v6787 = vpop.f32.mrb[0].mxu0
    %6788 = vmatprep.mubr.bf16.mxu0 %v4808
    %6789 = vmatmul.mubr.bf16.gmra.mrb[0].mxu0 %v4123
    %v6790 = vpop.f32.mrb[0].mxu0
    %v6791 = vadd.f32 %v6110, %v6790
    %v6792 = vpop.f32.mrb[0].mxu0
    %v6793 = vpop.f32.mrb[0].mxu0
    %v6794 = vadd.f32 %v6113, %v6793
    %v6795 = vpop.f32.mrb[0].mxu0
    %6796 = vmatprep.mubr.bf16.mxu0 %v4811
    %6797 = vmatmul.mubr.bf16.gmra.mrb[0].mxu0 %v4129
    %v6798 = vpop.f32.mrb[0].mxu0
    %v6799 = vadd.f32 %v6118, %v6798
    %v6800 = vpop.f32.mrb[0].mxu0
    %v6801 = vpop.f32.mrb[0].mxu0
    %v6802 = vadd.f32 %v6121, %v6801
    %v6803 = vpop.f32.mrb[0].mxu0
    %6804 = vmatprep.mubr.bf16.mxu0 %v4814
    %6805 = vmatmul.mubr.bf16.gmra.mrb[0].mxu0 %v4135
    %v6806 = vpop.f32.mrb[0].mxu0
    %v6807 = vadd.f32 %v6126, %v6806
    %v6808 = vpop.f32.mrb[0].mxu0
    %v6809 = vpop.f32.mrb[0].mxu0
    %v6810 = vadd.f32 %v6129, %v6809
    %v6811 = vpop.f32.mrb[0].mxu0
    %6812 = vmatprep.mubr.bf16.mxu0 %v4817
    %6813 = vmatmul.mubr.bf16.gmra.mrb[0].mxu0 %v4141
    %v6814 = vpop.f32.mrb[0].mxu0
    %v6815 = vadd.f32 %v6134, %v6814
    %v6816 = vpop.f32.mrb[0].mxu0
    %v6817 = vpop.f32.mrb[0].mxu0
    %v6818 = vadd.f32 %v6137, %v6817
    %v6819 = vpop.f32.mrb[0].mxu0
    %6820 = vmatprep.mubr.bf16.mxu0 %v4820
    %6821 = vmatmul.mubr.bf16.gmra.mrb[0].mxu0 %v4147
    %v6822 = vpop.f32.mrb[0].mxu0
    %v6823 = vadd.f32 %v6142, %v6822
    %v6824 = vpop.f32.mrb[0].mxu0
    %v6825 = vpop.f32.mrb[0].mxu0
    %v6826 = vadd.f32 %v6145, %v6825
    %v6827 = vpop.f32.mrb[0].mxu0
    %6828 = vmatprep.mubr.bf16.mxu0 %v4823
    %6829 = vmatmul.mubr.bf16.gmra.mrb[0].mxu0 %v4153
    %v6830 = vpop.f32.mrb[0].mxu0
    %v6831 = vadd.f32 %v6150, %v6830
    %v6832 = vpop.f32.mrb[0].mxu0
    %v6833 = vpop.f32.mrb[0].mxu0
    %v6834 = vadd.f32 %v6153, %v6833
    %v6835 = vpop.f32.mrb[0].mxu0
    %6836 = vmatprep.mubr.bf16.mxu0 %v4826
    %6837 = vmatmul.mubr.bf16.gmra.mrb[0].mxu0 %v4159
    %v6838 = vpop.f32.mrb[0].mxu0
    %v6839 = vadd.f32 %v6158, %v6838
    %v6840 = vpop.f32.mrb[0].mxu0
    %v6841 = vpop.f32.mrb[0].mxu0
    %v6842 = vadd.f32 %v6161, %v6841
    %v6843 = vpop.f32.mrb[0].mxu0
    %6844 = vmatprep.mubr.bf16.mxu0 %v4829
    %6845 = vmatmul.mubr.bf16.gmra.mrb[0].mxu0 %v4165
    %v6846 = vpop.f32.mrb[0].mxu0
    %v6847 = vadd.f32 %v6166, %v6846
    %v6848 = vpop.f32.mrb[0].mxu0
    %v6849 = vpop.f32.mrb[0].mxu0
    %v6850 = vadd.f32 %v6169, %v6849
    %v6851 = vpop.f32.mrb[0].mxu0
    %6852 = vmatprep.mubr.bf16.mxu0 %v4832
    %6853 = vmatmul.mubr.bf16.gmra.mrb[0].mxu0 %v4171
    %v6854 = vpop.f32.mrb[0].mxu0
    %v6855 = vadd.f32 %v6174, %v6854
    %v6856 = vpop.f32.mrb[0].mxu0
    %v6857 = vpop.f32.mrb[0].mxu0
    %v6858 = vadd.f32 %v6177, %v6857
    %v6859 = vpop.f32.mrb[0].mxu0
    %6860 = vmatprep.mubr.bf16.mxu0 %v4835
    %6861 = vmatmul.mubr.bf16.gmra.mrb[0].mxu0 %v4177
    %v6862 = vpop.f32.mrb[0].mxu0
    %v6863 = vadd.f32 %v6182, %v6862
    %v6864 = vpop.f32.mrb[0].mxu0
    %v6865 = vpop.f32.mrb[0].mxu0
    %v6866 = vadd.f32 %v6185, %v6865
    %v6867 = vpop.f32.mrb[0].mxu0
    %6868 = vmatprep.mubr.bf16.mxu0 %v4838
    %6869 = vmatmul.mubr.bf16.gmra.mrb[0].mxu0 %v4183
    %v6870 = vpop.f32.mrb[0].mxu0
    %v6871 = vadd.f32 %v6190, %v6870
    %v6872 = vpop.f32.mrb[0].mxu0
    %v6873 = vpop.f32.mrb[0].mxu0
    %v6874 = vadd.f32 %v6193, %v6873
    %v6875 = vpop.f32.mrb[0].mxu0
    %6876 = vmatprep.mubr.bf16.mxu0 %v4841
    %6877 = vmatmul.mubr.bf16.gmra.mrb[0].mxu0 %v4189
    %v6878 = vpop.f32.mrb[0].mxu0
    %v6879 = vadd.f32 %v6198, %v6878
    %v6880 = vpop.f32.mrb[0].mxu0
    %v6881 = vpop.f32.mrb[0].mxu0
    %v6882 = vadd.f32 %v6201, %v6881
    %v6883 = vpop.f32.mrb[0].mxu0
    %6884 = vmatprep.mubr.bf16.mxu0 %v4844
    %6885 = vmatmul.mubr.bf16.gmra.mrb[0].mxu0 %v4195
    %v6886 = vpop.f32.mrb[0].mxu0
    %v6887 = vadd.f32 %v6206, %v6886
    %v6888 = vpop.f32.mrb[0].mxu0
    %v6889 = vpop.f32.mrb[0].mxu0
    %v6890 = vadd.f32 %v6209, %v6889
    %v6891 = vpop.f32.mrb[0].mxu0
    %6892 = vdwg.mxu0
    %v6893 = vpack.c.bf16 %v6250, %v6247
    %v6894 = vpack.c.bf16 %v6258, %v6255
    %v6895 = vpack.c.bf16 %v6266, %v6263
    %v6896 = vpack.c.bf16 %v6274, %v6271
    %v6897 = vpack.c.bf16 %v6282, %v6279
    %v6898 = vpack.c.bf16 %v6290, %v6287
    %v6899 = vpack.c.bf16 %v6298, %v6295
    %v6900 = vpack.c.bf16 %v6306, %v6303
    %v6901 = vpack.c.bf16 %v6314, %v6311
    %v6902 = vpack.c.bf16 %v6322, %v6319
    %v6903 = vpack.c.bf16 %v6330, %v6327
    %v6904 = vpack.c.bf16 %v6338, %v6335
    %v6905 = vpack.c.bf16 %v6346, %v6343
    %v6906 = vpack.c.bf16 %v6354, %v6351
    %v6907 = vpack.c.bf16 %v6362, %v6359
    %v6908 = vpack.c.bf16 %v6370, %v6367
    %v6909 = vpack.c.bf16 %v6378, %v6375
    %v6910 = vpack.c.bf16 %v6386, %v6383
    %v6911 = vpack.c.bf16 %v6394, %v6391
    %v6912 = vpack.c.bf16 %v6402, %v6399
    %v6913 = vpack.c.bf16 %v6410, %v6407
    %v6914 = vpack.c.bf16 %v6418, %v6415
    %v6915 = vpack.c.bf16 %v6426, %v6423
    %v6916 = vpack.c.bf16 %v6434, %v6431
    %v6917 = vpack.c.bf16 %v6442, %v6439
    %v6918 = vpack.c.bf16 %v6450, %v6447
    %v6919 = vpack.c.bf16 %v6458, %v6455
    %v6920 = vpack.c.bf16 %v6466, %v6463
    %v6921 = vpack.c.bf16 %v6474, %v6471
    %v6922 = vpack.c.bf16 %v6482, %v6479
    %v6923 = vpack.c.bf16 %v6490, %v6487
    %v6924 = vpack.c.bf16 %v6498, %v6495
    %v6925 = vpack.c.bf16 %v6506, %v6503
    %v6926 = vpack.c.bf16 %v6514, %v6511
    %v6927 = vpack.c.bf16 %v6522, %v6519
    %v6928 = vpack.c.bf16 %v6530, %v6527
    %v6929 = vpack.c.bf16 %v6538, %v6535
    %v6930 = vpack.c.bf16 %v6546, %v6543
    %v6931 = vpack.c.bf16 %v6554, %v6551
    %v6932 = vpack.c.bf16 %v6562, %v6559
    %v6933 = vpack.c.bf16 %v6570, %v6567
    %v6934 = vpack.c.bf16 %v6578, %v6575
    %v6935 = vpack.c.bf16 %v6586, %v6583
    %v6936 = vpack.c.bf16 %v6594, %v6591
    %v6937 = vpack.c.bf16 %v6602, %v6599
    %v6938 = vpack.c.bf16 %v6610, %v6607
    %v6939 = vpack.c.bf16 %v6618, %v6615
    %v6940 = vpack.c.bf16 %v6626, %v6623
    %v6941 = vpack.c.bf16 %v6634, %v6631
    %v6942 = vpack.c.bf16 %v6642, %v6639
    %v6943 = vpack.c.bf16 %v6650, %v6647
    %v6944 = vpack.c.bf16 %v6658, %v6655
    %v6945 = vpack.c.bf16 %v6666, %v6663
    %v6946 = vpack.c.bf16 %v6674, %v6671
    %v6947 = vpack.c.bf16 %v6682, %v6679
    %v6948 = vpack.c.bf16 %v6690, %v6687
    %v6949 = vpack.c.bf16 %v6698, %v6695
    %v6950 = vpack.c.bf16 %v6706, %v6703
    %v6951 = vpack.c.bf16 %v6714, %v6711
    %v6952 = vpack.c.bf16 %v6722, %v6719
    %v6953 = vpack.c.bf16 %v6730, %v6727
    %v6954 = vpack.c.bf16 %v6738, %v6735
    %v6955 = vpack.c.bf16 %v6746, %v6743
    %v6956 = vpack.c.bf16 %v6754, %v6751
    %v6957 = vpack.c.bf16 %v6762, %v6759
    %v6958 = vpack.c.bf16 %v6770, %v6767
    %v6959 = vpack.c.bf16 %v6778, %v6775
    %v6960 = vpack.c.bf16 %v6786, %v6783
    %v6961 = vpack.c.bf16 %v6794, %v6791
    %v6962 = vpack.c.bf16 %v6802, %v6799
    %v6963 = vpack.c.bf16 %v6810, %v6807
    %v6964 = vpack.c.bf16 %v6818, %v6815
    %v6965 = vpack.c.bf16 %v6826, %v6823
    %v6966 = vpack.c.bf16 %v6834, %v6831
    %v6967 = vpack.c.bf16 %v6842, %v6839
    %v6968 = vpack.c.bf16 %v6850, %v6847
    %v6969 = vpack.c.bf16 %v6858, %v6855
    %v6970 = vpack.c.bf16 %v6866, %v6863
    %v6971 = vpack.c.bf16 %v6874, %v6871
    %v6972 = vpack.c.bf16 %v6882, %v6879
    %v6973 = vpack.c.bf16 %v6890, %v6887
    %v6974 = vld [vmem:[%s2 + $0x8] sm:$0xf]
    %v6975 = vld [vmem:[%s2 + $0xc] sm:$0xf]
    %v6976 = vld [vmem:[%s2 + $0x10] sm:$0xf]
    %v6977 = vld [vmem:[%s2 + $0x14] sm:$0xf]
    %v6978 = vld [vmem:[%s2 + $0x18] sm:$0xf]
    %v6979 = vld [vmem:[%s2 + $0x1c] sm:$0xf]
    %v6980 = vld [vmem:[%s2 + $0x20] sm:$0xf]
    %v6981 = vld [vmem:[%s2 + $0x24] sm:$0xf]
    %v6986 = vunpack.c.l.b16 %v6978
    %v6987 = vunpack.c.l.b16 %v6979
    %v6988 = vunpack.c.l.b16 %v6980
    %v6989 = vunpack.c.l.b16 %v6981
    %v6990 = vpack.c.b16 %v6987, %v6986
    %v6991 = vpack.c.b16 %v6989, %v6988
    %v6995 = vsel %vm930, %v6902, 0
    %v6998 = vsel %vm930, %v6903, 0
    %v7001 = vsel %vm930, %v6904, 0
    %v7004 = vsel %vm930, %v6905, 0
    %v7007 = vsel %vm930, %v6906, 0
    %v7010 = vsel %vm930, %v6907, 0
    %v7013 = vsel %vm930, %v6908, 0
    %v7016 = vsel %vm930, %v6909, 0
    %v7019 = vsel %vm930, %v6910, 0
    %7021 = vmatprep.subr.bf16.mxu0 0
    %7022 = vmatpush1.bf16.msra.mxu0 %v6990
    %7023 = vmatprep.subr.bf16.mxu0 0
    %7024 = vmatpush1.bf16.msra.mxu0 %v6991
    %7025 = vmatprep.subr.bf16.mxu0 0
    %7026 = vmatpush1.bf16.msra.mxu0 0
    %7027 = vmatprep.subr.bf16.mxu0 0
    %7028 = vmatpush1.bf16.msra.mxu0 0
    %7029 = vmatprep.subr.bf16.mxu0 0
    %7030 = vmatpush1.bf16.msra.mxu0 0
    %7031 = vmatprep.subr.bf16.mxu0 0
    %7032 = vmatpush1.bf16.msra.mxu0 0
    %7033 = vmatprep.subr.bf16.mxu0 0
    %7034 = vmatpush1.bf16.msra.mxu0 0
    %7035 = vmatprep.subr.bf16.mxu0 0
    %7036 = vmatpush1.bf16.msra.mxu0 0
    %7037 = vmatprep.subr.bf16.mxu0 0
    %7038 = vmatpush1.bf16.msra.mxu0 0
    %7039 = vmatprep.subr.bf16.mxu0 0
    %7040 = vmatpush1.bf16.msra.mxu0 0
    %7041 = vmatprep.subr.bf16.mxu0 0
    %7042 = vmatpush1.bf16.msra.mxu0 0
    %7043 = vmatprep.subr.bf16.mxu0 0
    %7044 = vmatpush1.bf16.msra.mxu0 0
    %7045 = vmatprep.subr.bf16.mxu0 0
    %7046 = vmatpush1.bf16.msra.mxu0 0
    %7047 = vmatprep.subr.bf16.mxu0 0
    %7048 = vmatpush1.bf16.msra.mxu0 0
    %7049 = vmatprep.subr.bf16.mxu0 0
    %7050 = vmatpush1.bf16.msra.mxu0 0
    %7051 = vmatprep.subr.bf16.mxu0 0
    %7052 = vmatpush1.bf16.msra.mxu0 0
    %7053 = vmatprep.mubr.bf16.mxu0 0
    %7054 = vmatmul.mubr.bf16.gmra.mrb[0].mxu0 %v6995
    %v7055 = vpop.f32.mrb[0].mxu0
    %v7056 = vadd.f32 0.0, %v7055
    %v7057 = vpop.f32.mrb[0].mxu0
    %v7058 = vpop.f32.mrb[0].mxu0
    %v7059 = vadd.f32 0.0, %v7058
    %v7060 = vpop.f32.mrb[0].mxu0
    %7061 = vmatprep.mubr.bf16.mxu0 0
    %7062 = vmatmul.mubr.bf16.gmra.mrb[0].mxu0 %v6998
    %v7063 = vpop.f32.mrb[0].mxu0
    %v7064 = vadd.f32 0.0, %v7063
    %v7065 = vpop.f32.mrb[0].mxu0
    %v7066 = vpop.f32.mrb[0].mxu0
    %v7067 = vadd.f32 0.0, %v7066
    %v7068 = vpop.f32.mrb[0].mxu0
    %7069 = vmatprep.mubr.bf16.mxu0 0
    %7070 = vmatmul.mubr.bf16.gmra.mrb[0].mxu0 %v7001
    %v7071 = vpop.f32.mrb[0].mxu0
    %v7072 = vadd.f32 0.0, %v7071
    %v7073 = vpop.f32.mrb[0].mxu0
    %v7074 = vpop.f32.mrb[0].mxu0
    %v7075 = vadd.f32 0.0, %v7074
    %v7076 = vpop.f32.mrb[0].mxu0
    %7077 = vmatprep.mubr.bf16.mxu0 0
    %7078 = vmatmul.mubr.bf16.gmra.mrb[0].mxu0 %v7004
    %v7079 = vpop.f32.mrb[0].mxu0
    %v7080 = vadd.f32 0.0, %v7079
    %v7081 = vpop.f32.mrb[0].mxu0
    %v7082 = vpop.f32.mrb[0].mxu0
    %v7083 = vadd.f32 0.0, %v7082
    %v7084 = vpop.f32.mrb[0].mxu0
    %7085 = vmatprep.mubr.bf16.mxu0 0
    %7086 = vmatmul.mubr.bf16.gmra.mrb[0].mxu0 %v7007
    %v7087 = vpop.f32.mrb[0].mxu0
    %v7088 = vadd.f32 0.0, %v7087
    %v7089 = vpop.f32.mrb[0].mxu0
    %v7090 = vpop.f32.mrb[0].mxu0
    %v7091 = vadd.f32 0.0, %v7090
    %v7092 = vpop.f32.mrb[0].mxu0
    %7093 = vmatprep.mubr.bf16.mxu0 0
    %7094 = vmatmul.mubr.bf16.gmra.mrb[0].mxu0 %v7010
    %v7095 = vpop.f32.mrb[0].mxu0
    %v7096 = vadd.f32 0.0, %v7095
    %v7097 = vpop.f32.mrb[0].mxu0
    %v7098 = vpop.f32.mrb[0].mxu0
    %v7099 = vadd.f32 0.0, %v7098
    %v7100 = vpop.f32.mrb[0].mxu0
    %7101 = vmatprep.mubr.bf16.mxu0 0
    %7102 = vmatmul.mubr.bf16.gmra.mrb[0].mxu0 %v7013
    %v7103 = vpop.f32.mrb[0].mxu0
    %v7104 = vadd.f32 0.0, %v7103
    %v7105 = vpop.f32.mrb[0].mxu0
    %v7106 = vpop.f32.mrb[0].mxu0
    %v7107 = vadd.f32 0.0, %v7106
    %v7108 = vpop.f32.mrb[0].mxu0
    %7109 = vmatprep.mubr.bf16.mxu0 0
    %7110 = vmatmul.mubr.bf16.gmra.mrb[0].mxu0 %v7016
    %v7111 = vpop.f32.mrb[0].mxu0
    %v7112 = vadd.f32 0.0, %v7111
    %v7113 = vpop.f32.mrb[0].mxu0
    %v7114 = vpop.f32.mrb[0].mxu0
    %v7115 = vadd.f32 0.0, %v7114
    %v7116 = vpop.f32.mrb[0].mxu0
    %7117 = vmatprep.mubr.bf16.mxu0 0
    %7118 = vmatmul.mubr.bf16.gmra.mrb[0].mxu0 %v7019
    %v7119 = vpop.f32.mrb[0].mxu0
    %v7120 = vadd.f32 0.0, %v7119
    %v7121 = vpop.f32.mrb[0].mxu0
    %v7122 = vpop.f32.mrb[0].mxu0
    %v7123 = vadd.f32 0.0, %v7122
    %v7124 = vpop.f32.mrb[0].mxu0
    %7125 = vdwg.mxu0
    %v7130 = vunpack.c.l.b16 %v6974
    %v7131 = vunpack.c.l.b16 %v6975
    %v7132 = vunpack.c.l.b16 %v6976
    %v7133 = vunpack.c.l.b16 %v6977
    %v7134 = vpack.c.b16 %v7131, %v7130
    %v7135 = vpack.c.b16 %v7133, %v7132
    %v7139 = vsel %vm930, %v6893, 0
    %v7142 = vsel %vm930, %v6894, 0
    %v7145 = vsel %vm930, %v6895, 0
    %v7148 = vsel %vm930, %v6896, 0
    %v7151 = vsel %vm930, %v6897, 0
    %v7154 = vsel %vm930, %v6898, 0
    %v7157 = vsel %vm930, %v6899, 0
    %v7160 = vsel %vm930, %v6900, 0
    %v7163 = vsel %vm930, %v6901, 0
    %7165 = vmatprep.subr.bf16.mxu0 0
    %7166 = vmatpush1.bf16.msra.mxu0 %v7134
    %7167 = vmatprep.subr.bf16.mxu0 0
    %7168 = vmatpush1.bf16.msra.mxu0 %v7135
    %7169 = vmatprep.subr.bf16.mxu0 0
    %7170 = vmatpush1.bf16.msra.mxu0 0
    %7171 = vmatprep.subr.bf16.mxu0 0
    %7172 = vmatpush1.bf16.msra.mxu0 0
    %7173 = vmatprep.subr.bf16.mxu0 0
    %7174 = vmatpush1.bf16.msra.mxu0 0
    %7175 = vmatprep.subr.bf16.mxu0 0
    %7176 = vmatpush1.bf16.msra.mxu0 0
    %7177 = vmatprep.subr.bf16.mxu0 0
    %7178 = vmatpush1.bf16.msra.mxu0 0
    %7179 = vmatprep.subr.bf16.mxu0 0
    %7180 = vmatpush1.bf16.msra.mxu0 0
    %7181 = vmatprep.subr.bf16.mxu0 0
    %7182 = vmatpush1.bf16.msra.mxu0 0
    %7183 = vmatprep.subr.bf16.mxu0 0
    %7184 = vmatpush1.bf16.msra.mxu0 0
    %7185 = vmatprep.subr.bf16.mxu0 0
    %7186 = vmatpush1.bf16.msra.mxu0 0
    %7187 = vmatprep.subr.bf16.mxu0 0
    %7188 = vmatpush1.bf16.msra.mxu0 0
    %7189 = vmatprep.subr.bf16.mxu0 0
    %7190 = vmatpush1.bf16.msra.mxu0 0
    %7191 = vmatprep.subr.bf16.mxu0 0
    %7192 = vmatpush1.bf16.msra.mxu0 0
    %7193 = vmatprep.subr.bf16.mxu0 0
    %7194 = vmatpush1.bf16.msra.mxu0 0
    %7195 = vmatprep.subr.bf16.mxu0 0
    %7196 = vmatpush1.bf16.msra.mxu0 0
    %7197 = vmatprep.mubr.bf16.mxu0 0
    %7198 = vmatmul.mubr.bf16.gmra.mrb[0].mxu0 %v7139
    %v7199 = vpop.f32.mrb[0].mxu0
    %v7200 = vadd.f32 %v7056, %v7199
    %v7201 = vpop.f32.mrb[0].mxu0
    %v7202 = vpop.f32.mrb[0].mxu0
    %v7203 = vadd.f32 %v7059, %v7202
    %v7204 = vpop.f32.mrb[0].mxu0
    %7205 = vmatprep.mubr.bf16.mxu0 0
    %7206 = vmatmul.mubr.bf16.gmra.mrb[0].mxu0 %v7142
    %v7207 = vpop.f32.mrb[0].mxu0
    %v7208 = vadd.f32 %v7064, %v7207
    %v7209 = vpop.f32.mrb[0].mxu0
    %v7210 = vpop.f32.mrb[0].mxu0
    %v7211 = vadd.f32 %v7067, %v7210
    %v7212 = vpop.f32.mrb[0].mxu0
    %7213 = vmatprep.mubr.bf16.mxu0 0
    %7214 = vmatmul.mubr.bf16.gmra.mrb[0].mxu0 %v7145
    %v7215 = vpop.f32.mrb[0].mxu0
    %v7216 = vadd.f32 %v7072, %v7215
    %v7217 = vpop.f32.mrb[0].mxu0
    %v7218 = vpop.f32.mrb[0].mxu0
    %v7219 = vadd.f32 %v7075, %v7218
    %v7220 = vpop.f32.mrb[0].mxu0
    %7221 = vmatprep.mubr.bf16.mxu0 0
    %7222 = vmatmul.mubr.bf16.gmra.mrb[0].mxu0 %v7148
    %v7223 = vpop.f32.mrb[0].mxu0
    %v7224 = vadd.f32 %v7080, %v7223
    %v7225 = vpop.f32.mrb[0].mxu0
    %v7226 = vpop.f32.mrb[0].mxu0
    %v7227 = vadd.f32 %v7083, %v7226
    %v7228 = vpop.f32.mrb[0].mxu0
    %7229 = vmatprep.mubr.bf16.mxu0 0
    %7230 = vmatmul.mubr.bf16.gmra.mrb[0].mxu0 %v7151
    %v7231 = vpop.f32.mrb[0].mxu0
    %v7232 = vadd.f32 %v7088, %v7231
    %v7233 = vpop.f32.mrb[0].mxu0
    %v7234 = vpop.f32.mrb[0].mxu0
    %v7235 = vadd.f32 %v7091, %v7234
    %v7236 = vpop.f32.mrb[0].mxu0
    %7237 = vmatprep.mubr.bf16.mxu0 0
    %7238 = vmatmul.mubr.bf16.gmra.mrb[0].mxu0 %v7154
    %v7239 = vpop.f32.mrb[0].mxu0
    %v7240 = vadd.f32 %v7096, %v7239
    %v7241 = vpop.f32.mrb[0].mxu0
    %v7242 = vpop.f32.mrb[0].mxu0
    %v7243 = vadd.f32 %v7099, %v7242
    %v7244 = vpop.f32.mrb[0].mxu0
    %7245 = vmatprep.mubr.bf16.mxu0 0
    %7246 = vmatmul.mubr.bf16.gmra.mrb[0].mxu0 %v7157
    %v7247 = vpop.f32.mrb[0].mxu0
    %v7248 = vadd.f32 %v7104, %v7247
    %v7249 = vpop.f32.mrb[0].mxu0
    %v7250 = vpop.f32.mrb[0].mxu0
    %v7251 = vadd.f32 %v7107, %v7250
    %v7252 = vpop.f32.mrb[0].mxu0
    %7253 = vmatprep.mubr.bf16.mxu0 0
    %7254 = vmatmul.mubr.bf16.gmra.mrb[0].mxu0 %v7160
    %v7255 = vpop.f32.mrb[0].mxu0
    %v7256 = vadd.f32 %v7112, %v7255
    %v7257 = vpop.f32.mrb[0].mxu0
    %v7258 = vpop.f32.mrb[0].mxu0
    %v7259 = vadd.f32 %v7115, %v7258
    %v7260 = vpop.f32.mrb[0].mxu0
    %7261 = vmatprep.mubr.bf16.mxu0 0
    %7262 = vmatmul.mubr.bf16.gmra.mrb[0].mxu0 %v7163
    %v7263 = vpop.f32.mrb[0].mxu0
    %v7264 = vadd.f32 %v7120, %v7263
    %v7265 = vpop.f32.mrb[0].mxu0
    %v7266 = vpop.f32.mrb[0].mxu0
    %v7267 = vadd.f32 %v7123, %v7266
    %v7268 = vpop.f32.mrb[0].mxu0
    %7269 = vdwg.mxu0
    %v7270 = vld [vmem:[%s2 + $0x28] sm:$0xf]
    %v7271 = vld [vmem:[%s2 + $0x2c] sm:$0xf]
    %v7272 = vld [vmem:[%s2 + $0x30] sm:$0xf]
    %v7273 = vld [vmem:[%s2 + $0x34] sm:$0xf]
    %v7278 = vunpack.c.l.b16 %v7270
    %v7279 = vunpack.c.l.b16 %v7271
    %v7280 = vunpack.c.l.b16 %v7272
    %v7281 = vunpack.c.l.b16 %v7273
    %v7282 = vpack.c.b16 %v7279, %v7278
    %v7283 = vpack.c.b16 %v7281, %v7280
    %v7287 = vsel %vm930, %v6911, 0
    %v7290 = vsel %vm930, %v6912, 0
    %v7293 = vsel %vm930, %v6913, 0
    %v7296 = vsel %vm930, %v6914, 0
    %v7299 = vsel %vm930, %v6915, 0
    %v7302 = vsel %vm930, %v6916, 0
    %v7305 = vsel %vm930, %v6917, 0
    %v7308 = vsel %vm930, %v6918, 0
    %v7311 = vsel %vm930, %v6919, 0
    %7313 = vmatprep.subr.bf16.mxu0 0
    %7314 = vmatpush1.bf16.msra.mxu0 %v7282
    %7315 = vmatprep.subr.bf16.mxu0 0
    %7316 = vmatpush1.bf16.msra.mxu0 %v7283
    %7317 = vmatprep.subr.bf16.mxu0 0
    %7318 = vmatpush1.bf16.msra.mxu0 0
    %7319 = vmatprep.subr.bf16.mxu0 0
    %7320 = vmatpush1.bf16.msra.mxu0 0
    %7321 = vmatprep.subr.bf16.mxu0 0
    %7322 = vmatpush1.bf16.msra.mxu0 0
    %7323 = vmatprep.subr.bf16.mxu0 0
    %7324 = vmatpush1.bf16.msra.mxu0 0
    %7325 = vmatprep.subr.bf16.mxu0 0
    %7326 = vmatpush1.bf16.msra.mxu0 0
    %7327 = vmatprep.subr.bf16.mxu0 0
    %7328 = vmatpush1.bf16.msra.mxu0 0
    %7329 = vmatprep.subr.bf16.mxu0 0
    %7330 = vmatpush1.bf16.msra.mxu0 0
    %7331 = vmatprep.subr.bf16.mxu0 0
    %7332 = vmatpush1.bf16.msra.mxu0 0
    %7333 = vmatprep.subr.bf16.mxu0 0
    %7334 = vmatpush1.bf16.msra.mxu0 0
    %7335 = vmatprep.subr.bf16.mxu0 0
    %7336 = vmatpush1.bf16.msra.mxu0 0
    %7337 = vmatprep.subr.bf16.mxu0 0
    %7338 = vmatpush1.bf16.msra.mxu0 0
    %7339 = vmatprep.subr.bf16.mxu0 0
    %7340 = vmatpush1.bf16.msra.mxu0 0
    %7341 = vmatprep.subr.bf16.mxu0 0
    %7342 = vmatpush1.bf16.msra.mxu0 0
    %7343 = vmatprep.subr.bf16.mxu0 0
    %7344 = vmatpush1.bf16.msra.mxu0 0
    %7345 = vmatprep.mubr.bf16.mxu0 0
    %7346 = vmatmul.mubr.bf16.gmra.mrb[0].mxu0 %v7287
    %v7347 = vpop.f32.mrb[0].mxu0
    %v7348 = vadd.f32 0.0, %v7347
    %v7349 = vpop.f32.mrb[0].mxu0
    %v7350 = vpop.f32.mrb[0].mxu0
    %v7351 = vadd.f32 0.0, %v7350
    %v7352 = vpop.f32.mrb[0].mxu0
    %7353 = vmatprep.mubr.bf16.mxu0 0
    %7354 = vmatmul.mubr.bf16.gmra.mrb[0].mxu0 %v7290
    %v7355 = vpop.f32.mrb[0].mxu0
    %v7356 = vadd.f32 0.0, %v7355
    %v7357 = vpop.f32.mrb[0].mxu0
    %v7358 = vpop.f32.mrb[0].mxu0
    %v7359 = vadd.f32 0.0, %v7358
    %v7360 = vpop.f32.mrb[0].mxu0
    %7361 = vmatprep.mubr.bf16.mxu0 0
    %7362 = vmatmul.mubr.bf16.gmra.mrb[0].mxu0 %v7293
    %v7363 = vpop.f32.mrb[0].mxu0
    %v7364 = vadd.f32 0.0, %v7363
    %v7365 = vpop.f32.mrb[0].mxu0
    %v7366 = vpop.f32.mrb[0].mxu0
    %v7367 = vadd.f32 0.0, %v7366
    %v7368 = vpop.f32.mrb[0].mxu0
    %7369 = vmatprep.mubr.bf16.mxu0 0
    %7370 = vmatmul.mubr.bf16.gmra.mrb[0].mxu0 %v7296
    %v7371 = vpop.f32.mrb[0].mxu0
    %v7372 = vadd.f32 0.0, %v7371
    %v7373 = vpop.f32.mrb[0].mxu0
    %v7374 = vpop.f32.mrb[0].mxu0
    %v7375 = vadd.f32 0.0, %v7374
    %v7376 = vpop.f32.mrb[0].mxu0
    %7377 = vmatprep.mubr.bf16.mxu0 0
    %7378 = vmatmul.mubr.bf16.gmra.mrb[0].mxu0 %v7299
    %v7379 = vpop.f32.mrb[0].mxu0
    %v7380 = vadd.f32 0.0, %v7379
    %v7381 = vpop.f32.mrb[0].mxu0
    %v7382 = vpop.f32.mrb[0].mxu0
    %v7383 = vadd.f32 0.0, %v7382
    %v7384 = vpop.f32.mrb[0].mxu0
    %7385 = vmatprep.mubr.bf16.mxu0 0
    %7386 = vmatmul.mubr.bf16.gmra.mrb[0].mxu0 %v7302
    %v7387 = vpop.f32.mrb[0].mxu0
    %v7388 = vadd.f32 0.0, %v7387
    %v7389 = vpop.f32.mrb[0].mxu0
    %v7390 = vpop.f32.mrb[0].mxu0
    %v7391 = vadd.f32 0.0, %v7390
    %v7392 = vpop.f32.mrb[0].mxu0
    %7393 = vmatprep.mubr.bf16.mxu0 0
    %7394 = vmatmul.mubr.bf16.gmra.mrb[0].mxu0 %v7305
    %v7395 = vpop.f32.mrb[0].mxu0
    %v7396 = vadd.f32 0.0, %v7395
    %v7397 = vpop.f32.mrb[0].mxu0
    %v7398 = vpop.f32.mrb[0].mxu0
    %v7399 = vadd.f32 0.0, %v7398
    %v7400 = vpop.f32.mrb[0].mxu0
    %7401 = vmatprep.mubr.bf16.mxu0 0
    %7402 = vmatmul.mubr.bf16.gmra.mrb[0].mxu0 %v7308
    %v7403 = vpop.f32.mrb[0].mxu0
    %v7404 = vadd.f32 0.0, %v7403
    %v7405 = vpop.f32.mrb[0].mxu0
    %v7406 = vpop.f32.mrb[0].mxu0
    %v7407 = vadd.f32 0.0, %v7406
    %v7408 = vpop.f32.mrb[0].mxu0
    %7409 = vmatprep.mubr.bf16.mxu0 0
    %7410 = vmatmul.mubr.bf16.gmra.mrb[0].mxu0 %v7311
    %v7411 = vpop.f32.mrb[0].mxu0
    %v7412 = vadd.f32 0.0, %v7411
    %v7413 = vpop.f32.mrb[0].mxu0
    %v7414 = vpop.f32.mrb[0].mxu0
    %v7415 = vadd.f32 0.0, %v7414
    %v7416 = vpop.f32.mrb[0].mxu0
    %7417 = vdwg.mxu0
    %v7418 = vadd.f32 %v7200, %v7348
    %v7419 = vadd.f32 %v7203, %v7351
    %v7420 = vadd.f32 %v7208, %v7356
    %v7421 = vadd.f32 %v7211, %v7359
    %v7422 = vadd.f32 %v7216, %v7364
    %v7423 = vadd.f32 %v7219, %v7367
    %v7424 = vadd.f32 %v7224, %v7372
    %v7425 = vadd.f32 %v7227, %v7375
    %v7426 = vadd.f32 %v7232, %v7380
    %v7427 = vadd.f32 %v7235, %v7383
    %v7428 = vadd.f32 %v7240, %v7388
    %v7429 = vadd.f32 %v7243, %v7391
    %v7430 = vadd.f32 %v7248, %v7396
    %v7431 = vadd.f32 %v7251, %v7399
    %v7432 = vadd.f32 %v7256, %v7404
    %v7433 = vadd.f32 %v7259, %v7407
    %v7434 = vadd.f32 %v7264, %v7412
    %v7435 = vadd.f32 %v7267, %v7415
    %v7436 = vld [vmem:[%s2 + $0x38] sm:$0xf]
    %v7437 = vld [vmem:[%s2 + $0x3c] sm:$0xf]
    %v7438 = vld [vmem:[%s2 + $0x40] sm:$0xf]
    %v7439 = vld [vmem:[%s2 + $0x44] sm:$0xf]
    %v7444 = vunpack.c.l.b16 %v7436
    %v7445 = vunpack.c.l.b16 %v7437
    %v7446 = vunpack.c.l.b16 %v7438
    %v7447 = vunpack.c.l.b16 %v7439
    %v7448 = vpack.c.b16 %v7445, %v7444
    %v7449 = vpack.c.b16 %v7447, %v7446
    %v7453 = vsel %vm930, %v6920, 0
    %v7456 = vsel %vm930, %v6921, 0
    %v7459 = vsel %vm930, %v6922, 0
    %v7462 = vsel %vm930, %v6923, 0
    %v7465 = vsel %vm930, %v6924, 0
    %v7468 = vsel %vm930, %v6925, 0
    %v7471 = vsel %vm930, %v6926, 0
    %v7474 = vsel %vm930, %v6927, 0
    %v7477 = vsel %vm930, %v6928, 0
    %7479 = vmatprep.subr.bf16.mxu0 0
    %7480 = vmatpush1.bf16.msra.mxu0 %v7448
    %7481 = vmatprep.subr.bf16.mxu0 0
    %7482 = vmatpush1.bf16.msra.mxu0 %v7449
    %7483 = vmatprep.subr.bf16.mxu0 0
    %7484 = vmatpush1.bf16.msra.mxu0 0
    %7485 = vmatprep.subr.bf16.mxu0 0
    %7486 = vmatpush1.bf16.msra.mxu0 0
    %7487 = vmatprep.subr.bf16.mxu0 0
    %7488 = vmatpush1.bf16.msra.mxu0 0
    %7489 = vmatprep.subr.bf16.mxu0 0
    %7490 = vmatpush1.bf16.msra.mxu0 0
    %7491 = vmatprep.subr.bf16.mxu0 0
    %7492 = vmatpush1.bf16.msra.mxu0 0
    %7493 = vmatprep.subr.bf16.mxu0 0
    %7494 = vmatpush1.bf16.msra.mxu0 0
    %7495 = vmatprep.subr.bf16.mxu0 0
    %7496 = vmatpush1.bf16.msra.mxu0 0
    %7497 = vmatprep.subr.bf16.mxu0 0
    %7498 = vmatpush1.bf16.msra.mxu0 0
    %7499 = vmatprep.subr.bf16.mxu0 0
    %7500 = vmatpush1.bf16.msra.mxu0 0
    %7501 = vmatprep.subr.bf16.mxu0 0
    %7502 = vmatpush1.bf16.msra.mxu0 0
    %7503 = vmatprep.subr.bf16.mxu0 0
    %7504 = vmatpush1.bf16.msra.mxu0 0
    %7505 = vmatprep.subr.bf16.mxu0 0
    %7506 = vmatpush1.bf16.msra.mxu0 0
    %7507 = vmatprep.subr.bf16.mxu0 0
    %7508 = vmatpush1.bf16.msra.mxu0 0
    %7509 = vmatprep.subr.bf16.mxu0 0
    %7510 = vmatpush1.bf16.msra.mxu0 0
    %7511 = vmatprep.mubr.bf16.mxu0 0
    %7512 = vmatmul.mubr.bf16.gmra.mrb[0].mxu0 %v7453
    %v7513 = vpop.f32.mrb[0].mxu0
    %v7514 = vadd.f32 0.0, %v7513
    %v7515 = vpop.f32.mrb[0].mxu0
    %v7516 = vpop.f32.mrb[0].mxu0
    %v7517 = vadd.f32 0.0, %v7516
    %v7518 = vpop.f32.mrb[0].mxu0
    %7519 = vmatprep.mubr.bf16.mxu0 0
    %7520 = vmatmul.mubr.bf16.gmra.mrb[0].mxu0 %v7456
    %v7521 = vpop.f32.mrb[0].mxu0
    %v7522 = vadd.f32 0.0, %v7521
    %v7523 = vpop.f32.mrb[0].mxu0
    %v7524 = vpop.f32.mrb[0].mxu0
    %v7525 = vadd.f32 0.0, %v7524
    %v7526 = vpop.f32.mrb[0].mxu0
    %7527 = vmatprep.mubr.bf16.mxu0 0
    %7528 = vmatmul.mubr.bf16.gmra.mrb[0].mxu0 %v7459
    %v7529 = vpop.f32.mrb[0].mxu0
    %v7530 = vadd.f32 0.0, %v7529
    %v7531 = vpop.f32.mrb[0].mxu0
    %v7532 = vpop.f32.mrb[0].mxu0
    %v7533 = vadd.f32 0.0, %v7532
    %v7534 = vpop.f32.mrb[0].mxu0
    %7535 = vmatprep.mubr.bf16.mxu0 0
    %7536 = vmatmul.mubr.bf16.gmra.mrb[0].mxu0 %v7462
    %v7537 = vpop.f32.mrb[0].mxu0
    %v7538 = vadd.f32 0.0, %v7537
    %v7539 = vpop.f32.mrb[0].mxu0
    %v7540 = vpop.f32.mrb[0].mxu0
    %v7541 = vadd.f32 0.0, %v7540
    %v7542 = vpop.f32.mrb[0].mxu0
    %7543 = vmatprep.mubr.bf16.mxu0 0
    %7544 = vmatmul.mubr.bf16.gmra.mrb[0].mxu0 %v7465
    %v7545 = vpop.f32.mrb[0].mxu0
    %v7546 = vadd.f32 0.0, %v7545
    %v7547 = vpop.f32.mrb[0].mxu0
    %v7548 = vpop.f32.mrb[0].mxu0
    %v7549 = vadd.f32 0.0, %v7548
    %v7550 = vpop.f32.mrb[0].mxu0
    %7551 = vmatprep.mubr.bf16.mxu0 0
    %7552 = vmatmul.mubr.bf16.gmra.mrb[0].mxu0 %v7468
    %v7553 = vpop.f32.mrb[0].mxu0
    %v7554 = vadd.f32 0.0, %v7553
    %v7555 = vpop.f32.mrb[0].mxu0
    %v7556 = vpop.f32.mrb[0].mxu0
    %v7557 = vadd.f32 0.0, %v7556
    %v7558 = vpop.f32.mrb[0].mxu0
    %7559 = vmatprep.mubr.bf16.mxu0 0
    %7560 = vmatmul.mubr.bf16.gmra.mrb[0].mxu0 %v7471
    %v7561 = vpop.f32.mrb[0].mxu0
    %v7562 = vadd.f32 0.0, %v7561
    %v7563 = vpop.f32.mrb[0].mxu0
    %v7564 = vpop.f32.mrb[0].mxu0
    %v7565 = vadd.f32 0.0, %v7564
    %v7566 = vpop.f32.mrb[0].mxu0
    %7567 = vmatprep.mubr.bf16.mxu0 0
    %7568 = vmatmul.mubr.bf16.gmra.mrb[0].mxu0 %v7474
    %v7569 = vpop.f32.mrb[0].mxu0
    %v7570 = vadd.f32 0.0, %v7569
    %v7571 = vpop.f32.mrb[0].mxu0
    %v7572 = vpop.f32.mrb[0].mxu0
    %v7573 = vadd.f32 0.0, %v7572
    %v7574 = vpop.f32.mrb[0].mxu0
    %7575 = vmatprep.mubr.bf16.mxu0 0
    %7576 = vmatmul.mubr.bf16.gmra.mrb[0].mxu0 %v7477
    %v7577 = vpop.f32.mrb[0].mxu0
    %v7578 = vadd.f32 0.0, %v7577
    %v7579 = vpop.f32.mrb[0].mxu0
    %v7580 = vpop.f32.mrb[0].mxu0
    %v7581 = vadd.f32 0.0, %v7580
    %v7582 = vpop.f32.mrb[0].mxu0
    %7583 = vdwg.mxu0
    %v7584 = vadd.f32 %v7418, %v7514
    %v7585 = vadd.f32 %v7419, %v7517
    %v7586 = vadd.f32 %v7420, %v7522
    %v7587 = vadd.f32 %v7421, %v7525
    %v7588 = vadd.f32 %v7422, %v7530
    %v7589 = vadd.f32 %v7423, %v7533
    %v7590 = vadd.f32 %v7424, %v7538
    %v7591 = vadd.f32 %v7425, %v7541
    %v7592 = vadd.f32 %v7426, %v7546
    %v7593 = vadd.f32 %v7427, %v7549
    %v7594 = vadd.f32 %v7428, %v7554
    %v7595 = vadd.f32 %v7429, %v7557
    %v7596 = vadd.f32 %v7430, %v7562
    %v7597 = vadd.f32 %v7431, %v7565
    %v7598 = vadd.f32 %v7432, %v7570
    %v7599 = vadd.f32 %v7433, %v7573
    %v7600 = vadd.f32 %v7434, %v7578
    %v7601 = vadd.f32 %v7435, %v7581
    %v7602 = vld [vmem:[%s2 + $0x48] sm:$0xf]
    %v7603 = vld [vmem:[%s2 + $0x4c] sm:$0xf]
    %v7604 = vld [vmem:[%s2 + $0x50] sm:$0xf]
    %v7605 = vld [vmem:[%s2 + $0x54] sm:$0xf]
    %v7610 = vunpack.c.l.b16 %v7602
    %v7611 = vunpack.c.l.b16 %v7603
    %v7612 = vunpack.c.l.b16 %v7604
    %v7613 = vunpack.c.l.b16 %v7605
    %v7614 = vpack.c.b16 %v7611, %v7610
    %v7615 = vpack.c.b16 %v7613, %v7612
    %v7619 = vsel %vm930, %v6929, 0
    %v7622 = vsel %vm930, %v6930, 0
    %v7625 = vsel %vm930, %v6931, 0
    %v7628 = vsel %vm930, %v6932, 0
    %v7631 = vsel %vm930, %v6933, 0
    %v7634 = vsel %vm930, %v6934, 0
    %v7637 = vsel %vm930, %v6935, 0
    %v7640 = vsel %vm930, %v6936, 0
    %v7643 = vsel %vm930, %v6937, 0
    %7645 = vmatprep.subr.bf16.mxu0 0
    %7646 = vmatpush1.bf16.msra.mxu0 %v7614
    %7647 = vmatprep.subr.bf16.mxu0 0
    %7648 = vmatpush1.bf16.msra.mxu0 %v7615
    %7649 = vmatprep.subr.bf16.mxu0 0
    %7650 = vmatpush1.bf16.msra.mxu0 0
    %7651 = vmatprep.subr.bf16.mxu0 0
    %7652 = vmatpush1.bf16.msra.mxu0 0
    %7653 = vmatprep.subr.bf16.mxu0 0
    %7654 = vmatpush1.bf16.msra.mxu0 0
    %7655 = vmatprep.subr.bf16.mxu0 0
    %7656 = vmatpush1.bf16.msra.mxu0 0
    %7657 = vmatprep.subr.bf16.mxu0 0
    %7658 = vmatpush1.bf16.msra.mxu0 0
    %7659 = vmatprep.subr.bf16.mxu0 0
    %7660 = vmatpush1.bf16.msra.mxu0 0
    %7661 = vmatprep.subr.bf16.mxu0 0
    %7662 = vmatpush1.bf16.msra.mxu0 0
    %7663 = vmatprep.subr.bf16.mxu0 0
    %7664 = vmatpush1.bf16.msra.mxu0 0
    %7665 = vmatprep.subr.bf16.mxu0 0
    %7666 = vmatpush1.bf16.msra.mxu0 0
    %7667 = vmatprep.subr.bf16.mxu0 0
    %7668 = vmatpush1.bf16.msra.mxu0 0
    %7669 = vmatprep.subr.bf16.mxu0 0
    %7670 = vmatpush1.bf16.msra.mxu0 0
    %7671 = vmatprep.subr.bf16.mxu0 0
    %7672 = vmatpush1.bf16.msra.mxu0 0
    %7673 = vmatprep.subr.bf16.mxu0 0
    %7674 = vmatpush1.bf16.msra.mxu0 0
    %7675 = vmatprep.subr.bf16.mxu0 0
    %7676 = vmatpush1.bf16.msra.mxu0 0
    %7677 = vmatprep.mubr.bf16.mxu0 0
    %7678 = vmatmul.mubr.bf16.gmra.mrb[0].mxu0 %v7619
    %v7679 = vpop.f32.mrb[0].mxu0
    %v7680 = vadd.f32 0.0, %v7679
    %v7681 = vpop.f32.mrb[0].mxu0
    %v7682 = vpop.f32.mrb[0].mxu0
    %v7683 = vadd.f32 0.0, %v7682
    %v7684 = vpop.f32.mrb[0].mxu0
    %7685 = vmatprep.mubr.bf16.mxu0 0
    %7686 = vmatmul.mubr.bf16.gmra.mrb[0].mxu0 %v7622
    %v7687 = vpop.f32.mrb[0].mxu0
    %v7688 = vadd.f32 0.0, %v7687
    %v7689 = vpop.f32.mrb[0].mxu0
    %v7690 = vpop.f32.mrb[0].mxu0
    %v7691 = vadd.f32 0.0, %v7690
    %v7692 = vpop.f32.mrb[0].mxu0
    %7693 = vmatprep.mubr.bf16.mxu0 0
    %7694 = vmatmul.mubr.bf16.gmra.mrb[0].mxu0 %v7625
    %v7695 = vpop.f32.mrb[0].mxu0
    %v7696 = vadd.f32 0.0, %v7695
    %v7697 = vpop.f32.mrb[0].mxu0
    %v7698 = vpop.f32.mrb[0].mxu0
    %v7699 = vadd.f32 0.0, %v7698
    %v7700 = vpop.f32.mrb[0].mxu0
    %7701 = vmatprep.mubr.bf16.mxu0 0
    %7702 = vmatmul.mubr.bf16.gmra.mrb[0].mxu0 %v7628
    %v7703 = vpop.f32.mrb[0].mxu0
    %v7704 = vadd.f32 0.0, %v7703
    %v7705 = vpop.f32.mrb[0].mxu0
    %v7706 = vpop.f32.mrb[0].mxu0
    %v7707 = vadd.f32 0.0, %v7706
    %v7708 = vpop.f32.mrb[0].mxu0
    %7709 = vmatprep.mubr.bf16.mxu0 0
    %7710 = vmatmul.mubr.bf16.gmra.mrb[0].mxu0 %v7631
    %v7711 = vpop.f32.mrb[0].mxu0
    %v7712 = vadd.f32 0.0, %v7711
    %v7713 = vpop.f32.mrb[0].mxu0
    %v7714 = vpop.f32.mrb[0].mxu0
    %v7715 = vadd.f32 0.0, %v7714
    %v7716 = vpop.f32.mrb[0].mxu0
    %7717 = vmatprep.mubr.bf16.mxu0 0
    %7718 = vmatmul.mubr.bf16.gmra.mrb[0].mxu0 %v7634
    %v7719 = vpop.f32.mrb[0].mxu0
    %v7720 = vadd.f32 0.0, %v7719
    %v7721 = vpop.f32.mrb[0].mxu0
    %v7722 = vpop.f32.mrb[0].mxu0
    %v7723 = vadd.f32 0.0, %v7722
    %v7724 = vpop.f32.mrb[0].mxu0
    %7725 = vmatprep.mubr.bf16.mxu0 0
    %7726 = vmatmul.mubr.bf16.gmra.mrb[0].mxu0 %v7637
    %v7727 = vpop.f32.mrb[0].mxu0
    %v7728 = vadd.f32 0.0, %v7727
    %v7729 = vpop.f32.mrb[0].mxu0
    %v7730 = vpop.f32.mrb[0].mxu0
    %v7731 = vadd.f32 0.0, %v7730
    %v7732 = vpop.f32.mrb[0].mxu0
    %7733 = vmatprep.mubr.bf16.mxu0 0
    %7734 = vmatmul.mubr.bf16.gmra.mrb[0].mxu0 %v7640
    %v7735 = vpop.f32.mrb[0].mxu0
    %v7736 = vadd.f32 0.0, %v7735
    %v7737 = vpop.f32.mrb[0].mxu0
    %v7738 = vpop.f32.mrb[0].mxu0
    %v7739 = vadd.f32 0.0, %v7738
    %v7740 = vpop.f32.mrb[0].mxu0
    %7741 = vmatprep.mubr.bf16.mxu0 0
    %7742 = vmatmul.mubr.bf16.gmra.mrb[0].mxu0 %v7643
    %v7743 = vpop.f32.mrb[0].mxu0
    %v7744 = vadd.f32 0.0, %v7743
    %v7745 = vpop.f32.mrb[0].mxu0
    %v7746 = vpop.f32.mrb[0].mxu0
    %v7747 = vadd.f32 0.0, %v7746
    %v7748 = vpop.f32.mrb[0].mxu0
    %7749 = vdwg.mxu0
    %v7750 = vadd.f32 %v7584, %v7680
    %v7751 = vadd.f32 %v7585, %v7683
    %v7752 = vadd.f32 %v7586, %v7688
    %v7753 = vadd.f32 %v7587, %v7691
    %v7754 = vadd.f32 %v7588, %v7696
    %v7755 = vadd.f32 %v7589, %v7699
    %v7756 = vadd.f32 %v7590, %v7704
    %v7757 = vadd.f32 %v7591, %v7707
    %v7758 = vadd.f32 %v7592, %v7712
    %v7759 = vadd.f32 %v7593, %v7715
    %v7760 = vadd.f32 %v7594, %v7720
    %v7761 = vadd.f32 %v7595, %v7723
    %v7762 = vadd.f32 %v7596, %v7728
    %v7763 = vadd.f32 %v7597, %v7731
    %v7764 = vadd.f32 %v7598, %v7736
    %v7765 = vadd.f32 %v7599, %v7739
    %v7766 = vadd.f32 %v7600, %v7744
    %v7767 = vadd.f32 %v7601, %v7747
    %v7768 = vld [vmem:[%s2 + $0x58] sm:$0xf]
    %v7769 = vld [vmem:[%s2 + $0x5c] sm:$0xf]
    %v7770 = vld [vmem:[%s2 + $0x60] sm:$0xf]
    %v7771 = vld [vmem:[%s2 + $0x64] sm:$0xf]
    %v7776 = vunpack.c.l.b16 %v7768
    %v7777 = vunpack.c.l.b16 %v7769
    %v7778 = vunpack.c.l.b16 %v7770
    %v7779 = vunpack.c.l.b16 %v7771
    %v7780 = vpack.c.b16 %v7777, %v7776
    %v7781 = vpack.c.b16 %v7779, %v7778
    %v7785 = vsel %vm930, %v6938, 0
    %v7788 = vsel %vm930, %v6939, 0
    %v7791 = vsel %vm930, %v6940, 0
    %v7794 = vsel %vm930, %v6941, 0
    %v7797 = vsel %vm930, %v6942, 0
    %v7800 = vsel %vm930, %v6943, 0
    %v7803 = vsel %vm930, %v6944, 0
    %v7806 = vsel %vm930, %v6945, 0
    %v7809 = vsel %vm930, %v6946, 0
    %7811 = vmatprep.subr.bf16.mxu0 0
    %7812 = vmatpush1.bf16.msra.mxu0 %v7780
    %7813 = vmatprep.subr.bf16.mxu0 0
    %7814 = vmatpush1.bf16.msra.mxu0 %v7781
    %7815 = vmatprep.subr.bf16.mxu0 0
    %7816 = vmatpush1.bf16.msra.mxu0 0
    %7817 = vmatprep.subr.bf16.mxu0 0
    %7818 = vmatpush1.bf16.msra.mxu0 0
    %7819 = vmatprep.subr.bf16.mxu0 0
    %7820 = vmatpush1.bf16.msra.mxu0 0
    %7821 = vmatprep.subr.bf16.mxu0 0
    %7822 = vmatpush1.bf16.msra.mxu0 0
    %7823 = vmatprep.subr.bf16.mxu0 0
    %7824 = vmatpush1.bf16.msra.mxu0 0
    %7825 = vmatprep.subr.bf16.mxu0 0
    %7826 = vmatpush1.bf16.msra.mxu0 0
    %7827 = vmatprep.subr.bf16.mxu0 0
    %7828 = vmatpush1.bf16.msra.mxu0 0
    %7829 = vmatprep.subr.bf16.mxu0 0
    %7830 = vmatpush1.bf16.msra.mxu0 0
    %7831 = vmatprep.subr.bf16.mxu0 0
    %7832 = vmatpush1.bf16.msra.mxu0 0
    %7833 = vmatprep.subr.bf16.mxu0 0
    %7834 = vmatpush1.bf16.msra.mxu0 0
    %7835 = vmatprep.subr.bf16.mxu0 0
    %7836 = vmatpush1.bf16.msra.mxu0 0
    %7837 = vmatprep.subr.bf16.mxu0 0
    %7838 = vmatpush1.bf16.msra.mxu0 0
    %7839 = vmatprep.subr.bf16.mxu0 0
    %7840 = vmatpush1.bf16.msra.mxu0 0
    %7841 = vmatprep.subr.bf16.mxu0 0
    %7842 = vmatpush1.bf16.msra.mxu0 0
    %7843 = vmatprep.mubr.bf16.mxu0 0
    %7844 = vmatmul.mubr.bf16.gmra.mrb[0].mxu0 %v7785
    %v7845 = vpop.f32.mrb[0].mxu0
    %v7846 = vadd.f32 0.0, %v7845
    %v7847 = vpop.f32.mrb[0].mxu0
    %v7848 = vpop.f32.mrb[0].mxu0
    %v7849 = vadd.f32 0.0, %v7848
    %v7850 = vpop.f32.mrb[0].mxu0
    %7851 = vmatprep.mubr.bf16.mxu0 0
    %7852 = vmatmul.mubr.bf16.gmra.mrb[0].mxu0 %v7788
    %v7853 = vpop.f32.mrb[0].mxu0
    %v7854 = vadd.f32 0.0, %v7853
    %v7855 = vpop.f32.mrb[0].mxu0
    %v7856 = vpop.f32.mrb[0].mxu0
    %v7857 = vadd.f32 0.0, %v7856
    %v7858 = vpop.f32.mrb[0].mxu0
    %7859 = vmatprep.mubr.bf16.mxu0 0
    %7860 = vmatmul.mubr.bf16.gmra.mrb[0].mxu0 %v7791
    %v7861 = vpop.f32.mrb[0].mxu0
    %v7862 = vadd.f32 0.0, %v7861
    %v7863 = vpop.f32.mrb[0].mxu0
    %v7864 = vpop.f32.mrb[0].mxu0
    %v7865 = vadd.f32 0.0, %v7864
    %v7866 = vpop.f32.mrb[0].mxu0
    %7867 = vmatprep.mubr.bf16.mxu0 0
    %7868 = vmatmul.mubr.bf16.gmra.mrb[0].mxu0 %v7794
    %v7869 = vpop.f32.mrb[0].mxu0
    %v7870 = vadd.f32 0.0, %v7869
    %v7871 = vpop.f32.mrb[0].mxu0
    %v7872 = vpop.f32.mrb[0].mxu0
    %v7873 = vadd.f32 0.0, %v7872
    %v7874 = vpop.f32.mrb[0].mxu0
    %7875 = vmatprep.mubr.bf16.mxu0 0
    %7876 = vmatmul.mubr.bf16.gmra.mrb[0].mxu0 %v7797
    %v7877 = vpop.f32.mrb[0].mxu0
    %v7878 = vadd.f32 0.0, %v7877
    %v7879 = vpop.f32.mrb[0].mxu0
    %v7880 = vpop.f32.mrb[0].mxu0
    %v7881 = vadd.f32 0.0, %v7880
    %v7882 = vpop.f32.mrb[0].mxu0
    %7883 = vmatprep.mubr.bf16.mxu0 0
    %7884 = vmatmul.mubr.bf16.gmra.mrb[0].mxu0 %v7800
    %v7885 = vpop.f32.mrb[0].mxu0
    %v7886 = vadd.f32 0.0, %v7885
    %v7887 = vpop.f32.mrb[0].mxu0
    %v7888 = vpop.f32.mrb[0].mxu0
    %v7889 = vadd.f32 0.0, %v7888
    %v7890 = vpop.f32.mrb[0].mxu0
    %7891 = vmatprep.mubr.bf16.mxu0 0
    %7892 = vmatmul.mubr.bf16.gmra.mrb[0].mxu0 %v7803
    %v7893 = vpop.f32.mrb[0].mxu0
    %v7894 = vadd.f32 0.0, %v7893
    %v7895 = vpop.f32.mrb[0].mxu0
    %v7896 = vpop.f32.mrb[0].mxu0
    %v7897 = vadd.f32 0.0, %v7896
    %v7898 = vpop.f32.mrb[0].mxu0
    %7899 = vmatprep.mubr.bf16.mxu0 0
    %7900 = vmatmul.mubr.bf16.gmra.mrb[0].mxu0 %v7806
    %v7901 = vpop.f32.mrb[0].mxu0
    %v7902 = vadd.f32 0.0, %v7901
    %v7903 = vpop.f32.mrb[0].mxu0
    %v7904 = vpop.f32.mrb[0].mxu0
    %v7905 = vadd.f32 0.0, %v7904
    %v7906 = vpop.f32.mrb[0].mxu0
    %7907 = vmatprep.mubr.bf16.mxu0 0
    %7908 = vmatmul.mubr.bf16.gmra.mrb[0].mxu0 %v7809
    %v7909 = vpop.f32.mrb[0].mxu0
    %v7910 = vadd.f32 0.0, %v7909
    %v7911 = vpop.f32.mrb[0].mxu0
    %v7912 = vpop.f32.mrb[0].mxu0
    %v7913 = vadd.f32 0.0, %v7912
    %v7914 = vpop.f32.mrb[0].mxu0
    %7915 = vdwg.mxu0
    %v7916 = vadd.f32 %v7750, %v7846
    %v7917 = vadd.f32 %v7751, %v7849
    %v7918 = vadd.f32 %v7752, %v7854
    %v7919 = vadd.f32 %v7753, %v7857
    %v7920 = vadd.f32 %v7754, %v7862
    %v7921 = vadd.f32 %v7755, %v7865
    %v7922 = vadd.f32 %v7756, %v7870
    %v7923 = vadd.f32 %v7757, %v7873
    %v7924 = vadd.f32 %v7758, %v7878
    %v7925 = vadd.f32 %v7759, %v7881
    %v7926 = vadd.f32 %v7760, %v7886
    %v7927 = vadd.f32 %v7761, %v7889
    %v7928 = vadd.f32 %v7762, %v7894
    %v7929 = vadd.f32 %v7763, %v7897
    %v7930 = vadd.f32 %v7764, %v7902
    %v7931 = vadd.f32 %v7765, %v7905
    %v7932 = vadd.f32 %v7766, %v7910
    %v7933 = vadd.f32 %v7767, %v7913
    %v7934 = vld [vmem:[%s2 + $0x68] sm:$0xf]
    %v7935 = vld [vmem:[%s2 + $0x6c] sm:$0xf]
    %v7936 = vld [vmem:[%s2 + $0x70] sm:$0xf]
    %v7937 = vld [vmem:[%s2 + $0x74] sm:$0xf]
    %v7942 = vunpack.c.l.b16 %v7934
    %v7943 = vunpack.c.l.b16 %v7935
    %v7944 = vunpack.c.l.b16 %v7936
    %v7945 = vunpack.c.l.b16 %v7937
    %v7946 = vpack.c.b16 %v7943, %v7942
    %v7947 = vpack.c.b16 %v7945, %v7944
    %v7951 = vsel %vm930, %v6947, 0
    %v7954 = vsel %vm930, %v6948, 0
    %v7957 = vsel %vm930, %v6949, 0
    %v7960 = vsel %vm930, %v6950, 0
    %v7963 = vsel %vm930, %v6951, 0
    %v7966 = vsel %vm930, %v6952, 0
    %v7969 = vsel %vm930, %v6953, 0
    %v7972 = vsel %vm930, %v6954, 0
    %v7975 = vsel %vm930, %v6955, 0
    %7977 = vmatprep.subr.bf16.mxu0 0
    %7978 = vmatpush1.bf16.msra.mxu0 %v7946
    %7979 = vmatprep.subr.bf16.mxu0 0
    %7980 = vmatpush1.bf16.msra.mxu0 %v7947
    %7981 = vmatprep.subr.bf16.mxu0 0
    %7982 = vmatpush1.bf16.msra.mxu0 0
    %7983 = vmatprep.subr.bf16.mxu0 0
    %7984 = vmatpush1.bf16.msra.mxu0 0
    %7985 = vmatprep.subr.bf16.mxu0 0
    %7986 = vmatpush1.bf16.msra.mxu0 0
    %7987 = vmatprep.subr.bf16.mxu0 0
    %7988 = vmatpush1.bf16.msra.mxu0 0
    %7989 = vmatprep.subr.bf16.mxu0 0
    %7990 = vmatpush1.bf16.msra.mxu0 0
    %7991 = vmatprep.subr.bf16.mxu0 0
    %7992 = vmatpush1.bf16.msra.mxu0 0
    %7993 = vmatprep.subr.bf16.mxu0 0
    %7994 = vmatpush1.bf16.msra.mxu0 0
    %7995 = vmatprep.subr.bf16.mxu0 0
    %7996 = vmatpush1.bf16.msra.mxu0 0
    %7997 = vmatprep.subr.bf16.mxu0 0
    %7998 = vmatpush1.bf16.msra.mxu0 0
    %7999 = vmatprep.subr.bf16.mxu0 0
    %8000 = vmatpush1.bf16.msra.mxu0 0
    %8001 = vmatprep.subr.bf16.mxu0 0
    %8002 = vmatpush1.bf16.msra.mxu0 0
    %8003 = vmatprep.subr.bf16.mxu0 0
    %8004 = vmatpush1.bf16.msra.mxu0 0
    %8005 = vmatprep.subr.bf16.mxu0 0
    %8006 = vmatpush1.bf16.msra.mxu0 0
    %8007 = vmatprep.subr.bf16.mxu0 0
    %8008 = vmatpush1.bf16.msra.mxu0 0
    %8009 = vmatprep.mubr.bf16.mxu0 0
    %8010 = vmatmul.mubr.bf16.gmra.mrb[0].mxu0 %v7951
    %v8011 = vpop.f32.mrb[0].mxu0
    %v8012 = vadd.f32 0.0, %v8011
    %v8013 = vpop.f32.mrb[0].mxu0
    %v8014 = vpop.f32.mrb[0].mxu0
    %v8015 = vadd.f32 0.0, %v8014
    %v8016 = vpop.f32.mrb[0].mxu0
    %8017 = vmatprep.mubr.bf16.mxu0 0
    %8018 = vmatmul.mubr.bf16.gmra.mrb[0].mxu0 %v7954
    %v8019 = vpop.f32.mrb[0].mxu0
    %v8020 = vadd.f32 0.0, %v8019
    %v8021 = vpop.f32.mrb[0].mxu0
    %v8022 = vpop.f32.mrb[0].mxu0
    %v8023 = vadd.f32 0.0, %v8022
    %v8024 = vpop.f32.mrb[0].mxu0
    %8025 = vmatprep.mubr.bf16.mxu0 0
    %8026 = vmatmul.mubr.bf16.gmra.mrb[0].mxu0 %v7957
    %v8027 = vpop.f32.mrb[0].mxu0
    %v8028 = vadd.f32 0.0, %v8027
    %v8029 = vpop.f32.mrb[0].mxu0
    %v8030 = vpop.f32.mrb[0].mxu0
    %v8031 = vadd.f32 0.0, %v8030
    %v8032 = vpop.f32.mrb[0].mxu0
    %8033 = vmatprep.mubr.bf16.mxu0 0
    %8034 = vmatmul.mubr.bf16.gmra.mrb[0].mxu0 %v7960
    %v8035 = vpop.f32.mrb[0].mxu0
    %v8036 = vadd.f32 0.0, %v8035
    %v8037 = vpop.f32.mrb[0].mxu0
    %v8038 = vpop.f32.mrb[0].mxu0
    %v8039 = vadd.f32 0.0, %v8038
    %v8040 = vpop.f32.mrb[0].mxu0
    %8041 = vmatprep.mubr.bf16.mxu0 0
    %8042 = vmatmul.mubr.bf16.gmra.mrb[0].mxu0 %v7963
    %v8043 = vpop.f32.mrb[0].mxu0
    %v8044 = vadd.f32 0.0, %v8043
    %v8045 = vpop.f32.mrb[0].mxu0
    %v8046 = vpop.f32.mrb[0].mxu0
    %v8047 = vadd.f32 0.0, %v8046
    %v8048 = vpop.f32.mrb[0].mxu0
    %8049 = vmatprep.mubr.bf16.mxu0 0
    %8050 = vmatmul.mubr.bf16.gmra.mrb[0].mxu0 %v7966
    %v8051 = vpop.f32.mrb[0].mxu0
    %v8052 = vadd.f32 0.0, %v8051
    %v8053 = vpop.f32.mrb[0].mxu0
    %v8054 = vpop.f32.mrb[0].mxu0
    %v8055 = vadd.f32 0.0, %v8054
    %v8056 = vpop.f32.mrb[0].mxu0
    %8057 = vmatprep.mubr.bf16.mxu0 0
    %8058 = vmatmul.mubr.bf16.gmra.mrb[0].mxu0 %v7969
    %v8059 = vpop.f32.mrb[0].mxu0
    %v8060 = vadd.f32 0.0, %v8059
    %v8061 = vpop.f32.mrb[0].mxu0
    %v8062 = vpop.f32.mrb[0].mxu0
    %v8063 = vadd.f32 0.0, %v8062
    %v8064 = vpop.f32.mrb[0].mxu0
    %8065 = vmatprep.mubr.bf16.mxu0 0
    %8066 = vmatmul.mubr.bf16.gmra.mrb[0].mxu0 %v7972
    %v8067 = vpop.f32.mrb[0].mxu0
    %v8068 = vadd.f32 0.0, %v8067
    %v8069 = vpop.f32.mrb[0].mxu0
    %v8070 = vpop.f32.mrb[0].mxu0
    %v8071 = vadd.f32 0.0, %v8070
    %v8072 = vpop.f32.mrb[0].mxu0
    %8073 = vmatprep.mubr.bf16.mxu0 0
    %8074 = vmatmul.mubr.bf16.gmra.mrb[0].mxu0 %v7975
    %v8075 = vpop.f32.mrb[0].mxu0
    %v8076 = vadd.f32 0.0, %v8075
    %v8077 = vpop.f32.mrb[0].mxu0
    %v8078 = vpop.f32.mrb[0].mxu0
    %v8079 = vadd.f32 0.0, %v8078
    %v8080 = vpop.f32.mrb[0].mxu0
    %8081 = vdwg.mxu0
    %v8082 = vadd.f32 %v7916, %v8012
    %v8083 = vadd.f32 %v7917, %v8015
    %v8084 = vadd.f32 %v7918, %v8020
    %v8085 = vadd.f32 %v7919, %v8023
    %v8086 = vadd.f32 %v7920, %v8028
    %v8087 = vadd.f32 %v7921, %v8031
    %v8088 = vadd.f32 %v7922, %v8036
    %v8089 = vadd.f32 %v7923, %v8039
    %v8090 = vadd.f32 %v7924, %v8044
    %v8091 = vadd.f32 %v7925, %v8047
    %v8092 = vadd.f32 %v7926, %v8052
    %v8093 = vadd.f32 %v7927, %v8055
    %v8094 = vadd.f32 %v7928, %v8060
    %v8095 = vadd.f32 %v7929, %v8063
    %v8096 = vadd.f32 %v7930, %v8068
    %v8097 = vadd.f32 %v7931, %v8071
    %v8098 = vadd.f32 %v7932, %v8076
    %v8099 = vadd.f32 %v7933, %v8079
    %v8100 = vld [vmem:[%s2 + $0x78] sm:$0xf]
    %v8101 = vld [vmem:[%s2 + $0x7c] sm:$0xf]
    %v8102 = vld [vmem:[%s2 + $0x80] sm:$0xf]
    %v8103 = vld [vmem:[%s2 + $0x84] sm:$0xf]
    %v8108 = vunpack.c.l.b16 %v8100
    %v8109 = vunpack.c.l.b16 %v8101
    %v8110 = vunpack.c.l.b16 %v8102
    %v8111 = vunpack.c.l.b16 %v8103
    %v8112 = vpack.c.b16 %v8109, %v8108
    %v8113 = vpack.c.b16 %v8111, %v8110
    %v8117 = vsel %vm930, %v6956, 0
    %v8120 = vsel %vm930, %v6957, 0
    %v8123 = vsel %vm930, %v6958, 0
    %v8126 = vsel %vm930, %v6959, 0
    %v8129 = vsel %vm930, %v6960, 0
    %v8132 = vsel %vm930, %v6961, 0
    %v8135 = vsel %vm930, %v6962, 0
    %v8138 = vsel %vm930, %v6963, 0
    %v8141 = vsel %vm930, %v6964, 0
    %8143 = vmatprep.subr.bf16.mxu0 0
    %8144 = vmatpush1.bf16.msra.mxu0 %v8112
    %8145 = vmatprep.subr.bf16.mxu0 0
    %8146 = vmatpush1.bf16.msra.mxu0 %v8113
    %8147 = vmatprep.subr.bf16.mxu0 0
    %8148 = vmatpush1.bf16.msra.mxu0 0
    %8149 = vmatprep.subr.bf16.mxu0 0
    %8150 = vmatpush1.bf16.msra.mxu0 0
    %8151 = vmatprep.subr.bf16.mxu0 0
    %8152 = vmatpush1.bf16.msra.mxu0 0
    %8153 = vmatprep.subr.bf16.mxu0 0
    %8154 = vmatpush1.bf16.msra.mxu0 0
    %8155 = vmatprep.subr.bf16.mxu0 0
    %8156 = vmatpush1.bf16.msra.mxu0 0
    %8157 = vmatprep.subr.bf16.mxu0 0
    %8158 = vmatpush1.bf16.msra.mxu0 0
    %8159 = vmatprep.subr.bf16.mxu0 0
    %8160 = vmatpush1.bf16.msra.mxu0 0
    %8161 = vmatprep.subr.bf16.mxu0 0
    %8162 = vmatpush1.bf16.msra.mxu0 0
    %8163 = vmatprep.subr.bf16.mxu0 0
    %8164 = vmatpush1.bf16.msra.mxu0 0
    %8165 = vmatprep.subr.bf16.mxu0 0
    %8166 = vmatpush1.bf16.msra.mxu0 0
    %8167 = vmatprep.subr.bf16.mxu0 0
    %8168 = vmatpush1.bf16.msra.mxu0 0
    %8169 = vmatprep.subr.bf16.mxu0 0
    %8170 = vmatpush1.bf16.msra.mxu0 0
    %8171 = vmatprep.subr.bf16.mxu0 0
    %8172 = vmatpush1.bf16.msra.mxu0 0
    %8173 = vmatprep.subr.bf16.mxu0 0
    %8174 = vmatpush1.bf16.msra.mxu0 0
    %8175 = vmatprep.mubr.bf16.mxu0 0
    %8176 = vmatmul.mubr.bf16.gmra.mrb[0].mxu0 %v8117
    %v8177 = vpop.f32.mrb[0].mxu0
    %v8178 = vadd.f32 0.0, %v8177
    %v8179 = vpop.f32.mrb[0].mxu0
    %v8180 = vpop.f32.mrb[0].mxu0
    %v8181 = vadd.f32 0.0, %v8180
    %v8182 = vpop.f32.mrb[0].mxu0
    %8183 = vmatprep.mubr.bf16.mxu0 0
    %8184 = vmatmul.mubr.bf16.gmra.mrb[0].mxu0 %v8120
    %v8185 = vpop.f32.mrb[0].mxu0
    %v8186 = vadd.f32 0.0, %v8185
    %v8187 = vpop.f32.mrb[0].mxu0
    %v8188 = vpop.f32.mrb[0].mxu0
    %v8189 = vadd.f32 0.0, %v8188
    %v8190 = vpop.f32.mrb[0].mxu0
    %8191 = vmatprep.mubr.bf16.mxu0 0
    %8192 = vmatmul.mubr.bf16.gmra.mrb[0].mxu0 %v8123
    %v8193 = vpop.f32.mrb[0].mxu0
    %v8194 = vadd.f32 0.0, %v8193
    %v8195 = vpop.f32.mrb[0].mxu0
    %v8196 = vpop.f32.mrb[0].mxu0
    %v8197 = vadd.f32 0.0, %v8196
    %v8198 = vpop.f32.mrb[0].mxu0
    %8199 = vmatprep.mubr.bf16.mxu0 0
    %8200 = vmatmul.mubr.bf16.gmra.mrb[0].mxu0 %v8126
    %v8201 = vpop.f32.mrb[0].mxu0
    %v8202 = vadd.f32 0.0, %v8201
    %v8203 = vpop.f32.mrb[0].mxu0
    %v8204 = vpop.f32.mrb[0].mxu0
    %v8205 = vadd.f32 0.0, %v8204
    %v8206 = vpop.f32.mrb[0].mxu0
    %8207 = vmatprep.mubr.bf16.mxu0 0
    %8208 = vmatmul.mubr.bf16.gmra.mrb[0].mxu0 %v8129
    %v8209 = vpop.f32.mrb[0].mxu0
    %v8210 = vadd.f32 0.0, %v8209
    %v8211 = vpop.f32.mrb[0].mxu0
    %v8212 = vpop.f32.mrb[0].mxu0
    %v8213 = vadd.f32 0.0, %v8212
    %v8214 = vpop.f32.mrb[0].mxu0
    %8215 = vmatprep.mubr.bf16.mxu0 0
    %8216 = vmatmul.mubr.bf16.gmra.mrb[0].mxu0 %v8132
    %v8217 = vpop.f32.mrb[0].mxu0
    %v8218 = vadd.f32 0.0, %v8217
    %v8219 = vpop.f32.mrb[0].mxu0
    %v8220 = vpop.f32.mrb[0].mxu0
    %v8221 = vadd.f32 0.0, %v8220
    %v8222 = vpop.f32.mrb[0].mxu0
    %8223 = vmatprep.mubr.bf16.mxu0 0
    %8224 = vmatmul.mubr.bf16.gmra.mrb[0].mxu0 %v8135
    %v8225 = vpop.f32.mrb[0].mxu0
    %v8226 = vadd.f32 0.0, %v8225
    %v8227 = vpop.f32.mrb[0].mxu0
    %v8228 = vpop.f32.mrb[0].mxu0
    %v8229 = vadd.f32 0.0, %v8228
    %v8230 = vpop.f32.mrb[0].mxu0
    %8231 = vmatprep.mubr.bf16.mxu0 0
    %8232 = vmatmul.mubr.bf16.gmra.mrb[0].mxu0 %v8138
    %v8233 = vpop.f32.mrb[0].mxu0
    %v8234 = vadd.f32 0.0, %v8233
    %v8235 = vpop.f32.mrb[0].mxu0
    %v8236 = vpop.f32.mrb[0].mxu0
    %v8237 = vadd.f32 0.0, %v8236
    %v8238 = vpop.f32.mrb[0].mxu0
    %8239 = vmatprep.mubr.bf16.mxu0 0
    %8240 = vmatmul.mubr.bf16.gmra.mrb[0].mxu0 %v8141
    %v8241 = vpop.f32.mrb[0].mxu0
    %v8242 = vadd.f32 0.0, %v8241
    %v8243 = vpop.f32.mrb[0].mxu0
    %v8244 = vpop.f32.mrb[0].mxu0
    %v8245 = vadd.f32 0.0, %v8244
    %v8246 = vpop.f32.mrb[0].mxu0
    %8247 = vdwg.mxu0
    %v8248 = vadd.f32 %v8082, %v8178
    %v8249 = vadd.f32 %v8083, %v8181
    %v8250 = vadd.f32 %v8084, %v8186
    %v8251 = vadd.f32 %v8085, %v8189
    %v8252 = vadd.f32 %v8086, %v8194
    %v8253 = vadd.f32 %v8087, %v8197
    %v8254 = vadd.f32 %v8088, %v8202
    %v8255 = vadd.f32 %v8089, %v8205
    %v8256 = vadd.f32 %v8090, %v8210
    %v8257 = vadd.f32 %v8091, %v8213
    %v8258 = vadd.f32 %v8092, %v8218
    %v8259 = vadd.f32 %v8093, %v8221
    %v8260 = vadd.f32 %v8094, %v8226
    %v8261 = vadd.f32 %v8095, %v8229
    %v8262 = vadd.f32 %v8096, %v8234
    %v8263 = vadd.f32 %v8097, %v8237
    %v8264 = vadd.f32 %v8098, %v8242
    %v8265 = vadd.f32 %v8099, %v8245
    %v8266 = vld [vmem:[%s2 + $0x88] sm:$0xf]
    %v8267 = vld [vmem:[%s2 + $0x8c] sm:$0xf]
    %v8268 = vld [vmem:[%s2 + $0x90] sm:$0xf]
    %v8269 = vld [vmem:[%s2 + $0x94] sm:$0xf]
    %v8274 = vunpack.c.l.b16 %v8266
    %v8275 = vunpack.c.l.b16 %v8267
    %v8276 = vunpack.c.l.b16 %v8268
    %v8277 = vunpack.c.l.b16 %v8269
    %v8278 = vpack.c.b16 %v8275, %v8274
    %v8279 = vpack.c.b16 %v8277, %v8276
    %v8283 = vsel %vm930, %v6965, 0
    %v8286 = vsel %vm930, %v6966, 0
    %v8289 = vsel %vm930, %v6967, 0
    %v8292 = vsel %vm930, %v6968, 0
    %v8295 = vsel %vm930, %v6969, 0
    %v8298 = vsel %vm930, %v6970, 0
    %v8301 = vsel %vm930, %v6971, 0
    %v8304 = vsel %vm930, %v6972, 0
    %v8307 = vsel %vm930, %v6973, 0
    %8309 = vmatprep.subr.bf16.mxu0 0
    %8310 = vmatpush1.bf16.msra.mxu0 %v8278
    %8311 = vmatprep.subr.bf16.mxu0 0
    %8312 = vmatpush1.bf16.msra.mxu0 %v8279
    %8313 = vmatprep.subr.bf16.mxu0 0
    %8314 = vmatpush1.bf16.msra.mxu0 0
    %8315 = vmatprep.subr.bf16.mxu0 0
    %8316 = vmatpush1.bf16.msra.mxu0 0
    %8317 = vmatprep.subr.bf16.mxu0 0
    %8318 = vmatpush1.bf16.msra.mxu0 0
    %8319 = vmatprep.subr.bf16.mxu0 0
    %8320 = vmatpush1.bf16.msra.mxu0 0
    %8321 = vmatprep.subr.bf16.mxu0 0
    %8322 = vmatpush1.bf16.msra.mxu0 0
    %8323 = vmatprep.subr.bf16.mxu0 0
    %8324 = vmatpush1.bf16.msra.mxu0 0
    %8325 = vmatprep.subr.bf16.mxu0 0
    %8326 = vmatpush1.bf16.msra.mxu0 0
    %8327 = vmatprep.subr.bf16.mxu0 0
    %8328 = vmatpush1.bf16.msra.mxu0 0
    %8329 = vmatprep.subr.bf16.mxu0 0
    %8330 = vmatpush1.bf16.msra.mxu0 0
    %8331 = vmatprep.subr.bf16.mxu0 0
    %8332 = vmatpush1.bf16.msra.mxu0 0
    %8333 = vmatprep.subr.bf16.mxu0 0
    %8334 = vmatpush1.bf16.msra.mxu0 0
    %8335 = vmatprep.subr.bf16.mxu0 0
    %8336 = vmatpush1.bf16.msra.mxu0 0
    %8337 = vmatprep.subr.bf16.mxu0 0
    %8338 = vmatpush1.bf16.msra.mxu0 0
    %8339 = vmatprep.subr.bf16.mxu0 0
    %8340 = vmatpush1.bf16.msra.mxu0 0
    %8341 = vmatprep.mubr.bf16.mxu0 0
    %8342 = vmatmul.mubr.bf16.gmra.mrb[0].mxu0 %v8283
    %v8343 = vpop.f32.mrb[0].mxu0
    %v8344 = vadd.f32 0.0, %v8343
    %v8345 = vpop.f32.mrb[0].mxu0
    %v8346 = vpop.f32.mrb[0].mxu0
    %v8347 = vadd.f32 0.0, %v8346
    %v8348 = vpop.f32.mrb[0].mxu0
    %8349 = vmatprep.mubr.bf16.mxu0 0
    %8350 = vmatmul.mubr.bf16.gmra.mrb[0].mxu0 %v8286
    %v8351 = vpop.f32.mrb[0].mxu0
    %v8352 = vadd.f32 0.0, %v8351
    %v8353 = vpop.f32.mrb[0].mxu0
    %v8354 = vpop.f32.mrb[0].mxu0
    %v8355 = vadd.f32 0.0, %v8354
    %v8356 = vpop.f32.mrb[0].mxu0
    %8357 = vmatprep.mubr.bf16.mxu0 0
    %8358 = vmatmul.mubr.bf16.gmra.mrb[0].mxu0 %v8289
    %v8359 = vpop.f32.mrb[0].mxu0
    %v8360 = vadd.f32 0.0, %v8359
    %v8361 = vpop.f32.mrb[0].mxu0
    %v8362 = vpop.f32.mrb[0].mxu0
    %v8363 = vadd.f32 0.0, %v8362
    %v8364 = vpop.f32.mrb[0].mxu0
    %8365 = vmatprep.mubr.bf16.mxu0 0
    %8366 = vmatmul.mubr.bf16.gmra.mrb[0].mxu0 %v8292
    %v8367 = vpop.f32.mrb[0].mxu0
    %v8368 = vadd.f32 0.0, %v8367
    %v8369 = vpop.f32.mrb[0].mxu0
    %v8370 = vpop.f32.mrb[0].mxu0
    %v8371 = vadd.f32 0.0, %v8370
    %v8372 = vpop.f32.mrb[0].mxu0
    %8373 = vmatprep.mubr.bf16.mxu0 0
    %8374 = vmatmul.mubr.bf16.gmra.mrb[0].mxu0 %v8295
    %v8375 = vpop.f32.mrb[0].mxu0
    %v8376 = vadd.f32 0.0, %v8375
    %v8377 = vpop.f32.mrb[0].mxu0
    %v8378 = vpop.f32.mrb[0].mxu0
    %v8379 = vadd.f32 0.0, %v8378
    %v8380 = vpop.f32.mrb[0].mxu0
    %8381 = vmatprep.mubr.bf16.mxu0 0
    %8382 = vmatmul.mubr.bf16.gmra.mrb[0].mxu0 %v8298
    %v8383 = vpop.f32.mrb[0].mxu0
    %v8384 = vadd.f32 0.0, %v8383
    %v8385 = vpop.f32.mrb[0].mxu0
    %v8386 = vpop.f32.mrb[0].mxu0
    %v8387 = vadd.f32 0.0, %v8386
    %v8388 = vpop.f32.mrb[0].mxu0
    %8389 = vmatprep.mubr.bf16.mxu0 0
    %8390 = vmatmul.mubr.bf16.gmra.mrb[0].mxu0 %v8301
    %v8391 = vpop.f32.mrb[0].mxu0
    %v8392 = vadd.f32 0.0, %v8391
    %v8393 = vpop.f32.mrb[0].mxu0
    %v8394 = vpop.f32.mrb[0].mxu0
    %v8395 = vadd.f32 0.0, %v8394
    %v8396 = vpop.f32.mrb[0].mxu0
    %8397 = vmatprep.mubr.bf16.mxu0 0
    %8398 = vmatmul.mubr.bf16.gmra.mrb[0].mxu0 %v8304
    %v8399 = vpop.f32.mrb[0].mxu0
    %v8400 = vadd.f32 0.0, %v8399
    %v8401 = vpop.f32.mrb[0].mxu0
    %v8402 = vpop.f32.mrb[0].mxu0
    %v8403 = vadd.f32 0.0, %v8402
    %v8404 = vpop.f32.mrb[0].mxu0
    %8405 = vmatprep.mubr.bf16.mxu0 0
    %8406 = vmatmul.mubr.bf16.gmra.mrb[0].mxu0 %v8307
    %v8407 = vpop.f32.mrb[0].mxu0
    %v8408 = vadd.f32 0.0, %v8407
    %v8409 = vpop.f32.mrb[0].mxu0
    %v8410 = vpop.f32.mrb[0].mxu0
    %v8411 = vadd.f32 0.0, %v8410
    %v8412 = vpop.f32.mrb[0].mxu0
    %8413 = vdwg.mxu0
    %v8414 = vadd.f32 %v8248, %v8344
    %v8415 = vadd.f32 %v8249, %v8347
    %v8416 = vadd.f32 %v8250, %v8352
    %v8417 = vadd.f32 %v8251, %v8355
    %v8418 = vadd.f32 %v8252, %v8360
    %v8419 = vadd.f32 %v8253, %v8363
    %v8420 = vadd.f32 %v8254, %v8368
    %v8421 = vadd.f32 %v8255, %v8371
    %v8422 = vadd.f32 %v8256, %v8376
    %v8423 = vadd.f32 %v8257, %v8379
    %v8424 = vadd.f32 %v8258, %v8384
    %v8425 = vadd.f32 %v8259, %v8387
    %v8426 = vadd.f32 %v8260, %v8392
    %v8427 = vadd.f32 %v8261, %v8395
    %v8428 = vadd.f32 %v8262, %v8400
    %v8429 = vadd.f32 %v8263, %v8403
    %v8430 = vadd.f32 %v8264, %v8408
    %v8431 = vadd.f32 %v8265, %v8411
    %v8432 = vld [vmem:[%s4 + $0x3] sm:$0x1]
    %v8433 = vlaneseq
    %v8434 = vshrl.u32 %v8433, 7
    %v8435 = vsub.s32 0, %v8434
    %v8436 = vrot.slane %v8432, %v8435
    %v8437 = vadd.f32 %v8414, %v8436
    %v8438 = vadd.f32 %v8415, %v8436
    %v8439 = vadd.f32 %v8416, %v8436
    %v8440 = vadd.f32 %v8417, %v8436
    %v8441 = vadd.f32 %v8418, %v8436
    %v8442 = vadd.f32 %v8419, %v8436
    %v8443 = vadd.f32 %v8420, %v8436
    %v8444 = vadd.f32 %v8421, %v8436
    %v8445 = vadd.f32 %v8422, %v8436
    %v8446 = vadd.f32 %v8423, %v8436
    %v8447 = vadd.f32 %v8424, %v8436
    %v8448 = vadd.f32 %v8425, %v8436
    %v8449 = vadd.f32 %v8426, %v8436
    %v8450 = vadd.f32 %v8427, %v8436
    %v8451 = vadd.f32 %v8428, %v8436
    %v8452 = vadd.f32 %v8429, %v8436
    %v8453 = vadd.f32 %v8430, %v8436
    %v8454 = vadd.f32 %v8431, %v8436
    %v8455 = vmax.f32 %v8437, 0.0
    %v8456 = vmax.f32 %v8438, 0.0
    %v8457 = vmax.f32 %v8439, 0.0
    %v8458 = vmax.f32 %v8440, 0.0
    %v8459 = vmax.f32 %v8441, 0.0
    %v8460 = vmax.f32 %v8442, 0.0
    %v8461 = vmax.f32 %v8443, 0.0
    %v8462 = vmax.f32 %v8444, 0.0
    %v8463 = vmax.f32 %v8445, 0.0
    %v8464 = vmax.f32 %v8446, 0.0
    %v8465 = vmax.f32 %v8447, 0.0
    %v8466 = vmax.f32 %v8448, 0.0
    %v8467 = vmax.f32 %v8449, 0.0
    %v8468 = vmax.f32 %v8450, 0.0
    %v8469 = vmax.f32 %v8451, 0.0
    %v8470 = vmax.f32 %v8452, 0.0
    %v8471 = vmax.f32 %v8453, 0.0
    %v8472 = vmax.f32 %v8454, 0.0
    %v8473 = vsel %vm930, %v8455, 0.0
    %v8474 = vsel %vm930, %v8456, 0.0
    %v8475 = vadd.f32 %v8473, %v8474
    %v8476 = vsel %vm930, %v8457, 0.0
    %v8477 = vadd.f32 %v8475, %v8476
    %v8478 = vsel %vm930, %v8458, 0.0
    %v8479 = vadd.f32 %v8477, %v8478
    %v8480 = vsel %vm930, %v8459, 0.0
    %v8481 = vadd.f32 %v8479, %v8480
    %v8482 = vsel %vm930, %v8460, 0.0
    %v8483 = vadd.f32 %v8481, %v8482
    %v8484 = vsel %vm930, %v8461, 0.0
    %v8485 = vadd.f32 %v8483, %v8484
    %v8486 = vsel %vm930, %v8462, 0.0
    %v8487 = vadd.f32 %v8485, %v8486
    %v8488 = vsel %vm930, %v8463, 0.0
    %v8489 = vadd.f32 %v8487, %v8488
    %v8490 = vsel %vm930, %v8464, 0.0
    %v8491 = vadd.f32 %v8489, %v8490
    %v8492 = vsel %vm930, %v8465, 0.0
    %v8493 = vadd.f32 %v8491, %v8492
    %v8494 = vsel %vm930, %v8466, 0.0
    %v8495 = vadd.f32 %v8493, %v8494
    %v8496 = vsel %vm930, %v8467, 0.0
    %v8497 = vadd.f32 %v8495, %v8496
    %v8498 = vsel %vm930, %v8468, 0.0
    %v8499 = vadd.f32 %v8497, %v8498
    %v8500 = vsel %vm930, %v8469, 0.0
    %v8501 = vadd.f32 %v8499, %v8500
    %v8502 = vsel %vm930, %v8470, 0.0
    %v8503 = vadd.f32 %v8501, %v8502
    %v8504 = vsel %vm930, %v8471, 0.0
    %v8505 = vadd.f32 %v8503, %v8504
    %v8506 = vsel %vm930, %v8472, 0.0
    %v8507 = vadd.f32 %v8505, %v8506
    %v8508 = vrot.slane %v8507, 4
    %v8509 = vadd.f32 %v8507, %v8508
    %v8510 = vrot.slane %v8509, 2
    %v8511 = vadd.f32 %v8509, %v8510
    %v8512 = vrot.slane %v8511, 1
    %v8513 = vadd.f32 %v8511, %v8512
    %v8514 = vmul.f32 %v8455, %v8455
    %v8515 = vmul.f32 %v8456, %v8456
    %v8516 = vmul.f32 %v8457, %v8457
    %v8517 = vmul.f32 %v8458, %v8458
    %v8518 = vmul.f32 %v8459, %v8459
    %v8519 = vmul.f32 %v8460, %v8460
    %v8520 = vmul.f32 %v8461, %v8461
    %v8521 = vmul.f32 %v8462, %v8462
    %v8522 = vmul.f32 %v8463, %v8463
    %v8523 = vmul.f32 %v8464, %v8464
    %v8524 = vmul.f32 %v8465, %v8465
    %v8525 = vmul.f32 %v8466, %v8466
    %v8526 = vmul.f32 %v8467, %v8467
    %v8527 = vmul.f32 %v8468, %v8468
    %v8528 = vmul.f32 %v8469, %v8469
    %v8529 = vmul.f32 %v8470, %v8470
    %v8530 = vmul.f32 %v8471, %v8471
    %v8531 = vmul.f32 %v8472, %v8472
    %v8532 = vsel %vm930, %v8514, 0.0
    %v8533 = vsel %vm930, %v8515, 0.0
    %v8534 = vadd.f32 %v8532, %v8533
    %v8535 = vsel %vm930, %v8516, 0.0
    %v8536 = vadd.f32 %v8534, %v8535
    %v8537 = vsel %vm930, %v8517, 0.0
    %v8538 = vadd.f32 %v8536, %v8537
    %v8539 = vsel %vm930, %v8518, 0.0
    %v8540 = vadd.f32 %v8538, %v8539
    %v8541 = vsel %vm930, %v8519, 0.0
    %v8542 = vadd.f32 %v8540, %v8541
    %v8543 = vsel %vm930, %v8520, 0.0
    %v8544 = vadd.f32 %v8542, %v8543
    %v8545 = vsel %vm930, %v8521, 0.0
    %v8546 = vadd.f32 %v8544, %v8545
    %v8547 = vsel %vm930, %v8522, 0.0
    %v8548 = vadd.f32 %v8546, %v8547
    %v8549 = vsel %vm930, %v8523, 0.0
    %v8550 = vadd.f32 %v8548, %v8549
    %v8551 = vsel %vm930, %v8524, 0.0
    %v8552 = vadd.f32 %v8550, %v8551
    %v8553 = vsel %vm930, %v8525, 0.0
    %v8554 = vadd.f32 %v8552, %v8553
    %v8555 = vsel %vm930, %v8526, 0.0
    %v8556 = vadd.f32 %v8554, %v8555
    %v8557 = vsel %vm930, %v8527, 0.0
    %v8558 = vadd.f32 %v8556, %v8557
    %v8559 = vsel %vm930, %v8528, 0.0
    %v8560 = vadd.f32 %v8558, %v8559
    %v8561 = vsel %vm930, %v8529, 0.0
    %v8562 = vadd.f32 %v8560, %v8561
    %v8563 = vsel %vm930, %v8530, 0.0
    %v8564 = vadd.f32 %v8562, %v8563
    %v8565 = vsel %vm930, %v8531, 0.0
    %v8566 = vadd.f32 %v8564, %v8565
    %v8567 = vrot.slane %v8566, 4
    %v8568 = vadd.f32 %v8566, %v8567
    %v8569 = vrot.slane %v8568, 2
    %v8570 = vadd.f32 %v8568, %v8569
    %v8571 = vrot.slane %v8570, 1
    %v8572 = vadd.f32 %v8570, %v8571
    %v8573 = vmul.f32 %v8513, 0.0069444445
    %v8574 = vmul.f32 %v8572, 0.0069444445
    %v8575 = vmul.f32 %v8573, %v8573
    %v8576 = vsub.f32 %v8574, %v8575
    %v8577 = vmax.f32 %v8576, 0.0
    %v8578 = vsub.f32 %v8455, %v8573
    %v8579 = vsub.f32 %v8456, %v8573
    %v8580 = vsub.f32 %v8457, %v8573
    %v8581 = vsub.f32 %v8458, %v8573
    %v8582 = vsub.f32 %v8459, %v8573
    %v8583 = vsub.f32 %v8460, %v8573
    %v8584 = vsub.f32 %v8461, %v8573
    %v8585 = vsub.f32 %v8462, %v8573
    %v8586 = vsub.f32 %v8463, %v8573
    %v8587 = vsub.f32 %v8464, %v8573
    %v8588 = vsub.f32 %v8465, %v8573
    %v8589 = vsub.f32 %v8466, %v8573
    %v8590 = vsub.f32 %v8467, %v8573
    %v8591 = vsub.f32 %v8468, %v8573
    %v8592 = vsub.f32 %v8469, %v8573
    %v8593 = vsub.f32 %v8470, %v8573
    %v8594 = vsub.f32 %v8471, %v8573
    %v8595 = vsub.f32 %v8472, %v8573
    %v8596 = vadd.f32 %v8577, 1e-05
    %v8597 = vrsqrt.pop %v8596
    %v8598 = vmul.f32 %v8578, %v8597
    %v8599 = vmul.f32 %v8579, %v8597
    %v8600 = vmul.f32 %v8580, %v8597
    %v8601 = vmul.f32 %v8581, %v8597
    %v8602 = vmul.f32 %v8582, %v8597
    %v8603 = vmul.f32 %v8583, %v8597
    %v8604 = vmul.f32 %v8584, %v8597
    %v8605 = vmul.f32 %v8585, %v8597
    %v8606 = vmul.f32 %v8586, %v8597
    %v8607 = vmul.f32 %v8587, %v8597
    %v8608 = vmul.f32 %v8588, %v8597
    %v8609 = vmul.f32 %v8589, %v8597
    %v8610 = vmul.f32 %v8590, %v8597
    %v8611 = vmul.f32 %v8591, %v8597
    %v8612 = vmul.f32 %v8592, %v8597
    %v8613 = vmul.f32 %v8593, %v8597
    %v8614 = vmul.f32 %v8594, %v8597
    %v8615 = vmul.f32 %v8595, %v8597
    %v8616 = vld [vmem:[%s4 + $0x4] sm:$0x1]
    %v8617 = vlaneseq
    %v8618 = vshrl.u32 %v8617, 7
    %v8619 = vsub.s32 0, %v8618
    %v8620 = vrot.slane %v8616, %v8619
    %v8621 = vmul.f32 %v8598, %v8620
    %v8622 = vmul.f32 %v8599, %v8620
    %v8623 = vmul.f32 %v8600, %v8620
    %v8624 = vmul.f32 %v8601, %v8620
    %v8625 = vmul.f32 %v8602, %v8620
    %v8626 = vmul.f32 %v8603, %v8620
    %v8627 = vmul.f32 %v8604, %v8620
    %v8628 = vmul.f32 %v8605, %v8620
    %v8629 = vmul.f32 %v8606, %v8620
    %v8630 = vmul.f32 %v8607, %v8620
    %v8631 = vmul.f32 %v8608, %v8620
    %v8632 = vmul.f32 %v8609, %v8620
    %v8633 = vmul.f32 %v8610, %v8620
    %v8634 = vmul.f32 %v8611, %v8620
    %v8635 = vmul.f32 %v8612, %v8620
    %v8636 = vmul.f32 %v8613, %v8620
    %v8637 = vmul.f32 %v8614, %v8620
    %v8638 = vmul.f32 %v8615, %v8620
    %v8639 = vld [vmem:[%s4 + $0x5] sm:$0x1]
    %v8640 = vlaneseq
    %v8641 = vshrl.u32 %v8640, 7
    %v8642 = vsub.s32 0, %v8641
    %v8643 = vrot.slane %v8639, %v8642
    %v8644 = vadd.f32 %v8621, %v8643
    %v8645 = vadd.f32 %v8622, %v8643
    %v8646 = vadd.f32 %v8623, %v8643
    %v8647 = vadd.f32 %v8624, %v8643
    %v8648 = vadd.f32 %v8625, %v8643
    %v8649 = vadd.f32 %v8626, %v8643
    %v8650 = vadd.f32 %v8627, %v8643
    %v8651 = vadd.f32 %v8628, %v8643
    %v8652 = vadd.f32 %v8629, %v8643
    %v8653 = vadd.f32 %v8630, %v8643
    %v8654 = vadd.f32 %v8631, %v8643
    %v8655 = vadd.f32 %v8632, %v8643
    %v8656 = vadd.f32 %v8633, %v8643
    %v8657 = vadd.f32 %v8634, %v8643
    %v8658 = vadd.f32 %v8635, %v8643
    %v8659 = vadd.f32 %v8636, %v8643
    %v8660 = vadd.f32 %v8637, %v8643
    %v8661 = vadd.f32 %v8638, %v8643
    %v8662 = vpack.c.bf16 %v8645, %v8644
    %v8663 = vpack.c.bf16 %v8647, %v8646
    %v8664 = vpack.c.bf16 %v8649, %v8648
    %v8665 = vpack.c.bf16 %v8651, %v8650
    %v8666 = vpack.c.bf16 %v8653, %v8652
    %v8667 = vpack.c.bf16 %v8655, %v8654
    %v8668 = vpack.c.bf16 %v8657, %v8656
    %v8669 = vpack.c.bf16 %v8659, %v8658
    %v8670 = vpack.c.bf16 %v8661, %v8660
    %v8671 = vld [vmem:[%s1 + $0xf30] sm:$0xff]
    %v8672 = vld [vmem:[%s1 + $0xf48] sm:$0xff]
    %v8673 = vld [vmem:[%s1 + $0xf60] sm:$0xff]
    %v8674 = vld [vmem:[%s1 + $0xf78] sm:$0xff]
    %v8675 = vld [vmem:[%s1 + $0xf90] sm:$0xff]
    %v8676 = vld [vmem:[%s1 + $0xfa8] sm:$0xff]
    %v8677 = vld [vmem:[%s1 + $0xfc0] sm:$0xff]
    %v8678 = vld [vmem:[%s1 + $0xfd8] sm:$0xff]
    %v8679 = vld [vmem:[%s1 + $0xff0] sm:$0xff]
    %v8680 = vld [vmem:[%s1 + $0x1008] sm:$0xff]
    %v8681 = vld [vmem:[%s1 + $0x1020] sm:$0xff]
    %v8682 = vld [vmem:[%s1 + $0x1038] sm:$0xff]
    %v8683 = vld [vmem:[%s1 + $0x1050] sm:$0xff]
    %v8684 = vld [vmem:[%s1 + $0x1068] sm:$0xff]
    %v8685 = vld [vmem:[%s1 + $0x1080] sm:$0xff]
    %v8686 = vld [vmem:[%s1 + $0x1098] sm:$0xff]
    %v8687 = vld [vmem:[%s1 + $0x10b0] sm:$0xff]
    %v8688 = vld [vmem:[%s1 + $0x10c8] sm:$0xff]
    %v8707 = vunpack.c.l.b16 %v8671
    %v8708 = vunpack.c.h.b16 %v8671
    %v8709 = vunpack.c.l.b16 %v8672
    %v8710 = vunpack.c.h.b16 %v8672
    %v8711 = vunpack.c.l.b16 %v8673
    %v8712 = vunpack.c.h.b16 %v8673
    %v8713 = vunpack.c.l.b16 %v8674
    %v8714 = vunpack.c.h.b16 %v8674
    %v8715 = vunpack.c.l.b16 %v8675
    %v8716 = vunpack.c.h.b16 %v8675
    %v8717 = vunpack.c.l.b16 %v8676
    %v8718 = vunpack.c.h.b16 %v8676
    %v8719 = vunpack.c.l.b16 %v8677
    %v8720 = vunpack.c.h.b16 %v8677
    %v8721 = vunpack.c.l.b16 %v8678
    %v8722 = vunpack.c.h.b16 %v8678
    %v8723 = vunpack.c.l.b16 %v8679
    %v8724 = vunpack.c.h.b16 %v8679
    %v8725 = vunpack.c.l.b16 %v8680
    %v8726 = vunpack.c.h.b16 %v8680
    %v8727 = vunpack.c.l.b16 %v8681
    %v8728 = vunpack.c.h.b16 %v8681
    %v8729 = vunpack.c.l.b16 %v8682
    %v8730 = vunpack.c.h.b16 %v8682
    %v8731 = vunpack.c.l.b16 %v8683
    %v8732 = vunpack.c.h.b16 %v8683
    %v8733 = vunpack.c.l.b16 %v8684
    %v8734 = vunpack.c.h.b16 %v8684
    %v8735 = vunpack.c.l.b16 %v8685
    %v8736 = vunpack.c.h.b16 %v8685
    %v8737 = vunpack.c.l.b16 %v8686
    %v8738 = vunpack.c.h.b16 %v8686
    %v8739 = vunpack.c.l.b16 %v8687
    %v8740 = vunpack.c.h.b16 %v8687
    %v8741 = vunpack.c.l.b16 %v8688
    %v8742 = vunpack.c.h.b16 %v8688
    %v8743 = vpack.c.b16 %v8709, %v8707
    %v8744 = vpack.c.b16 %v8710, %v8708
    %v8745 = vpack.c.b16 %v8713, %v8711
    %v8746 = vpack.c.b16 %v8714, %v8712
    %v8747 = vpack.c.b16 %v8717, %v8715
    %v8748 = vpack.c.b16 %v8718, %v8716
    %v8749 = vpack.c.b16 %v8721, %v8719
    %v8750 = vpack.c.b16 %v8722, %v8720
    %v8751 = vpack.c.b16 %v8725, %v8723
    %v8752 = vpack.c.b16 %v8726, %v8724
    %v8753 = vpack.c.b16 %v8729, %v8727
    %v8754 = vpack.c.b16 %v8730, %v8728
    %v8755 = vpack.c.b16 %v8733, %v8731
    %v8756 = vpack.c.b16 %v8734, %v8732
    %v8757 = vpack.c.b16 %v8737, %v8735
    %v8758 = vpack.c.b16 %v8738, %v8736
    %v8759 = vpack.c.b16 %v8741, %v8739
    %v8760 = vpack.c.b16 %v8742, %v8740
    %vm8770 = vcmask 130048
    %v8772 = vsel %vm8770, %v8744, 0
    %v8775 = vsel %vm8770, %v8746, 0
    %v8778 = vsel %vm8770, %v8748, 0
    %v8781 = vsel %vm8770, %v8750, 0
    %v8784 = vsel %vm8770, %v8752, 0
    %v8787 = vsel %vm8770, %v8754, 0
    %v8790 = vsel %vm8770, %v8756, 0
    %v8793 = vsel %vm8770, %v8758, 0
    %v8796 = vsel %vm8770, %v8760, 0
    %8798 = vmatprep.subr.bf16.mxu0 0
    %8799 = vmatpush1.bf16.msra.mxu0 %v8662
    %8800 = vmatprep.subr.bf16.mxu0 0
    %8801 = vmatpush1.bf16.msra.mxu0 %v8663
    %8802 = vmatprep.subr.bf16.mxu0 0
    %8803 = vmatpush1.bf16.msra.mxu0 %v8664
    %8804 = vmatprep.subr.bf16.mxu0 0
    %8805 = vmatpush1.bf16.msra.mxu0 %v8665
    %8806 = vmatprep.subr.bf16.mxu0 0
    %8807 = vmatpush1.bf16.msra.mxu0 %v8666
    %8808 = vmatprep.subr.bf16.mxu0 0
    %8809 = vmatpush1.bf16.msra.mxu0 %v8667
    %8810 = vmatprep.subr.bf16.mxu0 0
    %8811 = vmatpush1.bf16.msra.mxu0 %v8668
    %8812 = vmatprep.subr.bf16.mxu0 0
    %8813 = vmatpush1.bf16.msra.mxu0 %v8669
    %8814 = vmatprep.subr.bf16.mxu0 0
    %8815 = vmatpush1.bf16.msra.mxu0 %v8670
    %8816 = vmatprep.subr.bf16.mxu0 0
    %8817 = vmatpush1.bf16.msra.mxu0 0
    %8818 = vmatprep.subr.bf16.mxu0 0
    %8819 = vmatpush1.bf16.msra.mxu0 0
    %8820 = vmatprep.subr.bf16.mxu0 0
    %8821 = vmatpush1.bf16.msra.mxu0 0
    %8822 = vmatprep.subr.bf16.mxu0 0
    %8823 = vmatpush1.bf16.msra.mxu0 0
    %8824 = vmatprep.subr.bf16.mxu0 0
    %8825 = vmatpush1.bf16.msra.mxu0 0
    %8826 = vmatprep.subr.bf16.mxu0 0
    %8827 = vmatpush1.bf16.msra.mxu0 0
    %8828 = vmatprep.subr.bf16.mxu0 0
    %8829 = vmatpush1.bf16.msra.mxu0 0
    %8830 = vmatprep.mubr.bf16.mxu0 %v8772
    %8831 = vmatmul.mubr.bf16.gmra.mrb[0].mxu0 %v8743
    %v8832 = vpop.f32.mrb[0].mxu0
    %v8833 = vadd.f32 0.0, %v8832
    %v8834 = vpop.f32.mrb[0].mxu0
    %v8835 = vpop.f32.mrb[0].mxu0
    %v8836 = vadd.f32 0.0, %v8835
    %v8837 = vpop.f32.mrb[0].mxu0
    %8838 = vmatprep.mubr.bf16.mxu0 %v8775
    %8839 = vmatmul.mubr.bf16.gmra.mrb[0].mxu0 %v8745
    %v8840 = vpop.f32.mrb[0].mxu0
    %v8841 = vadd.f32 0.0, %v8840
    %v8842 = vpop.f32.mrb[0].mxu0
    %v8843 = vpop.f32.mrb[0].mxu0
    %v8844 = vadd.f32 0.0, %v8843
    %v8845 = vpop.f32.mrb[0].mxu0
    %8846 = vmatprep.mubr.bf16.mxu0 %v8778
    %8847 = vmatmul.mubr.bf16.gmra.mrb[0].mxu0 %v8747
    %v8848 = vpop.f32.mrb[0].mxu0
    %v8849 = vadd.f32 0.0, %v8848
    %v8850 = vpop.f32.mrb[0].mxu0
    %v8851 = vpop.f32.mrb[0].mxu0
    %v8852 = vadd.f32 0.0, %v8851
    %v8853 = vpop.f32.mrb[0].mxu0
    %8854 = vmatprep.mubr.bf16.mxu0 %v8781
    %8855 = vmatmul.mubr.bf16.gmra.mrb[0].mxu0 %v8749
    %v8856 = vpop.f32.mrb[0].mxu0
    %v8857 = vadd.f32 0.0, %v8856
    %v8858 = vpop.f32.mrb[0].mxu0
    %v8859 = vpop.f32.mrb[0].mxu0
    %v8860 = vadd.f32 0.0, %v8859
    %v8861 = vpop.f32.mrb[0].mxu0
    %8862 = vmatprep.mubr.bf16.mxu0 %v8784
    %8863 = vmatmul.mubr.bf16.gmra.mrb[0].mxu0 %v8751
    %v8864 = vpop.f32.mrb[0].mxu0
    %v8865 = vadd.f32 0.0, %v8864
    %v8866 = vpop.f32.mrb[0].mxu0
    %v8867 = vpop.f32.mrb[0].mxu0
    %v8868 = vadd.f32 0.0, %v8867
    %v8869 = vpop.f32.mrb[0].mxu0
    %8870 = vmatprep.mubr.bf16.mxu0 %v8787
    %8871 = vmatmul.mubr.bf16.gmra.mrb[0].mxu0 %v8753
    %v8872 = vpop.f32.mrb[0].mxu0
    %v8873 = vadd.f32 0.0, %v8872
    %v8874 = vpop.f32.mrb[0].mxu0
    %v8875 = vpop.f32.mrb[0].mxu0
    %v8876 = vadd.f32 0.0, %v8875
    %v8877 = vpop.f32.mrb[0].mxu0
    %8878 = vmatprep.mubr.bf16.mxu0 %v8790
    %8879 = vmatmul.mubr.bf16.gmra.mrb[0].mxu0 %v8755
    %v8880 = vpop.f32.mrb[0].mxu0
    %v8881 = vadd.f32 0.0, %v8880
    %v8882 = vpop.f32.mrb[0].mxu0
    %v8883 = vpop.f32.mrb[0].mxu0
    %v8884 = vadd.f32 0.0, %v8883
    %v8885 = vpop.f32.mrb[0].mxu0
    %8886 = vmatprep.mubr.bf16.mxu0 %v8793
    %8887 = vmatmul.mubr.bf16.gmra.mrb[0].mxu0 %v8757
    %v8888 = vpop.f32.mrb[0].mxu0
    %v8889 = vadd.f32 0.0, %v8888
    %v8890 = vpop.f32.mrb[0].mxu0
    %v8891 = vpop.f32.mrb[0].mxu0
    %v8892 = vadd.f32 0.0, %v8891
    %v8893 = vpop.f32.mrb[0].mxu0
    %8894 = vmatprep.mubr.bf16.mxu0 %v8796
    %8895 = vmatmul.mubr.bf16.gmra.mrb[0].mxu0 %v8759
    %v8896 = vpop.f32.mrb[0].mxu0
    %v8897 = vadd.f32 0.0, %v8896
    %v8898 = vpop.f32.mrb[0].mxu0
    %v8899 = vpop.f32.mrb[0].mxu0
    %v8900 = vadd.f32 0.0, %v8899
    %v8901 = vpop.f32.mrb[0].mxu0
    %8902 = vdwg.mxu0
    %v8903 = vpack.c.bf16 %v8836, %v8833
    %v8904 = vpack.c.bf16 %v8844, %v8841
    %v8905 = vpack.c.bf16 %v8852, %v8849
    %v8906 = vpack.c.bf16 %v8860, %v8857
    %v8907 = vpack.c.bf16 %v8868, %v8865
    %v8908 = vpack.c.bf16 %v8876, %v8873
    %v8909 = vpack.c.bf16 %v8884, %v8881
    %v8910 = vpack.c.bf16 %v8892, %v8889
    %v8911 = vpack.c.bf16 %v8900, %v8897
    %v8912 = vld [vmem:[%s2 + $0x98] sm:$0xf]
    %v8913 = vld [vmem:[%s2 + $0x9c] sm:$0xf]
    %v8914 = vld [vmem:[%s2 + $0xa0] sm:$0xf]
    %v8915 = vld [vmem:[%s2 + $0xa4] sm:$0xf]
    %v8916 = vld [vmem:[%s2 + $0xa8] sm:$0xf]
    %v8917 = vld [vmem:[%s2 + $0xac] sm:$0xf]
    %v8918 = vld [vmem:[%s2 + $0xb0] sm:$0xf]
    %v8919 = vld [vmem:[%s2 + $0xb4] sm:$0xf]
    %v8924 = vunpack.c.l.b16 %v8916
    %v8925 = vunpack.c.l.b16 %v8917
    %v8926 = vunpack.c.l.b16 %v8918
    %v8927 = vunpack.c.l.b16 %v8919
    %v8928 = vpack.c.b16 %v8925, %v8924
    %v8929 = vpack.c.b16 %v8927, %v8926
    %v8933 = vsel %vm930, %v8904, 0
    %8935 = vmatprep.subr.bf16.mxu0 0
    %8936 = vmatpush1.bf16.msra.mxu0 %v8928
    %8937 = vmatprep.subr.bf16.mxu0 0
    %8938 = vmatpush1.bf16.msra.mxu0 %v8929
    %8939 = vmatprep.subr.bf16.mxu0 0
    %8940 = vmatpush1.bf16.msra.mxu0 0
    %8941 = vmatprep.subr.bf16.mxu0 0
    %8942 = vmatpush1.bf16.msra.mxu0 0
    %8943 = vmatprep.subr.bf16.mxu0 0
    %8944 = vmatpush1.bf16.msra.mxu0 0
    %8945 = vmatprep.subr.bf16.mxu0 0
    %8946 = vmatpush1.bf16.msra.mxu0 0
    %8947 = vmatprep.subr.bf16.mxu0 0
    %8948 = vmatpush1.bf16.msra.mxu0 0
    %8949 = vmatprep.subr.bf16.mxu0 0
    %8950 = vmatpush1.bf16.msra.mxu0 0
    %8951 = vmatprep.subr.bf16.mxu0 0
    %8952 = vmatpush1.bf16.msra.mxu0 0
    %8953 = vmatprep.subr.bf16.mxu0 0
    %8954 = vmatpush1.bf16.msra.mxu0 0
    %8955 = vmatprep.subr.bf16.mxu0 0
    %8956 = vmatpush1.bf16.msra.mxu0 0
    %8957 = vmatprep.subr.bf16.mxu0 0
    %8958 = vmatpush1.bf16.msra.mxu0 0
    %8959 = vmatprep.subr.bf16.mxu0 0
    %8960 = vmatpush1.bf16.msra.mxu0 0
    %8961 = vmatprep.subr.bf16.mxu0 0
    %8962 = vmatpush1.bf16.msra.mxu0 0
    %8963 = vmatprep.subr.bf16.mxu0 0
    %8964 = vmatpush1.bf16.msra.mxu0 0
    %8965 = vmatprep.subr.bf16.mxu0 0
    %8966 = vmatpush1.bf16.msra.mxu0 0
    %8967 = vmatprep.mubr.bf16.mxu0 0
    %8968 = vmatmul.mubr.bf16.gmra.mrb[0].mxu0 %v8933
    %v8969 = vpop.f32.mrb[0].mxu0
    %v8970 = vadd.f32 0.0, %v8969
    %v8971 = vpop.f32.mrb[0].mxu0
    %v8972 = vpop.f32.mrb[0].mxu0
    %v8973 = vadd.f32 0.0, %v8972
    %v8974 = vpop.f32.mrb[0].mxu0
    %8975 = vdwg.mxu0
    %v8980 = vunpack.c.l.b16 %v8912
    %v8981 = vunpack.c.l.b16 %v8913
    %v8982 = vunpack.c.l.b16 %v8914
    %v8983 = vunpack.c.l.b16 %v8915
    %v8984 = vpack.c.b16 %v8981, %v8980
    %v8985 = vpack.c.b16 %v8983, %v8982
    %v8989 = vsel %vm930, %v8903, 0
    %8991 = vmatprep.subr.bf16.mxu0 0
    %8992 = vmatpush1.bf16.msra.mxu0 %v8984
    %8993 = vmatprep.subr.bf16.mxu0 0
    %8994 = vmatpush1.bf16.msra.mxu0 %v8985
    %8995 = vmatprep.subr.bf16.mxu0 0
    %8996 = vmatpush1.bf16.msra.mxu0 0
    %8997 = vmatprep.subr.bf16.mxu0 0
    %8998 = vmatpush1.bf16.msra.mxu0 0
    %8999 = vmatprep.subr.bf16.mxu0 0
    %9000 = vmatpush1.bf16.msra.mxu0 0
    %9001 = vmatprep.subr.bf16.mxu0 0
    %9002 = vmatpush1.bf16.msra.mxu0 0
    %9003 = vmatprep.subr.bf16.mxu0 0
    %9004 = vmatpush1.bf16.msra.mxu0 0
    %9005 = vmatprep.subr.bf16.mxu0 0
    %9006 = vmatpush1.bf16.msra.mxu0 0
    %9007 = vmatprep.subr.bf16.mxu0 0
    %9008 = vmatpush1.bf16.msra.mxu0 0
    %9009 = vmatprep.subr.bf16.mxu0 0
    %9010 = vmatpush1.bf16.msra.mxu0 0
    %9011 = vmatprep.subr.bf16.mxu0 0
    %9012 = vmatpush1.bf16.msra.mxu0 0
    %9013 = vmatprep.subr.bf16.mxu0 0
    %9014 = vmatpush1.bf16.msra.mxu0 0
    %9015 = vmatprep.subr.bf16.mxu0 0
    %9016 = vmatpush1.bf16.msra.mxu0 0
    %9017 = vmatprep.subr.bf16.mxu0 0
    %9018 = vmatpush1.bf16.msra.mxu0 0
    %9019 = vmatprep.subr.bf16.mxu0 0
    %9020 = vmatpush1.bf16.msra.mxu0 0
    %9021 = vmatprep.subr.bf16.mxu0 0
    %9022 = vmatpush1.bf16.msra.mxu0 0
    %9023 = vmatprep.mubr.bf16.mxu0 0
    %9024 = vmatmul.mubr.bf16.gmra.mrb[0].mxu0 %v8989
    %v9025 = vpop.f32.mrb[0].mxu0
    %v9026 = vadd.f32 %v8970, %v9025
    %v9027 = vpop.f32.mrb[0].mxu0
    %v9028 = vpop.f32.mrb[0].mxu0
    %v9029 = vadd.f32 %v8973, %v9028
    %v9030 = vpop.f32.mrb[0].mxu0
    %9031 = vdwg.mxu0
    %v9032 = vld [vmem:[%s2 + $0xb8] sm:$0xf]
    %v9033 = vld [vmem:[%s2 + $0xbc] sm:$0xf]
    %v9034 = vld [vmem:[%s2 + $0xc0] sm:$0xf]
    %v9035 = vld [vmem:[%s2 + $0xc4] sm:$0xf]
    %v9040 = vunpack.c.l.b16 %v9032
    %v9041 = vunpack.c.l.b16 %v9033
    %v9042 = vunpack.c.l.b16 %v9034
    %v9043 = vunpack.c.l.b16 %v9035
    %v9044 = vpack.c.b16 %v9041, %v9040
    %v9045 = vpack.c.b16 %v9043, %v9042
    %v9049 = vsel %vm930, %v8905, 0
    %9051 = vmatprep.subr.bf16.mxu0 0
    %9052 = vmatpush1.bf16.msra.mxu0 %v9044
    %9053 = vmatprep.subr.bf16.mxu0 0
    %9054 = vmatpush1.bf16.msra.mxu0 %v9045
    %9055 = vmatprep.subr.bf16.mxu0 0
    %9056 = vmatpush1.bf16.msra.mxu0 0
    %9057 = vmatprep.subr.bf16.mxu0 0
    %9058 = vmatpush1.bf16.msra.mxu0 0
    %9059 = vmatprep.subr.bf16.mxu0 0
    %9060 = vmatpush1.bf16.msra.mxu0 0
    %9061 = vmatprep.subr.bf16.mxu0 0
    %9062 = vmatpush1.bf16.msra.mxu0 0
    %9063 = vmatprep.subr.bf16.mxu0 0
    %9064 = vmatpush1.bf16.msra.mxu0 0
    %9065 = vmatprep.subr.bf16.mxu0 0
    %9066 = vmatpush1.bf16.msra.mxu0 0
    %9067 = vmatprep.subr.bf16.mxu0 0
    %9068 = vmatpush1.bf16.msra.mxu0 0
    %9069 = vmatprep.subr.bf16.mxu0 0
    %9070 = vmatpush1.bf16.msra.mxu0 0
    %9071 = vmatprep.subr.bf16.mxu0 0
    %9072 = vmatpush1.bf16.msra.mxu0 0
    %9073 = vmatprep.subr.bf16.mxu0 0
    %9074 = vmatpush1.bf16.msra.mxu0 0
    %9075 = vmatprep.subr.bf16.mxu0 0
    %9076 = vmatpush1.bf16.msra.mxu0 0
    %9077 = vmatprep.subr.bf16.mxu0 0
    %9078 = vmatpush1.bf16.msra.mxu0 0
    %9079 = vmatprep.subr.bf16.mxu0 0
    %9080 = vmatpush1.bf16.msra.mxu0 0
    %9081 = vmatprep.subr.bf16.mxu0 0
    %9082 = vmatpush1.bf16.msra.mxu0 0
    %9083 = vmatprep.mubr.bf16.mxu0 0
    %9084 = vmatmul.mubr.bf16.gmra.mrb[0].mxu0 %v9049
    %v9085 = vpop.f32.mrb[0].mxu0
    %v9086 = vadd.f32 0.0, %v9085
    %v9087 = vpop.f32.mrb[0].mxu0
    %v9088 = vpop.f32.mrb[0].mxu0
    %v9089 = vadd.f32 0.0, %v9088
    %v9090 = vpop.f32.mrb[0].mxu0
    %9091 = vdwg.mxu0
    %v9092 = vadd.f32 %v9026, %v9086
    %v9093 = vadd.f32 %v9029, %v9089
    %v9094 = vld [vmem:[%s2 + $0xc8] sm:$0xf]
    %v9095 = vld [vmem:[%s2 + $0xcc] sm:$0xf]
    %v9096 = vld [vmem:[%s2 + $0xd0] sm:$0xf]
    %v9097 = vld [vmem:[%s2 + $0xd4] sm:$0xf]
    %v9102 = vunpack.c.l.b16 %v9094
    %v9103 = vunpack.c.l.b16 %v9095
    %v9104 = vunpack.c.l.b16 %v9096
    %v9105 = vunpack.c.l.b16 %v9097
    %v9106 = vpack.c.b16 %v9103, %v9102
    %v9107 = vpack.c.b16 %v9105, %v9104
    %v9111 = vsel %vm930, %v8906, 0
    %9113 = vmatprep.subr.bf16.mxu0 0
    %9114 = vmatpush1.bf16.msra.mxu0 %v9106
    %9115 = vmatprep.subr.bf16.mxu0 0
    %9116 = vmatpush1.bf16.msra.mxu0 %v9107
    %9117 = vmatprep.subr.bf16.mxu0 0
    %9118 = vmatpush1.bf16.msra.mxu0 0
    %9119 = vmatprep.subr.bf16.mxu0 0
    %9120 = vmatpush1.bf16.msra.mxu0 0
    %9121 = vmatprep.subr.bf16.mxu0 0
    %9122 = vmatpush1.bf16.msra.mxu0 0
    %9123 = vmatprep.subr.bf16.mxu0 0
    %9124 = vmatpush1.bf16.msra.mxu0 0
    %9125 = vmatprep.subr.bf16.mxu0 0
    %9126 = vmatpush1.bf16.msra.mxu0 0
    %9127 = vmatprep.subr.bf16.mxu0 0
    %9128 = vmatpush1.bf16.msra.mxu0 0
    %9129 = vmatprep.subr.bf16.mxu0 0
    %9130 = vmatpush1.bf16.msra.mxu0 0
    %9131 = vmatprep.subr.bf16.mxu0 0
    %9132 = vmatpush1.bf16.msra.mxu0 0
    %9133 = vmatprep.subr.bf16.mxu0 0
    %9134 = vmatpush1.bf16.msra.mxu0 0
    %9135 = vmatprep.subr.bf16.mxu0 0
    %9136 = vmatpush1.bf16.msra.mxu0 0
    %9137 = vmatprep.subr.bf16.mxu0 0
    %9138 = vmatpush1.bf16.msra.mxu0 0
    %9139 = vmatprep.subr.bf16.mxu0 0
    %9140 = vmatpush1.bf16.msra.mxu0 0
    %9141 = vmatprep.subr.bf16.mxu0 0
    %9142 = vmatpush1.bf16.msra.mxu0 0
    %9143 = vmatprep.subr.bf16.mxu0 0
    %9144 = vmatpush1.bf16.msra.mxu0 0
    %9145 = vmatprep.mubr.bf16.mxu0 0
    %9146 = vmatmul.mubr.bf16.gmra.mrb[0].mxu0 %v9111
    %v9147 = vpop.f32.mrb[0].mxu0
    %v9148 = vadd.f32 0.0, %v9147
    %v9149 = vpop.f32.mrb[0].mxu0
    %v9150 = vpop.f32.mrb[0].mxu0
    %v9151 = vadd.f32 0.0, %v9150
    %v9152 = vpop.f32.mrb[0].mxu0
    %9153 = vdwg.mxu0
    %v9154 = vadd.f32 %v9092, %v9148
    %v9155 = vadd.f32 %v9093, %v9151
    %v9156 = vld [vmem:[%s2 + $0xd8] sm:$0xf]
    %v9157 = vld [vmem:[%s2 + $0xdc] sm:$0xf]
    %v9158 = vld [vmem:[%s2 + $0xe0] sm:$0xf]
    %v9159 = vld [vmem:[%s2 + $0xe4] sm:$0xf]
    %v9164 = vunpack.c.l.b16 %v9156
    %v9165 = vunpack.c.l.b16 %v9157
    %v9166 = vunpack.c.l.b16 %v9158
    %v9167 = vunpack.c.l.b16 %v9159
    %v9168 = vpack.c.b16 %v9165, %v9164
    %v9169 = vpack.c.b16 %v9167, %v9166
    %v9173 = vsel %vm930, %v8907, 0
    %9175 = vmatprep.subr.bf16.mxu0 0
    %9176 = vmatpush1.bf16.msra.mxu0 %v9168
    %9177 = vmatprep.subr.bf16.mxu0 0
    %9178 = vmatpush1.bf16.msra.mxu0 %v9169
    %9179 = vmatprep.subr.bf16.mxu0 0
    %9180 = vmatpush1.bf16.msra.mxu0 0
    %9181 = vmatprep.subr.bf16.mxu0 0
    %9182 = vmatpush1.bf16.msra.mxu0 0
    %9183 = vmatprep.subr.bf16.mxu0 0
    %9184 = vmatpush1.bf16.msra.mxu0 0
    %9185 = vmatprep.subr.bf16.mxu0 0
    %9186 = vmatpush1.bf16.msra.mxu0 0
    %9187 = vmatprep.subr.bf16.mxu0 0
    %9188 = vmatpush1.bf16.msra.mxu0 0
    %9189 = vmatprep.subr.bf16.mxu0 0
    %9190 = vmatpush1.bf16.msra.mxu0 0
    %9191 = vmatprep.subr.bf16.mxu0 0
    %9192 = vmatpush1.bf16.msra.mxu0 0
    %9193 = vmatprep.subr.bf16.mxu0 0
    %9194 = vmatpush1.bf16.msra.mxu0 0
    %9195 = vmatprep.subr.bf16.mxu0 0
    %9196 = vmatpush1.bf16.msra.mxu0 0
    %9197 = vmatprep.subr.bf16.mxu0 0
    %9198 = vmatpush1.bf16.msra.mxu0 0
    %9199 = vmatprep.subr.bf16.mxu0 0
    %9200 = vmatpush1.bf16.msra.mxu0 0
    %9201 = vmatprep.subr.bf16.mxu0 0
    %9202 = vmatpush1.bf16.msra.mxu0 0
    %9203 = vmatprep.subr.bf16.mxu0 0
    %9204 = vmatpush1.bf16.msra.mxu0 0
    %9205 = vmatprep.subr.bf16.mxu0 0
    %9206 = vmatpush1.bf16.msra.mxu0 0
    %9207 = vmatprep.mubr.bf16.mxu0 0
    %9208 = vmatmul.mubr.bf16.gmra.mrb[0].mxu0 %v9173
    %v9209 = vpop.f32.mrb[0].mxu0
    %v9210 = vadd.f32 0.0, %v9209
    %v9211 = vpop.f32.mrb[0].mxu0
    %v9212 = vpop.f32.mrb[0].mxu0
    %v9213 = vadd.f32 0.0, %v9212
    %v9214 = vpop.f32.mrb[0].mxu0
    %9215 = vdwg.mxu0
    %v9216 = vadd.f32 %v9154, %v9210
    %v9217 = vadd.f32 %v9155, %v9213
    %v9218 = vld [vmem:[%s2 + $0xe8] sm:$0xf]
    %v9219 = vld [vmem:[%s2 + $0xec] sm:$0xf]
    %v9220 = vld [vmem:[%s2 + $0xf0] sm:$0xf]
    %v9221 = vld [vmem:[%s2 + $0xf4] sm:$0xf]
    %v9226 = vunpack.c.l.b16 %v9218
    %v9227 = vunpack.c.l.b16 %v9219
    %v9228 = vunpack.c.l.b16 %v9220
    %v9229 = vunpack.c.l.b16 %v9221
    %v9230 = vpack.c.b16 %v9227, %v9226
    %v9231 = vpack.c.b16 %v9229, %v9228
    %v9235 = vsel %vm930, %v8908, 0
    %9237 = vmatprep.subr.bf16.mxu0 0
    %9238 = vmatpush1.bf16.msra.mxu0 %v9230
    %9239 = vmatprep.subr.bf16.mxu0 0
    %9240 = vmatpush1.bf16.msra.mxu0 %v9231
    %9241 = vmatprep.subr.bf16.mxu0 0
    %9242 = vmatpush1.bf16.msra.mxu0 0
    %9243 = vmatprep.subr.bf16.mxu0 0
    %9244 = vmatpush1.bf16.msra.mxu0 0
    %9245 = vmatprep.subr.bf16.mxu0 0
    %9246 = vmatpush1.bf16.msra.mxu0 0
    %9247 = vmatprep.subr.bf16.mxu0 0
    %9248 = vmatpush1.bf16.msra.mxu0 0
    %9249 = vmatprep.subr.bf16.mxu0 0
    %9250 = vmatpush1.bf16.msra.mxu0 0
    %9251 = vmatprep.subr.bf16.mxu0 0
    %9252 = vmatpush1.bf16.msra.mxu0 0
    %9253 = vmatprep.subr.bf16.mxu0 0
    %9254 = vmatpush1.bf16.msra.mxu0 0
    %9255 = vmatprep.subr.bf16.mxu0 0
    %9256 = vmatpush1.bf16.msra.mxu0 0
    %9257 = vmatprep.subr.bf16.mxu0 0
    %9258 = vmatpush1.bf16.msra.mxu0 0
    %9259 = vmatprep.subr.bf16.mxu0 0
    %9260 = vmatpush1.bf16.msra.mxu0 0
    %9261 = vmatprep.subr.bf16.mxu0 0
    %9262 = vmatpush1.bf16.msra.mxu0 0
    %9263 = vmatprep.subr.bf16.mxu0 0
    %9264 = vmatpush1.bf16.msra.mxu0 0
    %9265 = vmatprep.subr.bf16.mxu0 0
    %9266 = vmatpush1.bf16.msra.mxu0 0
    %9267 = vmatprep.subr.bf16.mxu0 0
    %9268 = vmatpush1.bf16.msra.mxu0 0
    %9269 = vmatprep.mubr.bf16.mxu0 0
    %9270 = vmatmul.mubr.bf16.gmra.mrb[0].mxu0 %v9235
    %v9271 = vpop.f32.mrb[0].mxu0
    %v9272 = vadd.f32 0.0, %v9271
    %v9273 = vpop.f32.mrb[0].mxu0
    %v9274 = vpop.f32.mrb[0].mxu0
    %v9275 = vadd.f32 0.0, %v9274
    %v9276 = vpop.f32.mrb[0].mxu0
    %9277 = vdwg.mxu0
    %v9278 = vadd.f32 %v9216, %v9272
    %v9279 = vadd.f32 %v9217, %v9275
    %v9280 = vld [vmem:[%s2 + $0xf8] sm:$0xf]
    %v9281 = vld [vmem:[%s2 + $0xfc] sm:$0xf]
    %v9282 = vld [vmem:[%s2 + $0x100] sm:$0xf]
    %v9283 = vld [vmem:[%s2 + $0x104] sm:$0xf]
    %v9288 = vunpack.c.l.b16 %v9280
    %v9289 = vunpack.c.l.b16 %v9281
    %v9290 = vunpack.c.l.b16 %v9282
    %v9291 = vunpack.c.l.b16 %v9283
    %v9292 = vpack.c.b16 %v9289, %v9288
    %v9293 = vpack.c.b16 %v9291, %v9290
    %v9297 = vsel %vm930, %v8909, 0
    %9299 = vmatprep.subr.bf16.mxu0 0
    %9300 = vmatpush1.bf16.msra.mxu0 %v9292
    %9301 = vmatprep.subr.bf16.mxu0 0
    %9302 = vmatpush1.bf16.msra.mxu0 %v9293
    %9303 = vmatprep.subr.bf16.mxu0 0
    %9304 = vmatpush1.bf16.msra.mxu0 0
    %9305 = vmatprep.subr.bf16.mxu0 0
    %9306 = vmatpush1.bf16.msra.mxu0 0
    %9307 = vmatprep.subr.bf16.mxu0 0
    %9308 = vmatpush1.bf16.msra.mxu0 0
    %9309 = vmatprep.subr.bf16.mxu0 0
    %9310 = vmatpush1.bf16.msra.mxu0 0
    %9311 = vmatprep.subr.bf16.mxu0 0
    %9312 = vmatpush1.bf16.msra.mxu0 0
    %9313 = vmatprep.subr.bf16.mxu0 0
    %9314 = vmatpush1.bf16.msra.mxu0 0
    %9315 = vmatprep.subr.bf16.mxu0 0
    %9316 = vmatpush1.bf16.msra.mxu0 0
    %9317 = vmatprep.subr.bf16.mxu0 0
    %9318 = vmatpush1.bf16.msra.mxu0 0
    %9319 = vmatprep.subr.bf16.mxu0 0
    %9320 = vmatpush1.bf16.msra.mxu0 0
    %9321 = vmatprep.subr.bf16.mxu0 0
    %9322 = vmatpush1.bf16.msra.mxu0 0
    %9323 = vmatprep.subr.bf16.mxu0 0
    %9324 = vmatpush1.bf16.msra.mxu0 0
    %9325 = vmatprep.subr.bf16.mxu0 0
    %9326 = vmatpush1.bf16.msra.mxu0 0
    %9327 = vmatprep.subr.bf16.mxu0 0
    %9328 = vmatpush1.bf16.msra.mxu0 0
    %9329 = vmatprep.subr.bf16.mxu0 0
    %9330 = vmatpush1.bf16.msra.mxu0 0
    %9331 = vmatprep.mubr.bf16.mxu0 0
    %9332 = vmatmul.mubr.bf16.gmra.mrb[0].mxu0 %v9297
    %v9333 = vpop.f32.mrb[0].mxu0
    %v9334 = vadd.f32 0.0, %v9333
    %v9335 = vpop.f32.mrb[0].mxu0
    %v9336 = vpop.f32.mrb[0].mxu0
    %v9337 = vadd.f32 0.0, %v9336
    %v9338 = vpop.f32.mrb[0].mxu0
    %9339 = vdwg.mxu0
    %v9340 = vadd.f32 %v9278, %v9334
    %v9341 = vadd.f32 %v9279, %v9337
    %v9342 = vld [vmem:[%s2 + $0x108] sm:$0xf]
    %v9343 = vld [vmem:[%s2 + $0x10c] sm:$0xf]
    %v9344 = vld [vmem:[%s2 + $0x110] sm:$0xf]
    %v9345 = vld [vmem:[%s2 + $0x114] sm:$0xf]
    %v9350 = vunpack.c.l.b16 %v9342
    %v9351 = vunpack.c.l.b16 %v9343
    %v9352 = vunpack.c.l.b16 %v9344
    %v9353 = vunpack.c.l.b16 %v9345
    %v9354 = vpack.c.b16 %v9351, %v9350
    %v9355 = vpack.c.b16 %v9353, %v9352
    %v9359 = vsel %vm930, %v8910, 0
    %9361 = vmatprep.subr.bf16.mxu0 0
    %9362 = vmatpush1.bf16.msra.mxu0 %v9354
    %9363 = vmatprep.subr.bf16.mxu0 0
    %9364 = vmatpush1.bf16.msra.mxu0 %v9355
    %9365 = vmatprep.subr.bf16.mxu0 0
    %9366 = vmatpush1.bf16.msra.mxu0 0
    %9367 = vmatprep.subr.bf16.mxu0 0
    %9368 = vmatpush1.bf16.msra.mxu0 0
    %9369 = vmatprep.subr.bf16.mxu0 0
    %9370 = vmatpush1.bf16.msra.mxu0 0
    %9371 = vmatprep.subr.bf16.mxu0 0
    %9372 = vmatpush1.bf16.msra.mxu0 0
    %9373 = vmatprep.subr.bf16.mxu0 0
    %9374 = vmatpush1.bf16.msra.mxu0 0
    %9375 = vmatprep.subr.bf16.mxu0 0
    %9376 = vmatpush1.bf16.msra.mxu0 0
    %9377 = vmatprep.subr.bf16.mxu0 0
    %9378 = vmatpush1.bf16.msra.mxu0 0
    %9379 = vmatprep.subr.bf16.mxu0 0
    %9380 = vmatpush1.bf16.msra.mxu0 0
    %9381 = vmatprep.subr.bf16.mxu0 0
    %9382 = vmatpush1.bf16.msra.mxu0 0
    %9383 = vmatprep.subr.bf16.mxu0 0
    %9384 = vmatpush1.bf16.msra.mxu0 0
    %9385 = vmatprep.subr.bf16.mxu0 0
    %9386 = vmatpush1.bf16.msra.mxu0 0
    %9387 = vmatprep.subr.bf16.mxu0 0
    %9388 = vmatpush1.bf16.msra.mxu0 0
    %9389 = vmatprep.subr.bf16.mxu0 0
    %9390 = vmatpush1.bf16.msra.mxu0 0
    %9391 = vmatprep.subr.bf16.mxu0 0
    %9392 = vmatpush1.bf16.msra.mxu0 0
    %9393 = vmatprep.mubr.bf16.mxu0 0
    %9394 = vmatmul.mubr.bf16.gmra.mrb[0].mxu0 %v9359
    %v9395 = vpop.f32.mrb[0].mxu0
    %v9396 = vadd.f32 0.0, %v9395
    %v9397 = vpop.f32.mrb[0].mxu0
    %v9398 = vpop.f32.mrb[0].mxu0
    %v9399 = vadd.f32 0.0, %v9398
    %v9400 = vpop.f32.mrb[0].mxu0
    %9401 = vdwg.mxu0
    %v9402 = vadd.f32 %v9340, %v9396
    %v9403 = vadd.f32 %v9341, %v9399
    %v9404 = vld [vmem:[%s2 + $0x118] sm:$0xf]
    %v9405 = vld [vmem:[%s2 + $0x11c] sm:$0xf]
    %v9406 = vld [vmem:[%s2 + $0x120] sm:$0xf]
    %v9407 = vld [vmem:[%s2 + $0x124] sm:$0xf]
    %v9412 = vunpack.c.l.b16 %v9404
    %v9413 = vunpack.c.l.b16 %v9405
    %v9414 = vunpack.c.l.b16 %v9406
    %v9415 = vunpack.c.l.b16 %v9407
    %v9416 = vpack.c.b16 %v9413, %v9412
    %v9417 = vpack.c.b16 %v9415, %v9414
    %v9421 = vsel %vm930, %v8911, 0
    %9423 = vmatprep.subr.bf16.mxu0 0
    %9424 = vmatpush1.bf16.msra.mxu0 %v9416
    %9425 = vmatprep.subr.bf16.mxu0 0
    %9426 = vmatpush1.bf16.msra.mxu0 %v9417
    %9427 = vmatprep.subr.bf16.mxu0 0
    %9428 = vmatpush1.bf16.msra.mxu0 0
    %9429 = vmatprep.subr.bf16.mxu0 0
    %9430 = vmatpush1.bf16.msra.mxu0 0
    %9431 = vmatprep.subr.bf16.mxu0 0
    %9432 = vmatpush1.bf16.msra.mxu0 0
    %9433 = vmatprep.subr.bf16.mxu0 0
    %9434 = vmatpush1.bf16.msra.mxu0 0
    %9435 = vmatprep.subr.bf16.mxu0 0
    %9436 = vmatpush1.bf16.msra.mxu0 0
    %9437 = vmatprep.subr.bf16.mxu0 0
    %9438 = vmatpush1.bf16.msra.mxu0 0
    %9439 = vmatprep.subr.bf16.mxu0 0
    %9440 = vmatpush1.bf16.msra.mxu0 0
    %9441 = vmatprep.subr.bf16.mxu0 0
    %9442 = vmatpush1.bf16.msra.mxu0 0
    %9443 = vmatprep.subr.bf16.mxu0 0
    %9444 = vmatpush1.bf16.msra.mxu0 0
    %9445 = vmatprep.subr.bf16.mxu0 0
    %9446 = vmatpush1.bf16.msra.mxu0 0
    %9447 = vmatprep.subr.bf16.mxu0 0
    %9448 = vmatpush1.bf16.msra.mxu0 0
    %9449 = vmatprep.subr.bf16.mxu0 0
    %9450 = vmatpush1.bf16.msra.mxu0 0
    %9451 = vmatprep.subr.bf16.mxu0 0
    %9452 = vmatpush1.bf16.msra.mxu0 0
    %9453 = vmatprep.subr.bf16.mxu0 0
    %9454 = vmatpush1.bf16.msra.mxu0 0
    %9455 = vmatprep.mubr.bf16.mxu0 0
    %9456 = vmatmul.mubr.bf16.gmra.mrb[0].mxu0 %v9421
    %v9457 = vpop.f32.mrb[0].mxu0
    %v9458 = vadd.f32 0.0, %v9457
    %v9459 = vpop.f32.mrb[0].mxu0
    %v9460 = vpop.f32.mrb[0].mxu0
    %v9461 = vadd.f32 0.0, %v9460
    %v9462 = vpop.f32.mrb[0].mxu0
    %9463 = vdwg.mxu0
    %v9464 = vadd.f32 %v9402, %v9458
    %v9465 = vadd.f32 %v9403, %v9461
    %v9466 = vld [vmem:[%s4 + $0x6] sm:$0x1]
    %v9467 = vlaneseq
    %v9468 = vshrl.u32 %v9467, 7
    %v9469 = vsub.s32 0, %v9468
    %v9470 = vrot.slane %v9466, %v9469
    %v9471 = vadd.f32 %v9464, %v9470
    %v9472 = vadd.f32 %v9465, %v9470
    %v9473 = vmax.f32 %v9471, 0.0
    %v9474 = vmax.f32 %v9472, 0.0
    %v9475 = vsel %vm930, %v9473, 0.0
    %v9476 = vsel %vm930, %v9474, 0.0
    %v9477 = vadd.f32 %v9475, %v9476
    %v9478 = vrot.slane %v9477, 4
    %v9479 = vadd.f32 %v9477, %v9478
    %v9480 = vrot.slane %v9479, 2
    %v9481 = vadd.f32 %v9479, %v9480
    %v9482 = vrot.slane %v9481, 1
    %v9483 = vadd.f32 %v9481, %v9482
    %v9484 = vmul.f32 %v9473, %v9473
    %v9485 = vmul.f32 %v9474, %v9474
    %v9486 = vsel %vm930, %v9484, 0.0
    %v9487 = vsel %vm930, %v9485, 0.0
    %v9488 = vadd.f32 %v9486, %v9487
    %v9489 = vrot.slane %v9488, 4
    %v9490 = vadd.f32 %v9488, %v9489
    %v9491 = vrot.slane %v9490, 2
    %v9492 = vadd.f32 %v9490, %v9491
    %v9493 = vrot.slane %v9492, 1
    %v9494 = vadd.f32 %v9492, %v9493
    %v9495 = vmul.f32 %v9483, 0.0625
    %v9496 = vmul.f32 %v9494, 0.0625
    %v9497 = vmul.f32 %v9495, %v9495
    %v9498 = vsub.f32 %v9496, %v9497
    %v9499 = vmax.f32 %v9498, 0.0
    %v9500 = vsub.f32 %v9473, %v9495
    %v9501 = vsub.f32 %v9474, %v9495
    %v9502 = vadd.f32 %v9499, 1e-05
    %v9503 = vrsqrt.pop %v9502
    %v9504 = vmul.f32 %v9500, %v9503
    %v9505 = vmul.f32 %v9501, %v9503
    %v9506 = vld [vmem:[%s4 + $0x7] sm:$0x1]
    %v9507 = vlaneseq
    %v9508 = vshrl.u32 %v9507, 7
    %v9509 = vsub.s32 0, %v9508
    %v9510 = vrot.slane %v9506, %v9509
    %v9511 = vmul.f32 %v9504, %v9510
    %v9512 = vmul.f32 %v9505, %v9510
    %v9513 = vld [vmem:[%s4 + $0x8] sm:$0x1]
    %v9514 = vlaneseq
    %v9515 = vshrl.u32 %v9514, 7
    %v9516 = vsub.s32 0, %v9515
    %v9517 = vrot.slane %v9513, %v9516
    %v9518 = vadd.f32 %v9511, %v9517
    %v9519 = vadd.f32 %v9512, %v9517
    %v9520 = vpack.c.bf16 %v9519, %v9518
    %v9521 = vld [vmem:[%s1 + $0x10e0] sm:$0xf]
    %v9522 = vld [vmem:[%s1 + $0x10f8] sm:$0xf]
    %v9523 = vld [vmem:[%s1 + $0x1110] sm:$0xf]
    %v9524 = vld [vmem:[%s1 + $0x1128] sm:$0xf]
    %v9525 = vld [vmem:[%s1 + $0x1140] sm:$0xf]
    %v9526 = vld [vmem:[%s1 + $0x1158] sm:$0xf]
    %v9527 = vld [vmem:[%s1 + $0x1170] sm:$0xf]
    %v9528 = vld [vmem:[%s1 + $0x1188] sm:$0xf]
    %v9537 = vunpack.c.l.b16 %v9521
    %v9538 = vunpack.c.l.b16 %v9522
    %v9539 = vunpack.c.l.b16 %v9523
    %v9540 = vunpack.c.l.b16 %v9524
    %v9541 = vunpack.c.l.b16 %v9525
    %v9542 = vunpack.c.l.b16 %v9526
    %v9543 = vunpack.c.l.b16 %v9527
    %v9544 = vunpack.c.l.b16 %v9528
    %v9545 = vpack.c.b16 %v9538, %v9537
    %v9546 = vpack.c.b16 %v9540, %v9539
    %v9547 = vpack.c.b16 %v9542, %v9541
    %v9548 = vpack.c.b16 %v9544, %v9543
    %v9550 = vsel %vm8770, %v9545, 0
    %v9553 = vsel %vm8770, %v9546, 0
    %v9556 = vsel %vm8770, %v9547, 0
    %v9559 = vsel %vm8770, %v9548, 0
    %9561 = vmatprep.subr.bf16.mxu0 0
    %9562 = vmatpush1.bf16.msra.mxu0 %v9520
    %9563 = vmatprep.subr.bf16.mxu0 0
    %9564 = vmatpush1.bf16.msra.mxu0 0
    %9565 = vmatprep.subr.bf16.mxu0 0
    %9566 = vmatpush1.bf16.msra.mxu0 0
    %9567 = vmatprep.subr.bf16.mxu0 0
    %9568 = vmatpush1.bf16.msra.mxu0 0
    %9569 = vmatprep.subr.bf16.mxu0 0
    %9570 = vmatpush1.bf16.msra.mxu0 0
    %9571 = vmatprep.subr.bf16.mxu0 0
    %9572 = vmatpush1.bf16.msra.mxu0 0
    %9573 = vmatprep.subr.bf16.mxu0 0
    %9574 = vmatpush1.bf16.msra.mxu0 0
    %9575 = vmatprep.subr.bf16.mxu0 0
    %9576 = vmatpush1.bf16.msra.mxu0 0
    %9577 = vmatprep.subr.bf16.mxu0 0
    %9578 = vmatpush1.bf16.msra.mxu0 0
    %9579 = vmatprep.subr.bf16.mxu0 0
    %9580 = vmatpush1.bf16.msra.mxu0 0
    %9581 = vmatprep.subr.bf16.mxu0 0
    %9582 = vmatpush1.bf16.msra.mxu0 0
    %9583 = vmatprep.subr.bf16.mxu0 0
    %9584 = vmatpush1.bf16.msra.mxu0 0
    %9585 = vmatprep.subr.bf16.mxu0 0
    %9586 = vmatpush1.bf16.msra.mxu0 0
    %9587 = vmatprep.subr.bf16.mxu0 0
    %9588 = vmatpush1.bf16.msra.mxu0 0
    %9589 = vmatprep.subr.bf16.mxu0 0
    %9590 = vmatpush1.bf16.msra.mxu0 0
    %9591 = vmatprep.subr.bf16.mxu0 0
    %9592 = vmatpush1.bf16.msra.mxu0 0
    %9593 = vmatprep.mubr.bf16.mxu0 0
    %9594 = vmatmul.mubr.bf16.gmra.mrb[0].mxu0 %v9550
    %v9595 = vpop.f32.mrb[0].mxu0
    %v9596 = vadd.f32 0.0, %v9595
    %v9597 = vpop.f32.mrb[0].mxu0
    %v9598 = vpop.f32.mrb[0].mxu0
    %v9599 = vadd.f32 0.0, %v9598
    %v9600 = vpop.f32.mrb[0].mxu0
    %9601 = vmatprep.mubr.bf16.mxu0 0
    %9602 = vmatmul.mubr.bf16.gmra.mrb[0].mxu0 %v9553
    %v9603 = vpop.f32.mrb[0].mxu0
    %v9604 = vadd.f32 0.0, %v9603
    %v9605 = vpop.f32.mrb[0].mxu0
    %v9606 = vpop.f32.mrb[0].mxu0
    %v9607 = vadd.f32 0.0, %v9606
    %v9608 = vpop.f32.mrb[0].mxu0
    %9609 = vmatprep.mubr.bf16.mxu0 0
    %9610 = vmatmul.mubr.bf16.gmra.mrb[0].mxu0 %v9556
    %v9611 = vpop.f32.mrb[0].mxu0
    %v9612 = vadd.f32 0.0, %v9611
    %v9613 = vpop.f32.mrb[0].mxu0
    %v9614 = vpop.f32.mrb[0].mxu0
    %v9615 = vadd.f32 0.0, %v9614
    %v9616 = vpop.f32.mrb[0].mxu0
    %9617 = vmatprep.mubr.bf16.mxu0 0
    %9618 = vmatmul.mubr.bf16.gmra.mrb[0].mxu0 %v9559
    %v9619 = vpop.f32.mrb[0].mxu0
    %v9620 = vadd.f32 0.0, %v9619
    %v9621 = vpop.f32.mrb[0].mxu0
    %v9622 = vpop.f32.mrb[0].mxu0
    %v9623 = vadd.f32 0.0, %v9622
    %v9624 = vpop.f32.mrb[0].mxu0
    %9625 = vdwg.mxu0
    %v9626 = vpack.c.bf16 %v9599, %v9596
    %v9627 = vpack.c.bf16 %v9607, %v9604
    %v9628 = vpack.c.bf16 %v9615, %v9612
    %v9629 = vpack.c.bf16 %v9623, %v9620
    %v9630 = vld [vmem:[%s2 + $0x128] sm:$0xf]
    %v9631 = vld [vmem:[%s2 + $0x12c] sm:$0xf]
    %v9632 = vld [vmem:[%s2 + $0x130] sm:$0xf]
    %v9633 = vld [vmem:[%s2 + $0x134] sm:$0xf]
    %v9634 = vld [vmem:[%s2 + $0x138] sm:$0xf]
    %v9635 = vld [vmem:[%s2 + $0x13c] sm:$0xf]
    %v9636 = vld [vmem:[%s2 + $0x140] sm:$0xf]
    %v9637 = vld [vmem:[%s2 + $0x144] sm:$0xf]
    %v9642 = vunpack.c.l.b16 %v9634
    %v9643 = vunpack.c.l.b16 %v9635
    %v9644 = vunpack.c.l.b16 %v9636
    %v9645 = vunpack.c.l.b16 %v9637
    %v9646 = vpack.c.b16 %v9643, %v9642
    %v9647 = vpack.c.b16 %v9645, %v9644
    %v9651 = vsel %vm930, %v9627, 0
    %9653 = vmatprep.subr.bf16.mxu0 0
    %9654 = vmatpush1.bf16.msra.mxu0 %v9646
    %9655 = vmatprep.subr.bf16.mxu0 0
    %9656 = vmatpush1.bf16.msra.mxu0 %v9647
    %9657 = vmatprep.subr.bf16.mxu0 0
    %9658 = vmatpush1.bf16.msra.mxu0 0
    %9659 = vmatprep.subr.bf16.mxu0 0
    %9660 = vmatpush1.bf16.msra.mxu0 0
    %9661 = vmatprep.subr.bf16.mxu0 0
    %9662 = vmatpush1.bf16.msra.mxu0 0
    %9663 = vmatprep.subr.bf16.mxu0 0
    %9664 = vmatpush1.bf16.msra.mxu0 0
    %9665 = vmatprep.subr.bf16.mxu0 0
    %9666 = vmatpush1.bf16.msra.mxu0 0
    %9667 = vmatprep.subr.bf16.mxu0 0
    %9668 = vmatpush1.bf16.msra.mxu0 0
    %9669 = vmatprep.subr.bf16.mxu0 0
    %9670 = vmatpush1.bf16.msra.mxu0 0
    %9671 = vmatprep.subr.bf16.mxu0 0
    %9672 = vmatpush1.bf16.msra.mxu0 0
    %9673 = vmatprep.subr.bf16.mxu0 0
    %9674 = vmatpush1.bf16.msra.mxu0 0
    %9675 = vmatprep.subr.bf16.mxu0 0
    %9676 = vmatpush1.bf16.msra.mxu0 0
    %9677 = vmatprep.subr.bf16.mxu0 0
    %9678 = vmatpush1.bf16.msra.mxu0 0
    %9679 = vmatprep.subr.bf16.mxu0 0
    %9680 = vmatpush1.bf16.msra.mxu0 0
    %9681 = vmatprep.subr.bf16.mxu0 0
    %9682 = vmatpush1.bf16.msra.mxu0 0
    %9683 = vmatprep.subr.bf16.mxu0 0
    %9684 = vmatpush1.bf16.msra.mxu0 0
    %9685 = vmatprep.mubr.bf16.mxu0 0
    %9686 = vmatmul.mubr.bf16.gmra.mrb[0].mxu0 %v9651
    %v9687 = vpop.f32.mrb[0].mxu0
    %v9688 = vadd.f32 0.0, %v9687
    %v9689 = vpop.f32.mrb[0].mxu0
    %v9690 = vpop.f32.mrb[0].mxu0
    %v9691 = vpop.f32.mrb[0].mxu0
    %9692 = vdwg.mxu0
    %v9697 = vunpack.c.l.b16 %v9630
    %v9698 = vunpack.c.l.b16 %v9631
    %v9699 = vunpack.c.l.b16 %v9632
    %v9700 = vunpack.c.l.b16 %v9633
    %v9701 = vpack.c.b16 %v9698, %v9697
    %v9702 = vpack.c.b16 %v9700, %v9699
    %v9706 = vsel %vm930, %v9626, 0
    %9708 = vmatprep.subr.bf16.mxu0 0
    %9709 = vmatpush1.bf16.msra.mxu0 %v9701
    %9710 = vmatprep.subr.bf16.mxu0 0
    %9711 = vmatpush1.bf16.msra.mxu0 %v9702
    %9712 = vmatprep.subr.bf16.mxu0 0
    %9713 = vmatpush1.bf16.msra.mxu0 0
    %9714 = vmatprep.subr.bf16.mxu0 0
    %9715 = vmatpush1.bf16.msra.mxu0 0
    %9716 = vmatprep.subr.bf16.mxu0 0
    %9717 = vmatpush1.bf16.msra.mxu0 0
    %9718 = vmatprep.subr.bf16.mxu0 0
    %9719 = vmatpush1.bf16.msra.mxu0 0
    %9720 = vmatprep.subr.bf16.mxu0 0
    %9721 = vmatpush1.bf16.msra.mxu0 0
    %9722 = vmatprep.subr.bf16.mxu0 0
    %9723 = vmatpush1.bf16.msra.mxu0 0
    %9724 = vmatprep.subr.bf16.mxu0 0
    %9725 = vmatpush1.bf16.msra.mxu0 0
    %9726 = vmatprep.subr.bf16.mxu0 0
    %9727 = vmatpush1.bf16.msra.mxu0 0
    %9728 = vmatprep.subr.bf16.mxu0 0
    %9729 = vmatpush1.bf16.msra.mxu0 0
    %9730 = vmatprep.subr.bf16.mxu0 0
    %9731 = vmatpush1.bf16.msra.mxu0 0
    %9732 = vmatprep.subr.bf16.mxu0 0
    %9733 = vmatpush1.bf16.msra.mxu0 0
    %9734 = vmatprep.subr.bf16.mxu0 0
    %9735 = vmatpush1.bf16.msra.mxu0 0
    %9736 = vmatprep.subr.bf16.mxu0 0
    %9737 = vmatpush1.bf16.msra.mxu0 0
    %9738 = vmatprep.subr.bf16.mxu0 0
    %9739 = vmatpush1.bf16.msra.mxu0 0
    %9740 = vmatprep.mubr.bf16.mxu0 0
    %9741 = vmatmul.mubr.bf16.gmra.mrb[0].mxu0 %v9706
    %v9742 = vpop.f32.mrb[0].mxu0
    %v9743 = vadd.f32 %v9688, %v9742
    %v9744 = vpop.f32.mrb[0].mxu0
    %v9745 = vpop.f32.mrb[0].mxu0
    %v9746 = vpop.f32.mrb[0].mxu0
    %9747 = vdwg.mxu0
    %v9748 = vld [vmem:[%s2 + $0x148] sm:$0xf]
    %v9749 = vld [vmem:[%s2 + $0x14c] sm:$0xf]
    %v9750 = vld [vmem:[%s2 + $0x150] sm:$0xf]
    %v9751 = vld [vmem:[%s2 + $0x154] sm:$0xf]
    %v9756 = vunpack.c.l.b16 %v9748
    %v9757 = vunpack.c.l.b16 %v9749
    %v9758 = vunpack.c.l.b16 %v9750
    %v9759 = vunpack.c.l.b16 %v9751
    %v9760 = vpack.c.b16 %v9757, %v9756
    %v9761 = vpack.c.b16 %v9759, %v9758
    %v9765 = vsel %vm930, %v9628, 0
    %9767 = vmatprep.subr.bf16.mxu0 0
    %9768 = vmatpush1.bf16.msra.mxu0 %v9760
    %9769 = vmatprep.subr.bf16.mxu0 0
    %9770 = vmatpush1.bf16.msra.mxu0 %v9761
    %9771 = vmatprep.subr.bf16.mxu0 0
    %9772 = vmatpush1.bf16.msra.mxu0 0
    %9773 = vmatprep.subr.bf16.mxu0 0
    %9774 = vmatpush1.bf16.msra.mxu0 0
    %9775 = vmatprep.subr.bf16.mxu0 0
    %9776 = vmatpush1.bf16.msra.mxu0 0
    %9777 = vmatprep.subr.bf16.mxu0 0
    %9778 = vmatpush1.bf16.msra.mxu0 0
    %9779 = vmatprep.subr.bf16.mxu0 0
    %9780 = vmatpush1.bf16.msra.mxu0 0
    %9781 = vmatprep.subr.bf16.mxu0 0
    %9782 = vmatpush1.bf16.msra.mxu0 0
    %9783 = vmatprep.subr.bf16.mxu0 0
    %9784 = vmatpush1.bf16.msra.mxu0 0
    %9785 = vmatprep.subr.bf16.mxu0 0
    %9786 = vmatpush1.bf16.msra.mxu0 0
    %9787 = vmatprep.subr.bf16.mxu0 0
    %9788 = vmatpush1.bf16.msra.mxu0 0
    %9789 = vmatprep.subr.bf16.mxu0 0
    %9790 = vmatpush1.bf16.msra.mxu0 0
    %9791 = vmatprep.subr.bf16.mxu0 0
    %9792 = vmatpush1.bf16.msra.mxu0 0
    %9793 = vmatprep.subr.bf16.mxu0 0
    %9794 = vmatpush1.bf16.msra.mxu0 0
    %9795 = vmatprep.subr.bf16.mxu0 0
    %9796 = vmatpush1.bf16.msra.mxu0 0
    %9797 = vmatprep.subr.bf16.mxu0 0
    %9798 = vmatpush1.bf16.msra.mxu0 0
    %9799 = vmatprep.mubr.bf16.mxu0 0
    %9800 = vmatmul.mubr.bf16.gmra.mrb[0].mxu0 %v9765
    %v9801 = vpop.f32.mrb[0].mxu0
    %v9802 = vadd.f32 0.0, %v9801
    %v9803 = vpop.f32.mrb[0].mxu0
    %v9804 = vpop.f32.mrb[0].mxu0
    %v9805 = vpop.f32.mrb[0].mxu0
    %9806 = vdwg.mxu0
    %v9807 = vadd.f32 %v9743, %v9802
    %v9808 = vld [vmem:[%s2 + $0x158] sm:$0xf]
    %v9809 = vld [vmem:[%s2 + $0x15c] sm:$0xf]
    %v9810 = vld [vmem:[%s2 + $0x160] sm:$0xf]
    %v9811 = vld [vmem:[%s2 + $0x164] sm:$0xf]
    %v9816 = vunpack.c.l.b16 %v9808
    %v9817 = vunpack.c.l.b16 %v9809
    %v9818 = vunpack.c.l.b16 %v9810
    %v9819 = vunpack.c.l.b16 %v9811
    %v9820 = vpack.c.b16 %v9817, %v9816
    %v9821 = vpack.c.b16 %v9819, %v9818
    %v9825 = vsel %vm930, %v9629, 0
    %9827 = vmatprep.subr.bf16.mxu0 0
    %9828 = vmatpush1.bf16.msra.mxu0 %v9820
    %9829 = vmatprep.subr.bf16.mxu0 0
    %9830 = vmatpush1.bf16.msra.mxu0 %v9821
    %9831 = vmatprep.subr.bf16.mxu0 0
    %9832 = vmatpush1.bf16.msra.mxu0 0
    %9833 = vmatprep.subr.bf16.mxu0 0
    %9834 = vmatpush1.bf16.msra.mxu0 0
    %9835 = vmatprep.subr.bf16.mxu0 0
    %9836 = vmatpush1.bf16.msra.mxu0 0
    %9837 = vmatprep.subr.bf16.mxu0 0
    %9838 = vmatpush1.bf16.msra.mxu0 0
    %9839 = vmatprep.subr.bf16.mxu0 0
    %9840 = vmatpush1.bf16.msra.mxu0 0
    %9841 = vmatprep.subr.bf16.mxu0 0
    %9842 = vmatpush1.bf16.msra.mxu0 0
    %9843 = vmatprep.subr.bf16.mxu0 0
    %9844 = vmatpush1.bf16.msra.mxu0 0
    %9845 = vmatprep.subr.bf16.mxu0 0
    %9846 = vmatpush1.bf16.msra.mxu0 0
    %9847 = vmatprep.subr.bf16.mxu0 0
    %9848 = vmatpush1.bf16.msra.mxu0 0
    %9849 = vmatprep.subr.bf16.mxu0 0
    %9850 = vmatpush1.bf16.msra.mxu0 0
    %9851 = vmatprep.subr.bf16.mxu0 0
    %9852 = vmatpush1.bf16.msra.mxu0 0
    %9853 = vmatprep.subr.bf16.mxu0 0
    %9854 = vmatpush1.bf16.msra.mxu0 0
    %9855 = vmatprep.subr.bf16.mxu0 0
    %9856 = vmatpush1.bf16.msra.mxu0 0
    %9857 = vmatprep.subr.bf16.mxu0 0
    %9858 = vmatpush1.bf16.msra.mxu0 0
    %9859 = vmatprep.mubr.bf16.mxu0 0
    %9860 = vmatmul.mubr.bf16.gmra.mrb[0].mxu0 %v9825
    %v9861 = vpop.f32.mrb[0].mxu0
    %v9862 = vadd.f32 0.0, %v9861
    %v9863 = vpop.f32.mrb[0].mxu0
    %v9864 = vpop.f32.mrb[0].mxu0
    %v9865 = vpop.f32.mrb[0].mxu0
    %9866 = vdwg.mxu0
    %v9867 = vadd.f32 %v9807, %v9862
    %v9868 = vld [vmem:[%s4 + $0x9] sm:$0x1]
    %v9869 = vlaneseq
    %v9870 = vshrl.u32 %v9869, 7
    %v9871 = vsub.s32 0, %v9870
    %v9872 = vrot.slane %v9868, %v9871
    %v9873 = vadd.f32 %v9867, %v9872
    %v9874 = vmax.f32 %v9873, 0.0
    %v9875 = vsel %vm1098, %v9874, 0.0
    %v9876 = vrot.slane %v9875, 4
    %v9877 = vadd.f32 %v9875, %v9876
    %v9878 = vrot.slane %v9877, 2
    %v9879 = vadd.f32 %v9877, %v9878
    %v9880 = vrot.slane %v9879, 1
    %v9881 = vadd.f32 %v9879, %v9880
    %v9882 = vmul.f32 %v9874, %v9874
    %v9883 = vsel %vm1098, %v9882, 0.0
    %v9884 = vrot.slane %v9883, 4
    %v9885 = vadd.f32 %v9883, %v9884
    %v9886 = vrot.slane %v9885, 2
    %v9887 = vadd.f32 %v9885, %v9886
    %v9888 = vrot.slane %v9887, 1
    %v9889 = vadd.f32 %v9887, %v9888
    %v9890 = vmul.f32 %v9881, 0.25
    %v9891 = vmul.f32 %v9889, 0.25
    %v9892 = vmul.f32 %v9890, %v9890
    %v9893 = vsub.f32 %v9891, %v9892
    %v9894 = vmax.f32 %v9893, 0.0
    %v9895 = vsub.f32 %v9874, %v9890
    %v9896 = vadd.f32 %v9894, 1e-05
    %v9897 = vrsqrt.pop %v9896
    %v9898 = vmul.f32 %v9895, %v9897
    %v9899 = vld [vmem:[%s4 + $0xa] sm:$0x1]
    %v9900 = vlaneseq
    %v9901 = vshrl.u32 %v9900, 7
    %v9902 = vsub.s32 0, %v9901
    %v9903 = vrot.slane %v9899, %v9902
    %v9904 = vmul.f32 %v9898, %v9903
    %v9905 = vld [vmem:[%s4 + $0xb] sm:$0x1]
    %v9906 = vlaneseq
    %v9907 = vshrl.u32 %v9906, 7
    %v9908 = vsub.s32 0, %v9907
    %v9909 = vrot.slane %v9905, %v9908
    %v9910 = vadd.f32 %v9904, %v9909
    %v9911 = vpack.c.bf16 %v9910, %v9910
    %v9912 = vld [vmem:[%s3] sm:$0x7]
    %v9913 = vld [vmem:[%s4 + $0xc] sm:$0x1]
    %v9914 = vlaneseq
    %v9915 = vshrl.u32 %v9914, 7
    %v9916 = vsub.s32 0, %v9915
    %v9917 = vrot.slane %v9913, %v9916
    %v9919 = vsel %vm930, %v9911, 0
    %v9922 = vsel %vm930, %v9912, 0
    %9924 = vmatprep.subr.bf16.mxu0 0
    %9925 = vmatpush1.bf16.xpose.msra.mxu0 %v9922
    %9926 = vmatprep.subr.bf16.mxu0 0
    %9927 = vmatpush1.bf16.xpose.msra.mxu0 0
    %9928 = vmatprep.subr.bf16.mxu0 0
    %9929 = vmatpush1.bf16.xpose.msra.mxu0 0
    %9930 = vmatprep.subr.bf16.mxu0 0
    %9931 = vmatpush1.bf16.xpose.msra.mxu0 0
    %9932 = vmatprep.subr.bf16.mxu0 0
    %9933 = vmatpush1.bf16.xpose.msra.mxu0 0
    %9934 = vmatprep.subr.bf16.mxu0 0
    %9935 = vmatpush1.bf16.xpose.msra.mxu0 0
    %9936 = vmatprep.subr.bf16.mxu0 0
    %9937 = vmatpush1.bf16.xpose.msra.mxu0 0
    %9938 = vmatprep.subr.bf16.mxu0 0
    %9939 = vmatpush1.bf16.xpose.msra.mxu0 0
    %9940 = vmatprep.subr.bf16.mxu0 0
    %9941 = vmatpush1.bf16.xpose.msra.mxu0 0
    %9942 = vmatprep.subr.bf16.mxu0 0
    %9943 = vmatpush1.bf16.xpose.msra.mxu0 0
    %9944 = vmatprep.subr.bf16.mxu0 0
    %9945 = vmatpush1.bf16.xpose.msra.mxu0 0
    %9946 = vmatprep.subr.bf16.mxu0 0
    %9947 = vmatpush1.bf16.xpose.msra.mxu0 0
    %9948 = vmatprep.subr.bf16.mxu0 0
    %9949 = vmatpush1.bf16.xpose.msra.mxu0 0
    %9950 = vmatprep.subr.bf16.mxu0 0
    %9951 = vmatpush1.bf16.xpose.msra.mxu0 0
    %9952 = vmatprep.subr.bf16.mxu0 0
    %9953 = vmatpush1.bf16.xpose.msra.mxu0 0
    %9954 = vmatprep.subr.bf16.mxu0 0
    %9955 = vmatpush1.bf16.xpose.msra.mxu0 0
    %9956 = vmatprep.mubr.bf16.mxu0 0
    %9957 = vmatmul.mubr.bf16.gmra.mrb[0].mxu0 %v9919
    %v9958 = vpop.f32.mrb[0].mxu0
    %v9959 = vadd.f32 %v9917, %v9958
    %v9960 = vpop.f32.mrb[0].mxu0
    %v9961 = vpop.f32.mrb[0].mxu0
    %v9962 = vpop.f32.mrb[0].mxu0
    %9963 = vdwg.mxu0
    %vm9964 = vcmask 35840
    %9965 = vst.msk [vmem:[#allocation2] sm:$0xf] %vm9964, %v9959
    // Predicated region
    $region22: #{_lambda_.1} parent=1 // pred_check
      _
    $region23: #{_lambda_.1} parent=1 // pred_check_branch
      %9967 = sbr.rel (0) target = $region25
    $region24: #{_lambda_.1} parent=1 // pred_region
      %s9969 = ssub.s32 64, 64
      %9970 = vsyncadd [#allocation3], %s9969
      %s9972 = sshll.u32 [#allocation2], 4
      %s9973 = int_to_ptr.vmem [resolvable:$true] %s9972
      %9975 = dma.vmem_to_hbm [thread:$0]  %s9973, 64, %s5, [#allocation3]
    $region25: #{_lambda_.1} parent=1 // pred_fallthru
      _
    // Predicated region
    $region26: #{_lambda_.1} parent=1 // pred_check
      _
    $region27: #{_lambda_.1} parent=1 // pred_check_branch
      %9977 = sbr.rel (0) target = $region29
    $region28: #{_lambda_.1} parent=1 // pred_region
      %9978 = dma.done [#allocation3], 64
    $region29: #{_lambda_.1} parent=1 // pred_fallthru
      _
    %9979 = vsyncpa [#allocation3], 1

</llo_original>
